<compile_context>
chip_gen: v7x
topology: tpu7x:2x2x1
jax: 0.10.0
libtpu: 0.0.40
codegen_flags: <defaults>
</compile_context>

<pallas_src>
import functools
import math

import jax
import jax.numpy as jnp
from jax.experimental import pallas as pl
from jax.experimental.pallas import tpu as pltpu

# TODO(synk): PyTorch nn.LayerNorm defaults to eps=1e-5; ViT-style Prenorm blocks commonly
# use 1e-6 — verify against the reference module's norm_ctor and adjust if needed.
LN_EPS = 1e-6


# ----------------------------- in-kernel helpers -----------------------------

def _layernorm(x, w, b):
    mu = jnp.mean(x, axis=-1, keepdims=True)
    var = jnp.mean(jnp.square(x - mu), axis=-1, keepdims=True)
    return (x - mu) * jax.lax.rsqrt(var + LN_EPS) * w + b


def _gelu(x):
    # TODO(synk): PyTorch nn.GELU default is the exact erf form; the tanh approximation is
    # used because erf lowering in Mosaic is not guaranteed.
    return jax.nn.gelu(x, approximate=True)


def _multihead_attention(q_src, kv_src, w_head, wo_head, bqk, *, num_heads,
                         head_dim, batch, q_len, kv_len, dim, q_per_batch):
    """Multi-head attention with per-head weight slices (no lane slicing, no concat).

    q_src:  (batch*q_len, dim) bf16 if q_per_batch else (q_len, dim) bf16 (LayerNormed).
    kv_src: (batch*kv_len, dim) bf16 (LayerNormed).
    w_head(i): (dim, head_dim) bf16; i in [0,3H): q heads, then k heads, then v heads.
               (q weights/biases are pre-scaled by 1/sqrt(head_dim) on the host.)
    wo_head(h): (head_dim, dim) bf16 output-projection rows for head h.
    bqk: (2*num_heads, head_dim) f32 — q biases then k biases.
    Returns (batch*q_len, dim) f32 == concat_h(softmax(QK^T)V) @ W_proj (biases excluded;
    the v/proj biases are folded into a single effective bias by the caller).
    """
    out = jnp.zeros((batch * q_len, dim), jnp.float32)
    for h in range(num_heads):
        qh = jnp.dot(q_src, w_head(h), preferred_element_type=jnp.float32) + bqk[h]
        kh = jnp.dot(kv_src, w_head(num_heads + h),
                     preferred_element_type=jnp.float32) + bqk[num_heads + h]
        vh = jnp.dot(kv_src, w_head(2 * num_heads + h),
                     preferred_element_type=jnp.float32)
        if q_per_batch:
            qh3 = qh.reshape(batch, q_len, head_dim)
        else:  # learnable queries shared across the batch
            qh3 = jnp.broadcast_to(qh[None], (batch, q_len, head_dim))
        kh3 = kh.reshape(batch, kv_len, head_dim)
        vh3 = vh.reshape(batch, kv_len, head_dim)
        s = jnp.einsum("bqd,bkd->bqk", qh3.astype(jnp.bfloat16),
                       kh3.astype(jnp.bfloat16),
                       preferred_element_type=jnp.float32)
        s = s - jnp.max(s, axis=-1, keepdims=True)
        p = jnp.exp(s)
        p = p * pl.reciprocal(jnp.sum(p, axis=-1, keepdims=True), approx=True)
        oh = jnp.einsum("bqk,bkd->bqd", p.astype(jnp.bfloat16),
                        vh3.astype(jnp.bfloat16),
                        preferred_element_type=jnp.float32)
        out = out + jnp.dot(oh.reshape(batch * q_len, head_dim).astype(jnp.bfloat16),
                            wo_head(h), preferred_element_type=jnp.float32)
    return out


# --------------------------------- fused kernel -------------------------------

def _fused_stack_kernel(
    # constant inputs (DMA'd once)
    x_ref, w_in_ref, posb_ref,
    # per-layer (depth-stacked, pipelined across the grid)
    blk_vec_ref, blk_bfc1_ref, blk_bqk_ref, blk_wqkv_ref, blk_wo_ref,
    blk_wfc1_ref, blk_wfc2_ref,
    # perceiver pooling (constant)
    query_ref, pool_vec_ref, pool_bfc1_ref, pool_bqk_ref, pool_wqkv_ref,
    pool_wo_ref, pool_wfc1_ref, pool_wfc2_ref,
    # output + resident activation scratch
    o_ref, acc_ref,
    *, num_heads, head_dim, dim, batch, seq, num_queries):
    layer = pl.program_id(0)

    # ---- step 0: input projection (LinearProjection) + sincos temporal pos embed ----
    @pl.when(layer == 0)
    def _():
        xin = x_ref[...].astype(jnp.bfloat16)                      # (B*S, Din)
        y = jnp.dot(xin, w_in_ref[...], preferred_element_type=jnp.float32)
        acc_ref[...] = y + posb_ref[...]                           # posb = pos + input bias

    # ---- PrenormBlock `layer` on the resident (B*S, D) activation ----
    x = acc_ref[...]
    vec = blk_vec_ref[0]          # (6, D): ln1_w, ln1_b, ln2_w, ln2_b, b_attn_eff, b_fc2
    bqk = blk_bqk_ref[0]          # (2H, hd)

    h1 = _layernorm(x, vec[0:1], vec[1:2]).astype(jnp.bfloat16)
    attn = _multihead_attention(
        h1, h1,
        lambda i: blk_wqkv_ref[0, i], lambda i: blk_wo_ref[0, i], bqk,
        num_heads=num_heads, head_dim=head_dim, batch=batch,
        q_len=seq, kv_len=seq, dim=dim, q_per_batch=True)
    x = x + attn + vec[4:5]                                        # + (b_v @ Wproj + b_proj)

    h2 = _layernorm(x, vec[2:3], vec[3:4]).astype(jnp.bfloat16)
    m = _gelu(jnp.dot(h2, blk_wfc1_ref[0], preferred_element_type=jnp.float32)
              + blk_bfc1_ref[0])
    x = x + jnp.dot(m.astype(jnp.bfloat16), blk_wfc2_ref[0],
                    preferred_element_type=jnp.float32) + vec[5:6]
    acc_ref[...] = x

    # ---- after the last block: PerceiverPoolingBlock ----
    @pl.when(layer == pl.num_programs(0) - 1)
    def _():
        pv = pool_vec_ref[...]     # (8, D): lnq_w/b, lnkv_w/b, ln2_w/b, b_attn_eff, b_fc2
        q0 = query_ref[...]        # (Nq, D) learnable queries (shared across batch)
        qn = _layernorm(q0, pv[0:1], pv[1:2]).astype(jnp.bfloat16)
        kvn = _layernorm(x, pv[2:3], pv[3:4]).astype(jnp.bfloat16)
        attn_p = _multihead_attention(
            qn, kvn,
            lambda i: pool_wqkv_ref[i], lambda i: pool_wo_ref[i], pool_bqk_ref[...],
            num_heads=num_heads, head_dim=head_dim, batch=batch,
            q_len=num_queries, kv_len=seq, dim=dim, q_per_batch=False)
        y3 = attn_p.reshape(batch, num_queries, dim) + q0[None] + pv[6:7]
        y = y3.reshape(batch * num_queries, dim)
        h2p = _layernorm(y, pv[4:5], pv[5:6]).astype(jnp.bfloat16)
        mp = _gelu(jnp.dot(h2p, pool_wfc1_ref[...], preferred_element_type=jnp.float32)
                   + pool_bfc1_ref[...])
        y = y + jnp.dot(mp.astype(jnp.bfloat16), pool_wfc2_ref[...],
                        preferred_element_type=jnp.float32) + pv[7:8]
        o_ref[...] = y.reshape(batch, num_queries, dim)


# ------------------------------ specs / wrapper --------------------------------

def _const_spec(arr):
    """Whole array, same block every grid step (DMA'd once, never re-fetched)."""
    n = arr.ndim
    return pl.BlockSpec(arr.shape, lambda d, _n=n: (0,) * _n)


def _depth_spec(arr):
    """Leading axis indexed by the depth/layer grid step (weights of layer d)."""
    n = arr.ndim
    return pl.BlockSpec((1,) + tuple(arr.shape[1:]),
                        lambda d, _n=n: (d,) + (0,) * (_n - 1))


def _cost_estimate(operands, out_shape, B, S, Din, D, H, depth, Nq):
    flops = 2 * B * S * Din * D                                   # input projection
    flops += depth * (2 * B * S * D * (4 * D)                     # q,k,v,out projections
                      + 2 * B * S * S * D * 2                     # QK^T + PV (all heads)
                      + 2 * B * S * D * (8 * D))                  # MLP fc1 + fc2
    flops += (2 * B * S * D * (2 * D) + 2 * Nq * D * D            # pool k,v / q projections
              + 2 * B * Nq * S * D * 2 + 2 * B * Nq * D * D       # pool attention + out proj
              + 2 * B * Nq * D * (8 * D))                         # pool MLP
    transcendentals = (depth * (B * H * S * S + B * S * 4 * D)
                       + B * H * Nq * S + B * Nq * 4 * D)
    bytes_accessed = sum(math.prod(a.shape) * a.dtype.itemsize for a in operands)
    bytes_accessed += math.prod(out_shape.shape) * 4
    return pl.CostEstimate(flops=int(flops), transcendentals=int(transcendentals),
                           bytes_accessed=int(bytes_accessed))


def _pack_params(params, num_heads):
    """Repack PyTorch-layout parameters into the fused kernel's layout (host-side, one-off):
    heads pre-split, 1/sqrt(hd) folded into w_q/b_q, b_v & b_proj folded into one effective
    bias, small vector params packed into single arrays, matmul weights cast to bf16."""
    D = params["input_proj"]["w"].shape[1]
    H = num_heads
    hd = D // H
    scale = 1.0 / math.sqrt(hd)

    def heads_out(w):   # (D_in, H*hd) -> (H, D_in, hd): split the output dim per head
        return jnp.transpose(w.reshape(w.shape[0], H, hd), (1, 0, 2))

    def heads_in(w):    # (H*hd, D_out) -> (H, hd, D_out): split the input dim per head
        return w.reshape(H, hd, w.shape[1])

    def attn_pack(wq, wk, wv, bq, bk, bv, wproj, bproj):
        wqkv = jnp.concatenate([heads_out(wq * scale), heads_out(wk), heads_out(wv)],
                               axis=0)                                   # (3H, D, hd)
        wo = heads_in(wproj)                                             # (H, hd, D)
        bqk = jnp.concatenate([(bq * scale).reshape(H, hd), bk.reshape(H, hd)], axis=0)
        b_eff = bv.reshape(1, D) @ wproj + bproj.reshape(1, D)           # exact fold
        return wqkv.astype(jnp.bfloat16), wo.astype(jnp.bfloat16), bqk, b_eff

    blk_vec, blk_bfc1, blk_bqk = [], [], []
    blk_wqkv, blk_wo, blk_wfc1, blk_wfc2 = [], [], [], []
    for blk in params["blocks"]:
        wq, wk, wv = blk["w_qkv"][:, :D], blk["w_qkv"][:, D:2 * D], blk["w_qkv"][:, 2 * D:]
        bq, bk, bv = blk["b_qkv"][:, :D], blk["b_qkv"][:, D:2 * D], blk["b_qkv"][:, 2 * D:]
        wqkv, wo, bqk, b_eff = attn_pack(wq, wk, wv, bq, bk, bv,
                                         blk["w_proj"], blk["b_proj"])
        blk_wqkv.append(wqkv)
        blk_wo.append(wo)
        blk_bqk.append(bqk)
        blk_vec.append(jnp.concatenate(
            [blk["ln1_w"], blk["ln1_b"], blk["ln2_w"], blk["ln2_b"], b_eff, blk["b_fc2"]],
            axis=0))
        blk_bfc1.append(blk["b_fc1"])
        blk_wfc1.append(blk["w_fc1"].astype(jnp.bfloat16))
        blk_wfc2.append(blk["w_fc2"].astype(jnp.bfloat16))

    pool = params["pool"]
    p_wk, p_wv = pool["w_kv"][:, :D], pool["w_kv"][:, D:]
    p_bk, p_bv = pool["b_kv"][:, :D], pool["b_kv"][:, D:]
    pool_wqkv, pool_wo, pool_bqk, p_beff = attn_pack(
        pool["w_q"], p_wk, p_wv, pool["b_q"], p_bk, p_bv, pool["w_proj"], pool["b_proj"])
    pool_vec = jnp.concatenate(
        [pool["lnq_w"], pool["lnq_b"], pool["lnkv_w"], pool["lnkv_b"],
         pool["ln2_w"], pool["ln2_b"], p_beff, pool["b_fc2"]], axis=0)

    return dict(
        w_in=params["input_proj"]["w"].astype(jnp.bfloat16),
        blk_vec=jnp.stack(blk_vec),            # (depth, 6, D)   f32
        blk_bfc1=jnp.stack(blk_bfc1),          # (depth, 1, 4D)  f32
        blk_bqk=jnp.stack(blk_bqk),            # (depth, 2H, hd) f32
        blk_wqkv=jnp.stack(blk_wqkv),          # (depth, 3H, D, hd) bf16
        blk_wo=jnp.stack(blk_wo),              # (depth, H, hd, D)  bf16
        blk_wfc1=jnp.stack(blk_wfc1),          # (depth, D, 4D)  bf16
        blk_wfc2=jnp.stack(blk_wfc2),          # (depth, 4D, D)  bf16
        query=pool["query"],                   # (Nq, D) f32
        pool_vec=pool_vec,                     # (8, D)  f32
        pool_bfc1=pool["b_fc1"],               # (1, 4D) f32
        pool_bqk=pool_bqk,                     # (2H, hd) f32
        pool_wqkv=pool_wqkv,                   # (3H, D, hd) bf16
        pool_wo=pool_wo,                       # (H, hd, D)  bf16
        pool_wfc1=pool["w_fc1"].astype(jnp.bfloat16),
        pool_wfc2=pool["w_fc2"].astype(jnp.bfloat16),
    )


def sincos_1d(seqlen, dim):
    # VitPosEmbed1d(is_learnable=False): fixed 1d sin-cos embedding, (seqlen, dim).
    pos = jnp.arange(seqlen, dtype=jnp.float32)
    omega = jnp.arange(dim // 2, dtype=jnp.float32) / (dim / 2.0)
    omega = 1.0 / (10000.0 ** omega)
    out = pos[:, None] * omega[None, :]
    return jnp.concatenate([jnp.sin(out), jnp.cos(out)], axis=-1)


def upt_context_perc_approximator(x, params, *, num_heads):
    """x: (batch, context_length, num_latent_tokens, input_dim) f32 -> (batch, Nq, dim)."""
    B, C, T, Din = x.shape
    D = params["input_proj"]["w"].shape[1]
    S = C * T
    depth = len(params["blocks"])
    Nq = params["pool"]["query"].shape[0]
    H = num_heads
    assert depth >= 1 and D % H == 0
    # keep sequence / query counts sublane (8) aligned so the in-kernel
    # (B*S, hd) <-> (B, S, hd) reshapes are pure relabels (no relayout).
    assert S % 8 == 0 and Nq % 8 == 0, (S, Nq)
    hd = D // H

    # host-side (XLA) prep: flatten, pos table, parameter repacking (all one-off).
    x2d = x.reshape(B * S, Din)
    pos = jnp.repeat(sincos_1d(C, D), T, axis=0)                  # (S, D), pos[cl] per nt
    # NOTE: LinearProjection(optional=True) is Identity when input_dim == dim; callers
    # can pass an identity weight / zero bias in that case — the fused matmul is exact.
    posb = jnp.tile(pos, (B, 1)) + params["input_proj"]["b"]      # pos + input bias
    pk = _pack_params(params, H)

    kern = functools.partial(_fused_stack_kernel, num_heads=H, head_dim=hd, dim=D,
                             batch=B, seq=S, num_queries=Nq)

    operands = (x2d, pk["w_in"], posb,
                pk["blk_vec"], pk["blk_bfc1"], pk["blk_bqk"], pk["blk_wqkv"],
                pk["blk_wo"], pk["blk_wfc1"], pk["blk_wfc2"],
                pk["query"], pk["pool_vec"], pk["pool_bfc1"], pk["pool_bqk"],
                pk["pool_wqkv"], pk["pool_wo"], pk["pool_wfc1"], pk["pool_wfc2"])
    in_specs = ([_const_spec(a) for a in operands[:3]]
                + [_depth_spec(a) for a in operands[3:10]]
                + [_const_spec(a) for a in operands[10:]])
    out_shape = jax.ShapeDtypeStruct((B, Nq, D), jnp.float32)

    # TODO(synk): on v7x, pipeline_mode=pl.Buffered(1) on the constant-index weight specs
    # would reclaim their second VMEM buffer; skipped here since VMEM is far from tight.
    grid_spec = pltpu.PrefetchScalarGridSpec(
        num_scalar_prefetch=0,
        grid=(depth,),                                   # one grid step per transformer block
        in_specs=in_specs,
        out_specs=pl.BlockSpec((B, Nq, D), lambda d: (0, 0, 0)),
        scratch_shapes=[pltpu.VMEM((B * S, D), jnp.float32)],     # resident activation
    )
    return pl.pallas_call(
        kern,
        out_shape=out_shape,
        grid_spec=grid_spec,
        compiler_params=pltpu.CompilerParams(
            dimension_semantics=("arbitrary",),          # layers are sequential
            vmem_limit_bytes=32 * 1024 * 1024),
        cost_estimate=_cost_estimate(operands, out_shape, B, S, Din, D, H, depth, Nq),
    )(*operands)


# ------------------------------ params / reference ------------------------------

def init_params(key, input_dim, dim, depth, num_output_tokens):
    hidden = 4 * dim
    n_keys = 1 + 4 * depth + 6
    kit = iter(jax.random.split(key, n_keys))

    def tn(shape, std=0.02):  # 'truncnormal002' init
        return std * jax.random.truncated_normal(next(kit), -2.0, 2.0, shape,
                                                 dtype=jnp.float32)

    params = {
        "input_proj": {"w": tn((input_dim, dim)), "b": jnp.zeros((1, dim), jnp.float32)},
        "blocks": [],
    }
    for _ in range(depth):
        params["blocks"].append({
            "ln1_w": jnp.ones((1, dim), jnp.float32), "ln1_b": jnp.zeros((1, dim), jnp.float32),
            "w_qkv": tn((dim, 3 * dim)), "b_qkv": jnp.zeros((1, 3 * dim), jnp.float32),
            "w_proj": tn((dim, dim)), "b_proj": jnp.zeros((1, dim), jnp.float32),
            "ln2_w": jnp.ones((1, dim), jnp.float32), "ln2_b": jnp.zeros((1, dim), jnp.float32),
            "w_fc1": tn((dim, hidden)), "b_fc1": jnp.zeros((1, hidden), jnp.float32),
            "w_fc2": tn((hidden, dim)), "b_fc2": jnp.zeros((1, dim), jnp.float32),
        })
    params["pool"] = {
        "query": tn((num_output_tokens, dim)),
        "lnq_w": jnp.ones((1, dim), jnp.float32), "lnq_b": jnp.zeros((1, dim), jnp.float32),
        "lnkv_w": jnp.ones((1, dim), jnp.float32), "lnkv_b": jnp.zeros((1, dim), jnp.float32),
        "w_q": tn((dim, dim)), "b_q": jnp.zeros((1, dim), jnp.float32),
        "w_kv": tn((dim, 2 * dim)), "b_kv": jnp.zeros((1, 2 * dim), jnp.float32),
        "w_proj": tn((dim, dim)), "b_proj": jnp.zeros((1, dim), jnp.float32),
        "ln2_w": jnp.ones((1, dim), jnp.float32), "ln2_b": jnp.zeros((1, dim), jnp.float32),
        "w_fc1": tn((dim, hidden)), "b_fc1": jnp.zeros((1, hidden), jnp.float32),
        "w_fc2": tn((hidden, dim)), "b_fc2": jnp.zeros((1, dim), jnp.float32),
    }
    return params


def _reference_forward(x, params, *, num_heads):
    """Pure-JAX (f32) reference of the same forward pass, used for a sanity check."""
    B, C, T, Din = x.shape
    D = params["input_proj"]["w"].shape[1]
    S = C * T
    H = num_heads
    hd = D // H

    def ln(a, w, b):
        mu = jnp.mean(a, -1, keepdims=True)
        var = jnp.mean(jnp.square(a - mu), -1, keepdims=True)
        return (a - mu) * jax.lax.rsqrt(var + LN_EPS) * w + b

    def mha(q, k, v):
        def split(a):
            return a.reshape(a.shape[0], a.shape[1], H, hd).transpose(0, 2, 1, 3)
        qh, kh, vh = split(q), split(k), split(v)
        s = jnp.einsum("bhqd,bhkd->bhqk", qh, kh) / math.sqrt(hd)
        p = jax.nn.softmax(s, axis=-1)
        o = jnp.einsum("bhqk,bhkd->bhqd", p, vh)
        return o.transpose(0, 2, 1, 3).reshape(q.shape[0], q.shape[1], D)

    h = x.reshape(B, S, Din) @ params["input_proj"]["w"] + params["input_proj"]["b"]
    h = h + jnp.repeat(sincos_1d(C, D), T, axis=0)[None]
    for blk in params["blocks"]:
        hn = ln(h, blk["ln1_w"], blk["ln1_b"])
        qkv = hn @ blk["w_qkv"] + blk["b_qkv"]
        q, k, v = qkv[..., :D], qkv[..., D:2 * D], qkv[..., 2 * D:]
        h = h + mha(q, k, v) @ blk["w_proj"] + blk["b_proj"]
        hn = ln(h, blk["ln2_w"], blk["ln2_b"])
        h = h + _gelu(hn @ blk["w_fc1"] + blk["b_fc1"]) @ blk["w_fc2"] + blk["b_fc2"]
    pool = params["pool"]
    q0 = jnp.broadcast_to(pool["query"][None], (B,) + pool["query"].shape)
    qn = ln(q0, pool["lnq_w"], pool["lnq_b"])
    kvn = ln(h, pool["lnkv_w"], pool["lnkv_b"])
    q = qn @ pool["w_q"] + pool["b_q"]
    kv = kvn @ pool["w_kv"] + pool["b_kv"]
    k, v = kv[..., :D], kv[..., D:]
    y = q0 + mha(q, k, v) @ pool["w_proj"] + pool["b_proj"]
    yn = ln(y, pool["ln2_w"], pool["ln2_b"])
    return y + _gelu(yn @ pool["w_fc1"] + pool["b_fc1"]) @ pool["w_fc2"] + pool["b_fc2"]


# ----------------------------------- main --------------------------------------

if __name__ == "__main__":
    batch, context_length, num_latent_tokens = 2, 4, 8          # S = cl*nt = 32
    input_dim, dim, num_heads = 96, 128, 4                       # lane-dense dim (128)
    depth, num_output_tokens = 2, 8

    key = jax.random.PRNGKey(0)
    kx, kp = jax.random.split(key)
    x = jax.random.normal(kx, (batch, context_length, num_latent_tokens, input_dim),
                          dtype=jnp.float32)
    params = init_params(kp, input_dim, dim, depth, num_output_tokens)

    fwd = jax.jit(functools.partial(upt_context_perc_approximator, num_heads=num_heads))
    out = jax.block_until_ready(fwd(x, params))
    assert out.shape == (batch, num_output_tokens, dim), out.shape
    assert bool(jnp.all(jnp.isfinite(out)))

    # sanity check against a pure-JAX f32 reference (bf16 matmuls + approx reciprocal
    # inside the kernel -> generous tolerance).
    ref = jax.block_until_ready(_reference_forward(x, params, num_heads=num_heads))
    max_err = float(jnp.max(jnp.abs(out - ref)))
    assert max_err < 5e-2, max_err

    print("KERNEL_OK")
</pallas_src>

<mosaic_0001>
module attributes {stable_mosaic.version = 11 : i64} {
  func.func @_fused_stack_kernel(%arg0: i32, %arg1: memref<64x96xf32, #tpu.memory_space<vmem>>, %arg2: memref<96x128xbf16, #tpu.memory_space<vmem>>, %arg3: memref<64x128xf32, #tpu.memory_space<vmem>>, %arg4: memref<1x6x128xf32, #tpu.memory_space<vmem>>, %arg5: memref<1x1x512xf32, #tpu.memory_space<vmem>>, %arg6: memref<1x8x32xf32, #tpu.memory_space<vmem>>, %arg7: memref<1x12x128x32xbf16, #tpu.memory_space<vmem>>, %arg8: memref<1x4x32x128xbf16, #tpu.memory_space<vmem>>, %arg9: memref<1x128x512xbf16, #tpu.memory_space<vmem>>, %arg10: memref<1x512x128xbf16, #tpu.memory_space<vmem>>, %arg11: memref<8x128xf32, #tpu.memory_space<vmem>>, %arg12: memref<8x128xf32, #tpu.memory_space<vmem>>, %arg13: memref<1x512xf32, #tpu.memory_space<vmem>>, %arg14: memref<8x32xf32, #tpu.memory_space<vmem>>, %arg15: memref<12x128x32xbf16, #tpu.memory_space<vmem>>, %arg16: memref<4x32x128xbf16, #tpu.memory_space<vmem>>, %arg17: memref<128x512xbf16, #tpu.memory_space<vmem>>, %arg18: memref<512x128xbf16, #tpu.memory_space<vmem>>, %arg19: memref<2x8x128xf32, #tpu.memory_space<vmem>>, %arg20: memref<64x128xf32, #tpu.memory_space<vmem>>) attributes {dimension_semantics = [#tpu.dimension_semantics<arbitrary>], iteration_bounds = array<i64: 2>, scalar_prefetch = 0 : i64, scratch_operands = 1 : i64, tpu.core_type = #tpu.core_type<tc>, window_params = [{pipeline_mode = #tpu.pipeline_mode<synchronous>, transform_indices = @transform_0, window_bounds = array<i64: 64, 96>}, {pipeline_mode = #tpu.pipeline_mode<synchronous>, transform_indices = @transform_1, window_bounds = array<i64: 96, 128>}, {pipeline_mode = #tpu.pipeline_mode<synchronous>, transform_indices = @transform_2, window_bounds = array<i64: 64, 128>}, {transform_indices = @transform_3, window_bounds = array<i64: 1, 6, 128>}, {transform_indices = @transform_4, window_bounds = array<i64: 1, 1, 512>}, {transform_indices = @transform_5, window_bounds = array<i64: 1, 8, 32>}, {transform_indices = @transform_6, window_bounds = array<i64: 1, 12, 128, 32>}, {transform_indices = @transform_7, window_bounds = array<i64: 1, 4, 32, 128>}, {transform_indices = @transform_8, window_bounds = array<i64: 1, 128, 512>}, {transform_indices = @transform_9, window_bounds = array<i64: 1, 512, 128>}, {pipeline_mode = #tpu.pipeline_mode<synchronous>, transform_indices = @transform_10, window_bounds = array<i64: 8, 128>}, {pipeline_mode = #tpu.pipeline_mode<synchronous>, transform_indices = @transform_11, window_bounds = array<i64: 8, 128>}, {pipeline_mode = #tpu.pipeline_mode<synchronous>, transform_indices = @transform_12, window_bounds = array<i64: 1, 512>}, {pipeline_mode = #tpu.pipeline_mode<synchronous>, transform_indices = @transform_13, window_bounds = array<i64: 8, 32>}, {pipeline_mode = #tpu.pipeline_mode<synchronous>, transform_indices = @transform_14, window_bounds = array<i64: 12, 128, 32>}, {pipeline_mode = #tpu.pipeline_mode<synchronous>, transform_indices = @transform_15, window_bounds = array<i64: 4, 32, 128>}, {pipeline_mode = #tpu.pipeline_mode<synchronous>, transform_indices = @transform_16, window_bounds = array<i64: 128, 512>}, {pipeline_mode = #tpu.pipeline_mode<synchronous>, transform_indices = @transform_17, window_bounds = array<i64: 512, 128>}, {pipeline_mode = #tpu.pipeline_mode<synchronous>, transform_indices = @transform_18, window_bounds = array<i64: 2, 8, 128>}]} {
    %c0_i32 = arith.constant 0 : i32
    %0 = arith.cmpi eq, %arg0, %c0_i32 : i32
    %1 = arith.extui %0 : i1 to i32
    %c0_i32_0 = arith.constant 0 : i32
    %2 = arith.cmpi ne, %1, %c0_i32_0 : i32
    scf.if %2 {
      %c0_121 = arith.constant 0 : index
      %c0_122 = arith.constant 0 : index
      %271 = vector.load %arg1[%c0_121, %c0_122] : memref<64x96xf32, #tpu.memory_space<vmem>>, vector<64x96xf32>
      %272 = arith.truncf %271 : vector<64x96xf32> to vector<64x96xbf16>
      %c0_123 = arith.constant 0 : index
      %c0_124 = arith.constant 0 : index
      %273 = vector.load %arg2[%c0_123, %c0_124] : memref<96x128xbf16, #tpu.memory_space<vmem>>, vector<96x128xbf16>
      %cst_125 = arith.constant dense<0.000000e+00> : vector<64x128xf32>
      %274 = tpu.matmul %272, %273, %cst_125 {dimension_numbers = #tpu.dot_dimension_numbers<[1], [0], [0], [1], [0, 0, 1, 1], [], []>} : vector<64x96xbf16>, vector<96x128xbf16>, vector<64x128xf32> -> vector<64x128xf32>
      %c0_126 = arith.constant 0 : index
      %c0_127 = arith.constant 0 : index
      %275 = vector.load %arg3[%c0_126, %c0_127] : memref<64x128xf32, #tpu.memory_space<vmem>>, vector<64x128xf32>
      %276 = arith.addf %274, %275 : vector<64x128xf32>
      %c0_128 = arith.constant 0 : index
      %c0_129 = arith.constant 0 : index
      %277 = vector.load %arg20[%c0_128, %c0_129] : memref<64x128xf32, #tpu.memory_space<vmem>>, vector<64x128xf32>
      tpu.vector_store %arg20[%c0_128, %c0_129], %276 {strides = array<i32>} : memref<64x128xf32, #tpu.memory_space<vmem>>, vector<64x128xf32>,
    } else {
    }
    %c0 = arith.constant 0 : index
    %c0_1 = arith.constant 0 : index
    %3 = vector.load %arg20[%c0, %c0_1] : memref<64x128xf32, #tpu.memory_space<vmem>>, vector<64x128xf32>
    %c0_2 = arith.constant 0 : index
    %c0_3 = arith.constant 0 : index
    %c0_4 = arith.constant 0 : index
    %4 = vector.load %arg4[%c0_2, %c0_3, %c0_4] : memref<1x6x128xf32, #tpu.memory_space<vmem>>, vector<1x6x128xf32>
    %5 = vector.shape_cast %4 : vector<1x6x128xf32> to vector<6x128xf32>
    %c0_5 = arith.constant 0 : index
    %c0_6 = arith.constant 0 : index
    %c0_7 = arith.constant 0 : index
    %6 = vector.load %arg6[%c0_5, %c0_6, %c0_7] : memref<1x8x32xf32, #tpu.memory_space<vmem>>, vector<1x8x32xf32>
    %7 = vector.shape_cast %6 : vector<1x8x32xf32> to vector<8x32xf32>
    %8 = vector.extract_strided_slice %5 {offsets = [0, 0], sizes = [1, 128], strides = [1, 1]} : vector<6x128xf32> to vector<1x128xf32>
    %9 = vector.extract_strided_slice %5 {offsets = [1, 0], sizes = [1, 128], strides = [1, 1]} : vector<6x128xf32> to vector<1x128xf32>
    %cst = arith.constant dense<0.000000e+00> : vector<64xf32>
    %10 = vector.multi_reduction <add>, %3, %cst [1] : vector<64x128xf32> to vector<64xf32>
    %11 = vector.shape_cast %10 : vector<64xf32> to vector<64x1xf32>
    %cst_8 = arith.constant 1.280000e+02 : f32
    %12 = vector.broadcast %cst_8 : f32 to vector<64x1xf32>
    %13 = arith.divf %11, %12 : vector<64x1xf32>
    %14 = vector.broadcast %13 : vector<64x1xf32> to vector<64x128xf32>
    %15 = arith.subf %3, %14 : vector<64x128xf32>
    %16 = arith.mulf %15, %15 : vector<64x128xf32>
    %cst_9 = arith.constant dense<0.000000e+00> : vector<64xf32>
    %17 = vector.multi_reduction <add>, %16, %cst_9 [1] : vector<64x128xf32> to vector<64xf32>
    %18 = vector.shape_cast %17 : vector<64xf32> to vector<64x1xf32>
    %cst_10 = arith.constant 1.280000e+02 : f32
    %19 = vector.broadcast %cst_10 : f32 to vector<64x1xf32>
    %20 = arith.divf %18, %19 : vector<64x1xf32>
    %21 = vector.broadcast %13 : vector<64x1xf32> to vector<64x128xf32>
    %22 = arith.subf %3, %21 : vector<64x128xf32>
    %cst_11 = arith.constant 9.99999997E-7 : f32
    %23 = vector.broadcast %cst_11 : f32 to vector<64x1xf32>
    %24 = arith.addf %20, %23 : vector<64x1xf32>
    %25 = math.rsqrt %24 : vector<64x1xf32>
    %26 = vector.broadcast %25 : vector<64x1xf32> to vector<64x128xf32>
    %27 = arith.mulf %22, %26 : vector<64x128xf32>
    %28 = vector.broadcast %8 : vector<1x128xf32> to vector<64x128xf32>
    %29 = arith.mulf %27, %28 : vector<64x128xf32>
    %30 = vector.broadcast %9 : vector<1x128xf32> to vector<64x128xf32>
    %31 = arith.addf %29, %30 : vector<64x128xf32>
    %32 = arith.truncf %31 : vector<64x128xf32> to vector<64x128xbf16>
    %cst_12 = arith.constant 0.000000e+00 : f32
    %33 = vector.broadcast %cst_12 : f32 to vector<64x128xf32>
    %c0_13 = arith.constant 0 : index
    %c0_14 = arith.constant 0 : index
    %c0_15 = arith.constant 0 : index
    %c0_16 = arith.constant 0 : index
    %34 = vector.load %arg7[%c0_13, %c0_14, %c0_15, %c0_16] : memref<1x12x128x32xbf16, #tpu.memory_space<vmem>>, vector<1x1x128x32xbf16>
    %35 = vector.shape_cast %34 : vector<1x1x128x32xbf16> to vector<128x32xbf16>
    %cst_17 = arith.constant dense<0.000000e+00> : vector<64x32xf32>
    %36 = tpu.matmul %32, %35, %cst_17 {dimension_numbers = #tpu.dot_dimension_numbers<[1], [0], [0], [1], [0, 0, 1, 1], [], []>} : vector<64x128xbf16>, vector<128x32xbf16>, vector<64x32xf32> -> vector<64x32xf32>
    %37 = vector.extract_strided_slice %7 {offsets = [0, 0], sizes = [1, 32], strides = [1, 1]} : vector<8x32xf32> to vector<1x32xf32>
    %38 = vector.shape_cast %37 : vector<1x32xf32> to vector<32xf32>
    %39 = vector.shape_cast %38 : vector<32xf32> to vector<1x32xf32>
    %40 = vector.broadcast %39 : vector<1x32xf32> to vector<64x32xf32>
    %41 = arith.addf %36, %40 : vector<64x32xf32>
    %c0_18 = arith.constant 0 : index
    %c4 = arith.constant 4 : index
    %c0_19 = arith.constant 0 : index
    %c0_20 = arith.constant 0 : index
    %42 = vector.load %arg7[%c0_18, %c4, %c0_19, %c0_20] : memref<1x12x128x32xbf16, #tpu.memory_space<vmem>>, vector<1x1x128x32xbf16>
    %43 = vector.shape_cast %42 : vector<1x1x128x32xbf16> to vector<128x32xbf16>
    %cst_21 = arith.constant dense<0.000000e+00> : vector<64x32xf32>
    %44 = tpu.matmul %32, %43, %cst_21 {dimension_numbers = #tpu.dot_dimension_numbers<[1], [0], [0], [1], [0, 0, 1, 1], [], []>} : vector<64x128xbf16>, vector<128x32xbf16>, vector<64x32xf32> -> vector<64x32xf32>
    %45 = vector.extract_strided_slice %7 {offsets = [4, 0], sizes = [1, 32], strides = [1, 1]} : vector<8x32xf32> to vector<1x32xf32>
    %46 = vector.shape_cast %45 : vector<1x32xf32> to vector<32xf32>
    %47 = vector.shape_cast %46 : vector<32xf32> to vector<1x32xf32>
    %48 = vector.broadcast %47 : vector<1x32xf32> to vector<64x32xf32>
    %49 = arith.addf %44, %48 : vector<64x32xf32>
    %c0_22 = arith.constant 0 : index
    %c8 = arith.constant 8 : index
    %c0_23 = arith.constant 0 : index
    %c0_24 = arith.constant 0 : index
    %50 = vector.load %arg7[%c0_22, %c8, %c0_23, %c0_24] : memref<1x12x128x32xbf16, #tpu.memory_space<vmem>>, vector<1x1x128x32xbf16>
    %51 = vector.shape_cast %50 : vector<1x1x128x32xbf16> to vector<128x32xbf16>
    %cst_25 = arith.constant dense<0.000000e+00> : vector<64x32xf32>
    %52 = tpu.matmul %32, %51, %cst_25 {dimension_numbers = #tpu.dot_dimension_numbers<[1], [0], [0], [1], [0, 0, 1, 1], [], []>} : vector<64x128xbf16>, vector<128x32xbf16>, vector<64x32xf32> -> vector<64x32xf32>
    %53 = vector.shape_cast %41 : vector<64x32xf32> to vector<2x32x32xf32>
    %54 = vector.shape_cast %49 : vector<64x32xf32> to vector<2x32x32xf32>
    %55 = vector.shape_cast %52 : vector<64x32xf32> to vector<2x32x32xf32>
    %56 = arith.truncf %53 : vector<2x32x32xf32> to vector<2x32x32xbf16>
    %57 = arith.truncf %54 : vector<2x32x32xf32> to vector<2x32x32xbf16>
    "tpu.trace_start"() <{level = 10 : i32, message = "bqd,bkd->bqk"}> : () -> ()
    %cst_26 = arith.constant dense<0.000000e+00> : vector<2x32x32xf32>
    %58 = tpu.matmul %56, %57, %cst_26 {dimension_numbers = #tpu.dot_dimension_numbers<[2], [2], [1], [1], [0, 0, 0, 1, 1, 1], [0], [0]>} : vector<2x32x32xbf16>, vector<2x32x32xbf16>, vector<2x32x32xf32> -> vector<2x32x32xf32>
    "tpu.trace_stop"() : () -> ()
    %cst_27 = arith.constant dense<0xFF800000> : vector<2x32xf32>
    %59 = vector.multi_reduction <maximumf>, %58, %cst_27 [2] : vector<2x32x32xf32> to vector<2x32xf32>
    %60 = vector.shape_cast %59 : vector<2x32xf32> to vector<2x32x1xf32>
    %61 = vector.broadcast %60 : vector<2x32x1xf32> to vector<2x32x32xf32>
    %62 = arith.subf %58, %61 : vector<2x32x32xf32>
    %63 = math.exp %62 : vector<2x32x32xf32>
    %cst_28 = arith.constant dense<0.000000e+00> : vector<2x32xf32>
    %64 = vector.multi_reduction <add>, %63, %cst_28 [2] : vector<2x32x32xf32> to vector<2x32xf32>
    %65 = vector.shape_cast %64 : vector<2x32xf32> to vector<2x32x1xf32>
    %66 = tpu.reciprocal %65 {approx = true} : vector<2x32x1xf32> -> vector<2x32x1xf32>
    %67 = vector.broadcast %66 : vector<2x32x1xf32> to vector<2x32x32xf32>
    %68 = arith.mulf %63, %67 : vector<2x32x32xf32>
    %69 = arith.truncf %68 : vector<2x32x32xf32> to vector<2x32x32xbf16>
    %70 = arith.truncf %55 : vector<2x32x32xf32> to vector<2x32x32xbf16>
    "tpu.trace_start"() <{level = 10 : i32, message = "bqk,bkd->bqd"}> : () -> ()
    %cst_29 = arith.constant dense<0.000000e+00> : vector<2x32x32xf32>
    %71 = tpu.matmul %69, %70, %cst_29 {dimension_numbers = #tpu.dot_dimension_numbers<[2], [1], [1], [2], [0, 0, 0, 1, 1, 2], [0], [0]>} : vector<2x32x32xbf16>, vector<2x32x32xbf16>, vector<2x32x32xf32> -> vector<2x32x32xf32>
    "tpu.trace_stop"() : () -> ()
    %72 = vector.shape_cast %71 : vector<2x32x32xf32> to vector<64x32xf32>
    %73 = arith.truncf %72 : vector<64x32xf32> to vector<64x32xbf16>
    %c0_30 = arith.constant 0 : index
    %c0_31 = arith.constant 0 : index
    %c0_32 = arith.constant 0 : index
    %c0_33 = arith.constant 0 : index
    %74 = vector.load %arg8[%c0_30, %c0_31, %c0_32, %c0_33] : memref<1x4x32x128xbf16, #tpu.memory_space<vmem>>, vector<1x1x32x128xbf16>
    %75 = vector.shape_cast %74 : vector<1x1x32x128xbf16> to vector<32x128xbf16>
    %cst_34 = arith.constant dense<0.000000e+00> : vector<64x128xf32>
    %76 = tpu.matmul %73, %75, %cst_34 {dimension_numbers = #tpu.dot_dimension_numbers<[1], [0], [0], [1], [0, 0, 1, 1], [], []>} : vector<64x32xbf16>, vector<32x128xbf16>, vector<64x128xf32> -> vector<64x128xf32>
    %77 = arith.addf %33, %76 : vector<64x128xf32>
    %c0_35 = arith.constant 0 : index
    %c1 = arith.constant 1 : index
    %c0_36 = arith.constant 0 : index
    %c0_37 = arith.constant 0 : index
    %78 = vector.load %arg7[%c0_35, %c1, %c0_36, %c0_37] : memref<1x12x128x32xbf16, #tpu.memory_space<vmem>>, vector<1x1x128x32xbf16>
    %79 = vector.shape_cast %78 : vector<1x1x128x32xbf16> to vector<128x32xbf16>
    %cst_38 = arith.constant dense<0.000000e+00> : vector<64x32xf32>
    %80 = tpu.matmul %32, %79, %cst_38 {dimension_numbers = #tpu.dot_dimension_numbers<[1], [0], [0], [1], [0, 0, 1, 1], [], []>} : vector<64x128xbf16>, vector<128x32xbf16>, vector<64x32xf32> -> vector<64x32xf32>
    %81 = vector.extract_strided_slice %7 {offsets = [1, 0], sizes = [1, 32], strides = [1, 1]} : vector<8x32xf32> to vector<1x32xf32>
    %82 = vector.shape_cast %81 : vector<1x32xf32> to vector<32xf32>
    %83 = vector.shape_cast %82 : vector<32xf32> to vector<1x32xf32>
    %84 = vector.broadcast %83 : vector<1x32xf32> to vector<64x32xf32>
    %85 = arith.addf %80, %84 : vector<64x32xf32>
    %c0_39 = arith.constant 0 : index
    %c5 = arith.constant 5 : index
    %c0_40 = arith.constant 0 : index
    %c0_41 = arith.constant 0 : index
    %86 = vector.load %arg7[%c0_39, %c5, %c0_40, %c0_41] : memref<1x12x128x32xbf16, #tpu.memory_space<vmem>>, vector<1x1x128x32xbf16>
    %87 = vector.shape_cast %86 : vector<1x1x128x32xbf16> to vector<128x32xbf16>
    %cst_42 = arith.constant dense<0.000000e+00> : vector<64x32xf32>
    %88 = tpu.matmul %32, %87, %cst_42 {dimension_numbers = #tpu.dot_dimension_numbers<[1], [0], [0], [1], [0, 0, 1, 1], [], []>} : vector<64x128xbf16>, vector<128x32xbf16>, vector<64x32xf32> -> vector<64x32xf32>
    %89 = vector.extract_strided_slice %7 {offsets = [5, 0], sizes = [1, 32], strides = [1, 1]} : vector<8x32xf32> to vector<1x32xf32>
    %90 = vector.shape_cast %89 : vector<1x32xf32> to vector<32xf32>
    %91 = vector.shape_cast %90 : vector<32xf32> to vector<1x32xf32>
    %92 = vector.broadcast %91 : vector<1x32xf32> to vector<64x32xf32>
    %93 = arith.addf %88, %92 : vector<64x32xf32>
    %c0_43 = arith.constant 0 : index
    %c9 = arith.constant 9 : index
    %c0_44 = arith.constant 0 : index
    %c0_45 = arith.constant 0 : index
    %94 = vector.load %arg7[%c0_43, %c9, %c0_44, %c0_45] : memref<1x12x128x32xbf16, #tpu.memory_space<vmem>>, vector<1x1x128x32xbf16>
    %95 = vector.shape_cast %94 : vector<1x1x128x32xbf16> to vector<128x32xbf16>
    %cst_46 = arith.constant dense<0.000000e+00> : vector<64x32xf32>
    %96 = tpu.matmul %32, %95, %cst_46 {dimension_numbers = #tpu.dot_dimension_numbers<[1], [0], [0], [1], [0, 0, 1, 1], [], []>} : vector<64x128xbf16>, vector<128x32xbf16>, vector<64x32xf32> -> vector<64x32xf32>
    %97 = vector.shape_cast %85 : vector<64x32xf32> to vector<2x32x32xf32>
    %98 = vector.shape_cast %93 : vector<64x32xf32> to vector<2x32x32xf32>
    %99 = vector.shape_cast %96 : vector<64x32xf32> to vector<2x32x32xf32>
    %100 = arith.truncf %97 : vector<2x32x32xf32> to vector<2x32x32xbf16>
    %101 = arith.truncf %98 : vector<2x32x32xf32> to vector<2x32x32xbf16>
    "tpu.trace_start"() <{level = 10 : i32, message = "bqd,bkd->bqk"}> : () -> ()
    %cst_47 = arith.constant dense<0.000000e+00> : vector<2x32x32xf32>
    %102 = tpu.matmul %100, %101, %cst_47 {dimension_numbers = #tpu.dot_dimension_numbers<[2], [2], [1], [1], [0, 0, 0, 1, 1, 1], [0], [0]>} : vector<2x32x32xbf16>, vector<2x32x32xbf16>, vector<2x32x32xf32> -> vector<2x32x32xf32>
    "tpu.trace_stop"() : () -> ()
    %cst_48 = arith.constant dense<0xFF800000> : vector<2x32xf32>
    %103 = vector.multi_reduction <maximumf>, %102, %cst_48 [2] : vector<2x32x32xf32> to vector<2x32xf32>
    %104 = vector.shape_cast %103 : vector<2x32xf32> to vector<2x32x1xf32>
    %105 = vector.broadcast %104 : vector<2x32x1xf32> to vector<2x32x32xf32>
    %106 = arith.subf %102, %105 : vector<2x32x32xf32>
    %107 = math.exp %106 : vector<2x32x32xf32>
    %cst_49 = arith.constant dense<0.000000e+00> : vector<2x32xf32>
    %108 = vector.multi_reduction <add>, %107, %cst_49 [2] : vector<2x32x32xf32> to vector<2x32xf32>
    %109 = vector.shape_cast %108 : vector<2x32xf32> to vector<2x32x1xf32>
    %110 = tpu.reciprocal %109 {approx = true} : vector<2x32x1xf32> -> vector<2x32x1xf32>
    %111 = vector.broadcast %110 : vector<2x32x1xf32> to vector<2x32x32xf32>
    %112 = arith.mulf %107, %111 : vector<2x32x32xf32>
    %113 = arith.truncf %112 : vector<2x32x32xf32> to vector<2x32x32xbf16>
    %114 = arith.truncf %99 : vector<2x32x32xf32> to vector<2x32x32xbf16>
    "tpu.trace_start"() <{level = 10 : i32, message = "bqk,bkd->bqd"}> : () -> ()
    %cst_50 = arith.constant dense<0.000000e+00> : vector<2x32x32xf32>
    %115 = tpu.matmul %113, %114, %cst_50 {dimension_numbers = #tpu.dot_dimension_numbers<[2], [1], [1], [2], [0, 0, 0, 1, 1, 2], [0], [0]>} : vector<2x32x32xbf16>, vector<2x32x32xbf16>, vector<2x32x32xf32> -> vector<2x32x32xf32>
    "tpu.trace_stop"() : () -> ()
    %116 = vector.shape_cast %115 : vector<2x32x32xf32> to vector<64x32xf32>
    %117 = arith.truncf %116 : vector<64x32xf32> to vector<64x32xbf16>
    %c0_51 = arith.constant 0 : index
    %c1_52 = arith.constant 1 : index
    %c0_53 = arith.constant 0 : index
    %c0_54 = arith.constant 0 : index
    %118 = vector.load %arg8[%c0_51, %c1_52, %c0_53, %c0_54] : memref<1x4x32x128xbf16, #tpu.memory_space<vmem>>, vector<1x1x32x128xbf16>
    %119 = vector.shape_cast %118 : vector<1x1x32x128xbf16> to vector<32x128xbf16>
    %cst_55 = arith.constant dense<0.000000e+00> : vector<64x128xf32>
    %120 = tpu.matmul %117, %119, %cst_55 {dimension_numbers = #tpu.dot_dimension_numbers<[1], [0], [0], [1], [0, 0, 1, 1], [], []>} : vector<64x32xbf16>, vector<32x128xbf16>, vector<64x128xf32> -> vector<64x128xf32>
    %121 = arith.addf %77, %120 : vector<64x128xf32>
    %c0_56 = arith.constant 0 : index
    %c2 = arith.constant 2 : index
    %c0_57 = arith.constant 0 : index
    %c0_58 = arith.constant 0 : index
    %122 = vector.load %arg7[%c0_56, %c2, %c0_57, %c0_58] : memref<1x12x128x32xbf16, #tpu.memory_space<vmem>>, vector<1x1x128x32xbf16>
    %123 = vector.shape_cast %122 : vector<1x1x128x32xbf16> to vector<128x32xbf16>
    %cst_59 = arith.constant dense<0.000000e+00> : vector<64x32xf32>
    %124 = tpu.matmul %32, %123, %cst_59 {dimension_numbers = #tpu.dot_dimension_numbers<[1], [0], [0], [1], [0, 0, 1, 1], [], []>} : vector<64x128xbf16>, vector<128x32xbf16>, vector<64x32xf32> -> vector<64x32xf32>
    %125 = vector.extract_strided_slice %7 {offsets = [2, 0], sizes = [1, 32], strides = [1, 1]} : vector<8x32xf32> to vector<1x32xf32>
    %126 = vector.shape_cast %125 : vector<1x32xf32> to vector<32xf32>
    %127 = vector.shape_cast %126 : vector<32xf32> to vector<1x32xf32>
    %128 = vector.broadcast %127 : vector<1x32xf32> to vector<64x32xf32>
    %129 = arith.addf %124, %128 : vector<64x32xf32>
    %c0_60 = arith.constant 0 : index
    %c6 = arith.constant 6 : index
    %c0_61 = arith.constant 0 : index
    %c0_62 = arith.constant 0 : index
    %130 = vector.load %arg7[%c0_60, %c6, %c0_61, %c0_62] : memref<1x12x128x32xbf16, #tpu.memory_space<vmem>>, vector<1x1x128x32xbf16>
    %131 = vector.shape_cast %130 : vector<1x1x128x32xbf16> to vector<128x32xbf16>
    %cst_63 = arith.constant dense<0.000000e+00> : vector<64x32xf32>
    %132 = tpu.matmul %32, %131, %cst_63 {dimension_numbers = #tpu.dot_dimension_numbers<[1], [0], [0], [1], [0, 0, 1, 1], [], []>} : vector<64x128xbf16>, vector<128x32xbf16>, vector<64x32xf32> -> vector<64x32xf32>
    %133 = vector.extract_strided_slice %7 {offsets = [6, 0], sizes = [1, 32], strides = [1, 1]} : vector<8x32xf32> to vector<1x32xf32>
    %134 = vector.shape_cast %133 : vector<1x32xf32> to vector<32xf32>
    %135 = vector.shape_cast %134 : vector<32xf32> to vector<1x32xf32>
    %136 = vector.broadcast %135 : vector<1x32xf32> to vector<64x32xf32>
    %137 = arith.addf %132, %136 : vector<64x32xf32>
    %c0_64 = arith.constant 0 : index
    %c10 = arith.constant 10 : index
    %c0_65 = arith.constant 0 : index
    %c0_66 = arith.constant 0 : index
    %138 = vector.load %arg7[%c0_64, %c10, %c0_65, %c0_66] : memref<1x12x128x32xbf16, #tpu.memory_space<vmem>>, vector<1x1x128x32xbf16>
    %139 = vector.shape_cast %138 : vector<1x1x128x32xbf16> to vector<128x32xbf16>
    %cst_67 = arith.constant dense<0.000000e+00> : vector<64x32xf32>
    %140 = tpu.matmul %32, %139, %cst_67 {dimension_numbers = #tpu.dot_dimension_numbers<[1], [0], [0], [1], [0, 0, 1, 1], [], []>} : vector<64x128xbf16>, vector<128x32xbf16>, vector<64x32xf32> -> vector<64x32xf32>
    %141 = vector.shape_cast %129 : vector<64x32xf32> to vector<2x32x32xf32>
    %142 = vector.shape_cast %137 : vector<64x32xf32> to vector<2x32x32xf32>
    %143 = vector.shape_cast %140 : vector<64x32xf32> to vector<2x32x32xf32>
    %144 = arith.truncf %141 : vector<2x32x32xf32> to vector<2x32x32xbf16>
    %145 = arith.truncf %142 : vector<2x32x32xf32> to vector<2x32x32xbf16>
    "tpu.trace_start"() <{level = 10 : i32, message = "bqd,bkd->bqk"}> : () -> ()
    %cst_68 = arith.constant dense<0.000000e+00> : vector<2x32x32xf32>
    %146 = tpu.matmul %144, %145, %cst_68 {dimension_numbers = #tpu.dot_dimension_numbers<[2], [2], [1], [1], [0, 0, 0, 1, 1, 1], [0], [0]>} : vector<2x32x32xbf16>, vector<2x32x32xbf16>, vector<2x32x32xf32> -> vector<2x32x32xf32>
    "tpu.trace_stop"() : () -> ()
    %cst_69 = arith.constant dense<0xFF800000> : vector<2x32xf32>
    %147 = vector.multi_reduction <maximumf>, %146, %cst_69 [2] : vector<2x32x32xf32> to vector<2x32xf32>
    %148 = vector.shape_cast %147 : vector<2x32xf32> to vector<2x32x1xf32>
    %149 = vector.broadcast %148 : vector<2x32x1xf32> to vector<2x32x32xf32>
    %150 = arith.subf %146, %149 : vector<2x32x32xf32>
    %151 = math.exp %150 : vector<2x32x32xf32>
    %cst_70 = arith.constant dense<0.000000e+00> : vector<2x32xf32>
    %152 = vector.multi_reduction <add>, %151, %cst_70 [2] : vector<2x32x32xf32> to vector<2x32xf32>
    %153 = vector.shape_cast %152 : vector<2x32xf32> to vector<2x32x1xf32>
    %154 = tpu.reciprocal %153 {approx = true} : vector<2x32x1xf32> -> vector<2x32x1xf32>
    %155 = vector.broadcast %154 : vector<2x32x1xf32> to vector<2x32x32xf32>
    %156 = arith.mulf %151, %155 : vector<2x32x32xf32>
    %157 = arith.truncf %156 : vector<2x32x32xf32> to vector<2x32x32xbf16>
    %158 = arith.truncf %143 : vector<2x32x32xf32> to vector<2x32x32xbf16>
    "tpu.trace_start"() <{level = 10 : i32, message = "bqk,bkd->bqd"}> : () -> ()
    %cst_71 = arith.constant dense<0.000000e+00> : vector<2x32x32xf32>
    %159 = tpu.matmul %157, %158, %cst_71 {dimension_numbers = #tpu.dot_dimension_numbers<[2], [1], [1], [2], [0, 0, 0, 1, 1, 2], [0], [0]>} : vector<2x32x32xbf16>, vector<2x32x32xbf16>, vector<2x32x32xf32> -> vector<2x32x32xf32>
    "tpu.trace_stop"() : () -> ()
    %160 = vector.shape_cast %159 : vector<2x32x32xf32> to vector<64x32xf32>
    %161 = arith.truncf %160 : vector<64x32xf32> to vector<64x32xbf16>
    %c0_72 = arith.constant 0 : index
    %c2_73 = arith.constant 2 : index
    %c0_74 = arith.constant 0 : index
    %c0_75 = arith.constant 0 : index
    %162 = vector.load %arg8[%c0_72, %c2_73, %c0_74, %c0_75] : memref<1x4x32x128xbf16, #tpu.memory_space<vmem>>, vector<1x1x32x128xbf16>
    %163 = vector.shape_cast %162 : vector<1x1x32x128xbf16> to vector<32x128xbf16>
    %cst_76 = arith.constant dense<0.000000e+00> : vector<64x128xf32>
    %164 = tpu.matmul %161, %163, %cst_76 {dimension_numbers = #tpu.dot_dimension_numbers<[1], [0], [0], [1], [0, 0, 1, 1], [], []>} : vector<64x32xbf16>, vector<32x128xbf16>, vector<64x128xf32> -> vector<64x128xf32>
    %165 = arith.addf %121, %164 : vector<64x128xf32>
    %c0_77 = arith.constant 0 : index
    %c3 = arith.constant 3 : index
    %c0_78 = arith.constant 0 : index
    %c0_79 = arith.constant 0 : index
    %166 = vector.load %arg7[%c0_77, %c3, %c0_78, %c0_79] : memref<1x12x128x32xbf16, #tpu.memory_space<vmem>>, vector<1x1x128x32xbf16>
    %167 = vector.shape_cast %166 : vector<1x1x128x32xbf16> to vector<128x32xbf16>
    %cst_80 = arith.constant dense<0.000000e+00> : vector<64x32xf32>
    %168 = tpu.matmul %32, %167, %cst_80 {dimension_numbers = #tpu.dot_dimension_numbers<[1], [0], [0], [1], [0, 0, 1, 1], [], []>} : vector<64x128xbf16>, vector<128x32xbf16>, vector<64x32xf32> -> vector<64x32xf32>
    %169 = vector.extract_strided_slice %7 {offsets = [3, 0], sizes = [1, 32], strides = [1, 1]} : vector<8x32xf32> to vector<1x32xf32>
    %170 = vector.shape_cast %169 : vector<1x32xf32> to vector<32xf32>
    %171 = vector.shape_cast %170 : vector<32xf32> to vector<1x32xf32>
    %172 = vector.broadcast %171 : vector<1x32xf32> to vector<64x32xf32>
    %173 = arith.addf %168, %172 : vector<64x32xf32>
    %c0_81 = arith.constant 0 : index
    %c7 = arith.constant 7 : index
    %c0_82 = arith.constant 0 : index
    %c0_83 = arith.constant 0 : index
    %174 = vector.load %arg7[%c0_81, %c7, %c0_82, %c0_83] : memref<1x12x128x32xbf16, #tpu.memory_space<vmem>>, vector<1x1x128x32xbf16>
    %175 = vector.shape_cast %174 : vector<1x1x128x32xbf16> to vector<128x32xbf16>
    %cst_84 = arith.constant dense<0.000000e+00> : vector<64x32xf32>
    %176 = tpu.matmul %32, %175, %cst_84 {dimension_numbers = #tpu.dot_dimension_numbers<[1], [0], [0], [1], [0, 0, 1, 1], [], []>} : vector<64x128xbf16>, vector<128x32xbf16>, vector<64x32xf32> -> vector<64x32xf32>
    %177 = vector.extract_strided_slice %7 {offsets = [7, 0], sizes = [1, 32], strides = [1, 1]} : vector<8x32xf32> to vector<1x32xf32>
    %178 = vector.shape_cast %177 : vector<1x32xf32> to vector<32xf32>
    %179 = vector.shape_cast %178 : vector<32xf32> to vector<1x32xf32>
    %180 = vector.broadcast %179 : vector<1x32xf32> to vector<64x32xf32>
    %181 = arith.addf %176, %180 : vector<64x32xf32>
    %c0_85 = arith.constant 0 : index
    %c11 = arith.constant 11 : index
    %c0_86 = arith.constant 0 : index
    %c0_87 = arith.constant 0 : index
    %182 = vector.load %arg7[%c0_85, %c11, %c0_86, %c0_87] : memref<1x12x128x32xbf16, #tpu.memory_space<vmem>>, vector<1x1x128x32xbf16>
    %183 = vector.shape_cast %182 : vector<1x1x128x32xbf16> to vector<128x32xbf16>
    %cst_88 = arith.constant dense<0.000000e+00> : vector<64x32xf32>
    %184 = tpu.matmul %32, %183, %cst_88 {dimension_numbers = #tpu.dot_dimension_numbers<[1], [0], [0], [1], [0, 0, 1, 1], [], []>} : vector<64x128xbf16>, vector<128x32xbf16>, vector<64x32xf32> -> vector<64x32xf32>
    %185 = vector.shape_cast %173 : vector<64x32xf32> to vector<2x32x32xf32>
    %186 = vector.shape_cast %181 : vector<64x32xf32> to vector<2x32x32xf32>
    %187 = vector.shape_cast %184 : vector<64x32xf32> to vector<2x32x32xf32>
    %188 = arith.truncf %185 : vector<2x32x32xf32> to vector<2x32x32xbf16>
    %189 = arith.truncf %186 : vector<2x32x32xf32> to vector<2x32x32xbf16>
    "tpu.trace_start"() <{level = 10 : i32, message = "bqd,bkd->bqk"}> : () -> ()
    %cst_89 = arith.constant dense<0.000000e+00> : vector<2x32x32xf32>
    %190 = tpu.matmul %188, %189, %cst_89 {dimension_numbers = #tpu.dot_dimension_numbers<[2], [2], [1], [1], [0, 0, 0, 1, 1, 1], [0], [0]>} : vector<2x32x32xbf16>, vector<2x32x32xbf16>, vector<2x32x32xf32> -> vector<2x32x32xf32>
    "tpu.trace_stop"() : () -> ()
    %cst_90 = arith.constant dense<0xFF800000> : vector<2x32xf32>
    %191 = vector.multi_reduction <maximumf>, %190, %cst_90 [2] : vector<2x32x32xf32> to vector<2x32xf32>
    %192 = vector.shape_cast %191 : vector<2x32xf32> to vector<2x32x1xf32>
    %193 = vector.broadcast %192 : vector<2x32x1xf32> to vector<2x32x32xf32>
    %194 = arith.subf %190, %193 : vector<2x32x32xf32>
    %195 = math.exp %194 : vector<2x32x32xf32>
    %cst_91 = arith.constant dense<0.000000e+00> : vector<2x32xf32>
    %196 = vector.multi_reduction <add>, %195, %cst_91 [2] : vector<2x32x32xf32> to vector<2x32xf32>
    %197 = vector.shape_cast %196 : vector<2x32xf32> to vector<2x32x1xf32>
    %198 = tpu.reciprocal %197 {approx = true} : vector<2x32x1xf32> -> vector<2x32x1xf32>
    %199 = vector.broadcast %198 : vector<2x32x1xf32> to vector<2x32x32xf32>
    %200 = arith.mulf %195, %199 : vector<2x32x32xf32>
    %201 = arith.truncf %200 : vector<2x32x32xf32> to vector<2x32x32xbf16>
    %202 = arith.truncf %187 : vector<2x32x32xf32> to vector<2x32x32xbf16>
    "tpu.trace_start"() <{level = 10 : i32, message = "bqk,bkd->bqd"}> : () -> ()
    %cst_92 = arith.constant dense<0.000000e+00> : vector<2x32x32xf32>
    %203 = tpu.matmul %201, %202, %cst_92 {dimension_numbers = #tpu.dot_dimension_numbers<[2], [1], [1], [2], [0, 0, 0, 1, 1, 2], [0], [0]>} : vector<2x32x32xbf16>, vector<2x32x32xbf16>, vector<2x32x32xf32> -> vector<2x32x32xf32>
    "tpu.trace_stop"() : () -> ()
    %204 = vector.shape_cast %203 : vector<2x32x32xf32> to vector<64x32xf32>
    %205 = arith.truncf %204 : vector<64x32xf32> to vector<64x32xbf16>
    %c0_93 = arith.constant 0 : index
    %c3_94 = arith.constant 3 : index
    %c0_95 = arith.constant 0 : index
    %c0_96 = arith.constant 0 : index
    %206 = vector.load %arg8[%c0_93, %c3_94, %c0_95, %c0_96] : memref<1x4x32x128xbf16, #tpu.memory_space<vmem>>, vector<1x1x32x128xbf16>
    %207 = vector.shape_cast %206 : vector<1x1x32x128xbf16> to vector<32x128xbf16>
    %cst_97 = arith.constant dense<0.000000e+00> : vector<64x128xf32>
    %208 = tpu.matmul %205, %207, %cst_97 {dimension_numbers = #tpu.dot_dimension_numbers<[1], [0], [0], [1], [0, 0, 1, 1], [], []>} : vector<64x32xbf16>, vector<32x128xbf16>, vector<64x128xf32> -> vector<64x128xf32>
    %209 = arith.addf %165, %208 : vector<64x128xf32>
    %210 = arith.addf %3, %209 : vector<64x128xf32>
    %211 = vector.extract_strided_slice %5 {offsets = [4, 0], sizes = [1, 128], strides = [1, 1]} : vector<6x128xf32> to vector<1x128xf32>
    %212 = vector.broadcast %211 : vector<1x128xf32> to vector<64x128xf32>
    %213 = arith.addf %210, %212 : vector<64x128xf32>
    %214 = vector.extract_strided_slice %5 {offsets = [2, 0], sizes = [1, 128], strides = [1, 1]} : vector<6x128xf32> to vector<1x128xf32>
    %215 = vector.extract_strided_slice %5 {offsets = [3, 0], sizes = [1, 128], strides = [1, 1]} : vector<6x128xf32> to vector<1x128xf32>
    %cst_98 = arith.constant dense<0.000000e+00> : vector<64xf32>
    %216 = vector.multi_reduction <add>, %213, %cst_98 [1] : vector<64x128xf32> to vector<64xf32>
    %217 = vector.shape_cast %216 : vector<64xf32> to vector<64x1xf32>
    %cst_99 = arith.constant 1.280000e+02 : f32
    %218 = vector.broadcast %cst_99 : f32 to vector<64x1xf32>
    %219 = arith.divf %217, %218 : vector<64x1xf32>
    %220 = vector.broadcast %219 : vector<64x1xf32> to vector<64x128xf32>
    %221 = arith.subf %213, %220 : vector<64x128xf32>
    %222 = arith.mulf %221, %221 : vector<64x128xf32>
    %cst_100 = arith.constant dense<0.000000e+00> : vector<64xf32>
    %223 = vector.multi_reduction <add>, %222, %cst_100 [1] : vector<64x128xf32> to vector<64xf32>
    %224 = vector.shape_cast %223 : vector<64xf32> to vector<64x1xf32>
    %cst_101 = arith.constant 1.280000e+02 : f32
    %225 = vector.broadcast %cst_101 : f32 to vector<64x1xf32>
    %226 = arith.divf %224, %225 : vector<64x1xf32>
    %227 = vector.broadcast %219 : vector<64x1xf32> to vector<64x128xf32>
    %228 = arith.subf %213, %227 : vector<64x128xf32>
    %cst_102 = arith.constant 9.99999997E-7 : f32
    %229 = vector.broadcast %cst_102 : f32 to vector<64x1xf32>
    %230 = arith.addf %226, %229 : vector<64x1xf32>
    %231 = math.rsqrt %230 : vector<64x1xf32>
    %232 = vector.broadcast %231 : vector<64x1xf32> to vector<64x128xf32>
    %233 = arith.mulf %228, %232 : vector<64x128xf32>
    %234 = vector.broadcast %214 : vector<1x128xf32> to vector<64x128xf32>
    %235 = arith.mulf %233, %234 : vector<64x128xf32>
    %236 = vector.broadcast %215 : vector<1x128xf32> to vector<64x128xf32>
    %237 = arith.addf %235, %236 : vector<64x128xf32>
    %238 = arith.truncf %237 : vector<64x128xf32> to vector<64x128xbf16>
    %c0_103 = arith.constant 0 : index
    %c0_104 = arith.constant 0 : index
    %c0_105 = arith.constant 0 : index
    %239 = vector.load %arg9[%c0_103, %c0_104, %c0_105] : memref<1x128x512xbf16, #tpu.memory_space<vmem>>, vector<1x128x512xbf16>
    %240 = vector.shape_cast %239 : vector<1x128x512xbf16> to vector<128x512xbf16>
    %cst_106 = arith.constant dense<0.000000e+00> : vector<64x512xf32>
    %241 = tpu.matmul %238, %240, %cst_106 {dimension_numbers = #tpu.dot_dimension_numbers<[1], [0], [0], [1], [0, 0, 1, 1], [], []>} : vector<64x128xbf16>, vector<128x512xbf16>, vector<64x512xf32> -> vector<64x512xf32>
    %c0_107 = arith.constant 0 : index
    %c0_108 = arith.constant 0 : index
    %c0_109 = arith.constant 0 : index
    %242 = vector.load %arg5[%c0_107, %c0_108, %c0_109] : memref<1x1x512xf32, #tpu.memory_space<vmem>>, vector<1x1x512xf32>
    %243 = vector.shape_cast %242 : vector<1x1x512xf32> to vector<1x512xf32>
    %244 = vector.broadcast %243 : vector<1x512xf32> to vector<64x512xf32>
    %245 = arith.addf %241, %244 : vector<64x512xf32>
    %246 = arith.mulf %245, %245 : vector<64x512xf32>
    %247 = arith.mulf %245, %246 : vector<64x512xf32>
    %cst_110 = arith.constant 4.471500e-02 : f32
    %248 = vector.broadcast %cst_110 : f32 to vector<64x512xf32>
    %249 = arith.mulf %248, %247 : vector<64x512xf32>
    %250 = arith.addf %245, %249 : vector<64x512xf32>
    %cst_111 = arith.constant 0.797884583 : f32
    %251 = vector.broadcast %cst_111 : f32 to vector<64x512xf32>
    %252 = arith.mulf %251, %250 : vector<64x512xf32>
    %253 = math.tanh %252 : vector<64x512xf32>
    %cst_112 = arith.constant 1.000000e+00 : f32
    %254 = vector.broadcast %cst_112 : f32 to vector<64x512xf32>
    %255 = arith.addf %254, %253 : vector<64x512xf32>
    %cst_113 = arith.constant 5.000000e-01 : f32
    %256 = vector.broadcast %cst_113 : f32 to vector<64x512xf32>
    %257 = arith.mulf %256, %255 : vector<64x512xf32>
    %258 = arith.mulf %245, %257 : vector<64x512xf32>
    %259 = arith.truncf %258 : vector<64x512xf32> to vector<64x512xbf16>
    %c0_114 = arith.constant 0 : index
    %c0_115 = arith.constant 0 : index
    %c0_116 = arith.constant 0 : index
    %260 = vector.load %arg10[%c0_114, %c0_115, %c0_116] : memref<1x512x128xbf16, #tpu.memory_space<vmem>>, vector<1x512x128xbf16>
    %261 = vector.shape_cast %260 : vector<1x512x128xbf16> to vector<512x128xbf16>
    %cst_117 = arith.constant dense<0.000000e+00> : vector<64x128xf32>
    %262 = tpu.matmul %259, %261, %cst_117 {dimension_numbers = #tpu.dot_dimension_numbers<[1], [0], [0], [1], [0, 0, 1, 1], [], []>} : vector<64x512xbf16>, vector<512x128xbf16>, vector<64x128xf32> -> vector<64x128xf32>
    %263 = arith.addf %213, %262 : vector<64x128xf32>
    %264 = vector.extract_strided_slice %5 {offsets = [5, 0], sizes = [1, 128], strides = [1, 1]} : vector<6x128xf32> to vector<1x128xf32>
    %265 = vector.broadcast %264 : vector<1x128xf32> to vector<64x128xf32>
    %266 = arith.addf %263, %265 : vector<64x128xf32>
    %c0_118 = arith.constant 0 : index
    %c0_119 = arith.constant 0 : index
    %267 = vector.load %arg20[%c0_118, %c0_119] : memref<64x128xf32, #tpu.memory_space<vmem>>, vector<64x128xf32>
    tpu.vector_store %arg20[%c0_118, %c0_119], %266 {strides = array<i32>} : memref<64x128xf32, #tpu.memory_space<vmem>>, vector<64x128xf32>,
    %c1_i32 = arith.constant 1 : i32
    %268 = arith.cmpi eq, %arg0, %c1_i32 : i32
    %269 = arith.extui %268 : i1 to i32
    %c0_i32_120 = arith.constant 0 : i32
    %270 = arith.cmpi ne, %269, %c0_i32_120 : i32
    scf.if %270 {
      %c0_121 = arith.constant 0 : index
      %c0_122 = arith.constant 0 : index
      %271 = vector.load %arg12[%c0_121, %c0_122] : memref<8x128xf32, #tpu.memory_space<vmem>>, vector<8x128xf32>
      %c0_123 = arith.constant 0 : index
      %c0_124 = arith.constant 0 : index
      %272 = vector.load %arg11[%c0_123, %c0_124] : memref<8x128xf32, #tpu.memory_space<vmem>>, vector<8x128xf32>
      %273 = vector.extract_strided_slice %271 {offsets = [0, 0], sizes = [1, 128], strides = [1, 1]} : vector<8x128xf32> to vector<1x128xf32>
      %274 = vector.extract_strided_slice %271 {offsets = [1, 0], sizes = [1, 128], strides = [1, 1]} : vector<8x128xf32> to vector<1x128xf32>
      %cst_125 = arith.constant dense<0.000000e+00> : vector<8xf32>
      %275 = vector.multi_reduction <add>, %272, %cst_125 [1] : vector<8x128xf32> to vector<8xf32>
      %276 = vector.shape_cast %275 : vector<8xf32> to vector<8x1xf32>
      %cst_126 = arith.constant 1.280000e+02 : f32
      %277 = vector.broadcast %cst_126 : f32 to vector<8x1xf32>
      %278 = arith.divf %276, %277 : vector<8x1xf32>
      %279 = vector.broadcast %278 : vector<8x1xf32> to vector<8x128xf32>
      %280 = arith.subf %272, %279 : vector<8x128xf32>
      %281 = arith.mulf %280, %280 : vector<8x128xf32>
      %cst_127 = arith.constant dense<0.000000e+00> : vector<8xf32>
      %282 = vector.multi_reduction <add>, %281, %cst_127 [1] : vector<8x128xf32> to vector<8xf32>
      %283 = vector.shape_cast %282 : vector<8xf32> to vector<8x1xf32>
      %cst_128 = arith.constant 1.280000e+02 : f32
      %284 = vector.broadcast %cst_128 : f32 to vector<8x1xf32>
      %285 = arith.divf %283, %284 : vector<8x1xf32>
      %286 = vector.broadcast %278 : vector<8x1xf32> to vector<8x128xf32>
      %287 = arith.subf %272, %286 : vector<8x128xf32>
      %cst_129 = arith.constant 9.99999997E-7 : f32
      %288 = vector.broadcast %cst_129 : f32 to vector<8x1xf32>
      %289 = arith.addf %285, %288 : vector<8x1xf32>
      %290 = math.rsqrt %289 : vector<8x1xf32>
      %291 = vector.broadcast %290 : vector<8x1xf32> to vector<8x128xf32>
      %292 = arith.mulf %287, %291 : vector<8x128xf32>
      %293 = vector.broadcast %273 : vector<1x128xf32> to vector<8x128xf32>
      %294 = arith.mulf %292, %293 : vector<8x128xf32>
      %295 = vector.broadcast %274 : vector<1x128xf32> to vector<8x128xf32>
      %296 = arith.addf %294, %295 : vector<8x128xf32>
      %297 = arith.truncf %296 : vector<8x128xf32> to vector<8x128xbf16>
      %298 = vector.extract_strided_slice %271 {offsets = [2, 0], sizes = [1, 128], strides = [1, 1]} : vector<8x128xf32> to vector<1x128xf32>
      %299 = vector.extract_strided_slice %271 {offsets = [3, 0], sizes = [1, 128], strides = [1, 1]} : vector<8x128xf32> to vector<1x128xf32>
      %cst_130 = arith.constant dense<0.000000e+00> : vector<64xf32>
      %300 = vector.multi_reduction <add>, %266, %cst_130 [1] : vector<64x128xf32> to vector<64xf32>
      %301 = vector.shape_cast %300 : vector<64xf32> to vector<64x1xf32>
      %cst_131 = arith.constant 1.280000e+02 : f32
      %302 = vector.broadcast %cst_131 : f32 to vector<64x1xf32>
      %303 = arith.divf %301, %302 : vector<64x1xf32>
      %304 = vector.broadcast %303 : vector<64x1xf32> to vector<64x128xf32>
      %305 = arith.subf %266, %304 : vector<64x128xf32>
      %306 = arith.mulf %305, %305 : vector<64x128xf32>
      %cst_132 = arith.constant dense<0.000000e+00> : vector<64xf32>
      %307 = vector.multi_reduction <add>, %306, %cst_132 [1] : vector<64x128xf32> to vector<64xf32>
      %308 = vector.shape_cast %307 : vector<64xf32> to vector<64x1xf32>
      %cst_133 = arith.constant 1.280000e+02 : f32
      %309 = vector.broadcast %cst_133 : f32 to vector<64x1xf32>
      %310 = arith.divf %308, %309 : vector<64x1xf32>
      %311 = vector.broadcast %303 : vector<64x1xf32> to vector<64x128xf32>
      %312 = arith.subf %266, %311 : vector<64x128xf32>
      %cst_134 = arith.constant 9.99999997E-7 : f32
      %313 = vector.broadcast %cst_134 : f32 to vector<64x1xf32>
      %314 = arith.addf %310, %313 : vector<64x1xf32>
      %315 = math.rsqrt %314 : vector<64x1xf32>
      %316 = vector.broadcast %315 : vector<64x1xf32> to vector<64x128xf32>
      %317 = arith.mulf %312, %316 : vector<64x128xf32>
      %318 = vector.broadcast %298 : vector<1x128xf32> to vector<64x128xf32>
      %319 = arith.mulf %317, %318 : vector<64x128xf32>
      %320 = vector.broadcast %299 : vector<1x128xf32> to vector<64x128xf32>
      %321 = arith.addf %319, %320 : vector<64x128xf32>
      %322 = arith.truncf %321 : vector<64x128xf32> to vector<64x128xbf16>
      %c0_135 = arith.constant 0 : index
      %c0_136 = arith.constant 0 : index
      %323 = vector.load %arg14[%c0_135, %c0_136] : memref<8x32xf32, #tpu.memory_space<vmem>>, vector<8x32xf32>
      %cst_137 = arith.constant 0.000000e+00 : f32
      %324 = vector.broadcast %cst_137 : f32 to vector<16x128xf32>
      %c0_138 = arith.constant 0 : index
      %c0_139 = arith.constant 0 : index
      %c0_140 = arith.constant 0 : index
      %325 = vector.load %arg15[%c0_138, %c0_139, %c0_140] : memref<12x128x32xbf16, #tpu.memory_space<vmem>>, vector<1x128x32xbf16>
      %326 = vector.shape_cast %325 : vector<1x128x32xbf16> to vector<128x32xbf16>
      %cst_141 = arith.constant dense<0.000000e+00> : vector<8x32xf32>
      %327 = tpu.matmul %297, %326, %cst_141 {dimension_numbers = #tpu.dot_dimension_numbers<[1], [0], [0], [1], [0, 0, 1, 1], [], []>} : vector<8x128xbf16>, vector<128x32xbf16>, vector<8x32xf32> -> vector<8x32xf32>
      %328 = vector.extract_strided_slice %323 {offsets = [0, 0], sizes = [1, 32], strides = [1, 1]} : vector<8x32xf32> to vector<1x32xf32>
      %329 = vector.shape_cast %328 : vector<1x32xf32> to vector<32xf32>
      %330 = vector.shape_cast %329 : vector<32xf32> to vector<1x32xf32>
      %331 = vector.broadcast %330 : vector<1x32xf32> to vector<8x32xf32>
      %332 = arith.addf %327, %331 : vector<8x32xf32>
      %c4_142 = arith.constant 4 : index
      %c0_143 = arith.constant 0 : index
      %c0_144 = arith.constant 0 : index
      %333 = vector.load %arg15[%c4_142, %c0_143, %c0_144] : memref<12x128x32xbf16, #tpu.memory_space<vmem>>, vector<1x128x32xbf16>
      %334 = vector.shape_cast %333 : vector<1x128x32xbf16> to vector<128x32xbf16>
      %cst_145 = arith.constant dense<0.000000e+00> : vector<64x32xf32>
      %335 = tpu.matmul %322, %334, %cst_145 {dimension_numbers = #tpu.dot_dimension_numbers<[1], [0], [0], [1], [0, 0, 1, 1], [], []>} : vector<64x128xbf16>, vector<128x32xbf16>, vector<64x32xf32> -> vector<64x32xf32>
      %336 = vector.extract_strided_slice %323 {offsets = [4, 0], sizes = [1, 32], strides = [1, 1]} : vector<8x32xf32> to vector<1x32xf32>
      %337 = vector.shape_cast %336 : vector<1x32xf32> to vector<32xf32>
      %338 = vector.shape_cast %337 : vector<32xf32> to vector<1x32xf32>
      %339 = vector.broadcast %338 : vector<1x32xf32> to vector<64x32xf32>
      %340 = arith.addf %335, %339 : vector<64x32xf32>
      %c8_146 = arith.constant 8 : index
      %c0_147 = arith.constant 0 : index
      %c0_148 = arith.constant 0 : index
      %341 = vector.load %arg15[%c8_146, %c0_147, %c0_148] : memref<12x128x32xbf16, #tpu.memory_space<vmem>>, vector<1x128x32xbf16>
      %342 = vector.shape_cast %341 : vector<1x128x32xbf16> to vector<128x32xbf16>
      %cst_149 = arith.constant dense<0.000000e+00> : vector<64x32xf32>
      %343 = tpu.matmul %322, %342, %cst_149 {dimension_numbers = #tpu.dot_dimension_numbers<[1], [0], [0], [1], [0, 0, 1, 1], [], []>} : vector<64x128xbf16>, vector<128x32xbf16>, vector<64x32xf32> -> vector<64x32xf32>
      %344 = vector.shape_cast %332 : vector<8x32xf32> to vector<1x8x32xf32>
      %345 = vector.shape_cast %344 : vector<1x8x32xf32> to vector<1x8x32xf32>
      %346 = vector.broadcast %345 : vector<1x8x32xf32> to vector<2x8x32xf32>
      %347 = vector.shape_cast %340 : vector<64x32xf32> to vector<2x32x32xf32>
      %348 = vector.shape_cast %343 : vector<64x32xf32> to vector<2x32x32xf32>
      %349 = arith.truncf %346 : vector<2x8x32xf32> to vector<2x8x32xbf16>
      %350 = arith.truncf %347 : vector<2x32x32xf32> to vector<2x32x32xbf16>
      "tpu.trace_start"() <{level = 10 : i32, message = "bqd,bkd->bqk"}> : () -> ()
      %cst_150 = arith.constant dense<0.000000e+00> : vector<2x8x32xf32>
      %351 = tpu.matmul %349, %350, %cst_150 {dimension_numbers = #tpu.dot_dimension_numbers<[2], [2], [1], [1], [0, 0, 0, 1, 1, 1], [0], [0]>} : vector<2x8x32xbf16>, vector<2x32x32xbf16>, vector<2x8x32xf32> -> vector<2x8x32xf32>
      "tpu.trace_stop"() : () -> ()
      %cst_151 = arith.constant dense<0xFF800000> : vector<2x8xf32>
      %352 = vector.multi_reduction <maximumf>, %351, %cst_151 [2] : vector<2x8x32xf32> to vector<2x8xf32>
      %353 = vector.shape_cast %352 : vector<2x8xf32> to vector<2x8x1xf32>
      %354 = vector.broadcast %353 : vector<2x8x1xf32> to vector<2x8x32xf32>
      %355 = arith.subf %351, %354 : vector<2x8x32xf32>
      %356 = math.exp %355 : vector<2x8x32xf32>
      %cst_152 = arith.constant dense<0.000000e+00> : vector<2x8xf32>
      %357 = vector.multi_reduction <add>, %356, %cst_152 [2] : vector<2x8x32xf32> to vector<2x8xf32>
      %358 = vector.shape_cast %357 : vector<2x8xf32> to vector<2x8x1xf32>
      %359 = tpu.reciprocal %358 {approx = true} : vector<2x8x1xf32> -> vector<2x8x1xf32>
      %360 = vector.broadcast %359 : vector<2x8x1xf32> to vector<2x8x32xf32>
      %361 = arith.mulf %356, %360 : vector<2x8x32xf32>
      %362 = arith.truncf %361 : vector<2x8x32xf32> to vector<2x8x32xbf16>
      %363 = arith.truncf %348 : vector<2x32x32xf32> to vector<2x32x32xbf16>
      "tpu.trace_start"() <{level = 10 : i32, message = "bqk,bkd->bqd"}> : () -> ()
      %cst_153 = arith.constant dense<0.000000e+00> : vector<2x8x32xf32>
      %364 = tpu.matmul %362, %363, %cst_153 {dimension_numbers = #tpu.dot_dimension_numbers<[2], [1], [1], [2], [0, 0, 0, 1, 1, 2], [0], [0]>} : vector<2x8x32xbf16>, vector<2x32x32xbf16>, vector<2x8x32xf32> -> vector<2x8x32xf32>
      "tpu.trace_stop"() : () -> ()
      %365 = vector.shape_cast %364 : vector<2x8x32xf32> to vector<16x32xf32>
      %366 = arith.truncf %365 : vector<16x32xf32> to vector<16x32xbf16>
      %c0_154 = arith.constant 0 : index
      %c0_155 = arith.constant 0 : index
      %c0_156 = arith.constant 0 : index
      %367 = vector.load %arg16[%c0_154, %c0_155, %c0_156] : memref<4x32x128xbf16, #tpu.memory_space<vmem>>, vector<1x32x128xbf16>
      %368 = vector.shape_cast %367 : vector<1x32x128xbf16> to vector<32x128xbf16>
      %cst_157 = arith.constant dense<0.000000e+00> : vector<16x128xf32>
      %369 = tpu.matmul %366, %368, %cst_157 {dimension_numbers = #tpu.dot_dimension_numbers<[1], [0], [0], [1], [0, 0, 1, 1], [], []>} : vector<16x32xbf16>, vector<32x128xbf16>, vector<16x128xf32> -> vector<16x128xf32>
      %370 = arith.addf %324, %369 : vector<16x128xf32>
      %c1_158 = arith.constant 1 : index
      %c0_159 = arith.constant 0 : index
      %c0_160 = arith.constant 0 : index
      %371 = vector.load %arg15[%c1_158, %c0_159, %c0_160] : memref<12x128x32xbf16, #tpu.memory_space<vmem>>, vector<1x128x32xbf16>
      %372 = vector.shape_cast %371 : vector<1x128x32xbf16> to vector<128x32xbf16>
      %cst_161 = arith.constant dense<0.000000e+00> : vector<8x32xf32>
      %373 = tpu.matmul %297, %372, %cst_161 {dimension_numbers = #tpu.dot_dimension_numbers<[1], [0], [0], [1], [0, 0, 1, 1], [], []>} : vector<8x128xbf16>, vector<128x32xbf16>, vector<8x32xf32> -> vector<8x32xf32>
      %374 = vector.extract_strided_slice %323 {offsets = [1, 0], sizes = [1, 32], strides = [1, 1]} : vector<8x32xf32> to vector<1x32xf32>
      %375 = vector.shape_cast %374 : vector<1x32xf32> to vector<32xf32>
      %376 = vector.shape_cast %375 : vector<32xf32> to vector<1x32xf32>
      %377 = vector.broadcast %376 : vector<1x32xf32> to vector<8x32xf32>
      %378 = arith.addf %373, %377 : vector<8x32xf32>
      %c5_162 = arith.constant 5 : index
      %c0_163 = arith.constant 0 : index
      %c0_164 = arith.constant 0 : index
      %379 = vector.load %arg15[%c5_162, %c0_163, %c0_164] : memref<12x128x32xbf16, #tpu.memory_space<vmem>>, vector<1x128x32xbf16>
      %380 = vector.shape_cast %379 : vector<1x128x32xbf16> to vector<128x32xbf16>
      %cst_165 = arith.constant dense<0.000000e+00> : vector<64x32xf32>
      %381 = tpu.matmul %322, %380, %cst_165 {dimension_numbers = #tpu.dot_dimension_numbers<[1], [0], [0], [1], [0, 0, 1, 1], [], []>} : vector<64x128xbf16>, vector<128x32xbf16>, vector<64x32xf32> -> vector<64x32xf32>
      %382 = vector.extract_strided_slice %323 {offsets = [5, 0], sizes = [1, 32], strides = [1, 1]} : vector<8x32xf32> to vector<1x32xf32>
      %383 = vector.shape_cast %382 : vector<1x32xf32> to vector<32xf32>
      %384 = vector.shape_cast %383 : vector<32xf32> to vector<1x32xf32>
      %385 = vector.broadcast %384 : vector<1x32xf32> to vector<64x32xf32>
      %386 = arith.addf %381, %385 : vector<64x32xf32>
      %c9_166 = arith.constant 9 : index
      %c0_167 = arith.constant 0 : index
      %c0_168 = arith.constant 0 : index
      %387 = vector.load %arg15[%c9_166, %c0_167, %c0_168] : memref<12x128x32xbf16, #tpu.memory_space<vmem>>, vector<1x128x32xbf16>
      %388 = vector.shape_cast %387 : vector<1x128x32xbf16> to vector<128x32xbf16>
      %cst_169 = arith.constant dense<0.000000e+00> : vector<64x32xf32>
      %389 = tpu.matmul %322, %388, %cst_169 {dimension_numbers = #tpu.dot_dimension_numbers<[1], [0], [0], [1], [0, 0, 1, 1], [], []>} : vector<64x128xbf16>, vector<128x32xbf16>, vector<64x32xf32> -> vector<64x32xf32>
      %390 = vector.shape_cast %378 : vector<8x32xf32> to vector<1x8x32xf32>
      %391 = vector.shape_cast %390 : vector<1x8x32xf32> to vector<1x8x32xf32>
      %392 = vector.broadcast %391 : vector<1x8x32xf32> to vector<2x8x32xf32>
      %393 = vector.shape_cast %386 : vector<64x32xf32> to vector<2x32x32xf32>
      %394 = vector.shape_cast %389 : vector<64x32xf32> to vector<2x32x32xf32>
      %395 = arith.truncf %392 : vector<2x8x32xf32> to vector<2x8x32xbf16>
      %396 = arith.truncf %393 : vector<2x32x32xf32> to vector<2x32x32xbf16>
      "tpu.trace_start"() <{level = 10 : i32, message = "bqd,bkd->bqk"}> : () -> ()
      %cst_170 = arith.constant dense<0.000000e+00> : vector<2x8x32xf32>
      %397 = tpu.matmul %395, %396, %cst_170 {dimension_numbers = #tpu.dot_dimension_numbers<[2], [2], [1], [1], [0, 0, 0, 1, 1, 1], [0], [0]>} : vector<2x8x32xbf16>, vector<2x32x32xbf16>, vector<2x8x32xf32> -> vector<2x8x32xf32>
      "tpu.trace_stop"() : () -> ()
      %cst_171 = arith.constant dense<0xFF800000> : vector<2x8xf32>
      %398 = vector.multi_reduction <maximumf>, %397, %cst_171 [2] : vector<2x8x32xf32> to vector<2x8xf32>
      %399 = vector.shape_cast %398 : vector<2x8xf32> to vector<2x8x1xf32>
      %400 = vector.broadcast %399 : vector<2x8x1xf32> to vector<2x8x32xf32>
      %401 = arith.subf %397, %400 : vector<2x8x32xf32>
      %402 = math.exp %401 : vector<2x8x32xf32>
      %cst_172 = arith.constant dense<0.000000e+00> : vector<2x8xf32>
      %403 = vector.multi_reduction <add>, %402, %cst_172 [2] : vector<2x8x32xf32> to vector<2x8xf32>
      %404 = vector.shape_cast %403 : vector<2x8xf32> to vector<2x8x1xf32>
      %405 = tpu.reciprocal %404 {approx = true} : vector<2x8x1xf32> -> vector<2x8x1xf32>
      %406 = vector.broadcast %405 : vector<2x8x1xf32> to vector<2x8x32xf32>
      %407 = arith.mulf %402, %406 : vector<2x8x32xf32>
      %408 = arith.truncf %407 : vector<2x8x32xf32> to vector<2x8x32xbf16>
      %409 = arith.truncf %394 : vector<2x32x32xf32> to vector<2x32x32xbf16>
      "tpu.trace_start"() <{level = 10 : i32, message = "bqk,bkd->bqd"}> : () -> ()
      %cst_173 = arith.constant dense<0.000000e+00> : vector<2x8x32xf32>
      %410 = tpu.matmul %408, %409, %cst_173 {dimension_numbers = #tpu.dot_dimension_numbers<[2], [1], [1], [2], [0, 0, 0, 1, 1, 2], [0], [0]>} : vector<2x8x32xbf16>, vector<2x32x32xbf16>, vector<2x8x32xf32> -> vector<2x8x32xf32>
      "tpu.trace_stop"() : () -> ()
      %411 = vector.shape_cast %410 : vector<2x8x32xf32> to vector<16x32xf32>
      %412 = arith.truncf %411 : vector<16x32xf32> to vector<16x32xbf16>
      %c1_174 = arith.constant 1 : index
      %c0_175 = arith.constant 0 : index
      %c0_176 = arith.constant 0 : index
      %413 = vector.load %arg16[%c1_174, %c0_175, %c0_176] : memref<4x32x128xbf16, #tpu.memory_space<vmem>>, vector<1x32x128xbf16>
      %414 = vector.shape_cast %413 : vector<1x32x128xbf16> to vector<32x128xbf16>
      %cst_177 = arith.constant dense<0.000000e+00> : vector<16x128xf32>
      %415 = tpu.matmul %412, %414, %cst_177 {dimension_numbers = #tpu.dot_dimension_numbers<[1], [0], [0], [1], [0, 0, 1, 1], [], []>} : vector<16x32xbf16>, vector<32x128xbf16>, vector<16x128xf32> -> vector<16x128xf32>
      %416 = arith.addf %370, %415 : vector<16x128xf32>
      %c2_178 = arith.constant 2 : index
      %c0_179 = arith.constant 0 : index
      %c0_180 = arith.constant 0 : index
      %417 = vector.load %arg15[%c2_178, %c0_179, %c0_180] : memref<12x128x32xbf16, #tpu.memory_space<vmem>>, vector<1x128x32xbf16>
      %418 = vector.shape_cast %417 : vector<1x128x32xbf16> to vector<128x32xbf16>
      %cst_181 = arith.constant dense<0.000000e+00> : vector<8x32xf32>
      %419 = tpu.matmul %297, %418, %cst_181 {dimension_numbers = #tpu.dot_dimension_numbers<[1], [0], [0], [1], [0, 0, 1, 1], [], []>} : vector<8x128xbf16>, vector<128x32xbf16>, vector<8x32xf32> -> vector<8x32xf32>
      %420 = vector.extract_strided_slice %323 {offsets = [2, 0], sizes = [1, 32], strides = [1, 1]} : vector<8x32xf32> to vector<1x32xf32>
      %421 = vector.shape_cast %420 : vector<1x32xf32> to vector<32xf32>
      %422 = vector.shape_cast %421 : vector<32xf32> to vector<1x32xf32>
      %423 = vector.broadcast %422 : vector<1x32xf32> to vector<8x32xf32>
      %424 = arith.addf %419, %423 : vector<8x32xf32>
      %c6_182 = arith.constant 6 : index
      %c0_183 = arith.constant 0 : index
      %c0_184 = arith.constant 0 : index
      %425 = vector.load %arg15[%c6_182, %c0_183, %c0_184] : memref<12x128x32xbf16, #tpu.memory_space<vmem>>, vector<1x128x32xbf16>
      %426 = vector.shape_cast %425 : vector<1x128x32xbf16> to vector<128x32xbf16>
      %cst_185 = arith.constant dense<0.000000e+00> : vector<64x32xf32>
      %427 = tpu.matmul %322, %426, %cst_185 {dimension_numbers = #tpu.dot_dimension_numbers<[1], [0], [0], [1], [0, 0, 1, 1], [], []>} : vector<64x128xbf16>, vector<128x32xbf16>, vector<64x32xf32> -> vector<64x32xf32>
      %428 = vector.extract_strided_slice %323 {offsets = [6, 0], sizes = [1, 32], strides = [1, 1]} : vector<8x32xf32> to vector<1x32xf32>
      %429 = vector.shape_cast %428 : vector<1x32xf32> to vector<32xf32>
      %430 = vector.shape_cast %429 : vector<32xf32> to vector<1x32xf32>
      %431 = vector.broadcast %430 : vector<1x32xf32> to vector<64x32xf32>
      %432 = arith.addf %427, %431 : vector<64x32xf32>
      %c10_186 = arith.constant 10 : index
      %c0_187 = arith.constant 0 : index
      %c0_188 = arith.constant 0 : index
      %433 = vector.load %arg15[%c10_186, %c0_187, %c0_188] : memref<12x128x32xbf16, #tpu.memory_space<vmem>>, vector<1x128x32xbf16>
      %434 = vector.shape_cast %433 : vector<1x128x32xbf16> to vector<128x32xbf16>
      %cst_189 = arith.constant dense<0.000000e+00> : vector<64x32xf32>
      %435 = tpu.matmul %322, %434, %cst_189 {dimension_numbers = #tpu.dot_dimension_numbers<[1], [0], [0], [1], [0, 0, 1, 1], [], []>} : vector<64x128xbf16>, vector<128x32xbf16>, vector<64x32xf32> -> vector<64x32xf32>
      %436 = vector.shape_cast %424 : vector<8x32xf32> to vector<1x8x32xf32>
      %437 = vector.shape_cast %436 : vector<1x8x32xf32> to vector<1x8x32xf32>
      %438 = vector.broadcast %437 : vector<1x8x32xf32> to vector<2x8x32xf32>
      %439 = vector.shape_cast %432 : vector<64x32xf32> to vector<2x32x32xf32>
      %440 = vector.shape_cast %435 : vector<64x32xf32> to vector<2x32x32xf32>
      %441 = arith.truncf %438 : vector<2x8x32xf32> to vector<2x8x32xbf16>
      %442 = arith.truncf %439 : vector<2x32x32xf32> to vector<2x32x32xbf16>
      "tpu.trace_start"() <{level = 10 : i32, message = "bqd,bkd->bqk"}> : () -> ()
      %cst_190 = arith.constant dense<0.000000e+00> : vector<2x8x32xf32>
      %443 = tpu.matmul %441, %442, %cst_190 {dimension_numbers = #tpu.dot_dimension_numbers<[2], [2], [1], [1], [0, 0, 0, 1, 1, 1], [0], [0]>} : vector<2x8x32xbf16>, vector<2x32x32xbf16>, vector<2x8x32xf32> -> vector<2x8x32xf32>
      "tpu.trace_stop"() : () -> ()
      %cst_191 = arith.constant dense<0xFF800000> : vector<2x8xf32>
      %444 = vector.multi_reduction <maximumf>, %443, %cst_191 [2] : vector<2x8x32xf32> to vector<2x8xf32>
      %445 = vector.shape_cast %444 : vector<2x8xf32> to vector<2x8x1xf32>
      %446 = vector.broadcast %445 : vector<2x8x1xf32> to vector<2x8x32xf32>
      %447 = arith.subf %443, %446 : vector<2x8x32xf32>
      %448 = math.exp %447 : vector<2x8x32xf32>
      %cst_192 = arith.constant dense<0.000000e+00> : vector<2x8xf32>
      %449 = vector.multi_reduction <add>, %448, %cst_192 [2] : vector<2x8x32xf32> to vector<2x8xf32>
      %450 = vector.shape_cast %449 : vector<2x8xf32> to vector<2x8x1xf32>
      %451 = tpu.reciprocal %450 {approx = true} : vector<2x8x1xf32> -> vector<2x8x1xf32>
      %452 = vector.broadcast %451 : vector<2x8x1xf32> to vector<2x8x32xf32>
      %453 = arith.mulf %448, %452 : vector<2x8x32xf32>
      %454 = arith.truncf %453 : vector<2x8x32xf32> to vector<2x8x32xbf16>
      %455 = arith.truncf %440 : vector<2x32x32xf32> to vector<2x32x32xbf16>
      "tpu.trace_start"() <{level = 10 : i32, message = "bqk,bkd->bqd"}> : () -> ()
      %cst_193 = arith.constant dense<0.000000e+00> : vector<2x8x32xf32>
      %456 = tpu.matmul %454, %455, %cst_193 {dimension_numbers = #tpu.dot_dimension_numbers<[2], [1], [1], [2], [0, 0, 0, 1, 1, 2], [0], [0]>} : vector<2x8x32xbf16>, vector<2x32x32xbf16>, vector<2x8x32xf32> -> vector<2x8x32xf32>
      "tpu.trace_stop"() : () -> ()
      %457 = vector.shape_cast %456 : vector<2x8x32xf32> to vector<16x32xf32>
      %458 = arith.truncf %457 : vector<16x32xf32> to vector<16x32xbf16>
      %c2_194 = arith.constant 2 : index
      %c0_195 = arith.constant 0 : index
      %c0_196 = arith.constant 0 : index
      %459 = vector.load %arg16[%c2_194, %c0_195, %c0_196] : memref<4x32x128xbf16, #tpu.memory_space<vmem>>, vector<1x32x128xbf16>
      %460 = vector.shape_cast %459 : vector<1x32x128xbf16> to vector<32x128xbf16>
      %cst_197 = arith.constant dense<0.000000e+00> : vector<16x128xf32>
      %461 = tpu.matmul %458, %460, %cst_197 {dimension_numbers = #tpu.dot_dimension_numbers<[1], [0], [0], [1], [0, 0, 1, 1], [], []>} : vector<16x32xbf16>, vector<32x128xbf16>, vector<16x128xf32> -> vector<16x128xf32>
      %462 = arith.addf %416, %461 : vector<16x128xf32>
      %c3_198 = arith.constant 3 : index
      %c0_199 = arith.constant 0 : index
      %c0_200 = arith.constant 0 : index
      %463 = vector.load %arg15[%c3_198, %c0_199, %c0_200] : memref<12x128x32xbf16, #tpu.memory_space<vmem>>, vector<1x128x32xbf16>
      %464 = vector.shape_cast %463 : vector<1x128x32xbf16> to vector<128x32xbf16>
      %cst_201 = arith.constant dense<0.000000e+00> : vector<8x32xf32>
      %465 = tpu.matmul %297, %464, %cst_201 {dimension_numbers = #tpu.dot_dimension_numbers<[1], [0], [0], [1], [0, 0, 1, 1], [], []>} : vector<8x128xbf16>, vector<128x32xbf16>, vector<8x32xf32> -> vector<8x32xf32>
      %466 = vector.extract_strided_slice %323 {offsets = [3, 0], sizes = [1, 32], strides = [1, 1]} : vector<8x32xf32> to vector<1x32xf32>
      %467 = vector.shape_cast %466 : vector<1x32xf32> to vector<32xf32>
      %468 = vector.shape_cast %467 : vector<32xf32> to vector<1x32xf32>
      %469 = vector.broadcast %468 : vector<1x32xf32> to vector<8x32xf32>
      %470 = arith.addf %465, %469 : vector<8x32xf32>
      %c7_202 = arith.constant 7 : index
      %c0_203 = arith.constant 0 : index
      %c0_204 = arith.constant 0 : index
      %471 = vector.load %arg15[%c7_202, %c0_203, %c0_204] : memref<12x128x32xbf16, #tpu.memory_space<vmem>>, vector<1x128x32xbf16>
      %472 = vector.shape_cast %471 : vector<1x128x32xbf16> to vector<128x32xbf16>
      %cst_205 = arith.constant dense<0.000000e+00> : vector<64x32xf32>
      %473 = tpu.matmul %322, %472, %cst_205 {dimension_numbers = #tpu.dot_dimension_numbers<[1], [0], [0], [1], [0, 0, 1, 1], [], []>} : vector<64x128xbf16>, vector<128x32xbf16>, vector<64x32xf32> -> vector<64x32xf32>
      %474 = vector.extract_strided_slice %323 {offsets = [7, 0], sizes = [1, 32], strides = [1, 1]} : vector<8x32xf32> to vector<1x32xf32>
      %475 = vector.shape_cast %474 : vector<1x32xf32> to vector<32xf32>
      %476 = vector.shape_cast %475 : vector<32xf32> to vector<1x32xf32>
      %477 = vector.broadcast %476 : vector<1x32xf32> to vector<64x32xf32>
      %478 = arith.addf %473, %477 : vector<64x32xf32>
      %c11_206 = arith.constant 11 : index
      %c0_207 = arith.constant 0 : index
      %c0_208 = arith.constant 0 : index
      %479 = vector.load %arg15[%c11_206, %c0_207, %c0_208] : memref<12x128x32xbf16, #tpu.memory_space<vmem>>, vector<1x128x32xbf16>
      %480 = vector.shape_cast %479 : vector<1x128x32xbf16> to vector<128x32xbf16>
      %cst_209 = arith.constant dense<0.000000e+00> : vector<64x32xf32>
      %481 = tpu.matmul %322, %480, %cst_209 {dimension_numbers = #tpu.dot_dimension_numbers<[1], [0], [0], [1], [0, 0, 1, 1], [], []>} : vector<64x128xbf16>, vector<128x32xbf16>, vector<64x32xf32> -> vector<64x32xf32>
      %482 = vector.shape_cast %470 : vector<8x32xf32> to vector<1x8x32xf32>
      %483 = vector.shape_cast %482 : vector<1x8x32xf32> to vector<1x8x32xf32>
      %484 = vector.broadcast %483 : vector<1x8x32xf32> to vector<2x8x32xf32>
      %485 = vector.shape_cast %478 : vector<64x32xf32> to vector<2x32x32xf32>
      %486 = vector.shape_cast %481 : vector<64x32xf32> to vector<2x32x32xf32>
      %487 = arith.truncf %484 : vector<2x8x32xf32> to vector<2x8x32xbf16>
      %488 = arith.truncf %485 : vector<2x32x32xf32> to vector<2x32x32xbf16>
      "tpu.trace_start"() <{level = 10 : i32, message = "bqd,bkd->bqk"}> : () -> ()
      %cst_210 = arith.constant dense<0.000000e+00> : vector<2x8x32xf32>
      %489 = tpu.matmul %487, %488, %cst_210 {dimension_numbers = #tpu.dot_dimension_numbers<[2], [2], [1], [1], [0, 0, 0, 1, 1, 1], [0], [0]>} : vector<2x8x32xbf16>, vector<2x32x32xbf16>, vector<2x8x32xf32> -> vector<2x8x32xf32>
      "tpu.trace_stop"() : () -> ()
      %cst_211 = arith.constant dense<0xFF800000> : vector<2x8xf32>
      %490 = vector.multi_reduction <maximumf>, %489, %cst_211 [2] : vector<2x8x32xf32> to vector<2x8xf32>
      %491 = vector.shape_cast %490 : vector<2x8xf32> to vector<2x8x1xf32>
      %492 = vector.broadcast %491 : vector<2x8x1xf32> to vector<2x8x32xf32>
      %493 = arith.subf %489, %492 : vector<2x8x32xf32>
      %494 = math.exp %493 : vector<2x8x32xf32>
      %cst_212 = arith.constant dense<0.000000e+00> : vector<2x8xf32>
      %495 = vector.multi_reduction <add>, %494, %cst_212 [2] : vector<2x8x32xf32> to vector<2x8xf32>
      %496 = vector.shape_cast %495 : vector<2x8xf32> to vector<2x8x1xf32>
      %497 = tpu.reciprocal %496 {approx = true} : vector<2x8x1xf32> -> vector<2x8x1xf32>
      %498 = vector.broadcast %497 : vector<2x8x1xf32> to vector<2x8x32xf32>
      %499 = arith.mulf %494, %498 : vector<2x8x32xf32>
      %500 = arith.truncf %499 : vector<2x8x32xf32> to vector<2x8x32xbf16>
      %501 = arith.truncf %486 : vector<2x32x32xf32> to vector<2x32x32xbf16>
      "tpu.trace_start"() <{level = 10 : i32, message = "bqk,bkd->bqd"}> : () -> ()
      %cst_213 = arith.constant dense<0.000000e+00> : vector<2x8x32xf32>
      %502 = tpu.matmul %500, %501, %cst_213 {dimension_numbers = #tpu.dot_dimension_numbers<[2], [1], [1], [2], [0, 0, 0, 1, 1, 2], [0], [0]>} : vector<2x8x32xbf16>, vector<2x32x32xbf16>, vector<2x8x32xf32> -> vector<2x8x32xf32>
      "tpu.trace_stop"() : () -> ()
      %503 = vector.shape_cast %502 : vector<2x8x32xf32> to vector<16x32xf32>
      %504 = arith.truncf %503 : vector<16x32xf32> to vector<16x32xbf16>
      %c3_214 = arith.constant 3 : index
      %c0_215 = arith.constant 0 : index
      %c0_216 = arith.constant 0 : index
      %505 = vector.load %arg16[%c3_214, %c0_215, %c0_216] : memref<4x32x128xbf16, #tpu.memory_space<vmem>>, vector<1x32x128xbf16>
      %506 = vector.shape_cast %505 : vector<1x32x128xbf16> to vector<32x128xbf16>
      %cst_217 = arith.constant dense<0.000000e+00> : vector<16x128xf32>
      %507 = tpu.matmul %504, %506, %cst_217 {dimension_numbers = #tpu.dot_dimension_numbers<[1], [0], [0], [1], [0, 0, 1, 1], [], []>} : vector<16x32xbf16>, vector<32x128xbf16>, vector<16x128xf32> -> vector<16x128xf32>
      %508 = arith.addf %462, %507 : vector<16x128xf32>
      %509 = vector.shape_cast %508 : vector<16x128xf32> to vector<2x8x128xf32>
      %510 = vector.shape_cast %272 : vector<8x128xf32> to vector<1x8x128xf32>
      %511 = vector.broadcast %510 : vector<1x8x128xf32> to vector<2x8x128xf32>
      %512 = arith.addf %509, %511 : vector<2x8x128xf32>
      %513 = vector.extract_strided_slice %271 {offsets = [6, 0], sizes = [1, 128], strides = [1, 1]} : vector<8x128xf32> to vector<1x128xf32>
      %514 = vector.shape_cast %513 : vector<1x128xf32> to vector<1x1x128xf32>
      %515 = vector.broadcast %514 : vector<1x1x128xf32> to vector<2x8x128xf32>
      %516 = arith.addf %512, %515 : vector<2x8x128xf32>
      %517 = vector.shape_cast %516 : vector<2x8x128xf32> to vector<16x128xf32>
      %518 = vector.extract_strided_slice %271 {offsets = [4, 0], sizes = [1, 128], strides = [1, 1]} : vector<8x128xf32> to vector<1x128xf32>
      %519 = vector.extract_strided_slice %271 {offsets = [5, 0], sizes = [1, 128], strides = [1, 1]} : vector<8x128xf32> to vector<1x128xf32>
      %cst_218 = arith.constant dense<0.000000e+00> : vector<16xf32>
      %520 = vector.multi_reduction <add>, %517, %cst_218 [1] : vector<16x128xf32> to vector<16xf32>
      %521 = vector.shape_cast %520 : vector<16xf32> to vector<16x1xf32>
      %cst_219 = arith.constant 1.280000e+02 : f32
      %522 = vector.broadcast %cst_219 : f32 to vector<16x1xf32>
      %523 = arith.divf %521, %522 : vector<16x1xf32>
      %524 = vector.broadcast %523 : vector<16x1xf32> to vector<16x128xf32>
      %525 = arith.subf %517, %524 : vector<16x128xf32>
      %526 = arith.mulf %525, %525 : vector<16x128xf32>
      %cst_220 = arith.constant dense<0.000000e+00> : vector<16xf32>
      %527 = vector.multi_reduction <add>, %526, %cst_220 [1] : vector<16x128xf32> to vector<16xf32>
      %528 = vector.shape_cast %527 : vector<16xf32> to vector<16x1xf32>
      %cst_221 = arith.constant 1.280000e+02 : f32
      %529 = vector.broadcast %cst_221 : f32 to vector<16x1xf32>
      %530 = arith.divf %528, %529 : vector<16x1xf32>
      %531 = vector.broadcast %523 : vector<16x1xf32> to vector<16x128xf32>
      %532 = arith.subf %517, %531 : vector<16x128xf32>
      %cst_222 = arith.constant 9.99999997E-7 : f32
      %533 = vector.broadcast %cst_222 : f32 to vector<16x1xf32>
      %534 = arith.addf %530, %533 : vector<16x1xf32>
      %535 = math.rsqrt %534 : vector<16x1xf32>
      %536 = vector.broadcast %535 : vector<16x1xf32> to vector<16x128xf32>
      %537 = arith.mulf %532, %536 : vector<16x128xf32>
      %538 = vector.broadcast %518 : vector<1x128xf32> to vector<16x128xf32>
      %539 = arith.mulf %537, %538 : vector<16x128xf32>
      %540 = vector.broadcast %519 : vector<1x128xf32> to vector<16x128xf32>
      %541 = arith.addf %539, %540 : vector<16x128xf32>
      %542 = arith.truncf %541 : vector<16x128xf32> to vector<16x128xbf16>
      %c0_223 = arith.constant 0 : index
      %c0_224 = arith.constant 0 : index
      %543 = vector.load %arg17[%c0_223, %c0_224] : memref<128x512xbf16, #tpu.memory_space<vmem>>, vector<128x512xbf16>
      %cst_225 = arith.constant dense<0.000000e+00> : vector<16x512xf32>
      %544 = tpu.matmul %542, %543, %cst_225 {dimension_numbers = #tpu.dot_dimension_numbers<[1], [0], [0], [1], [0, 0, 1, 1], [], []>} : vector<16x128xbf16>, vector<128x512xbf16>, vector<16x512xf32> -> vector<16x512xf32>
      %c0_226 = arith.constant 0 : index
      %c0_227 = arith.constant 0 : index
      %545 = vector.load %arg13[%c0_226, %c0_227] : memref<1x512xf32, #tpu.memory_space<vmem>>, vector<1x512xf32>
      %546 = vector.broadcast %545 : vector<1x512xf32> to vector<16x512xf32>
      %547 = arith.addf %544, %546 : vector<16x512xf32>
      %548 = arith.mulf %547, %547 : vector<16x512xf32>
      %549 = arith.mulf %547, %548 : vector<16x512xf32>
      %cst_228 = arith.constant 4.471500e-02 : f32
      %550 = vector.broadcast %cst_228 : f32 to vector<16x512xf32>
      %551 = arith.mulf %550, %549 : vector<16x512xf32>
      %552 = arith.addf %547, %551 : vector<16x512xf32>
      %cst_229 = arith.constant 0.797884583 : f32
      %553 = vector.broadcast %cst_229 : f32 to vector<16x512xf32>
      %554 = arith.mulf %553, %552 : vector<16x512xf32>
      %555 = math.tanh %554 : vector<16x512xf32>
      %cst_230 = arith.constant 1.000000e+00 : f32
      %556 = vector.broadcast %cst_230 : f32 to vector<16x512xf32>
      %557 = arith.addf %556, %555 : vector<16x512xf32>
      %cst_231 = arith.constant 5.000000e-01 : f32
      %558 = vector.broadcast %cst_231 : f32 to vector<16x512xf32>
      %559 = arith.mulf %558, %557 : vector<16x512xf32>
      %560 = arith.mulf %547, %559 : vector<16x512xf32>
      %561 = arith.truncf %560 : vector<16x512xf32> to vector<16x512xbf16>
      %c0_232 = arith.constant 0 : index
      %c0_233 = arith.constant 0 : index
      %562 = vector.load %arg18[%c0_232, %c0_233] : memref<512x128xbf16, #tpu.memory_space<vmem>>, vector<512x128xbf16>
      %cst_234 = arith.constant dense<0.000000e+00> : vector<16x128xf32>
      %563 = tpu.matmul %561, %562, %cst_234 {dimension_numbers = #tpu.dot_dimension_numbers<[1], [0], [0], [1], [0, 0, 1, 1], [], []>} : vector<16x512xbf16>, vector<512x128xbf16>, vector<16x128xf32> -> vector<16x128xf32>
      %564 = arith.addf %517, %563 : vector<16x128xf32>
      %565 = vector.extract_strided_slice %271 {offsets = [7, 0], sizes = [1, 128], strides = [1, 1]} : vector<8x128xf32> to vector<1x128xf32>
      %566 = vector.broadcast %565 : vector<1x128xf32> to vector<16x128xf32>
      %567 = arith.addf %564, %566 : vector<16x128xf32>
      %568 = vector.shape_cast %567 : vector<16x128xf32> to vector<2x8x128xf32>
      %c0_235 = arith.constant 0 : index
      %c0_236 = arith.constant 0 : index
      %c0_237 = arith.constant 0 : index
      %569 = vector.load %arg19[%c0_235, %c0_236, %c0_237] : memref<2x8x128xf32, #tpu.memory_space<vmem>>, vector<2x8x128xf32>
      tpu.vector_store %arg19[%c0_235, %c0_236, %c0_237], %568 {strides = array<i32>} : memref<2x8x128xf32, #tpu.memory_space<vmem>>, vector<2x8x128xf32>,
    } else {
    }
    return
  }
  func.func @transform_0(%arg0: i32) -> (i32, i32) {
    %c0_i32 = arith.constant 0 : i32
    %c0_i32_0 = arith.constant 0 : i32
    %c0_i32_1 = arith.constant 0 : i32
    return %c0_i32, %c0_i32_0 : i32, i32
  }
  func.func @transform_1(%arg0: i32) -> (i32, i32) {
    %c0_i32 = arith.constant 0 : i32
    %c0_i32_0 = arith.constant 0 : i32
    %c0_i32_1 = arith.constant 0 : i32
    return %c0_i32, %c0_i32_0 : i32, i32
  }
  func.func @transform_2(%arg0: i32) -> (i32, i32) {
    %c0_i32 = arith.constant 0 : i32
    %c0_i32_0 = arith.constant 0 : i32
    %c0_i32_1 = arith.constant 0 : i32
    return %c0_i32, %c0_i32_0 : i32, i32
  }
  func.func @transform_3(%arg0: i32) -> (i32, i32, i32) {
    %c0_i32 = arith.constant 0 : i32
    %c0_i32_0 = arith.constant 0 : i32
    %c0_i32_1 = arith.constant 0 : i32
    return %arg0, %c0_i32, %c0_i32_0 : i32, i32, i32
  }
  func.func @transform_4(%arg0: i32) -> (i32, i32, i32) {
    %c0_i32 = arith.constant 0 : i32
    %c0_i32_0 = arith.constant 0 : i32
    %c0_i32_1 = arith.constant 0 : i32
    return %arg0, %c0_i32, %c0_i32_0 : i32, i32, i32
  }
  func.func @transform_5(%arg0: i32) -> (i32, i32, i32) {
    %c0_i32 = arith.constant 0 : i32
    %c0_i32_0 = arith.constant 0 : i32
    %c0_i32_1 = arith.constant 0 : i32
    return %arg0, %c0_i32, %c0_i32_0 : i32, i32, i32
  }
  func.func @transform_6(%arg0: i32) -> (i32, i32, i32, i32) {
    %c0_i32 = arith.constant 0 : i32
    %c0_i32_0 = arith.constant 0 : i32
    %c0_i32_1 = arith.constant 0 : i32
    %c0_i32_2 = arith.constant 0 : i32
    return %arg0, %c0_i32, %c0_i32_0, %c0_i32_1 : i32, i32, i32, i32
  }
  func.func @transform_7(%arg0: i32) -> (i32, i32, i32, i32) {
    %c0_i32 = arith.constant 0 : i32
    %c0_i32_0 = arith.constant 0 : i32
    %c0_i32_1 = arith.constant 0 : i32
    %c0_i32_2 = arith.constant 0 : i32
    return %arg0, %c0_i32, %c0_i32_0, %c0_i32_1 : i32, i32, i32, i32
  }
  func.func @transform_8(%arg0: i32) -> (i32, i32, i32) {
    %c0_i32 = arith.constant 0 : i32
    %c0_i32_0 = arith.constant 0 : i32
    %c0_i32_1 = arith.constant 0 : i32
    return %arg0, %c0_i32, %c0_i32_0 : i32, i32, i32
  }
  func.func @transform_9(%arg0: i32) -> (i32, i32, i32) {
    %c0_i32 = arith.constant 0 : i32
    %c0_i32_0 = arith.constant 0 : i32
    %c0_i32_1 = arith.constant 0 : i32
    return %arg0, %c0_i32, %c0_i32_0 : i32, i32, i32
  }
  func.func @transform_10(%arg0: i32) -> (i32, i32) {
    %c0_i32 = arith.constant 0 : i32
    %c0_i32_0 = arith.constant 0 : i32
    %c0_i32_1 = arith.constant 0 : i32
    return %c0_i32, %c0_i32_0 : i32, i32
  }
  func.func @transform_11(%arg0: i32) -> (i32, i32) {
    %c0_i32 = arith.constant 0 : i32
    %c0_i32_0 = arith.constant 0 : i32
    %c0_i32_1 = arith.constant 0 : i32
    return %c0_i32, %c0_i32_0 : i32, i32
  }
  func.func @transform_12(%arg0: i32) -> (i32, i32) {
    %c0_i32 = arith.constant 0 : i32
    %c0_i32_0 = arith.constant 0 : i32
    %c0_i32_1 = arith.constant 0 : i32
    return %c0_i32, %c0_i32_0 : i32, i32
  }
  func.func @transform_13(%arg0: i32) -> (i32, i32) {
    %c0_i32 = arith.constant 0 : i32
    %c0_i32_0 = arith.constant 0 : i32
    %c0_i32_1 = arith.constant 0 : i32
    return %c0_i32, %c0_i32_0 : i32, i32
  }
  func.func @transform_14(%arg0: i32) -> (i32, i32, i32) {
    %c0_i32 = arith.constant 0 : i32
    %c0_i32_0 = arith.constant 0 : i32
    %c0_i32_1 = arith.constant 0 : i32
    %c0_i32_2 = arith.constant 0 : i32
    return %c0_i32, %c0_i32_0, %c0_i32_1 : i32, i32, i32
  }
  func.func @transform_15(%arg0: i32) -> (i32, i32, i32) {
    %c0_i32 = arith.constant 0 : i32
    %c0_i32_0 = arith.constant 0 : i32
    %c0_i32_1 = arith.constant 0 : i32
    %c0_i32_2 = arith.constant 0 : i32
    return %c0_i32, %c0_i32_0, %c0_i32_1 : i32, i32, i32
  }
  func.func @transform_16(%arg0: i32) -> (i32, i32) {
    %c0_i32 = arith.constant 0 : i32
    %c0_i32_0 = arith.constant 0 : i32
    %c0_i32_1 = arith.constant 0 : i32
    return %c0_i32, %c0_i32_0 : i32, i32
  }
  func.func @transform_17(%arg0: i32) -> (i32, i32) {
    %c0_i32 = arith.constant 0 : i32
    %c0_i32_0 = arith.constant 0 : i32
    %c0_i32_1 = arith.constant 0 : i32
    return %c0_i32, %c0_i32_0 : i32, i32
  }
  func.func @transform_18(%arg0: i32) -> (i32, i32, i32) {
    %c0_i32 = arith.constant 0 : i32
    %c0_i32_0 = arith.constant 0 : i32
    %c0_i32_1 = arith.constant 0 : i32
    %c0_i32_2 = arith.constant 0 : i32
    return %c0_i32, %c0_i32_0, %c0_i32_1 : i32, i32, i32
  }
}

</mosaic_0001>

<llo_original>
// kernel: upt_context_perc_approximator.1
$region0: #{upt_context_perc_approximator.1}
  #allocation0 [shape = 'u32[]', space=smem, size = 0x4, offset = 0x4, fixed_abs, tag = 'smem constant byte address 0x4 - core index']
  #allocation1 [shape = 'u32[144,128]{1,0:T(1,128)}', space=vmem, size = 0x12000, scoped, tag = 'internal scratch']
  #allocation2 [shape = 'f32[64,128]{1,0:T(8,128)}', space=vmem, size = 0x8000, scoped, tag = 'scratch operand']
  %s0 = inlined_call_operand.vmem [shape: f32[64,96], index: 0, kind: input, shape index: {}]
  %s1 = inlined_call_operand.vmem [shape: bf16[96,128], index: 1, kind: input, shape index: {}]
  %s2 = inlined_call_operand.vmem [shape: f32[64,128], index: 2, kind: input, shape index: {}]
  %s3 = inlined_call_operand.vmem [shape: f32[2,6,128], index: 3, kind: input, shape index: {}]
  %s4 = inlined_call_operand.vmem [shape: f32[2,1,512], index: 4, kind: input, shape index: {}]
  %s5 = inlined_call_operand.vmem [shape: f32[2,8,32], index: 5, kind: input, shape index: {}]
  %s6 = inlined_call_operand.vmem [shape: bf16[2,12,128,32], index: 6, kind: input, shape index: {}]
  %s7 = inlined_call_operand.vmem [shape: bf16[2,4,32,128], index: 7, kind: input, shape index: {}]
  %s8 = inlined_call_operand.vmem [shape: bf16[2,128,512], index: 8, kind: input, shape index: {}]
  %s9 = inlined_call_operand.vmem [shape: bf16[2,512,128], index: 9, kind: input, shape index: {}]
  %s10 = inlined_call_operand.vmem [shape: f32[8,128], index: 10, kind: input, shape index: {}]
  %s11 = inlined_call_operand.vmem [shape: f32[8,128], index: 11, kind: input, shape index: {}]
  %s12 = inlined_call_operand.vmem [shape: f32[1,512], index: 12, kind: input, shape index: {}]
  %s13 = inlined_call_operand.vmem [shape: f32[8,32], index: 13, kind: input, shape index: {}]
  %s14 = inlined_call_operand.vmem [shape: bf16[12,128,32], index: 14, kind: input, shape index: {}]
  %s15 = inlined_call_operand.vmem [shape: bf16[4,32,128], index: 15, kind: input, shape index: {}]
  %s16 = inlined_call_operand.vmem [shape: bf16[128,512], index: 16, kind: input, shape index: {}]
  %s17 = inlined_call_operand.vmem [shape: bf16[512,128], index: 17, kind: input, shape index: {}]
  %s18 = inlined_call_operand.hbm [shape: f32[2,8,128], index: 18, kind: output, shape index: {}]
  %s19 = sld [smem:[#allocation0]]
  $region113: #{upt_context_perc_approximator.1} parent=0
    _
  %s21 = ssub.s32 1, %s19
  %s22 = scalar_select 0, %s21, %s19
  $region1: #{upt_context_perc_approximator.1} parent=0
    #allocation3 [shape = 'u8[8192]{0}', space=vmem, size = 0x2000, scoped, tag = 'output window, operand 0, single buffered']
    #allocation4 [shape = 's32[2]{0}', space=sflag, size = 0x8, scoped, tag = 'scoped memory for upt_context_perc_approximator.1']
    %23 = vsyncpa [#allocation4], 0
    loop: start=0, step=1, limit=4
    $region2: #{upt_context_perc_approximator.1} parent=1 // loop_pre_header
      _
    $region3: #{upt_context_perc_approximator.1} parent=1 // loop_header
      %s25 = sphi 0, %s29
      %p26 = scmp.ge.s32.totalorder %s25, 4
      %s33 = sphi 0, %s33
      %s35 = sphi 0, %s33
      %s36 = sphi 0, %s35
      %s50 = sphi 0, %s36
      %s54 = sphi 0, %s54
      %s56 = sphi 0, %s54
      %s57 = sphi 0, %s56
      %s71 = sphi 0, %s57
      %s75 = sphi 0, %s75
      %s77 = sphi 0, %s75
      %s78 = sphi 0, %s77
      %s92 = sphi 0, %s78
      %s98 = sphi 0, %s100
      %s101 = sphi 0, %s98
      %s102 = sphi 0, %s101
      %s118 = sphi 0, %s102
      %s124 = sphi 0, %s126
      %s127 = sphi 0, %s124
      %s128 = sphi 0, %s127
      %s144 = sphi 0, %s128
      %s150 = sphi 0, %s152
      %s153 = sphi 0, %s150
      %s154 = sphi 0, %s153
      %s170 = sphi 0, %s154
      %s176 = sphi 0, %s178
      %s179 = sphi 0, %s176
      %s180 = sphi 0, %s179
      %s196 = sphi 0, %s180
      %s202 = sphi 0, %s204
      %s205 = sphi 0, %s202
      %s206 = sphi 0, %s205
      %s222 = sphi 0, %s206
      %s228 = sphi 0, %s230
      %s231 = sphi 0, %s228
      %s232 = sphi 0, %s231
      %s248 = sphi 0, %s232
      %s254 = sphi 0, %s256
      %s257 = sphi 0, %s254
      %s258 = sphi 0, %s257
      %s274 = sphi 0, %s258
      %s278 = sphi 0, %s278
      %s280 = sphi 0, %s278
      %s281 = sphi 0, %s280
      %s295 = sphi 0, %s281
      %s299 = sphi 0, %s299
      %s301 = sphi 0, %s299
      %s302 = sphi 0, %s301
      %s316 = sphi 0, %s302
      %s320 = sphi 0, %s320
      %s322 = sphi 0, %s320
      %s323 = sphi 0, %s322
      %s337 = sphi 0, %s323
      %s341 = sphi 0, %s341
      %s343 = sphi 0, %s341
      %s344 = sphi 0, %s343
      %s358 = sphi 0, %s344
      %s362 = sphi 0, %s362
      %s364 = sphi 0, %s362
      %s365 = sphi 0, %s364
      %s379 = sphi 0, %s365
      %s383 = sphi 0, %s383
      %s385 = sphi 0, %s383
      %s386 = sphi 0, %s385
      %s400 = sphi 0, %s386
      %s404 = sphi 0, %s404
      %s406 = sphi 0, %s404
      %s407 = sphi 0, %s406
      %s421 = sphi 0, %s407
      %s425 = sphi 0, %s425
      %s427 = sphi 0, %s425
      %s428 = sphi 0, %s427
      %s442 = sphi 0, %s428
      %s446 = sphi 0, %s446
      %s448 = sphi 0, %s446
      %s449 = sphi 0, %s448
      %s463 = sphi 0, %s449
    $region4: #{upt_context_perc_approximator.1} parent=1 // loop_header_branch
      %28 = sbr.rel (%p26) target = $region8
    $region5: #{upt_context_perc_approximator.1} parent=1 // loop_body
      %s30 = ssub.s32 %s25, 1
      %s31 = ssub.s32 %s25, 2
      %s32 = sadd.s32 %s25, 1
      %s34 = sadd.s32 %s33, 1
      %p37 = scmp.eq.s32.totalorder %s25, 1
      %p38 = scmp.ne.s32.totalorder %s33, %s35
      %p39 = scmp.eq.s32.totalorder %s25, 0
      %p40 = por %p38, %p39
      %p41 = scmp.ne.s32.totalorder %s33, %s35
      %p42 = scmp.eq.s32.totalorder %s30, 1
      %p43 = por %p41, %p42
      %p44 = scmp.ne.s32.totalorder %s35, %s36
      %p45 = scmp.eq.s32.totalorder %s30, 0
      %p46 = por %p44, %p45
      %p47 = scmp.ne.s32.totalorder %s35, %s36
      %p48 = scmp.eq.s32.totalorder %s31, 1
      %p49 = por %p47, %p48
      %p51 = scmp.ne.s32.totalorder %s36, %s50
      %p52 = scmp.eq.s32.totalorder %s31, 0
      %p53 = por %p51, %p52
      %s55 = sadd.s32 %s54, 1
      %p58 = scmp.eq.s32.totalorder %s25, 1
      %p59 = scmp.ne.s32.totalorder %s54, %s56
      %p60 = scmp.eq.s32.totalorder %s25, 0
      %p61 = por %p59, %p60
      %p62 = scmp.ne.s32.totalorder %s54, %s56
      %p63 = scmp.eq.s32.totalorder %s30, 1
      %p64 = por %p62, %p63
      %p65 = scmp.ne.s32.totalorder %s56, %s57
      %p66 = scmp.eq.s32.totalorder %s30, 0
      %p67 = por %p65, %p66
      %p68 = scmp.ne.s32.totalorder %s56, %s57
      %p69 = scmp.eq.s32.totalorder %s31, 1
      %p70 = por %p68, %p69
      %p72 = scmp.ne.s32.totalorder %s57, %s71
      %p73 = scmp.eq.s32.totalorder %s31, 0
      %p74 = por %p72, %p73
      %s76 = sadd.s32 %s75, 1
      %p79 = scmp.eq.s32.totalorder %s25, 1
      %p80 = scmp.ne.s32.totalorder %s75, %s77
      %p81 = scmp.eq.s32.totalorder %s25, 0
      %p82 = por %p80, %p81
      %p83 = scmp.ne.s32.totalorder %s75, %s77
      %p84 = scmp.eq.s32.totalorder %s30, 1
      %p85 = por %p83, %p84
      %p86 = scmp.ne.s32.totalorder %s77, %s78
      %p87 = scmp.eq.s32.totalorder %s30, 0
      %p88 = por %p86, %p87
      %p89 = scmp.ne.s32.totalorder %s77, %s78
      %p90 = scmp.eq.s32.totalorder %s31, 1
      %p91 = por %p89, %p90
      %p93 = scmp.ne.s32.totalorder %s78, %s92
      %p94 = scmp.eq.s32.totalorder %s31, 0
      %p95 = por %p93, %p94
      %s96 = ssub.s32 %s25, %s32
      %p97 = scmp.eq.s32.totalorder %s96, 0
      %s99 = sadd.s32 %s98, 1
      %s100 = scalar_select %p97, %s98, %s99
      %p103 = pneg %p97
      %p104 = scmp.eq.s32.totalorder %s25, 1
      %p105 = por %p103, %p104
      %p106 = scmp.ne.s32.totalorder %s98, %s101
      %p107 = scmp.eq.s32.totalorder %s25, 0
      %p108 = por %p106, %p107
      %p109 = scmp.ne.s32.totalorder %s98, %s101
      %p110 = scmp.eq.s32.totalorder %s30, 1
      %p111 = por %p109, %p110
      %p112 = scmp.ne.s32.totalorder %s101, %s102
      %p113 = scmp.eq.s32.totalorder %s30, 0
      %p114 = por %p112, %p113
      %p115 = scmp.ne.s32.totalorder %s101, %s102
      %p116 = scmp.eq.s32.totalorder %s31, 1
      %p117 = por %p115, %p116
      %p119 = scmp.ne.s32.totalorder %s102, %s118
      %p120 = scmp.eq.s32.totalorder %s31, 0
      %p121 = por %p119, %p120
      %s122 = ssub.s32 %s25, %s32
      %p123 = scmp.eq.s32.totalorder %s122, 0
      %s125 = sadd.s32 %s124, 1
      %s126 = scalar_select %p123, %s124, %s125
      %p129 = pneg %p123
      %p130 = scmp.eq.s32.totalorder %s25, 1
      %p131 = por %p129, %p130
      %p132 = scmp.ne.s32.totalorder %s124, %s127
      %p133 = scmp.eq.s32.totalorder %s25, 0
      %p134 = por %p132, %p133
      %p135 = scmp.ne.s32.totalorder %s124, %s127
      %p136 = scmp.eq.s32.totalorder %s30, 1
      %p137 = por %p135, %p136
      %p138 = scmp.ne.s32.totalorder %s127, %s128
      %p139 = scmp.eq.s32.totalorder %s30, 0
      %p140 = por %p138, %p139
      %p141 = scmp.ne.s32.totalorder %s127, %s128
      %p142 = scmp.eq.s32.totalorder %s31, 1
      %p143 = por %p141, %p142
      %p145 = scmp.ne.s32.totalorder %s128, %s144
      %p146 = scmp.eq.s32.totalorder %s31, 0
      %p147 = por %p145, %p146
      %s148 = ssub.s32 %s25, %s32
      %p149 = scmp.eq.s32.totalorder %s148, 0
      %s151 = sadd.s32 %s150, 1
      %s152 = scalar_select %p149, %s150, %s151
      %p155 = pneg %p149
      %p156 = scmp.eq.s32.totalorder %s25, 1
      %p157 = por %p155, %p156
      %p158 = scmp.ne.s32.totalorder %s150, %s153
      %p159 = scmp.eq.s32.totalorder %s25, 0
      %p160 = por %p158, %p159
      %p161 = scmp.ne.s32.totalorder %s150, %s153
      %p162 = scmp.eq.s32.totalorder %s30, 1
      %p163 = por %p161, %p162
      %p164 = scmp.ne.s32.totalorder %s153, %s154
      %p165 = scmp.eq.s32.totalorder %s30, 0
      %p166 = por %p164, %p165
      %p167 = scmp.ne.s32.totalorder %s153, %s154
      %p168 = scmp.eq.s32.totalorder %s31, 1
      %p169 = por %p167, %p168
      %p171 = scmp.ne.s32.totalorder %s154, %s170
      %p172 = scmp.eq.s32.totalorder %s31, 0
      %p173 = por %p171, %p172
      %s174 = ssub.s32 %s25, %s32
      %p175 = scmp.eq.s32.totalorder %s174, 0
      %s177 = sadd.s32 %s176, 1
      %s178 = scalar_select %p175, %s176, %s177
      %p181 = pneg %p175
      %p182 = scmp.eq.s32.totalorder %s25, 1
      %p183 = por %p181, %p182
      %p184 = scmp.ne.s32.totalorder %s176, %s179
      %p185 = scmp.eq.s32.totalorder %s25, 0
      %p186 = por %p184, %p185
      %p187 = scmp.ne.s32.totalorder %s176, %s179
      %p188 = scmp.eq.s32.totalorder %s30, 1
      %p189 = por %p187, %p188
      %p190 = scmp.ne.s32.totalorder %s179, %s180
      %p191 = scmp.eq.s32.totalorder %s30, 0
      %p192 = por %p190, %p191
      %p193 = scmp.ne.s32.totalorder %s179, %s180
      %p194 = scmp.eq.s32.totalorder %s31, 1
      %p195 = por %p193, %p194
      %p197 = scmp.ne.s32.totalorder %s180, %s196
      %p198 = scmp.eq.s32.totalorder %s31, 0
      %p199 = por %p197, %p198
      %s200 = ssub.s32 %s25, %s32
      %p201 = scmp.eq.s32.totalorder %s200, 0
      %s203 = sadd.s32 %s202, 1
      %s204 = scalar_select %p201, %s202, %s203
      %p207 = pneg %p201
      %p208 = scmp.eq.s32.totalorder %s25, 1
      %p209 = por %p207, %p208
      %p210 = scmp.ne.s32.totalorder %s202, %s205
      %p211 = scmp.eq.s32.totalorder %s25, 0
      %p212 = por %p210, %p211
      %p213 = scmp.ne.s32.totalorder %s202, %s205
      %p214 = scmp.eq.s32.totalorder %s30, 1
      %p215 = por %p213, %p214
      %p216 = scmp.ne.s32.totalorder %s205, %s206
      %p217 = scmp.eq.s32.totalorder %s30, 0
      %p218 = por %p216, %p217
      %p219 = scmp.ne.s32.totalorder %s205, %s206
      %p220 = scmp.eq.s32.totalorder %s31, 1
      %p221 = por %p219, %p220
      %p223 = scmp.ne.s32.totalorder %s206, %s222
      %p224 = scmp.eq.s32.totalorder %s31, 0
      %p225 = por %p223, %p224
      %s226 = ssub.s32 %s25, %s32
      %p227 = scmp.eq.s32.totalorder %s226, 0
      %s229 = sadd.s32 %s228, 1
      %s230 = scalar_select %p227, %s228, %s229
      %p233 = pneg %p227
      %p234 = scmp.eq.s32.totalorder %s25, 1
      %p235 = por %p233, %p234
      %p236 = scmp.ne.s32.totalorder %s228, %s231
      %p237 = scmp.eq.s32.totalorder %s25, 0
      %p238 = por %p236, %p237
      %p239 = scmp.ne.s32.totalorder %s228, %s231
      %p240 = scmp.eq.s32.totalorder %s30, 1
      %p241 = por %p239, %p240
      %p242 = scmp.ne.s32.totalorder %s231, %s232
      %p243 = scmp.eq.s32.totalorder %s30, 0
      %p244 = por %p242, %p243
      %p245 = scmp.ne.s32.totalorder %s231, %s232
      %p246 = scmp.eq.s32.totalorder %s31, 1
      %p247 = por %p245, %p246
      %p249 = scmp.ne.s32.totalorder %s232, %s248
      %p250 = scmp.eq.s32.totalorder %s31, 0
      %p251 = por %p249, %p250
      %s252 = ssub.s32 %s25, %s32
      %p253 = scmp.eq.s32.totalorder %s252, 0
      %s255 = sadd.s32 %s254, 1
      %s256 = scalar_select %p253, %s254, %s255
      %p259 = pneg %p253
      %p260 = scmp.eq.s32.totalorder %s25, 1
      %p261 = por %p259, %p260
      %p262 = scmp.ne.s32.totalorder %s254, %s257
      %p263 = scmp.eq.s32.totalorder %s25, 0
      %p264 = por %p262, %p263
      %p265 = scmp.ne.s32.totalorder %s254, %s257
      %p266 = scmp.eq.s32.totalorder %s30, 1
      %p267 = por %p265, %p266
      %p268 = scmp.ne.s32.totalorder %s257, %s258
      %p269 = scmp.eq.s32.totalorder %s30, 0
      %p270 = por %p268, %p269
      %p271 = scmp.ne.s32.totalorder %s257, %s258
      %p272 = scmp.eq.s32.totalorder %s31, 1
      %p273 = por %p271, %p272
      %p275 = scmp.ne.s32.totalorder %s258, %s274
      %p276 = scmp.eq.s32.totalorder %s31, 0
      %p277 = por %p275, %p276
      %s279 = sadd.s32 %s278, 1
      %p282 = scmp.eq.s32.totalorder %s25, 1
      %p283 = scmp.ne.s32.totalorder %s278, %s280
      %p284 = scmp.eq.s32.totalorder %s25, 0
      %p285 = por %p283, %p284
      %p286 = scmp.ne.s32.totalorder %s278, %s280
      %p287 = scmp.eq.s32.totalorder %s30, 1
      %p288 = por %p286, %p287
      %p289 = scmp.ne.s32.totalorder %s280, %s281
      %p290 = scmp.eq.s32.totalorder %s30, 0
      %p291 = por %p289, %p290
      %p292 = scmp.ne.s32.totalorder %s280, %s281
      %p293 = scmp.eq.s32.totalorder %s31, 1
      %p294 = por %p292, %p293
      %p296 = scmp.ne.s32.totalorder %s281, %s295
      %p297 = scmp.eq.s32.totalorder %s31, 0
      %p298 = por %p296, %p297
      %s300 = sadd.s32 %s299, 1
      %p303 = scmp.eq.s32.totalorder %s25, 1
      %p304 = scmp.ne.s32.totalorder %s299, %s301
      %p305 = scmp.eq.s32.totalorder %s25, 0
      %p306 = por %p304, %p305
      %p307 = scmp.ne.s32.totalorder %s299, %s301
      %p308 = scmp.eq.s32.totalorder %s30, 1
      %p309 = por %p307, %p308
      %p310 = scmp.ne.s32.totalorder %s301, %s302
      %p311 = scmp.eq.s32.totalorder %s30, 0
      %p312 = por %p310, %p311
      %p313 = scmp.ne.s32.totalorder %s301, %s302
      %p314 = scmp.eq.s32.totalorder %s31, 1
      %p315 = por %p313, %p314
      %p317 = scmp.ne.s32.totalorder %s302, %s316
      %p318 = scmp.eq.s32.totalorder %s31, 0
      %p319 = por %p317, %p318
      %s321 = sadd.s32 %s320, 1
      %p324 = scmp.eq.s32.totalorder %s25, 1
      %p325 = scmp.ne.s32.totalorder %s320, %s322
      %p326 = scmp.eq.s32.totalorder %s25, 0
      %p327 = por %p325, %p326
      %p328 = scmp.ne.s32.totalorder %s320, %s322
      %p329 = scmp.eq.s32.totalorder %s30, 1
      %p330 = por %p328, %p329
      %p331 = scmp.ne.s32.totalorder %s322, %s323
      %p332 = scmp.eq.s32.totalorder %s30, 0
      %p333 = por %p331, %p332
      %p334 = scmp.ne.s32.totalorder %s322, %s323
      %p335 = scmp.eq.s32.totalorder %s31, 1
      %p336 = por %p334, %p335
      %p338 = scmp.ne.s32.totalorder %s323, %s337
      %p339 = scmp.eq.s32.totalorder %s31, 0
      %p340 = por %p338, %p339
      %s342 = sadd.s32 %s341, 1
      %p345 = scmp.eq.s32.totalorder %s25, 1
      %p346 = scmp.ne.s32.totalorder %s341, %s343
      %p347 = scmp.eq.s32.totalorder %s25, 0
      %p348 = por %p346, %p347
      %p349 = scmp.ne.s32.totalorder %s341, %s343
      %p350 = scmp.eq.s32.totalorder %s30, 1
      %p351 = por %p349, %p350
      %p352 = scmp.ne.s32.totalorder %s343, %s344
      %p353 = scmp.eq.s32.totalorder %s30, 0
      %p354 = por %p352, %p353
      %p355 = scmp.ne.s32.totalorder %s343, %s344
      %p356 = scmp.eq.s32.totalorder %s31, 1
      %p357 = por %p355, %p356
      %p359 = scmp.ne.s32.totalorder %s344, %s358
      %p360 = scmp.eq.s32.totalorder %s31, 0
      %p361 = por %p359, %p360
      %s363 = sadd.s32 %s362, 1
      %p366 = scmp.eq.s32.totalorder %s25, 1
      %p367 = scmp.ne.s32.totalorder %s362, %s364
      %p368 = scmp.eq.s32.totalorder %s25, 0
      %p369 = por %p367, %p368
      %p370 = scmp.ne.s32.totalorder %s362, %s364
      %p371 = scmp.eq.s32.totalorder %s30, 1
      %p372 = por %p370, %p371
      %p373 = scmp.ne.s32.totalorder %s364, %s365
      %p374 = scmp.eq.s32.totalorder %s30, 0
      %p375 = por %p373, %p374
      %p376 = scmp.ne.s32.totalorder %s364, %s365
      %p377 = scmp.eq.s32.totalorder %s31, 1
      %p378 = por %p376, %p377
      %p380 = scmp.ne.s32.totalorder %s365, %s379
      %p381 = scmp.eq.s32.totalorder %s31, 0
      %p382 = por %p380, %p381
      %s384 = sadd.s32 %s383, 1
      %p387 = scmp.eq.s32.totalorder %s25, 1
      %p388 = scmp.ne.s32.totalorder %s383, %s385
      %p389 = scmp.eq.s32.totalorder %s25, 0
      %p390 = por %p388, %p389
      %p391 = scmp.ne.s32.totalorder %s383, %s385
      %p392 = scmp.eq.s32.totalorder %s30, 1
      %p393 = por %p391, %p392
      %p394 = scmp.ne.s32.totalorder %s385, %s386
      %p395 = scmp.eq.s32.totalorder %s30, 0
      %p396 = por %p394, %p395
      %p397 = scmp.ne.s32.totalorder %s385, %s386
      %p398 = scmp.eq.s32.totalorder %s31, 1
      %p399 = por %p397, %p398
      %p401 = scmp.ne.s32.totalorder %s386, %s400
      %p402 = scmp.eq.s32.totalorder %s31, 0
      %p403 = por %p401, %p402
      %s405 = sadd.s32 %s404, 1
      %p408 = scmp.eq.s32.totalorder %s25, 1
      %p409 = scmp.ne.s32.totalorder %s404, %s406
      %p410 = scmp.eq.s32.totalorder %s25, 0
      %p411 = por %p409, %p410
      %p412 = scmp.ne.s32.totalorder %s404, %s406
      %p413 = scmp.eq.s32.totalorder %s30, 1
      %p414 = por %p412, %p413
      %p415 = scmp.ne.s32.totalorder %s406, %s407
      %p416 = scmp.eq.s32.totalorder %s30, 0
      %p417 = por %p415, %p416
      %p418 = scmp.ne.s32.totalorder %s406, %s407
      %p419 = scmp.eq.s32.totalorder %s31, 1
      %p420 = por %p418, %p419
      %p422 = scmp.ne.s32.totalorder %s407, %s421
      %p423 = scmp.eq.s32.totalorder %s31, 0
      %p424 = por %p422, %p423
      %s426 = sadd.s32 %s425, 1
      %p429 = scmp.eq.s32.totalorder %s25, 1
      %p430 = scmp.ne.s32.totalorder %s425, %s427
      %p431 = scmp.eq.s32.totalorder %s25, 0
      %p432 = por %p430, %p431
      %p433 = scmp.ne.s32.totalorder %s425, %s427
      %p434 = scmp.eq.s32.totalorder %s30, 1
      %p435 = por %p433, %p434
      %p436 = scmp.ne.s32.totalorder %s427, %s428
      %p437 = scmp.eq.s32.totalorder %s30, 0
      %p438 = por %p436, %p437
      %p439 = scmp.ne.s32.totalorder %s427, %s428
      %p440 = scmp.eq.s32.totalorder %s31, 1
      %p441 = por %p439, %p440
      %p443 = scmp.ne.s32.totalorder %s428, %s442
      %p444 = scmp.eq.s32.totalorder %s31, 0
      %p445 = por %p443, %p444
      %s447 = sadd.s32 %s446, 1
      %p450 = scmp.eq.s32.totalorder %s25, 1
      %p451 = scmp.ne.s32.totalorder %s446, %s448
      %p452 = scmp.eq.s32.totalorder %s25, 0
      %p453 = por %p451, %p452
      %p454 = scmp.ne.s32.totalorder %s446, %s448
      %p455 = scmp.eq.s32.totalorder %s30, 1
      %p456 = por %p454, %p455
      %p457 = scmp.ne.s32.totalorder %s448, %s449
      %p458 = scmp.eq.s32.totalorder %s30, 0
      %p459 = por %p457, %p458
      %p460 = scmp.ne.s32.totalorder %s448, %s449
      %p461 = scmp.eq.s32.totalorder %s31, 1
      %p462 = por %p460, %p461
      %p464 = scmp.ne.s32.totalorder %s449, %s463
      %p465 = scmp.eq.s32.totalorder %s31, 0
      %p466 = por %p464, %p465
      %p467 = scmp.le.s32.totalorder 1, %s25
      %p468 = scmp.lt.s32.totalorder %s25, 3
      %p469 = pnand %p467, %p468
      %p470 = pneg %p469
      // Predicated region
      $region9: #{upt_context_perc_approximator.1} parent=5 // pred_check
        _
      $region10: #{upt_context_perc_approximator.1} parent=5 // pred_check_branch
        %472 = sbr.rel (%p469) target = $region12
      $region11: #{upt_context_perc_approximator.1} parent=5 // pred_region
        %s473 = ssub.s32 %s25, 1
        // Predicated region
        $region13: #{upt_context_perc_approximator.1} parent=11 // pred_check
          %p474 = pneg %p46
        $region14: #{upt_context_perc_approximator.1} parent=11 // pred_check_branch
          %476 = sbr.rel (%p474) target = $region16
        $region15: #{upt_context_perc_approximator.1} parent=11 // pred_region
          _
        $region16: #{upt_context_perc_approximator.1} parent=11 // pred_fallthru
          _
        // Predicated region
        $region17: #{upt_context_perc_approximator.1} parent=11 // pred_check
          %p477 = pneg %p67
        $region18: #{upt_context_perc_approximator.1} parent=11 // pred_check_branch
          %479 = sbr.rel (%p477) target = $region20
        $region19: #{upt_context_perc_approximator.1} parent=11 // pred_region
          _
        $region20: #{upt_context_perc_approximator.1} parent=11 // pred_fallthru
          _
        // Predicated region
        $region21: #{upt_context_perc_approximator.1} parent=11 // pred_check
          %p480 = pneg %p88
        $region22: #{upt_context_perc_approximator.1} parent=11 // pred_check_branch
          %482 = sbr.rel (%p480) target = $region24
        $region23: #{upt_context_perc_approximator.1} parent=11 // pred_region
          _
        $region24: #{upt_context_perc_approximator.1} parent=11 // pred_fallthru
          _
        // Predicated region
        $region25: #{upt_context_perc_approximator.1} parent=11 // pred_check
          %p483 = pneg %p291
        $region26: #{upt_context_perc_approximator.1} parent=11 // pred_check_branch
          %485 = sbr.rel (%p483) target = $region28
        $region27: #{upt_context_perc_approximator.1} parent=11 // pred_region
          _
        $region28: #{upt_context_perc_approximator.1} parent=11 // pred_fallthru
          _
        // Predicated region
        $region29: #{upt_context_perc_approximator.1} parent=11 // pred_check
          %p486 = pneg %p312
        $region30: #{upt_context_perc_approximator.1} parent=11 // pred_check_branch
          %488 = sbr.rel (%p486) target = $region32
        $region31: #{upt_context_perc_approximator.1} parent=11 // pred_region
          _
        $region32: #{upt_context_perc_approximator.1} parent=11 // pred_fallthru
          _
        // Predicated region
        $region33: #{upt_context_perc_approximator.1} parent=11 // pred_check
          %p489 = pneg %p333
        $region34: #{upt_context_perc_approximator.1} parent=11 // pred_check_branch
          %491 = sbr.rel (%p489) target = $region36
        $region35: #{upt_context_perc_approximator.1} parent=11 // pred_region
          _
        $region36: #{upt_context_perc_approximator.1} parent=11 // pred_fallthru
          _
        // Predicated region
        $region37: #{upt_context_perc_approximator.1} parent=11 // pred_check
          %p492 = pneg %p354
        $region38: #{upt_context_perc_approximator.1} parent=11 // pred_check_branch
          %494 = sbr.rel (%p492) target = $region40
        $region39: #{upt_context_perc_approximator.1} parent=11 // pred_region
          _
        $region40: #{upt_context_perc_approximator.1} parent=11 // pred_fallthru
          _
        // Predicated region
        $region41: #{upt_context_perc_approximator.1} parent=11 // pred_check
          %p495 = pneg %p375
        $region42: #{upt_context_perc_approximator.1} parent=11 // pred_check_branch
          %497 = sbr.rel (%p495) target = $region44
        $region43: #{upt_context_perc_approximator.1} parent=11 // pred_region
          _
        $region44: #{upt_context_perc_approximator.1} parent=11 // pred_fallthru
          _
        // Predicated region
        $region45: #{upt_context_perc_approximator.1} parent=11 // pred_check
          %p498 = pneg %p396
        $region46: #{upt_context_perc_approximator.1} parent=11 // pred_check_branch
          %500 = sbr.rel (%p498) target = $region48
        $region47: #{upt_context_perc_approximator.1} parent=11 // pred_region
          _
        $region48: #{upt_context_perc_approximator.1} parent=11 // pred_fallthru
          _
        // Predicated region
        $region49: #{upt_context_perc_approximator.1} parent=11 // pred_check
          %p501 = pneg %p417
        $region50: #{upt_context_perc_approximator.1} parent=11 // pred_check_branch
          %503 = sbr.rel (%p501) target = $region52
        $region51: #{upt_context_perc_approximator.1} parent=11 // pred_region
          _
        $region52: #{upt_context_perc_approximator.1} parent=11 // pred_fallthru
          _
        // Predicated region
        $region53: #{upt_context_perc_approximator.1} parent=11 // pred_check
          %p504 = pneg %p438
        $region54: #{upt_context_perc_approximator.1} parent=11 // pred_check_branch
          %506 = sbr.rel (%p504) target = $region56
        $region55: #{upt_context_perc_approximator.1} parent=11 // pred_region
          _
        $region56: #{upt_context_perc_approximator.1} parent=11 // pred_fallthru
          _
      $region12: #{upt_context_perc_approximator.1} parent=5 // pred_fallthru
        _
      %p507 = scmp.lt.s32.totalorder %s25, 2
      // Predicated region
      $region57: #{upt_context_perc_approximator.1} parent=5 // pred_check
        %p508 = pneg %p507
      $region58: #{upt_context_perc_approximator.1} parent=5 // pred_check_branch
        %510 = sbr.rel (%p508) target = $region60
      $region59: #{upt_context_perc_approximator.1} parent=5 // pred_region
        // Predicated region
        $region61: #{upt_context_perc_approximator.1} parent=59 // pred_check
          %p511 = pneg %p108
        $region62: #{upt_context_perc_approximator.1} parent=59 // pred_check_branch
          %513 = sbr.rel (%p511) target = $region64
        $region63: #{upt_context_perc_approximator.1} parent=59 // pred_region
          %p514 = scmp.lt.s32.totalorder %s25, 1
          %s515 = scalar_select %p514, %s25, 1
          %s516 = smul.addr %s515, 8
          %s517 = scalar_lea.vmem %s3, %s516
        $region64: #{upt_context_perc_approximator.1} parent=59 // pred_fallthru
          _
        // Predicated region
        $region65: #{upt_context_perc_approximator.1} parent=59 // pred_check
          %p518 = pneg %p134
        $region66: #{upt_context_perc_approximator.1} parent=59 // pred_check_branch
          %520 = sbr.rel (%p518) target = $region68
        $region67: #{upt_context_perc_approximator.1} parent=59 // pred_region
          %p521 = scmp.lt.s32.totalorder %s25, 1
          %s522 = scalar_select %p521, %s25, 1
          %s523 = smul.addr %s522, 4
          %s524 = scalar_lea.vmem %s4, %s523
        $region68: #{upt_context_perc_approximator.1} parent=59 // pred_fallthru
          _
        // Predicated region
        $region69: #{upt_context_perc_approximator.1} parent=59 // pred_check
          %p525 = pneg %p160
        $region70: #{upt_context_perc_approximator.1} parent=59 // pred_check_branch
          %527 = sbr.rel (%p525) target = $region72
        $region71: #{upt_context_perc_approximator.1} parent=59 // pred_region
          %p528 = scmp.lt.s32.totalorder %s25, 1
          %s529 = scalar_select %p528, %s25, 1
          %s530 = smul.addr %s529, 8
          %s531 = scalar_lea.vmem %s5, %s530
        $region72: #{upt_context_perc_approximator.1} parent=59 // pred_fallthru
          _
        // Predicated region
        $region73: #{upt_context_perc_approximator.1} parent=59 // pred_check
          %p532 = pneg %p186
        $region74: #{upt_context_perc_approximator.1} parent=59 // pred_check_branch
          %534 = sbr.rel (%p532) target = $region76
        $region75: #{upt_context_perc_approximator.1} parent=59 // pred_region
          %p535 = scmp.lt.s32.totalorder %s25, 1
          %s536 = scalar_select %p535, %s25, 1
          %s537 = smul.addr %s536, 192
          %s538 = smul.addr %s537, 4
          %s539 = scalar_lea.vmem %s6, %s538
        $region76: #{upt_context_perc_approximator.1} parent=59 // pred_fallthru
          _
        // Predicated region
        $region77: #{upt_context_perc_approximator.1} parent=59 // pred_check
          %p540 = pneg %p212
        $region78: #{upt_context_perc_approximator.1} parent=59 // pred_check_branch
          %542 = sbr.rel (%p540) target = $region80
        $region79: #{upt_context_perc_approximator.1} parent=59 // pred_region
          %p543 = scmp.lt.s32.totalorder %s25, 1
          %s544 = scalar_select %p543, %s25, 1
          %s545 = smul.addr %s544, 16
          %s546 = smul.addr %s545, 4
          %s547 = scalar_lea.vmem %s7, %s546
        $region80: #{upt_context_perc_approximator.1} parent=59 // pred_fallthru
          _
        // Predicated region
        $region81: #{upt_context_perc_approximator.1} parent=59 // pred_check
          %p548 = pneg %p238
        $region82: #{upt_context_perc_approximator.1} parent=59 // pred_check_branch
          %550 = sbr.rel (%p548) target = $region84
        $region83: #{upt_context_perc_approximator.1} parent=59 // pred_region
          %p551 = scmp.lt.s32.totalorder %s25, 1
          %s552 = scalar_select %p551, %s25, 1
          %s553 = smul.addr %s552, 64
          %s554 = smul.addr %s553, 4
          %s555 = scalar_lea.vmem %s8, %s554
        $region84: #{upt_context_perc_approximator.1} parent=59 // pred_fallthru
          _
        // Predicated region
        $region85: #{upt_context_perc_approximator.1} parent=59 // pred_check
          %p556 = pneg %p264
        $region86: #{upt_context_perc_approximator.1} parent=59 // pred_check_branch
          %558 = sbr.rel (%p556) target = $region88
        $region87: #{upt_context_perc_approximator.1} parent=59 // pred_region
          %p559 = scmp.lt.s32.totalorder %s25, 1
          %s560 = scalar_select %p559, %s25, 1
          %s561 = smul.addr %s560, 64
          %s562 = smul.addr %s561, 4
          %s563 = scalar_lea.vmem %s9, %s562
        $region88: #{upt_context_perc_approximator.1} parent=59 // pred_fallthru
          _
      $region60: #{upt_context_perc_approximator.1} parent=5 // pred_fallthru
        _
      %p564 = scmp.le.s32.totalorder 1, %s25
      %p565 = scmp.lt.s32.totalorder %s25, 3
      %p566 = pnand %p564, %p565
      %p567 = pneg %p566
      // Predicated region
      $region89: #{upt_context_perc_approximator.1} parent=5 // pred_check
        _
      $region90: #{upt_context_perc_approximator.1} parent=5 // pred_check_branch
        %569 = sbr.rel (%p566) target = $region92
      $region91: #{upt_context_perc_approximator.1} parent=5 // pred_region
        %s570 = ssub.s32 %s25, 1
        %p571 = pneg %p46
        %p572 = pneg %p43
        %p573 = pneg %p67
        %p574 = pneg %p64
        %p575 = pneg %p88
        %p576 = pneg %p85
        %p577 = scmp.lt.s32.totalorder %s30, 1
        %s578 = scalar_select %p577, %s30, 1
        %s579 = smul.addr %s578, 8
        %s580 = scalar_lea.vmem %s3, %s579
        %p581 = pneg %p114
        %p582 = pneg %p111
        %p583 = scmp.lt.s32.totalorder %s30, 1
        %s584 = scalar_select %p583, %s30, 1
        %s585 = smul.addr %s584, 4
        %s586 = scalar_lea.vmem %s4, %s585
        %p587 = pneg %p140
        %p588 = pneg %p137
        %p589 = scmp.lt.s32.totalorder %s30, 1
        %s590 = scalar_select %p589, %s30, 1
        %s591 = smul.addr %s590, 8
        %s592 = scalar_lea.vmem %s5, %s591
        %p593 = pneg %p166
        %p594 = pneg %p163
        %p595 = scmp.lt.s32.totalorder %s30, 1
        %s596 = scalar_select %p595, %s30, 1
        %s597 = smul.addr %s596, 192
        %s598 = smul.addr %s597, 4
        %s599 = scalar_lea.vmem %s6, %s598
        %p600 = pneg %p192
        %p601 = pneg %p189
        %p602 = scmp.lt.s32.totalorder %s30, 1
        %s603 = scalar_select %p602, %s30, 1
        %s604 = smul.addr %s603, 16
        %s605 = smul.addr %s604, 4
        %s606 = scalar_lea.vmem %s7, %s605
        %p607 = pneg %p218
        %p608 = pneg %p215
        %p609 = scmp.lt.s32.totalorder %s30, 1
        %s610 = scalar_select %p609, %s30, 1
        %s611 = smul.addr %s610, 64
        %s612 = smul.addr %s611, 4
        %s613 = scalar_lea.vmem %s8, %s612
        %p614 = pneg %p244
        %p615 = pneg %p241
        %p616 = scmp.lt.s32.totalorder %s30, 1
        %s617 = scalar_select %p616, %s30, 1
        %s618 = smul.addr %s617, 64
        %s619 = smul.addr %s618, 4
        %s620 = scalar_lea.vmem %s9, %s619
        %p621 = pneg %p270
        %p622 = pneg %p267
        %p623 = pneg %p291
        %p624 = pneg %p288
        %p625 = pneg %p312
        %p626 = pneg %p309
        %p627 = pneg %p333
        %p628 = pneg %p330
        %p629 = pneg %p354
        %p630 = pneg %p351
        %p631 = pneg %p375
        %p632 = pneg %p372
        %p633 = pneg %p396
        %p634 = pneg %p393
        %p635 = pneg %p417
        %p636 = pneg %p414
        %p637 = pneg %p438
        %p638 = pneg %p435
        %p639 = pneg %p459
        %p640 = pneg %p456
        %p641 = scmp.lt.s32.totalorder %s30, 1
        %s642 = scalar_select %p641, %s30, 1
        %s643 = smul.addr %s642, 8
        %s644 = scalar_lea.vmem %s3, %s643
        %p645 = scmp.lt.s32.totalorder %s30, 1
        %s646 = scalar_select %p645, %s30, 1
        %s647 = smul.addr %s646, 4
        %s648 = scalar_lea.vmem %s4, %s647
        %p649 = scmp.lt.s32.totalorder %s30, 1
        %s650 = scalar_select %p649, %s30, 1
        %s651 = smul.addr %s650, 8
        %s652 = scalar_lea.vmem %s5, %s651
        %p653 = scmp.lt.s32.totalorder %s30, 1
        %s654 = scalar_select %p653, %s30, 1
        %s655 = smul.addr %s654, 192
        %s656 = smul.addr %s655, 4
        %s657 = scalar_lea.vmem %s6, %s656
        %p658 = scmp.lt.s32.totalorder %s30, 1
        %s659 = scalar_select %p658, %s30, 1
        %s660 = smul.addr %s659, 16
        %s661 = smul.addr %s660, 4
        %s662 = scalar_lea.vmem %s7, %s661
        %p663 = scmp.lt.s32.totalorder %s30, 1
        %s664 = scalar_select %p663, %s30, 1
        %s665 = smul.addr %s664, 64
        %s666 = smul.addr %s665, 4
        %s667 = scalar_lea.vmem %s8, %s666
        %p668 = scmp.lt.s32.totalorder %s30, 1
        %s669 = scalar_select %p668, %s30, 1
        %s670 = smul.addr %s669, 64
        %s671 = smul.addr %s670, 4
        %s672 = scalar_lea.vmem %s9, %s671
        %p674 = scmp.eq.s32.totalorder %s30, 0
        // Predicated region
        $region93: #{upt_context_perc_approximator.1} parent=91 // pred_check
          %p675 = pneg %p674
        $region94: #{upt_context_perc_approximator.1} parent=91 // pred_check_branch
          %677 = sbr.rel (%p675) target = $region96
        $region95: #{upt_context_perc_approximator.1} parent=91 // pred_region
          %v678 = vld [vmem:[%s0] sm:$0xff]
          %v679 = vld [vmem:[%s0 + $0x8] sm:$0xff]
          %v680 = vld [vmem:[%s0 + $0x10] sm:$0xff]
          %v681 = vld [vmem:[%s0 + $0x18] sm:$0xff]
          %v682 = vld [vmem:[%s0 + $0x20] sm:$0xff]
          %v683 = vld [vmem:[%s0 + $0x28] sm:$0xff]
          %v684 = vld [vmem:[%s0 + $0x30] sm:$0xff]
          %v685 = vld [vmem:[%s0 + $0x38] sm:$0xff]
          %v686 = vpack.c.bf16 %v679, %v678
          %v687 = vpack.c.bf16 %v681, %v680
          %v688 = vpack.c.bf16 %v683, %v682
          %v689 = vpack.c.bf16 %v685, %v684
          %v690 = vld [vmem:[%s1] sm:$0xf]
          %v691 = vld [vmem:[%s1 + $0x4] sm:$0xf]
          %v692 = vld [vmem:[%s1 + $0x8] sm:$0xf]
          %v693 = vld [vmem:[%s1 + $0xc] sm:$0xf]
          %v694 = vld [vmem:[%s1 + $0x10] sm:$0xf]
          %v695 = vld [vmem:[%s1 + $0x14] sm:$0xf]
          %v696 = vld [vmem:[%s1 + $0x18] sm:$0xf]
          %v697 = vld [vmem:[%s1 + $0x1c] sm:$0xf]
          %v698 = vld [vmem:[%s1 + $0x20] sm:$0xf]
          %v699 = vld [vmem:[%s1 + $0x24] sm:$0xf]
          %v700 = vld [vmem:[%s1 + $0x28] sm:$0xf]
          %v701 = vld [vmem:[%s1 + $0x2c] sm:$0xf]
          %v702 = vld [vmem:[%s2] sm:$0xff]
          %v703 = vld [vmem:[%s2 + $0x8] sm:$0xff]
          %v704 = vld [vmem:[%s2 + $0x10] sm:$0xff]
          %v705 = vld [vmem:[%s2 + $0x18] sm:$0xff]
          %v706 = vld [vmem:[%s2 + $0x20] sm:$0xff]
          %v707 = vld [vmem:[%s2 + $0x28] sm:$0xff]
          %v708 = vld [vmem:[%s2 + $0x30] sm:$0xff]
          %v709 = vld [vmem:[%s2 + $0x38] sm:$0xff]
          %v722 = vunpack.c.l.b16 %v690
          %v723 = vunpack.c.l.b16 %v691
          %v724 = vunpack.c.l.b16 %v692
          %v725 = vunpack.c.l.b16 %v693
          %v726 = vunpack.c.l.b16 %v694
          %v727 = vunpack.c.l.b16 %v695
          %v728 = vunpack.c.l.b16 %v696
          %v729 = vunpack.c.l.b16 %v697
          %v730 = vunpack.c.l.b16 %v698
          %v731 = vunpack.c.l.b16 %v699
          %v732 = vunpack.c.l.b16 %v700
          %v733 = vunpack.c.l.b16 %v701
          %v734 = vpack.c.b16 %v723, %v722
          %v735 = vpack.c.b16 %v725, %v724
          %v736 = vpack.c.b16 %v727, %v726
          %v737 = vpack.c.b16 %v729, %v728
          %v738 = vpack.c.b16 %v731, %v730
          %v739 = vpack.c.b16 %v733, %v732
          %vm746 = vcmask 785408
          %v748 = vsel %vm746, %v686, 0
          %v751 = vsel %vm746, %v687, 0
          %v754 = vsel %vm746, %v688, 0
          %v757 = vsel %vm746, %v689, 0
          %759 = vmatprep.subr.bf16.mxu0 0
          %760 = vmatpush1.bf16.msra.mxu0 %v734
          %761 = vmatprep.subr.bf16.mxu0 0
          %762 = vmatpush1.bf16.msra.mxu0 %v735
          %763 = vmatprep.subr.bf16.mxu0 0
          %764 = vmatpush1.bf16.msra.mxu0 %v736
          %765 = vmatprep.subr.bf16.mxu0 0
          %766 = vmatpush1.bf16.msra.mxu0 %v737
          %767 = vmatprep.subr.bf16.mxu0 0
          %768 = vmatpush1.bf16.msra.mxu0 %v738
          %769 = vmatprep.subr.bf16.mxu0 0
          %770 = vmatpush1.bf16.msra.mxu0 %v739
          %771 = vmatprep.subr.bf16.mxu0 0
          %772 = vmatpush1.bf16.msra.mxu0 0
          %773 = vmatprep.subr.bf16.mxu0 0
          %774 = vmatpush1.bf16.msra.mxu0 0
          %775 = vmatprep.subr.bf16.mxu0 0
          %776 = vmatpush1.bf16.msra.mxu0 0
          %777 = vmatprep.subr.bf16.mxu0 0
          %778 = vmatpush1.bf16.msra.mxu0 0
          %779 = vmatprep.subr.bf16.mxu0 0
          %780 = vmatpush1.bf16.msra.mxu0 0
          %781 = vmatprep.subr.bf16.mxu0 0
          %782 = vmatpush1.bf16.msra.mxu0 0
          %783 = vmatprep.subr.bf16.mxu0 0
          %784 = vmatpush1.bf16.msra.mxu0 0
          %785 = vmatprep.subr.bf16.mxu0 0
          %786 = vmatpush1.bf16.msra.mxu0 0
          %787 = vmatprep.subr.bf16.mxu0 0
          %788 = vmatpush1.bf16.msra.mxu0 0
          %789 = vmatprep.subr.bf16.mxu0 0
          %790 = vmatpush1.bf16.msra.mxu0 0
          %791 = vmatprep.mubr.bf16.mxu0 0
          %792 = vmatmul.mubr.bf16.gmra.mrb[0].mxu0 %v748
          %v793 = vpop.f32.mrb[0].mxu0
          %v794 = vadd.f32 %v702, %v793
          %v795 = vpop.f32.mrb[0].mxu0
          %v796 = vpop.f32.mrb[0].mxu0
          %v797 = vadd.f32 %v703, %v796
          %v798 = vpop.f32.mrb[0].mxu0
          %799 = vmatprep.mubr.bf16.mxu0 0
          %800 = vmatmul.mubr.bf16.gmra.mrb[0].mxu0 %v751
          %v801 = vpop.f32.mrb[0].mxu0
          %v802 = vadd.f32 %v704, %v801
          %v803 = vpop.f32.mrb[0].mxu0
          %v804 = vpop.f32.mrb[0].mxu0
          %v805 = vadd.f32 %v705, %v804
          %v806 = vpop.f32.mrb[0].mxu0
          %807 = vmatprep.mubr.bf16.mxu0 0
          %808 = vmatmul.mubr.bf16.gmra.mrb[0].mxu0 %v754
          %v809 = vpop.f32.mrb[0].mxu0
          %v810 = vadd.f32 %v706, %v809
          %v811 = vpop.f32.mrb[0].mxu0
          %v812 = vpop.f32.mrb[0].mxu0
          %v813 = vadd.f32 %v707, %v812
          %v814 = vpop.f32.mrb[0].mxu0
          %815 = vmatprep.mubr.bf16.mxu0 0
          %816 = vmatmul.mubr.bf16.gmra.mrb[0].mxu0 %v757
          %v817 = vpop.f32.mrb[0].mxu0
          %v818 = vadd.f32 %v708, %v817
          %v819 = vpop.f32.mrb[0].mxu0
          %v820 = vpop.f32.mrb[0].mxu0
          %v821 = vadd.f32 %v709, %v820
          %v822 = vpop.f32.mrb[0].mxu0
          %823 = vdwg.mxu0
          %824 = vst [vmem:[#allocation2] sm:$0xff] %v794
          %825 = vst [vmem:[#allocation2 + $0x8] sm:$0xff] %v797
          %826 = vst [vmem:[#allocation2 + $0x10] sm:$0xff] %v802
          %827 = vst [vmem:[#allocation2 + $0x18] sm:$0xff] %v805
          %828 = vst [vmem:[#allocation2 + $0x20] sm:$0xff] %v810
          %829 = vst [vmem:[#allocation2 + $0x28] sm:$0xff] %v813
          %830 = vst [vmem:[#allocation2 + $0x30] sm:$0xff] %v818
          %831 = vst [vmem:[#allocation2 + $0x38] sm:$0xff] %v821
        $region96: #{upt_context_perc_approximator.1} parent=91 // pred_fallthru
          _
        %v832 = vld [vmem:[#allocation2] sm:$0xff]
        %v833 = vld [vmem:[#allocation2 + $0x8] sm:$0xff]
        %v834 = vld [vmem:[#allocation2 + $0x10] sm:$0xff]
        %v835 = vld [vmem:[#allocation2 + $0x18] sm:$0xff]
        %v836 = vld [vmem:[#allocation2 + $0x20] sm:$0xff]
        %v837 = vld [vmem:[#allocation2 + $0x28] sm:$0xff]
        %v838 = vld [vmem:[#allocation2 + $0x30] sm:$0xff]
        %v839 = vld [vmem:[#allocation2 + $0x38] sm:$0xff]
        %v840 = vld [vmem:[%s644] sm:$0x3f]
        %v841 = vld [vmem:[%s652] sm:$0xff]
        %842 = vadd.xlane.f32.xlu0 %v832
        %v843 = vpop.xlane.xlu0 %842
        %844 = vadd.xlane.f32.xlu0 %v833
        %v845 = vpop.xlane.xlu0 %844
        %846 = vadd.xlane.f32.xlu0 %v834
        %v847 = vpop.xlane.xlu0 %846
        %848 = vadd.xlane.f32.xlu0 %v835
        %v849 = vpop.xlane.xlu0 %848
        %850 = vadd.xlane.f32.xlu0 %v836
        %v851 = vpop.xlane.xlu0 %850
        %852 = vadd.xlane.f32.xlu0 %v837
        %v853 = vpop.xlane.xlu0 %852
        %854 = vadd.xlane.f32.xlu0 %v838
        %v855 = vpop.xlane.xlu0 %854
        %856 = vadd.xlane.f32.xlu0 %v839
        %v857 = vpop.xlane.xlu0 %856
        %v858 = vrcp.pop 128.0
        %v859 = vmul.f32 %v843, %v858
        %v860 = vmul.f32 %v845, %v858
        %v861 = vmul.f32 %v847, %v858
        %v862 = vmul.f32 %v849, %v858
        %v863 = vmul.f32 %v851, %v858
        %v864 = vmul.f32 %v853, %v858
        %v865 = vmul.f32 %v855, %v858
        %v866 = vmul.f32 %v857, %v858
        %v867 = vsub.f32 %v832, %v859
        %v868 = vsub.f32 %v833, %v860
        %v869 = vsub.f32 %v834, %v861
        %v870 = vsub.f32 %v835, %v862
        %v871 = vsub.f32 %v836, %v863
        %v872 = vsub.f32 %v837, %v864
        %v873 = vsub.f32 %v838, %v865
        %v874 = vsub.f32 %v839, %v866
        %v875 = vmul.f32 %v867, %v867
        %v876 = vmul.f32 %v868, %v868
        %v877 = vmul.f32 %v869, %v869
        %v878 = vmul.f32 %v870, %v870
        %v879 = vmul.f32 %v871, %v871
        %v880 = vmul.f32 %v872, %v872
        %v881 = vmul.f32 %v873, %v873
        %v882 = vmul.f32 %v874, %v874
        %883 = vadd.xlane.f32.xlu0 %v875
        %v884 = vpop.xlane.xlu0 %883
        %885 = vadd.xlane.f32.xlu0 %v876
        %v886 = vpop.xlane.xlu0 %885
        %887 = vadd.xlane.f32.xlu0 %v877
        %v888 = vpop.xlane.xlu0 %887
        %889 = vadd.xlane.f32.xlu0 %v878
        %v890 = vpop.xlane.xlu0 %889
        %891 = vadd.xlane.f32.xlu0 %v879
        %v892 = vpop.xlane.xlu0 %891
        %893 = vadd.xlane.f32.xlu0 %v880
        %v894 = vpop.xlane.xlu0 %893
        %895 = vadd.xlane.f32.xlu0 %v881
        %v896 = vpop.xlane.xlu0 %895
        %897 = vadd.xlane.f32.xlu0 %v882
        %v898 = vpop.xlane.xlu0 %897
        %v899 = vmul.f32 %v884, %v858
        %v900 = vmul.f32 %v886, %v858
        %v901 = vmul.f32 %v888, %v858
        %v902 = vmul.f32 %v890, %v858
        %v903 = vmul.f32 %v892, %v858
        %v904 = vmul.f32 %v894, %v858
        %v905 = vmul.f32 %v896, %v858
        %v906 = vmul.f32 %v898, %v858
        %v907 = vadd.f32 %v899, 1e-06
        %v908 = vadd.f32 %v900, 1e-06
        %v909 = vadd.f32 %v901, 1e-06
        %v910 = vadd.f32 %v902, 1e-06
        %v911 = vadd.f32 %v903, 1e-06
        %v912 = vadd.f32 %v904, 1e-06
        %v913 = vadd.f32 %v905, 1e-06
        %v914 = vadd.f32 %v906, 1e-06
        %v915 = vrsqrt.pop %v907
        %v916 = vrsqrt.pop %v908
        %v917 = vrsqrt.pop %v909
        %v918 = vrsqrt.pop %v910
        %v919 = vrsqrt.pop %v911
        %v920 = vrsqrt.pop %v912
        %v921 = vrsqrt.pop %v913
        %v922 = vrsqrt.pop %v914
        %v923 = vmul.f32 %v867, %v915
        %v924 = vmul.f32 %v868, %v916
        %v925 = vmul.f32 %v869, %v917
        %v926 = vmul.f32 %v870, %v918
        %v927 = vmul.f32 %v871, %v919
        %v928 = vmul.f32 %v872, %v920
        %v929 = vmul.f32 %v873, %v921
        %v930 = vmul.f32 %v874, %v922
        %v931 = vlaneseq
        %v932 = vshrl.u32 %v931, 7
        %v933 = vsub.s32 0, %v932
        %v934 = vrot.slane %v840, %v933
        %v935 = vmul.f32 %v923, %v934
        %v936 = vmul.f32 %v924, %v934
        %v937 = vmul.f32 %v925, %v934
        %v938 = vmul.f32 %v926, %v934
        %v939 = vmul.f32 %v927, %v934
        %v940 = vmul.f32 %v928, %v934
        %v941 = vmul.f32 %v929, %v934
        %v942 = vmul.f32 %v930, %v934
        %v943 = vlaneseq
        %v944 = vshrl.u32 %v943, 7
        %v945 = vsub.s32 1, %v944
        %v946 = vrot.slane %v840, %v945
        %v947 = vadd.f32 %v935, %v946
        %v948 = vadd.f32 %v936, %v946
        %v949 = vadd.f32 %v937, %v946
        %v950 = vadd.f32 %v938, %v946
        %v951 = vadd.f32 %v939, %v946
        %v952 = vadd.f32 %v940, %v946
        %v953 = vadd.f32 %v941, %v946
        %v954 = vadd.f32 %v942, %v946
        %v955 = vpack.c.bf16 %v948, %v947
        %v956 = vpack.c.bf16 %v950, %v949
        %v957 = vpack.c.bf16 %v952, %v951
        %v958 = vpack.c.bf16 %v954, %v953
        %v959 = vld [vmem:[%s657] sm:$0xf]
        %v960 = vld [vmem:[%s657 + $0x4] sm:$0xf]
        %v961 = vld [vmem:[%s657 + $0x8] sm:$0xf]
        %v962 = vld [vmem:[%s657 + $0xc] sm:$0xf]
        %v963 = vld [vmem:[%s657 + $0x10] sm:$0xf]
        %v964 = vld [vmem:[%s657 + $0x14] sm:$0xf]
        %v965 = vld [vmem:[%s657 + $0x18] sm:$0xf]
        %v966 = vld [vmem:[%s657 + $0x1c] sm:$0xf]
        %v967 = vld [vmem:[%s657 + $0x20] sm:$0xf]
        %v968 = vld [vmem:[%s657 + $0x24] sm:$0xf]
        %v969 = vld [vmem:[%s657 + $0x28] sm:$0xf]
        %v970 = vld [vmem:[%s657 + $0x2c] sm:$0xf]
        %v971 = vld [vmem:[%s657 + $0x30] sm:$0xf]
        %v972 = vld [vmem:[%s657 + $0x34] sm:$0xf]
        %v973 = vld [vmem:[%s657 + $0x38] sm:$0xf]
        %v974 = vld [vmem:[%s657 + $0x3c] sm:$0xf]
        %v975 = vlaneseq
        %v976 = vshrl.u32 %v975, 7
        %v977 = vsub.s32 0, %v976
        %v978 = vrot.slane %v841, %v977
        %v995 = vunpack.c.l.b16 %v959
        %v996 = vunpack.c.l.b16 %v960
        %v997 = vunpack.c.l.b16 %v961
        %v998 = vunpack.c.l.b16 %v962
        %v999 = vunpack.c.l.b16 %v963
        %v1000 = vunpack.c.l.b16 %v964
        %v1001 = vunpack.c.l.b16 %v965
        %v1002 = vunpack.c.l.b16 %v966
        %v1003 = vunpack.c.l.b16 %v967
        %v1004 = vunpack.c.l.b16 %v968
        %v1005 = vunpack.c.l.b16 %v969
        %v1006 = vunpack.c.l.b16 %v970
        %v1007 = vunpack.c.l.b16 %v971
        %v1008 = vunpack.c.l.b16 %v972
        %v1009 = vunpack.c.l.b16 %v973
        %v1010 = vunpack.c.l.b16 %v974
        %v1011 = vpack.c.b16 %v996, %v995
        %v1012 = vpack.c.b16 %v998, %v997
        %v1013 = vpack.c.b16 %v1000, %v999
        %v1014 = vpack.c.b16 %v1002, %v1001
        %v1015 = vpack.c.b16 %v1004, %v1003
        %v1016 = vpack.c.b16 %v1006, %v1005
        %v1017 = vpack.c.b16 %v1008, %v1007
        %v1018 = vpack.c.b16 %v1010, %v1009
        %1027 = vmatprep.subr.bf16.mxu0 0
        %1028 = vmatpush1.bf16.msra.mxu0 %v1011
        %1029 = vmatprep.subr.bf16.mxu0 0
        %1030 = vmatpush1.bf16.msra.mxu0 %v1012
        %1031 = vmatprep.subr.bf16.mxu0 0
        %1032 = vmatpush1.bf16.msra.mxu0 %v1013
        %1033 = vmatprep.subr.bf16.mxu0 0
        %1034 = vmatpush1.bf16.msra.mxu0 %v1014
        %1035 = vmatprep.subr.bf16.mxu0 0
        %1036 = vmatpush1.bf16.msra.mxu0 %v1015
        %1037 = vmatprep.subr.bf16.mxu0 0
        %1038 = vmatpush1.bf16.msra.mxu0 %v1016
        %1039 = vmatprep.subr.bf16.mxu0 0
        %1040 = vmatpush1.bf16.msra.mxu0 %v1017
        %1041 = vmatprep.subr.bf16.mxu0 0
        %1042 = vmatpush1.bf16.msra.mxu0 %v1018
        %1043 = vmatprep.subr.bf16.mxu0 0
        %1044 = vmatpush1.bf16.msra.mxu0 0
        %1045 = vmatprep.subr.bf16.mxu0 0
        %1046 = vmatpush1.bf16.msra.mxu0 0
        %1047 = vmatprep.subr.bf16.mxu0 0
        %1048 = vmatpush1.bf16.msra.mxu0 0
        %1049 = vmatprep.subr.bf16.mxu0 0
        %1050 = vmatpush1.bf16.msra.mxu0 0
        %1051 = vmatprep.subr.bf16.mxu0 0
        %1052 = vmatpush1.bf16.msra.mxu0 0
        %1053 = vmatprep.subr.bf16.mxu0 0
        %1054 = vmatpush1.bf16.msra.mxu0 0
        %1055 = vmatprep.subr.bf16.mxu0 0
        %1056 = vmatpush1.bf16.msra.mxu0 0
        %1057 = vmatprep.subr.bf16.mxu0 0
        %1058 = vmatpush1.bf16.msra.mxu0 0
        %1059 = vmatprep.mubr.bf16.mxu0 0
        %1060 = vmatmul.mubr.bf16.gmra.mrb[0].mxu0 %v955
        %v1061 = vpop.f32.mrb[0].mxu0
        %v1062 = vadd.f32 %v978, %v1061
        %v1063 = vpop.f32.mrb[0].mxu0
        %v1064 = vpop.f32.mrb[0].mxu0
        %v1065 = vadd.f32 %v978, %v1064
        %v1066 = vpop.f32.mrb[0].mxu0
        %1067 = vmatprep.mubr.bf16.mxu0 0
        %1068 = vmatmul.mubr.bf16.gmra.mrb[0].mxu0 %v956
        %v1069 = vpop.f32.mrb[0].mxu0
        %v1070 = vadd.f32 %v978, %v1069
        %v1071 = vpop.f32.mrb[0].mxu0
        %v1072 = vpop.f32.mrb[0].mxu0
        %v1073 = vadd.f32 %v978, %v1072
        %v1074 = vpop.f32.mrb[0].mxu0
        %1075 = vmatprep.mubr.bf16.mxu0 0
        %1076 = vmatmul.mubr.bf16.gmra.mrb[0].mxu0 %v957
        %v1077 = vpop.f32.mrb[0].mxu0
        %v1078 = vadd.f32 %v978, %v1077
        %v1079 = vpop.f32.mrb[0].mxu0
        %v1080 = vpop.f32.mrb[0].mxu0
        %v1081 = vadd.f32 %v978, %v1080
        %v1082 = vpop.f32.mrb[0].mxu0
        %1083 = vmatprep.mubr.bf16.mxu0 0
        %1084 = vmatmul.mubr.bf16.gmra.mrb[0].mxu0 %v958
        %v1085 = vpop.f32.mrb[0].mxu0
        %v1086 = vadd.f32 %v978, %v1085
        %v1087 = vpop.f32.mrb[0].mxu0
        %v1088 = vpop.f32.mrb[0].mxu0
        %v1089 = vadd.f32 %v978, %v1088
        %v1090 = vpop.f32.mrb[0].mxu0
        %1091 = vdwg.mxu0
        %s1092 = scalar_lea.vmem %s657, 256
        %v1093 = vld [vmem:[%s1092] sm:$0xf]
        %v1094 = vld [vmem:[%s1092 + $0x4] sm:$0xf]
        %v1095 = vld [vmem:[%s1092 + $0x8] sm:$0xf]
        %v1096 = vld [vmem:[%s1092 + $0xc] sm:$0xf]
        %v1097 = vld [vmem:[%s1092 + $0x10] sm:$0xf]
        %v1098 = vld [vmem:[%s1092 + $0x14] sm:$0xf]
        %v1099 = vld [vmem:[%s1092 + $0x18] sm:$0xf]
        %v1100 = vld [vmem:[%s1092 + $0x1c] sm:$0xf]
        %v1101 = vld [vmem:[%s1092 + $0x20] sm:$0xf]
        %v1102 = vld [vmem:[%s1092 + $0x24] sm:$0xf]
        %v1103 = vld [vmem:[%s1092 + $0x28] sm:$0xf]
        %v1104 = vld [vmem:[%s1092 + $0x2c] sm:$0xf]
        %v1105 = vld [vmem:[%s1092 + $0x30] sm:$0xf]
        %v1106 = vld [vmem:[%s1092 + $0x34] sm:$0xf]
        %v1107 = vld [vmem:[%s1092 + $0x38] sm:$0xf]
        %v1108 = vld [vmem:[%s1092 + $0x3c] sm:$0xf]
        %v1109 = vlaneseq
        %v1110 = vshrl.u32 %v1109, 7
        %v1111 = vsub.s32 4, %v1110
        %v1112 = vrot.slane %v841, %v1111
        %v1129 = vunpack.c.l.b16 %v1093
        %v1130 = vunpack.c.l.b16 %v1094
        %v1131 = vunpack.c.l.b16 %v1095
        %v1132 = vunpack.c.l.b16 %v1096
        %v1133 = vunpack.c.l.b16 %v1097
        %v1134 = vunpack.c.l.b16 %v1098
        %v1135 = vunpack.c.l.b16 %v1099
        %v1136 = vunpack.c.l.b16 %v1100
        %v1137 = vunpack.c.l.b16 %v1101
        %v1138 = vunpack.c.l.b16 %v1102
        %v1139 = vunpack.c.l.b16 %v1103
        %v1140 = vunpack.c.l.b16 %v1104
        %v1141 = vunpack.c.l.b16 %v1105
        %v1142 = vunpack.c.l.b16 %v1106
        %v1143 = vunpack.c.l.b16 %v1107
        %v1144 = vunpack.c.l.b16 %v1108
        %v1145 = vpack.c.b16 %v1130, %v1129
        %v1146 = vpack.c.b16 %v1132, %v1131
        %v1147 = vpack.c.b16 %v1134, %v1133
        %v1148 = vpack.c.b16 %v1136, %v1135
        %v1149 = vpack.c.b16 %v1138, %v1137
        %v1150 = vpack.c.b16 %v1140, %v1139
        %v1151 = vpack.c.b16 %v1142, %v1141
        %v1152 = vpack.c.b16 %v1144, %v1143
        %1161 = vmatprep.subr.bf16.mxu0 0
        %1162 = vmatpush1.bf16.msra.mxu0 %v1145
        %1163 = vmatprep.subr.bf16.mxu0 0
        %1164 = vmatpush1.bf16.msra.mxu0 %v1146
        %1165 = vmatprep.subr.bf16.mxu0 0
        %1166 = vmatpush1.bf16.msra.mxu0 %v1147
        %1167 = vmatprep.subr.bf16.mxu0 0
        %1168 = vmatpush1.bf16.msra.mxu0 %v1148
        %1169 = vmatprep.subr.bf16.mxu0 0
        %1170 = vmatpush1.bf16.msra.mxu0 %v1149
        %1171 = vmatprep.subr.bf16.mxu0 0
        %1172 = vmatpush1.bf16.msra.mxu0 %v1150
        %1173 = vmatprep.subr.bf16.mxu0 0
        %1174 = vmatpush1.bf16.msra.mxu0 %v1151
        %1175 = vmatprep.subr.bf16.mxu0 0
        %1176 = vmatpush1.bf16.msra.mxu0 %v1152
        %1177 = vmatprep.subr.bf16.mxu0 0
        %1178 = vmatpush1.bf16.msra.mxu0 0
        %1179 = vmatprep.subr.bf16.mxu0 0
        %1180 = vmatpush1.bf16.msra.mxu0 0
        %1181 = vmatprep.subr.bf16.mxu0 0
        %1182 = vmatpush1.bf16.msra.mxu0 0
        %1183 = vmatprep.subr.bf16.mxu0 0
        %1184 = vmatpush1.bf16.msra.mxu0 0
        %1185 = vmatprep.subr.bf16.mxu0 0
        %1186 = vmatpush1.bf16.msra.mxu0 0
        %1187 = vmatprep.subr.bf16.mxu0 0
        %1188 = vmatpush1.bf16.msra.mxu0 0
        %1189 = vmatprep.subr.bf16.mxu0 0
        %1190 = vmatpush1.bf16.msra.mxu0 0
        %1191 = vmatprep.subr.bf16.mxu0 0
        %1192 = vmatpush1.bf16.msra.mxu0 0
        %1193 = vmatprep.mubr.bf16.mxu0 0
        %1194 = vmatmul.mubr.bf16.gmra.mrb[0].mxu0 %v955
        %v1195 = vpop.f32.mrb[0].mxu0
        %v1196 = vadd.f32 %v1112, %v1195
        %v1197 = vpop.f32.mrb[0].mxu0
        %v1198 = vpop.f32.mrb[0].mxu0
        %v1199 = vadd.f32 %v1112, %v1198
        %v1200 = vpop.f32.mrb[0].mxu0
        %1201 = vmatprep.mubr.bf16.mxu0 0
        %1202 = vmatmul.mubr.bf16.gmra.mrb[0].mxu0 %v956
        %v1203 = vpop.f32.mrb[0].mxu0
        %v1204 = vadd.f32 %v1112, %v1203
        %v1205 = vpop.f32.mrb[0].mxu0
        %v1206 = vpop.f32.mrb[0].mxu0
        %v1207 = vadd.f32 %v1112, %v1206
        %v1208 = vpop.f32.mrb[0].mxu0
        %1209 = vmatprep.mubr.bf16.mxu0 0
        %1210 = vmatmul.mubr.bf16.gmra.mrb[0].mxu0 %v957
        %v1211 = vpop.f32.mrb[0].mxu0
        %v1212 = vadd.f32 %v1112, %v1211
        %v1213 = vpop.f32.mrb[0].mxu0
        %v1214 = vpop.f32.mrb[0].mxu0
        %v1215 = vadd.f32 %v1112, %v1214
        %v1216 = vpop.f32.mrb[0].mxu0
        %1217 = vmatprep.mubr.bf16.mxu0 0
        %1218 = vmatmul.mubr.bf16.gmra.mrb[0].mxu0 %v958
        %v1219 = vpop.f32.mrb[0].mxu0
        %v1220 = vadd.f32 %v1112, %v1219
        %v1221 = vpop.f32.mrb[0].mxu0
        %v1222 = vpop.f32.mrb[0].mxu0
        %v1223 = vadd.f32 %v1112, %v1222
        %v1224 = vpop.f32.mrb[0].mxu0
        %1225 = vdwg.mxu0
        %s1226 = scalar_lea.vmem %s657, 512
        %v1227 = vld [vmem:[%s1226] sm:$0xf]
        %v1228 = vld [vmem:[%s1226 + $0x4] sm:$0xf]
        %v1229 = vld [vmem:[%s1226 + $0x8] sm:$0xf]
        %v1230 = vld [vmem:[%s1226 + $0xc] sm:$0xf]
        %v1231 = vld [vmem:[%s1226 + $0x10] sm:$0xf]
        %v1232 = vld [vmem:[%s1226 + $0x14] sm:$0xf]
        %v1233 = vld [vmem:[%s1226 + $0x18] sm:$0xf]
        %v1234 = vld [vmem:[%s1226 + $0x1c] sm:$0xf]
        %v1235 = vld [vmem:[%s1226 + $0x20] sm:$0xf]
        %v1236 = vld [vmem:[%s1226 + $0x24] sm:$0xf]
        %v1237 = vld [vmem:[%s1226 + $0x28] sm:$0xf]
        %v1238 = vld [vmem:[%s1226 + $0x2c] sm:$0xf]
        %v1239 = vld [vmem:[%s1226 + $0x30] sm:$0xf]
        %v1240 = vld [vmem:[%s1226 + $0x34] sm:$0xf]
        %v1241 = vld [vmem:[%s1226 + $0x38] sm:$0xf]
        %v1242 = vld [vmem:[%s1226 + $0x3c] sm:$0xf]
        %v1259 = vunpack.c.l.b16 %v1227
        %v1260 = vunpack.c.l.b16 %v1228
        %v1261 = vunpack.c.l.b16 %v1229
        %v1262 = vunpack.c.l.b16 %v1230
        %v1263 = vunpack.c.l.b16 %v1231
        %v1264 = vunpack.c.l.b16 %v1232
        %v1265 = vunpack.c.l.b16 %v1233
        %v1266 = vunpack.c.l.b16 %v1234
        %v1267 = vunpack.c.l.b16 %v1235
        %v1268 = vunpack.c.l.b16 %v1236
        %v1269 = vunpack.c.l.b16 %v1237
        %v1270 = vunpack.c.l.b16 %v1238
        %v1271 = vunpack.c.l.b16 %v1239
        %v1272 = vunpack.c.l.b16 %v1240
        %v1273 = vunpack.c.l.b16 %v1241
        %v1274 = vunpack.c.l.b16 %v1242
        %v1275 = vpack.c.b16 %v1260, %v1259
        %v1276 = vpack.c.b16 %v1262, %v1261
        %v1277 = vpack.c.b16 %v1264, %v1263
        %v1278 = vpack.c.b16 %v1266, %v1265
        %v1279 = vpack.c.b16 %v1268, %v1267
        %v1280 = vpack.c.b16 %v1270, %v1269
        %v1281 = vpack.c.b16 %v1272, %v1271
        %v1282 = vpack.c.b16 %v1274, %v1273
        %1291 = vmatprep.subr.bf16.mxu0 0
        %1292 = vmatpush1.bf16.msra.mxu0 %v1275
        %1293 = vmatprep.subr.bf16.mxu0 0
        %1294 = vmatpush1.bf16.msra.mxu0 %v1276
        %1295 = vmatprep.subr.bf16.mxu0 0
        %1296 = vmatpush1.bf16.msra.mxu0 %v1277
        %1297 = vmatprep.subr.bf16.mxu0 0
        %1298 = vmatpush1.bf16.msra.mxu0 %v1278
        %1299 = vmatprep.subr.bf16.mxu0 0
        %1300 = vmatpush1.bf16.msra.mxu0 %v1279
        %1301 = vmatprep.subr.bf16.mxu0 0
        %1302 = vmatpush1.bf16.msra.mxu0 %v1280
        %1303 = vmatprep.subr.bf16.mxu0 0
        %1304 = vmatpush1.bf16.msra.mxu0 %v1281
        %1305 = vmatprep.subr.bf16.mxu0 0
        %1306 = vmatpush1.bf16.msra.mxu0 %v1282
        %1307 = vmatprep.subr.bf16.mxu0 0
        %1308 = vmatpush1.bf16.msra.mxu0 0
        %1309 = vmatprep.subr.bf16.mxu0 0
        %1310 = vmatpush1.bf16.msra.mxu0 0
        %1311 = vmatprep.subr.bf16.mxu0 0
        %1312 = vmatpush1.bf16.msra.mxu0 0
        %1313 = vmatprep.subr.bf16.mxu0 0
        %1314 = vmatpush1.bf16.msra.mxu0 0
        %1315 = vmatprep.subr.bf16.mxu0 0
        %1316 = vmatpush1.bf16.msra.mxu0 0
        %1317 = vmatprep.subr.bf16.mxu0 0
        %1318 = vmatpush1.bf16.msra.mxu0 0
        %1319 = vmatprep.subr.bf16.mxu0 0
        %1320 = vmatpush1.bf16.msra.mxu0 0
        %1321 = vmatprep.subr.bf16.mxu0 0
        %1322 = vmatpush1.bf16.msra.mxu0 0
        %1323 = vmatprep.mubr.bf16.mxu0 0
        %1324 = vmatmul.mubr.bf16.gmra.mrb[0].mxu0 %v955
        %v1325 = vpop.f32.mrb[0].mxu0
        %v1326 = vadd.f32 0.0, %v1325
        %v1327 = vpop.f32.mrb[0].mxu0
        %v1328 = vpop.f32.mrb[0].mxu0
        %v1329 = vadd.f32 0.0, %v1328
        %v1330 = vpop.f32.mrb[0].mxu0
        %1331 = vmatprep.mubr.bf16.mxu0 0
        %1332 = vmatmul.mubr.bf16.gmra.mrb[0].mxu0 %v956
        %v1333 = vpop.f32.mrb[0].mxu0
        %v1334 = vadd.f32 0.0, %v1333
        %v1335 = vpop.f32.mrb[0].mxu0
        %v1336 = vpop.f32.mrb[0].mxu0
        %v1337 = vadd.f32 0.0, %v1336
        %v1338 = vpop.f32.mrb[0].mxu0
        %1339 = vmatprep.mubr.bf16.mxu0 0
        %1340 = vmatmul.mubr.bf16.gmra.mrb[0].mxu0 %v957
        %v1341 = vpop.f32.mrb[0].mxu0
        %v1342 = vadd.f32 0.0, %v1341
        %v1343 = vpop.f32.mrb[0].mxu0
        %v1344 = vpop.f32.mrb[0].mxu0
        %v1345 = vadd.f32 0.0, %v1344
        %v1346 = vpop.f32.mrb[0].mxu0
        %1347 = vmatprep.mubr.bf16.mxu0 0
        %1348 = vmatmul.mubr.bf16.gmra.mrb[0].mxu0 %v958
        %v1349 = vpop.f32.mrb[0].mxu0
        %v1350 = vadd.f32 0.0, %v1349
        %v1351 = vpop.f32.mrb[0].mxu0
        %v1352 = vpop.f32.mrb[0].mxu0
        %v1353 = vadd.f32 0.0, %v1352
        %v1354 = vpop.f32.mrb[0].mxu0
        %1355 = vdwg.mxu0
        %v1356 = vpack.c.bf16 %v1065, %v1062
        %v1357 = vpack.c.bf16 %v1073, %v1070
        %v1358 = vpack.c.bf16 %v1081, %v1078
        %v1359 = vpack.c.bf16 %v1089, %v1086
        %v1360 = vpack.c.bf16 %v1199, %v1196
        %v1361 = vpack.c.bf16 %v1207, %v1204
        %v1362 = vpack.c.bf16 %v1215, %v1212
        %v1363 = vpack.c.bf16 %v1223, %v1220
        %vm1364 = vcmask 261120
        %v1366 = vsel %vm1364, %v1356, 0
        %v1369 = vsel %vm1364, %v1357, 0
        %v1372 = vsel %vm1364, %v1360, 0
        %v1375 = vsel %vm1364, %v1361, 0
        %1377 = vmatprep.subr.bf16.mxu0 0
        %1378 = vmatpush1.bf16.xpose.msra.mxu0 %v1372
        %1379 = vmatprep.subr.bf16.mxu0 0
        %1380 = vmatpush1.bf16.xpose.msra.mxu0 %v1375
        %1381 = vmatprep.subr.bf16.mxu0 0
        %1382 = vmatpush1.bf16.xpose.msra.mxu0 0
        %1383 = vmatprep.subr.bf16.mxu0 0
        %1384 = vmatpush1.bf16.xpose.msra.mxu0 0
        %1385 = vmatprep.subr.bf16.mxu0 0
        %1386 = vmatpush1.bf16.xpose.msra.mxu0 0
        %1387 = vmatprep.subr.bf16.mxu0 0
        %1388 = vmatpush1.bf16.xpose.msra.mxu0 0
        %1389 = vmatprep.subr.bf16.mxu0 0
        %1390 = vmatpush1.bf16.xpose.msra.mxu0 0
        %1391 = vmatprep.subr.bf16.mxu0 0
        %1392 = vmatpush1.bf16.xpose.msra.mxu0 0
        %1393 = vmatprep.subr.bf16.mxu0 0
        %1394 = vmatpush1.bf16.xpose.msra.mxu0 0
        %1395 = vmatprep.subr.bf16.mxu0 0
        %1396 = vmatpush1.bf16.xpose.msra.mxu0 0
        %1397 = vmatprep.subr.bf16.mxu0 0
        %1398 = vmatpush1.bf16.xpose.msra.mxu0 0
        %1399 = vmatprep.subr.bf16.mxu0 0
        %1400 = vmatpush1.bf16.xpose.msra.mxu0 0
        %1401 = vmatprep.subr.bf16.mxu0 0
        %1402 = vmatpush1.bf16.xpose.msra.mxu0 0
        %1403 = vmatprep.subr.bf16.mxu0 0
        %1404 = vmatpush1.bf16.xpose.msra.mxu0 0
        %1405 = vmatprep.subr.bf16.mxu0 0
        %1406 = vmatpush1.bf16.xpose.msra.mxu0 0
        %1407 = vmatprep.subr.bf16.mxu0 0
        %1408 = vmatpush1.bf16.xpose.msra.mxu0 0
        %1409 = vmatprep.mubr.bf16.mxu0 0
        %1410 = vmatmul.mubr.bf16.gmra.mrb[0].mxu0 %v1366
        %v1411 = vpop.f32.mrb[0].mxu0
        %v1412 = vadd.f32 0.0, %v1411
        %v1413 = vpop.f32.mrb[0].mxu0
        %v1414 = vpop.f32.mrb[0].mxu0
        %v1415 = vadd.f32 0.0, %v1414
        %v1416 = vpop.f32.mrb[0].mxu0
        %1417 = vmatprep.mubr.bf16.mxu0 0
        %1418 = vmatmul.mubr.bf16.gmra.mrb[0].mxu0 %v1369
        %v1419 = vpop.f32.mrb[0].mxu0
        %v1420 = vadd.f32 0.0, %v1419
        %v1421 = vpop.f32.mrb[0].mxu0
        %v1422 = vpop.f32.mrb[0].mxu0
        %v1423 = vadd.f32 0.0, %v1422
        %v1424 = vpop.f32.mrb[0].mxu0
        %1425 = vdwg.mxu0
        %v1427 = vsel %vm1364, %v1358, 0
        %v1430 = vsel %vm1364, %v1359, 0
        %v1433 = vsel %vm1364, %v1362, 0
        %v1436 = vsel %vm1364, %v1363, 0
        %1438 = vmatprep.subr.bf16.mxu0 0
        %1439 = vmatpush1.bf16.xpose.msra.mxu0 %v1433
        %1440 = vmatprep.subr.bf16.mxu0 0
        %1441 = vmatpush1.bf16.xpose.msra.mxu0 %v1436
        %1442 = vmatprep.subr.bf16.mxu0 0
        %1443 = vmatpush1.bf16.xpose.msra.mxu0 0
        %1444 = vmatprep.subr.bf16.mxu0 0
        %1445 = vmatpush1.bf16.xpose.msra.mxu0 0
        %1446 = vmatprep.subr.bf16.mxu0 0
        %1447 = vmatpush1.bf16.xpose.msra.mxu0 0
        %1448 = vmatprep.subr.bf16.mxu0 0
        %1449 = vmatpush1.bf16.xpose.msra.mxu0 0
        %1450 = vmatprep.subr.bf16.mxu0 0
        %1451 = vmatpush1.bf16.xpose.msra.mxu0 0
        %1452 = vmatprep.subr.bf16.mxu0 0
        %1453 = vmatpush1.bf16.xpose.msra.mxu0 0
        %1454 = vmatprep.subr.bf16.mxu0 0
        %1455 = vmatpush1.bf16.xpose.msra.mxu0 0
        %1456 = vmatprep.subr.bf16.mxu0 0
        %1457 = vmatpush1.bf16.xpose.msra.mxu0 0
        %1458 = vmatprep.subr.bf16.mxu0 0
        %1459 = vmatpush1.bf16.xpose.msra.mxu0 0
        %1460 = vmatprep.subr.bf16.mxu0 0
        %1461 = vmatpush1.bf16.xpose.msra.mxu0 0
        %1462 = vmatprep.subr.bf16.mxu0 0
        %1463 = vmatpush1.bf16.xpose.msra.mxu0 0
        %1464 = vmatprep.subr.bf16.mxu0 0
        %1465 = vmatpush1.bf16.xpose.msra.mxu0 0
        %1466 = vmatprep.subr.bf16.mxu0 0
        %1467 = vmatpush1.bf16.xpose.msra.mxu0 0
        %1468 = vmatprep.subr.bf16.mxu0 0
        %1469 = vmatpush1.bf16.xpose.msra.mxu0 0
        %1470 = vmatprep.mubr.bf16.mxu0 0
        %1471 = vmatmul.mubr.bf16.gmra.mrb[0].mxu0 %v1427
        %v1472 = vpop.f32.mrb[0].mxu0
        %v1473 = vadd.f32 0.0, %v1472
        %v1474 = vpop.f32.mrb[0].mxu0
        %v1475 = vpop.f32.mrb[0].mxu0
        %v1476 = vadd.f32 0.0, %v1475
        %v1477 = vpop.f32.mrb[0].mxu0
        %1478 = vmatprep.mubr.bf16.mxu0 0
        %1479 = vmatmul.mubr.bf16.gmra.mrb[0].mxu0 %v1430
        %v1480 = vpop.f32.mrb[0].mxu0
        %v1481 = vadd.f32 0.0, %v1480
        %v1482 = vpop.f32.mrb[0].mxu0
        %v1483 = vpop.f32.mrb[0].mxu0
        %v1484 = vadd.f32 0.0, %v1483
        %v1485 = vpop.f32.mrb[0].mxu0
        %1486 = vdwg.mxu0
        %v1487 = vsel %vm1364, %v1412, -inf
        %1488 = vmax.xlane.f32.xlu0 %v1487
        %v1489 = vpop.xlane.xlu0 %1488
        %v1490 = vsel %vm1364, %v1415, -inf
        %1491 = vmax.xlane.f32.xlu0 %v1490
        %v1492 = vpop.xlane.xlu0 %1491
        %v1493 = vsel %vm1364, %v1420, -inf
        %1494 = vmax.xlane.f32.xlu0 %v1493
        %v1495 = vpop.xlane.xlu0 %1494
        %v1496 = vsel %vm1364, %v1423, -inf
        %1497 = vmax.xlane.f32.xlu0 %v1496
        %v1498 = vpop.xlane.xlu0 %1497
        %v1499 = vsel %vm1364, %v1473, -inf
        %1500 = vmax.xlane.f32.xlu0 %v1499
        %v1501 = vpop.xlane.xlu0 %1500
        %v1502 = vsel %vm1364, %v1476, -inf
        %1503 = vmax.xlane.f32.xlu0 %v1502
        %v1504 = vpop.xlane.xlu0 %1503
        %v1505 = vsel %vm1364, %v1481, -inf
        %1506 = vmax.xlane.f32.xlu0 %v1505
        %v1507 = vpop.xlane.xlu0 %1506
        %v1508 = vsel %vm1364, %v1484, -inf
        %1509 = vmax.xlane.f32.xlu0 %v1508
        %v1510 = vpop.xlane.xlu0 %1509
        %v1511 = vsub.f32 %v1412, %v1489
        %v1512 = vsub.f32 %v1415, %v1492
        %v1513 = vsub.f32 %v1420, %v1495
        %v1514 = vsub.f32 %v1423, %v1498
        %v1515 = vsub.f32 %v1473, %v1501
        %v1516 = vsub.f32 %v1476, %v1504
        %v1517 = vsub.f32 %v1481, %v1507
        %v1518 = vsub.f32 %v1484, %v1510
        %v1519 = vmul.f32 %v1511, 1.442695
        %v1520 = vpow.pop %v1519
        %v1521 = vmul.f32 %v1512, 1.442695
        %v1522 = vpow.pop %v1521
        %v1523 = vmul.f32 %v1513, 1.442695
        %v1524 = vpow.pop %v1523
        %v1525 = vmul.f32 %v1514, 1.442695
        %v1526 = vpow.pop %v1525
        %v1527 = vmul.f32 %v1515, 1.442695
        %v1528 = vpow.pop %v1527
        %v1529 = vmul.f32 %v1516, 1.442695
        %v1530 = vpow.pop %v1529
        %v1531 = vmul.f32 %v1517, 1.442695
        %v1532 = vpow.pop %v1531
        %v1533 = vmul.f32 %v1518, 1.442695
        %v1534 = vpow.pop %v1533
        %v1535 = vsel %vm1364, %v1520, 0.0
        %1536 = vadd.xlane.f32.xlu0 %v1535
        %v1537 = vpop.xlane.xlu0 %1536
        %v1538 = vsel %vm1364, %v1522, 0.0
        %1539 = vadd.xlane.f32.xlu0 %v1538
        %v1540 = vpop.xlane.xlu0 %1539
        %v1541 = vsel %vm1364, %v1524, 0.0
        %1542 = vadd.xlane.f32.xlu0 %v1541
        %v1543 = vpop.xlane.xlu0 %1542
        %v1544 = vsel %vm1364, %v1526, 0.0
        %1545 = vadd.xlane.f32.xlu0 %v1544
        %v1546 = vpop.xlane.xlu0 %1545
        %v1547 = vsel %vm1364, %v1528, 0.0
        %1548 = vadd.xlane.f32.xlu0 %v1547
        %v1549 = vpop.xlane.xlu0 %1548
        %v1550 = vsel %vm1364, %v1530, 0.0
        %1551 = vadd.xlane.f32.xlu0 %v1550
        %v1552 = vpop.xlane.xlu0 %1551
        %v1553 = vsel %vm1364, %v1532, 0.0
        %1554 = vadd.xlane.f32.xlu0 %v1553
        %v1555 = vpop.xlane.xlu0 %1554
        %v1556 = vsel %vm1364, %v1534, 0.0
        %1557 = vadd.xlane.f32.xlu0 %v1556
        %v1558 = vpop.xlane.xlu0 %1557
        %v1559 = vrcp.pop %v1537
        %v1560 = vrcp.pop %v1540
        %v1561 = vrcp.pop %v1543
        %v1562 = vrcp.pop %v1546
        %v1563 = vrcp.pop %v1549
        %v1564 = vrcp.pop %v1552
        %v1565 = vrcp.pop %v1555
        %v1566 = vrcp.pop %v1558
        %v1567 = vmul.f32 %v1520, %v1559
        %v1568 = vmul.f32 %v1522, %v1560
        %v1569 = vmul.f32 %v1524, %v1561
        %v1570 = vmul.f32 %v1526, %v1562
        %v1571 = vmul.f32 %v1528, %v1563
        %v1572 = vmul.f32 %v1530, %v1564
        %v1573 = vmul.f32 %v1532, %v1565
        %v1574 = vmul.f32 %v1534, %v1566
        %v1575 = vpack.c.bf16 %v1568, %v1567
        %v1576 = vpack.c.bf16 %v1570, %v1569
        %v1577 = vpack.c.bf16 %v1572, %v1571
        %v1578 = vpack.c.bf16 %v1574, %v1573
        %v1579 = vpack.c.bf16 %v1329, %v1326
        %v1580 = vpack.c.bf16 %v1337, %v1334
        %v1581 = vpack.c.bf16 %v1345, %v1342
        %v1582 = vpack.c.bf16 %v1353, %v1350
        %v1584 = vsel %vm1364, %v1575, 0
        %v1587 = vsel %vm1364, %v1576, 0
        %1589 = vmatprep.subr.bf16.mxu0 0
        %1590 = vmatpush1.bf16.msra.mxu0 %v1579
        %1591 = vmatprep.subr.bf16.mxu0 0
        %1592 = vmatpush1.bf16.msra.mxu0 %v1580
        %1593 = vmatprep.subr.bf16.mxu0 0
        %1594 = vmatpush1.bf16.msra.mxu0 0
        %1595 = vmatprep.subr.bf16.mxu0 0
        %1596 = vmatpush1.bf16.msra.mxu0 0
        %1597 = vmatprep.subr.bf16.mxu0 0
        %1598 = vmatpush1.bf16.msra.mxu0 0
        %1599 = vmatprep.subr.bf16.mxu0 0
        %1600 = vmatpush1.bf16.msra.mxu0 0
        %1601 = vmatprep.subr.bf16.mxu0 0
        %1602 = vmatpush1.bf16.msra.mxu0 0
        %1603 = vmatprep.subr.bf16.mxu0 0
        %1604 = vmatpush1.bf16.msra.mxu0 0
        %1605 = vmatprep.subr.bf16.mxu0 0
        %1606 = vmatpush1.bf16.msra.mxu0 0
        %1607 = vmatprep.subr.bf16.mxu0 0
        %1608 = vmatpush1.bf16.msra.mxu0 0
        %1609 = vmatprep.subr.bf16.mxu0 0
        %1610 = vmatpush1.bf16.msra.mxu0 0
        %1611 = vmatprep.subr.bf16.mxu0 0
        %1612 = vmatpush1.bf16.msra.mxu0 0
        %1613 = vmatprep.subr.bf16.mxu0 0
        %1614 = vmatpush1.bf16.msra.mxu0 0
        %1615 = vmatprep.subr.bf16.mxu0 0
        %1616 = vmatpush1.bf16.msra.mxu0 0
        %1617 = vmatprep.subr.bf16.mxu0 0
        %1618 = vmatpush1.bf16.msra.mxu0 0
        %1619 = vmatprep.subr.bf16.mxu0 0
        %1620 = vmatpush1.bf16.msra.mxu0 0
        %1621 = vmatprep.mubr.bf16.mxu0 0
        %1622 = vmatmul.mubr.bf16.gmra.mrb[0].mxu0 %v1584
        %v1623 = vpop.f32.mrb[0].mxu0
        %v1624 = vadd.f32 0.0, %v1623
        %v1625 = vpop.f32.mrb[0].mxu0
        %v1626 = vpop.f32.mrb[0].mxu0
        %v1627 = vadd.f32 0.0, %v1626
        %v1628 = vpop.f32.mrb[0].mxu0
        %1629 = vmatprep.mubr.bf16.mxu0 0
        %1630 = vmatmul.mubr.bf16.gmra.mrb[0].mxu0 %v1587
        %v1631 = vpop.f32.mrb[0].mxu0
        %v1632 = vadd.f32 0.0, %v1631
        %v1633 = vpop.f32.mrb[0].mxu0
        %v1634 = vpop.f32.mrb[0].mxu0
        %v1635 = vadd.f32 0.0, %v1634
        %v1636 = vpop.f32.mrb[0].mxu0
        %1637 = vdwg.mxu0
        %v1639 = vsel %vm1364, %v1577, 0
        %v1642 = vsel %vm1364, %v1578, 0
        %1644 = vmatprep.subr.bf16.mxu0 0
        %1645 = vmatpush1.bf16.msra.mxu0 %v1581
        %1646 = vmatprep.subr.bf16.mxu0 0
        %1647 = vmatpush1.bf16.msra.mxu0 %v1582
        %1648 = vmatprep.subr.bf16.mxu0 0
        %1649 = vmatpush1.bf16.msra.mxu0 0
        %1650 = vmatprep.subr.bf16.mxu0 0
        %1651 = vmatpush1.bf16.msra.mxu0 0
        %1652 = vmatprep.subr.bf16.mxu0 0
        %1653 = vmatpush1.bf16.msra.mxu0 0
        %1654 = vmatprep.subr.bf16.mxu0 0
        %1655 = vmatpush1.bf16.msra.mxu0 0
        %1656 = vmatprep.subr.bf16.mxu0 0
        %1657 = vmatpush1.bf16.msra.mxu0 0
        %1658 = vmatprep.subr.bf16.mxu0 0
        %1659 = vmatpush1.bf16.msra.mxu0 0
        %1660 = vmatprep.subr.bf16.mxu0 0
        %1661 = vmatpush1.bf16.msra.mxu0 0
        %1662 = vmatprep.subr.bf16.mxu0 0
        %1663 = vmatpush1.bf16.msra.mxu0 0
        %1664 = vmatprep.subr.bf16.mxu0 0
        %1665 = vmatpush1.bf16.msra.mxu0 0
        %1666 = vmatprep.subr.bf16.mxu0 0
        %1667 = vmatpush1.bf16.msra.mxu0 0
        %1668 = vmatprep.subr.bf16.mxu0 0
        %1669 = vmatpush1.bf16.msra.mxu0 0
        %1670 = vmatprep.subr.bf16.mxu0 0
        %1671 = vmatpush1.bf16.msra.mxu0 0
        %1672 = vmatprep.subr.bf16.mxu0 0
        %1673 = vmatpush1.bf16.msra.mxu0 0
        %1674 = vmatprep.subr.bf16.mxu0 0
        %1675 = vmatpush1.bf16.msra.mxu0 0
        %1676 = vmatprep.mubr.bf16.mxu0 0
        %1677 = vmatmul.mubr.bf16.gmra.mrb[0].mxu0 %v1639
        %v1678 = vpop.f32.mrb[0].mxu0
        %v1679 = vadd.f32 0.0, %v1678
        %v1680 = vpop.f32.mrb[0].mxu0
        %v1681 = vpop.f32.mrb[0].mxu0
        %v1682 = vadd.f32 0.0, %v1681
        %v1683 = vpop.f32.mrb[0].mxu0
        %1684 = vmatprep.mubr.bf16.mxu0 0
        %1685 = vmatmul.mubr.bf16.gmra.mrb[0].mxu0 %v1642
        %v1686 = vpop.f32.mrb[0].mxu0
        %v1687 = vadd.f32 0.0, %v1686
        %v1688 = vpop.f32.mrb[0].mxu0
        %v1689 = vpop.f32.mrb[0].mxu0
        %v1690 = vadd.f32 0.0, %v1689
        %v1691 = vpop.f32.mrb[0].mxu0
        %1692 = vdwg.mxu0
        %v1693 = vpack.c.bf16 %v1627, %v1624
        %v1694 = vpack.c.bf16 %v1635, %v1632
        %v1695 = vpack.c.bf16 %v1682, %v1679
        %v1696 = vpack.c.bf16 %v1690, %v1687
        %v1697 = vld [vmem:[%s662] sm:$0xf]
        %v1698 = vld [vmem:[%s662 + $0x4] sm:$0xf]
        %v1699 = vld [vmem:[%s662 + $0x8] sm:$0xf]
        %v1700 = vld [vmem:[%s662 + $0xc] sm:$0xf]
        %s1701 = scalar_lea.vmem %s657, 64
        %v1702 = vld [vmem:[%s1701] sm:$0xf]
        %v1703 = vld [vmem:[%s1701 + $0x4] sm:$0xf]
        %v1704 = vld [vmem:[%s1701 + $0x8] sm:$0xf]
        %v1705 = vld [vmem:[%s1701 + $0xc] sm:$0xf]
        %v1706 = vld [vmem:[%s1701 + $0x10] sm:$0xf]
        %v1707 = vld [vmem:[%s1701 + $0x14] sm:$0xf]
        %v1708 = vld [vmem:[%s1701 + $0x18] sm:$0xf]
        %v1709 = vld [vmem:[%s1701 + $0x1c] sm:$0xf]
        %v1710 = vld [vmem:[%s1701 + $0x20] sm:$0xf]
        %v1711 = vld [vmem:[%s1701 + $0x24] sm:$0xf]
        %v1712 = vld [vmem:[%s1701 + $0x28] sm:$0xf]
        %v1713 = vld [vmem:[%s1701 + $0x2c] sm:$0xf]
        %v1714 = vld [vmem:[%s1701 + $0x30] sm:$0xf]
        %v1715 = vld [vmem:[%s1701 + $0x34] sm:$0xf]
        %v1716 = vld [vmem:[%s1701 + $0x38] sm:$0xf]
        %v1717 = vld [vmem:[%s1701 + $0x3c] sm:$0xf]
        %v1718 = vlaneseq
        %v1719 = vshrl.u32 %v1718, 7
        %v1720 = vsub.s32 1, %v1719
        %v1721 = vrot.slane %v841, %v1720
        %v1738 = vunpack.c.l.b16 %v1702
        %v1739 = vunpack.c.l.b16 %v1703
        %v1740 = vunpack.c.l.b16 %v1704
        %v1741 = vunpack.c.l.b16 %v1705
        %v1742 = vunpack.c.l.b16 %v1706
        %v1743 = vunpack.c.l.b16 %v1707
        %v1744 = vunpack.c.l.b16 %v1708
        %v1745 = vunpack.c.l.b16 %v1709
        %v1746 = vunpack.c.l.b16 %v1710
        %v1747 = vunpack.c.l.b16 %v1711
        %v1748 = vunpack.c.l.b16 %v1712
        %v1749 = vunpack.c.l.b16 %v1713
        %v1750 = vunpack.c.l.b16 %v1714
        %v1751 = vunpack.c.l.b16 %v1715
        %v1752 = vunpack.c.l.b16 %v1716
        %v1753 = vunpack.c.l.b16 %v1717
        %v1754 = vpack.c.b16 %v1739, %v1738
        %v1755 = vpack.c.b16 %v1741, %v1740
        %v1756 = vpack.c.b16 %v1743, %v1742
        %v1757 = vpack.c.b16 %v1745, %v1744
        %v1758 = vpack.c.b16 %v1747, %v1746
        %v1759 = vpack.c.b16 %v1749, %v1748
        %v1760 = vpack.c.b16 %v1751, %v1750
        %v1761 = vpack.c.b16 %v1753, %v1752
        %1770 = vmatprep.subr.bf16.mxu0 0
        %1771 = vmatpush1.bf16.msra.mxu0 %v1754
        %1772 = vmatprep.subr.bf16.mxu0 0
        %1773 = vmatpush1.bf16.msra.mxu0 %v1755
        %1774 = vmatprep.subr.bf16.mxu0 0
        %1775 = vmatpush1.bf16.msra.mxu0 %v1756
        %1776 = vmatprep.subr.bf16.mxu0 0
        %1777 = vmatpush1.bf16.msra.mxu0 %v1757
        %1778 = vmatprep.subr.bf16.mxu0 0
        %1779 = vmatpush1.bf16.msra.mxu0 %v1758
        %1780 = vmatprep.subr.bf16.mxu0 0
        %1781 = vmatpush1.bf16.msra.mxu0 %v1759
        %1782 = vmatprep.subr.bf16.mxu0 0
        %1783 = vmatpush1.bf16.msra.mxu0 %v1760
        %1784 = vmatprep.subr.bf16.mxu0 0
        %1785 = vmatpush1.bf16.msra.mxu0 %v1761
        %1786 = vmatprep.subr.bf16.mxu0 0
        %1787 = vmatpush1.bf16.msra.mxu0 0
        %1788 = vmatprep.subr.bf16.mxu0 0
        %1789 = vmatpush1.bf16.msra.mxu0 0
        %1790 = vmatprep.subr.bf16.mxu0 0
        %1791 = vmatpush1.bf16.msra.mxu0 0
        %1792 = vmatprep.subr.bf16.mxu0 0
        %1793 = vmatpush1.bf16.msra.mxu0 0
        %1794 = vmatprep.subr.bf16.mxu0 0
        %1795 = vmatpush1.bf16.msra.mxu0 0
        %1796 = vmatprep.subr.bf16.mxu0 0
        %1797 = vmatpush1.bf16.msra.mxu0 0
        %1798 = vmatprep.subr.bf16.mxu0 0
        %1799 = vmatpush1.bf16.msra.mxu0 0
        %1800 = vmatprep.subr.bf16.mxu0 0
        %1801 = vmatpush1.bf16.msra.mxu0 0
        %1802 = vmatprep.mubr.bf16.mxu0 0
        %1803 = vmatmul.mubr.bf16.gmra.mrb[0].mxu0 %v955
        %v1804 = vpop.f32.mrb[0].mxu0
        %v1805 = vadd.f32 %v1721, %v1804
        %v1806 = vpop.f32.mrb[0].mxu0
        %v1807 = vpop.f32.mrb[0].mxu0
        %v1808 = vadd.f32 %v1721, %v1807
        %v1809 = vpop.f32.mrb[0].mxu0
        %1810 = vmatprep.mubr.bf16.mxu0 0
        %1811 = vmatmul.mubr.bf16.gmra.mrb[0].mxu0 %v956
        %v1812 = vpop.f32.mrb[0].mxu0
        %v1813 = vadd.f32 %v1721, %v1812
        %v1814 = vpop.f32.mrb[0].mxu0
        %v1815 = vpop.f32.mrb[0].mxu0
        %v1816 = vadd.f32 %v1721, %v1815
        %v1817 = vpop.f32.mrb[0].mxu0
        %1818 = vmatprep.mubr.bf16.mxu0 0
        %1819 = vmatmul.mubr.bf16.gmra.mrb[0].mxu0 %v957
        %v1820 = vpop.f32.mrb[0].mxu0
        %v1821 = vadd.f32 %v1721, %v1820
        %v1822 = vpop.f32.mrb[0].mxu0
        %v1823 = vpop.f32.mrb[0].mxu0
        %v1824 = vadd.f32 %v1721, %v1823
        %v1825 = vpop.f32.mrb[0].mxu0
        %1826 = vmatprep.mubr.bf16.mxu0 0
        %1827 = vmatmul.mubr.bf16.gmra.mrb[0].mxu0 %v958
        %v1828 = vpop.f32.mrb[0].mxu0
        %v1829 = vadd.f32 %v1721, %v1828
        %v1830 = vpop.f32.mrb[0].mxu0
        %v1831 = vpop.f32.mrb[0].mxu0
        %v1832 = vadd.f32 %v1721, %v1831
        %v1833 = vpop.f32.mrb[0].mxu0
        %1834 = vdwg.mxu0
        %s1835 = scalar_lea.vmem %s657, 320
        %v1836 = vld [vmem:[%s1835] sm:$0xf]
        %v1837 = vld [vmem:[%s1835 + $0x4] sm:$0xf]
        %v1838 = vld [vmem:[%s1835 + $0x8] sm:$0xf]
        %v1839 = vld [vmem:[%s1835 + $0xc] sm:$0xf]
        %v1840 = vld [vmem:[%s1835 + $0x10] sm:$0xf]
        %v1841 = vld [vmem:[%s1835 + $0x14] sm:$0xf]
        %v1842 = vld [vmem:[%s1835 + $0x18] sm:$0xf]
        %v1843 = vld [vmem:[%s1835 + $0x1c] sm:$0xf]
        %v1844 = vld [vmem:[%s1835 + $0x20] sm:$0xf]
        %v1845 = vld [vmem:[%s1835 + $0x24] sm:$0xf]
        %v1846 = vld [vmem:[%s1835 + $0x28] sm:$0xf]
        %v1847 = vld [vmem:[%s1835 + $0x2c] sm:$0xf]
        %v1848 = vld [vmem:[%s1835 + $0x30] sm:$0xf]
        %v1849 = vld [vmem:[%s1835 + $0x34] sm:$0xf]
        %v1850 = vld [vmem:[%s1835 + $0x38] sm:$0xf]
        %v1851 = vld [vmem:[%s1835 + $0x3c] sm:$0xf]
        %v1852 = vlaneseq
        %v1853 = vshrl.u32 %v1852, 7
        %v1854 = vsub.s32 5, %v1853
        %v1855 = vrot.slane %v841, %v1854
        %v1872 = vunpack.c.l.b16 %v1836
        %v1873 = vunpack.c.l.b16 %v1837
        %v1874 = vunpack.c.l.b16 %v1838
        %v1875 = vunpack.c.l.b16 %v1839
        %v1876 = vunpack.c.l.b16 %v1840
        %v1877 = vunpack.c.l.b16 %v1841
        %v1878 = vunpack.c.l.b16 %v1842
        %v1879 = vunpack.c.l.b16 %v1843
        %v1880 = vunpack.c.l.b16 %v1844
        %v1881 = vunpack.c.l.b16 %v1845
        %v1882 = vunpack.c.l.b16 %v1846
        %v1883 = vunpack.c.l.b16 %v1847
        %v1884 = vunpack.c.l.b16 %v1848
        %v1885 = vunpack.c.l.b16 %v1849
        %v1886 = vunpack.c.l.b16 %v1850
        %v1887 = vunpack.c.l.b16 %v1851
        %v1888 = vpack.c.b16 %v1873, %v1872
        %v1889 = vpack.c.b16 %v1875, %v1874
        %v1890 = vpack.c.b16 %v1877, %v1876
        %v1891 = vpack.c.b16 %v1879, %v1878
        %v1892 = vpack.c.b16 %v1881, %v1880
        %v1893 = vpack.c.b16 %v1883, %v1882
        %v1894 = vpack.c.b16 %v1885, %v1884
        %v1895 = vpack.c.b16 %v1887, %v1886
        %1904 = vmatprep.subr.bf16.mxu0 0
        %1905 = vmatpush1.bf16.msra.mxu0 %v1888
        %1906 = vmatprep.subr.bf16.mxu0 0
        %1907 = vmatpush1.bf16.msra.mxu0 %v1889
        %1908 = vmatprep.subr.bf16.mxu0 0
        %1909 = vmatpush1.bf16.msra.mxu0 %v1890
        %1910 = vmatprep.subr.bf16.mxu0 0
        %1911 = vmatpush1.bf16.msra.mxu0 %v1891
        %1912 = vmatprep.subr.bf16.mxu0 0
        %1913 = vmatpush1.bf16.msra.mxu0 %v1892
        %1914 = vmatprep.subr.bf16.mxu0 0
        %1915 = vmatpush1.bf16.msra.mxu0 %v1893
        %1916 = vmatprep.subr.bf16.mxu0 0
        %1917 = vmatpush1.bf16.msra.mxu0 %v1894
        %1918 = vmatprep.subr.bf16.mxu0 0
        %1919 = vmatpush1.bf16.msra.mxu0 %v1895
        %1920 = vmatprep.subr.bf16.mxu0 0
        %1921 = vmatpush1.bf16.msra.mxu0 0
        %1922 = vmatprep.subr.bf16.mxu0 0
        %1923 = vmatpush1.bf16.msra.mxu0 0
        %1924 = vmatprep.subr.bf16.mxu0 0
        %1925 = vmatpush1.bf16.msra.mxu0 0
        %1926 = vmatprep.subr.bf16.mxu0 0
        %1927 = vmatpush1.bf16.msra.mxu0 0
        %1928 = vmatprep.subr.bf16.mxu0 0
        %1929 = vmatpush1.bf16.msra.mxu0 0
        %1930 = vmatprep.subr.bf16.mxu0 0
        %1931 = vmatpush1.bf16.msra.mxu0 0
        %1932 = vmatprep.subr.bf16.mxu0 0
        %1933 = vmatpush1.bf16.msra.mxu0 0
        %1934 = vmatprep.subr.bf16.mxu0 0
        %1935 = vmatpush1.bf16.msra.mxu0 0
        %1936 = vmatprep.mubr.bf16.mxu0 0
        %1937 = vmatmul.mubr.bf16.gmra.mrb[0].mxu0 %v955
        %v1938 = vpop.f32.mrb[0].mxu0
        %v1939 = vadd.f32 %v1855, %v1938
        %v1940 = vpop.f32.mrb[0].mxu0
        %v1941 = vpop.f32.mrb[0].mxu0
        %v1942 = vadd.f32 %v1855, %v1941
        %v1943 = vpop.f32.mrb[0].mxu0
        %1944 = vmatprep.mubr.bf16.mxu0 0
        %1945 = vmatmul.mubr.bf16.gmra.mrb[0].mxu0 %v956
        %v1946 = vpop.f32.mrb[0].mxu0
        %v1947 = vadd.f32 %v1855, %v1946
        %v1948 = vpop.f32.mrb[0].mxu0
        %v1949 = vpop.f32.mrb[0].mxu0
        %v1950 = vadd.f32 %v1855, %v1949
        %v1951 = vpop.f32.mrb[0].mxu0
        %1952 = vmatprep.mubr.bf16.mxu0 0
        %1953 = vmatmul.mubr.bf16.gmra.mrb[0].mxu0 %v957
        %v1954 = vpop.f32.mrb[0].mxu0
        %v1955 = vadd.f32 %v1855, %v1954
        %v1956 = vpop.f32.mrb[0].mxu0
        %v1957 = vpop.f32.mrb[0].mxu0
        %v1958 = vadd.f32 %v1855, %v1957
        %v1959 = vpop.f32.mrb[0].mxu0
        %1960 = vmatprep.mubr.bf16.mxu0 0
        %1961 = vmatmul.mubr.bf16.gmra.mrb[0].mxu0 %v958
        %v1962 = vpop.f32.mrb[0].mxu0
        %v1963 = vadd.f32 %v1855, %v1962
        %v1964 = vpop.f32.mrb[0].mxu0
        %v1965 = vpop.f32.mrb[0].mxu0
        %v1966 = vadd.f32 %v1855, %v1965
        %v1967 = vpop.f32.mrb[0].mxu0
        %1968 = vdwg.mxu0
        %s1969 = scalar_lea.vmem %s657, 576
        %v1970 = vld [vmem:[%s1969] sm:$0xf]
        %v1971 = vld [vmem:[%s1969 + $0x4] sm:$0xf]
        %v1972 = vld [vmem:[%s1969 + $0x8] sm:$0xf]
        %v1973 = vld [vmem:[%s1969 + $0xc] sm:$0xf]
        %v1974 = vld [vmem:[%s1969 + $0x10] sm:$0xf]
        %v1975 = vld [vmem:[%s1969 + $0x14] sm:$0xf]
        %v1976 = vld [vmem:[%s1969 + $0x18] sm:$0xf]
        %v1977 = vld [vmem:[%s1969 + $0x1c] sm:$0xf]
        %v1978 = vld [vmem:[%s1969 + $0x20] sm:$0xf]
        %v1979 = vld [vmem:[%s1969 + $0x24] sm:$0xf]
        %v1980 = vld [vmem:[%s1969 + $0x28] sm:$0xf]
        %v1981 = vld [vmem:[%s1969 + $0x2c] sm:$0xf]
        %v1982 = vld [vmem:[%s1969 + $0x30] sm:$0xf]
        %v1983 = vld [vmem:[%s1969 + $0x34] sm:$0xf]
        %v1984 = vld [vmem:[%s1969 + $0x38] sm:$0xf]
        %v1985 = vld [vmem:[%s1969 + $0x3c] sm:$0xf]
        %v2002 = vunpack.c.l.b16 %v1970
        %v2003 = vunpack.c.l.b16 %v1971
        %v2004 = vunpack.c.l.b16 %v1972
        %v2005 = vunpack.c.l.b16 %v1973
        %v2006 = vunpack.c.l.b16 %v1974
        %v2007 = vunpack.c.l.b16 %v1975
        %v2008 = vunpack.c.l.b16 %v1976
        %v2009 = vunpack.c.l.b16 %v1977
        %v2010 = vunpack.c.l.b16 %v1978
        %v2011 = vunpack.c.l.b16 %v1979
        %v2012 = vunpack.c.l.b16 %v1980
        %v2013 = vunpack.c.l.b16 %v1981
        %v2014 = vunpack.c.l.b16 %v1982
        %v2015 = vunpack.c.l.b16 %v1983
        %v2016 = vunpack.c.l.b16 %v1984
        %v2017 = vunpack.c.l.b16 %v1985
        %v2018 = vpack.c.b16 %v2003, %v2002
        %v2019 = vpack.c.b16 %v2005, %v2004
        %v2020 = vpack.c.b16 %v2007, %v2006
        %v2021 = vpack.c.b16 %v2009, %v2008
        %v2022 = vpack.c.b16 %v2011, %v2010
        %v2023 = vpack.c.b16 %v2013, %v2012
        %v2024 = vpack.c.b16 %v2015, %v2014
        %v2025 = vpack.c.b16 %v2017, %v2016
        %2034 = vmatprep.subr.bf16.mxu0 0
        %2035 = vmatpush1.bf16.msra.mxu0 %v2018
        %2036 = vmatprep.subr.bf16.mxu0 0
        %2037 = vmatpush1.bf16.msra.mxu0 %v2019
        %2038 = vmatprep.subr.bf16.mxu0 0
        %2039 = vmatpush1.bf16.msra.mxu0 %v2020
        %2040 = vmatprep.subr.bf16.mxu0 0
        %2041 = vmatpush1.bf16.msra.mxu0 %v2021
        %2042 = vmatprep.subr.bf16.mxu0 0
        %2043 = vmatpush1.bf16.msra.mxu0 %v2022
        %2044 = vmatprep.subr.bf16.mxu0 0
        %2045 = vmatpush1.bf16.msra.mxu0 %v2023
        %2046 = vmatprep.subr.bf16.mxu0 0
        %2047 = vmatpush1.bf16.msra.mxu0 %v2024
        %2048 = vmatprep.subr.bf16.mxu0 0
        %2049 = vmatpush1.bf16.msra.mxu0 %v2025
        %2050 = vmatprep.subr.bf16.mxu0 0
        %2051 = vmatpush1.bf16.msra.mxu0 0
        %2052 = vmatprep.subr.bf16.mxu0 0
        %2053 = vmatpush1.bf16.msra.mxu0 0
        %2054 = vmatprep.subr.bf16.mxu0 0
        %2055 = vmatpush1.bf16.msra.mxu0 0
        %2056 = vmatprep.subr.bf16.mxu0 0
        %2057 = vmatpush1.bf16.msra.mxu0 0
        %2058 = vmatprep.subr.bf16.mxu0 0
        %2059 = vmatpush1.bf16.msra.mxu0 0
        %2060 = vmatprep.subr.bf16.mxu0 0
        %2061 = vmatpush1.bf16.msra.mxu0 0
        %2062 = vmatprep.subr.bf16.mxu0 0
        %2063 = vmatpush1.bf16.msra.mxu0 0
        %2064 = vmatprep.subr.bf16.mxu0 0
        %2065 = vmatpush1.bf16.msra.mxu0 0
        %2066 = vmatprep.mubr.bf16.mxu0 0
        %2067 = vmatmul.mubr.bf16.gmra.mrb[0].mxu0 %v955
        %v2068 = vpop.f32.mrb[0].mxu0
        %v2069 = vadd.f32 0.0, %v2068
        %v2070 = vpop.f32.mrb[0].mxu0
        %v2071 = vpop.f32.mrb[0].mxu0
        %v2072 = vadd.f32 0.0, %v2071
        %v2073 = vpop.f32.mrb[0].mxu0
        %2074 = vmatprep.mubr.bf16.mxu0 0
        %2075 = vmatmul.mubr.bf16.gmra.mrb[0].mxu0 %v956
        %v2076 = vpop.f32.mrb[0].mxu0
        %v2077 = vadd.f32 0.0, %v2076
        %v2078 = vpop.f32.mrb[0].mxu0
        %v2079 = vpop.f32.mrb[0].mxu0
        %v2080 = vadd.f32 0.0, %v2079
        %v2081 = vpop.f32.mrb[0].mxu0
        %2082 = vmatprep.mubr.bf16.mxu0 0
        %2083 = vmatmul.mubr.bf16.gmra.mrb[0].mxu0 %v957
        %v2084 = vpop.f32.mrb[0].mxu0
        %v2085 = vadd.f32 0.0, %v2084
        %v2086 = vpop.f32.mrb[0].mxu0
        %v2087 = vpop.f32.mrb[0].mxu0
        %v2088 = vadd.f32 0.0, %v2087
        %v2089 = vpop.f32.mrb[0].mxu0
        %2090 = vmatprep.mubr.bf16.mxu0 0
        %2091 = vmatmul.mubr.bf16.gmra.mrb[0].mxu0 %v958
        %v2092 = vpop.f32.mrb[0].mxu0
        %v2093 = vadd.f32 0.0, %v2092
        %v2094 = vpop.f32.mrb[0].mxu0
        %v2095 = vpop.f32.mrb[0].mxu0
        %v2096 = vadd.f32 0.0, %v2095
        %v2097 = vpop.f32.mrb[0].mxu0
        %2098 = vdwg.mxu0
        %v2099 = vpack.c.bf16 %v1808, %v1805
        %v2100 = vpack.c.bf16 %v1816, %v1813
        %v2101 = vpack.c.bf16 %v1824, %v1821
        %v2102 = vpack.c.bf16 %v1832, %v1829
        %v2103 = vpack.c.bf16 %v1942, %v1939
        %v2104 = vpack.c.bf16 %v1950, %v1947
        %v2105 = vpack.c.bf16 %v1958, %v1955
        %v2106 = vpack.c.bf16 %v1966, %v1963
        %v2108 = vsel %vm1364, %v2099, 0
        %v2111 = vsel %vm1364, %v2100, 0
        %v2114 = vsel %vm1364, %v2103, 0
        %v2117 = vsel %vm1364, %v2104, 0
        %2119 = vmatprep.subr.bf16.mxu0 0
        %2120 = vmatpush1.bf16.xpose.msra.mxu0 %v2114
        %2121 = vmatprep.subr.bf16.mxu0 0
        %2122 = vmatpush1.bf16.xpose.msra.mxu0 %v2117
        %2123 = vmatprep.subr.bf16.mxu0 0
        %2124 = vmatpush1.bf16.xpose.msra.mxu0 0
        %2125 = vmatprep.subr.bf16.mxu0 0
        %2126 = vmatpush1.bf16.xpose.msra.mxu0 0
        %2127 = vmatprep.subr.bf16.mxu0 0
        %2128 = vmatpush1.bf16.xpose.msra.mxu0 0
        %2129 = vmatprep.subr.bf16.mxu0 0
        %2130 = vmatpush1.bf16.xpose.msra.mxu0 0
        %2131 = vmatprep.subr.bf16.mxu0 0
        %2132 = vmatpush1.bf16.xpose.msra.mxu0 0
        %2133 = vmatprep.subr.bf16.mxu0 0
        %2134 = vmatpush1.bf16.xpose.msra.mxu0 0
        %2135 = vmatprep.subr.bf16.mxu0 0
        %2136 = vmatpush1.bf16.xpose.msra.mxu0 0
        %2137 = vmatprep.subr.bf16.mxu0 0
        %2138 = vmatpush1.bf16.xpose.msra.mxu0 0
        %2139 = vmatprep.subr.bf16.mxu0 0
        %2140 = vmatpush1.bf16.xpose.msra.mxu0 0
        %2141 = vmatprep.subr.bf16.mxu0 0
        %2142 = vmatpush1.bf16.xpose.msra.mxu0 0
        %2143 = vmatprep.subr.bf16.mxu0 0
        %2144 = vmatpush1.bf16.xpose.msra.mxu0 0
        %2145 = vmatprep.subr.bf16.mxu0 0
        %2146 = vmatpush1.bf16.xpose.msra.mxu0 0
        %2147 = vmatprep.subr.bf16.mxu0 0
        %2148 = vmatpush1.bf16.xpose.msra.mxu0 0
        %2149 = vmatprep.subr.bf16.mxu0 0
        %2150 = vmatpush1.bf16.xpose.msra.mxu0 0
        %2151 = vmatprep.mubr.bf16.mxu0 0
        %2152 = vmatmul.mubr.bf16.gmra.mrb[0].mxu0 %v2108
        %v2153 = vpop.f32.mrb[0].mxu0
        %v2154 = vadd.f32 0.0, %v2153
        %v2155 = vpop.f32.mrb[0].mxu0
        %v2156 = vpop.f32.mrb[0].mxu0
        %v2157 = vadd.f32 0.0, %v2156
        %v2158 = vpop.f32.mrb[0].mxu0
        %2159 = vmatprep.mubr.bf16.mxu0 0
        %2160 = vmatmul.mubr.bf16.gmra.mrb[0].mxu0 %v2111
        %v2161 = vpop.f32.mrb[0].mxu0
        %v2162 = vadd.f32 0.0, %v2161
        %v2163 = vpop.f32.mrb[0].mxu0
        %v2164 = vpop.f32.mrb[0].mxu0
        %v2165 = vadd.f32 0.0, %v2164
        %v2166 = vpop.f32.mrb[0].mxu0
        %2167 = vdwg.mxu0
        %v2169 = vsel %vm1364, %v2101, 0
        %v2172 = vsel %vm1364, %v2102, 0
        %v2175 = vsel %vm1364, %v2105, 0
        %v2178 = vsel %vm1364, %v2106, 0
        %2180 = vmatprep.subr.bf16.mxu0 0
        %2181 = vmatpush1.bf16.xpose.msra.mxu0 %v2175
        %2182 = vmatprep.subr.bf16.mxu0 0
        %2183 = vmatpush1.bf16.xpose.msra.mxu0 %v2178
        %2184 = vmatprep.subr.bf16.mxu0 0
        %2185 = vmatpush1.bf16.xpose.msra.mxu0 0
        %2186 = vmatprep.subr.bf16.mxu0 0
        %2187 = vmatpush1.bf16.xpose.msra.mxu0 0
        %2188 = vmatprep.subr.bf16.mxu0 0
        %2189 = vmatpush1.bf16.xpose.msra.mxu0 0
        %2190 = vmatprep.subr.bf16.mxu0 0
        %2191 = vmatpush1.bf16.xpose.msra.mxu0 0
        %2192 = vmatprep.subr.bf16.mxu0 0
        %2193 = vmatpush1.bf16.xpose.msra.mxu0 0
        %2194 = vmatprep.subr.bf16.mxu0 0
        %2195 = vmatpush1.bf16.xpose.msra.mxu0 0
        %2196 = vmatprep.subr.bf16.mxu0 0
        %2197 = vmatpush1.bf16.xpose.msra.mxu0 0
        %2198 = vmatprep.subr.bf16.mxu0 0
        %2199 = vmatpush1.bf16.xpose.msra.mxu0 0
        %2200 = vmatprep.subr.bf16.mxu0 0
        %2201 = vmatpush1.bf16.xpose.msra.mxu0 0
        %2202 = vmatprep.subr.bf16.mxu0 0
        %2203 = vmatpush1.bf16.xpose.msra.mxu0 0
        %2204 = vmatprep.subr.bf16.mxu0 0
        %2205 = vmatpush1.bf16.xpose.msra.mxu0 0
        %2206 = vmatprep.subr.bf16.mxu0 0
        %2207 = vmatpush1.bf16.xpose.msra.mxu0 0
        %2208 = vmatprep.subr.bf16.mxu0 0
        %2209 = vmatpush1.bf16.xpose.msra.mxu0 0
        %2210 = vmatprep.subr.bf16.mxu0 0
        %2211 = vmatpush1.bf16.xpose.msra.mxu0 0
        %2212 = vmatprep.mubr.bf16.mxu0 0
        %2213 = vmatmul.mubr.bf16.gmra.mrb[0].mxu0 %v2169
        %v2214 = vpop.f32.mrb[0].mxu0
        %v2215 = vadd.f32 0.0, %v2214
        %v2216 = vpop.f32.mrb[0].mxu0
        %v2217 = vpop.f32.mrb[0].mxu0
        %v2218 = vadd.f32 0.0, %v2217
        %v2219 = vpop.f32.mrb[0].mxu0
        %2220 = vmatprep.mubr.bf16.mxu0 0
        %2221 = vmatmul.mubr.bf16.gmra.mrb[0].mxu0 %v2172
        %v2222 = vpop.f32.mrb[0].mxu0
        %v2223 = vadd.f32 0.0, %v2222
        %v2224 = vpop.f32.mrb[0].mxu0
        %v2225 = vpop.f32.mrb[0].mxu0
        %v2226 = vadd.f32 0.0, %v2225
        %v2227 = vpop.f32.mrb[0].mxu0
        %2228 = vdwg.mxu0
        %v2229 = vsel %vm1364, %v2154, -inf
        %2230 = vmax.xlane.f32.xlu0 %v2229
        %v2231 = vpop.xlane.xlu0 %2230
        %v2232 = vsel %vm1364, %v2157, -inf
        %2233 = vmax.xlane.f32.xlu0 %v2232
        %v2234 = vpop.xlane.xlu0 %2233
        %v2235 = vsel %vm1364, %v2162, -inf
        %2236 = vmax.xlane.f32.xlu0 %v2235
        %v2237 = vpop.xlane.xlu0 %2236
        %v2238 = vsel %vm1364, %v2165, -inf
        %2239 = vmax.xlane.f32.xlu0 %v2238
        %v2240 = vpop.xlane.xlu0 %2239
        %v2241 = vsel %vm1364, %v2215, -inf
        %2242 = vmax.xlane.f32.xlu0 %v2241
        %v2243 = vpop.xlane.xlu0 %2242
        %v2244 = vsel %vm1364, %v2218, -inf
        %2245 = vmax.xlane.f32.xlu0 %v2244
        %v2246 = vpop.xlane.xlu0 %2245
        %v2247 = vsel %vm1364, %v2223, -inf
        %2248 = vmax.xlane.f32.xlu0 %v2247
        %v2249 = vpop.xlane.xlu0 %2248
        %v2250 = vsel %vm1364, %v2226, -inf
        %2251 = vmax.xlane.f32.xlu0 %v2250
        %v2252 = vpop.xlane.xlu0 %2251
        %v2253 = vsub.f32 %v2154, %v2231
        %v2254 = vsub.f32 %v2157, %v2234
        %v2255 = vsub.f32 %v2162, %v2237
        %v2256 = vsub.f32 %v2165, %v2240
        %v2257 = vsub.f32 %v2215, %v2243
        %v2258 = vsub.f32 %v2218, %v2246
        %v2259 = vsub.f32 %v2223, %v2249
        %v2260 = vsub.f32 %v2226, %v2252
        %v2261 = vmul.f32 %v2253, 1.442695
        %v2262 = vpow.pop %v2261
        %v2263 = vmul.f32 %v2254, 1.442695
        %v2264 = vpow.pop %v2263
        %v2265 = vmul.f32 %v2255, 1.442695
        %v2266 = vpow.pop %v2265
        %v2267 = vmul.f32 %v2256, 1.442695
        %v2268 = vpow.pop %v2267
        %v2269 = vmul.f32 %v2257, 1.442695
        %v2270 = vpow.pop %v2269
        %v2271 = vmul.f32 %v2258, 1.442695
        %v2272 = vpow.pop %v2271
        %v2273 = vmul.f32 %v2259, 1.442695
        %v2274 = vpow.pop %v2273
        %v2275 = vmul.f32 %v2260, 1.442695
        %v2276 = vpow.pop %v2275
        %v2277 = vsel %vm1364, %v2262, 0.0
        %2278 = vadd.xlane.f32.xlu0 %v2277
        %v2279 = vpop.xlane.xlu0 %2278
        %v2280 = vsel %vm1364, %v2264, 0.0
        %2281 = vadd.xlane.f32.xlu0 %v2280
        %v2282 = vpop.xlane.xlu0 %2281
        %v2283 = vsel %vm1364, %v2266, 0.0
        %2284 = vadd.xlane.f32.xlu0 %v2283
        %v2285 = vpop.xlane.xlu0 %2284
        %v2286 = vsel %vm1364, %v2268, 0.0
        %2287 = vadd.xlane.f32.xlu0 %v2286
        %v2288 = vpop.xlane.xlu0 %2287
        %v2289 = vsel %vm1364, %v2270, 0.0
        %2290 = vadd.xlane.f32.xlu0 %v2289
        %v2291 = vpop.xlane.xlu0 %2290
        %v2292 = vsel %vm1364, %v2272, 0.0
        %2293 = vadd.xlane.f32.xlu0 %v2292
        %v2294 = vpop.xlane.xlu0 %2293
        %v2295 = vsel %vm1364, %v2274, 0.0
        %2296 = vadd.xlane.f32.xlu0 %v2295
        %v2297 = vpop.xlane.xlu0 %2296
        %v2298 = vsel %vm1364, %v2276, 0.0
        %2299 = vadd.xlane.f32.xlu0 %v2298
        %v2300 = vpop.xlane.xlu0 %2299
        %v2301 = vrcp.pop %v2279
        %v2302 = vrcp.pop %v2282
        %v2303 = vrcp.pop %v2285
        %v2304 = vrcp.pop %v2288
        %v2305 = vrcp.pop %v2291
        %v2306 = vrcp.pop %v2294
        %v2307 = vrcp.pop %v2297
        %v2308 = vrcp.pop %v2300
        %v2309 = vmul.f32 %v2262, %v2301
        %v2310 = vmul.f32 %v2264, %v2302
        %v2311 = vmul.f32 %v2266, %v2303
        %v2312 = vmul.f32 %v2268, %v2304
        %v2313 = vmul.f32 %v2270, %v2305
        %v2314 = vmul.f32 %v2272, %v2306
        %v2315 = vmul.f32 %v2274, %v2307
        %v2316 = vmul.f32 %v2276, %v2308
        %v2317 = vpack.c.bf16 %v2310, %v2309
        %v2318 = vpack.c.bf16 %v2312, %v2311
        %v2319 = vpack.c.bf16 %v2314, %v2313
        %v2320 = vpack.c.bf16 %v2316, %v2315
        %v2321 = vpack.c.bf16 %v2072, %v2069
        %v2322 = vpack.c.bf16 %v2080, %v2077
        %v2323 = vpack.c.bf16 %v2088, %v2085
        %v2324 = vpack.c.bf16 %v2096, %v2093
        %v2326 = vsel %vm1364, %v2317, 0
        %v2329 = vsel %vm1364, %v2318, 0
        %2331 = vmatprep.subr.bf16.mxu0 0
        %2332 = vmatpush1.bf16.msra.mxu0 %v2321
        %2333 = vmatprep.subr.bf16.mxu0 0
        %2334 = vmatpush1.bf16.msra.mxu0 %v2322
        %2335 = vmatprep.subr.bf16.mxu0 0
        %2336 = vmatpush1.bf16.msra.mxu0 0
        %2337 = vmatprep.subr.bf16.mxu0 0
        %2338 = vmatpush1.bf16.msra.mxu0 0
        %2339 = vmatprep.subr.bf16.mxu0 0
        %2340 = vmatpush1.bf16.msra.mxu0 0
        %2341 = vmatprep.subr.bf16.mxu0 0
        %2342 = vmatpush1.bf16.msra.mxu0 0
        %2343 = vmatprep.subr.bf16.mxu0 0
        %2344 = vmatpush1.bf16.msra.mxu0 0
        %2345 = vmatprep.subr.bf16.mxu0 0
        %2346 = vmatpush1.bf16.msra.mxu0 0
        %2347 = vmatprep.subr.bf16.mxu0 0
        %2348 = vmatpush1.bf16.msra.mxu0 0
        %2349 = vmatprep.subr.bf16.mxu0 0
        %2350 = vmatpush1.bf16.msra.mxu0 0
        %2351 = vmatprep.subr.bf16.mxu0 0
        %2352 = vmatpush1.bf16.msra.mxu0 0
        %2353 = vmatprep.subr.bf16.mxu0 0
        %2354 = vmatpush1.bf16.msra.mxu0 0
        %2355 = vmatprep.subr.bf16.mxu0 0
        %2356 = vmatpush1.bf16.msra.mxu0 0
        %2357 = vmatprep.subr.bf16.mxu0 0
        %2358 = vmatpush1.bf16.msra.mxu0 0
        %2359 = vmatprep.subr.bf16.mxu0 0
        %2360 = vmatpush1.bf16.msra.mxu0 0
        %2361 = vmatprep.subr.bf16.mxu0 0
        %2362 = vmatpush1.bf16.msra.mxu0 0
        %2363 = vmatprep.mubr.bf16.mxu0 0
        %2364 = vmatmul.mubr.bf16.gmra.mrb[0].mxu0 %v2326
        %v2365 = vpop.f32.mrb[0].mxu0
        %v2366 = vadd.f32 0.0, %v2365
        %v2367 = vpop.f32.mrb[0].mxu0
        %v2368 = vpop.f32.mrb[0].mxu0
        %v2369 = vadd.f32 0.0, %v2368
        %v2370 = vpop.f32.mrb[0].mxu0
        %2371 = vmatprep.mubr.bf16.mxu0 0
        %2372 = vmatmul.mubr.bf16.gmra.mrb[0].mxu0 %v2329
        %v2373 = vpop.f32.mrb[0].mxu0
        %v2374 = vadd.f32 0.0, %v2373
        %v2375 = vpop.f32.mrb[0].mxu0
        %v2376 = vpop.f32.mrb[0].mxu0
        %v2377 = vadd.f32 0.0, %v2376
        %v2378 = vpop.f32.mrb[0].mxu0
        %2379 = vdwg.mxu0
        %v2381 = vsel %vm1364, %v2319, 0
        %v2384 = vsel %vm1364, %v2320, 0
        %2386 = vmatprep.subr.bf16.mxu0 0
        %2387 = vmatpush1.bf16.msra.mxu0 %v2323
        %2388 = vmatprep.subr.bf16.mxu0 0
        %2389 = vmatpush1.bf16.msra.mxu0 %v2324
        %2390 = vmatprep.subr.bf16.mxu0 0
        %2391 = vmatpush1.bf16.msra.mxu0 0
        %2392 = vmatprep.subr.bf16.mxu0 0
        %2393 = vmatpush1.bf16.msra.mxu0 0
        %2394 = vmatprep.subr.bf16.mxu0 0
        %2395 = vmatpush1.bf16.msra.mxu0 0
        %2396 = vmatprep.subr.bf16.mxu0 0
        %2397 = vmatpush1.bf16.msra.mxu0 0
        %2398 = vmatprep.subr.bf16.mxu0 0
        %2399 = vmatpush1.bf16.msra.mxu0 0
        %2400 = vmatprep.subr.bf16.mxu0 0
        %2401 = vmatpush1.bf16.msra.mxu0 0
        %2402 = vmatprep.subr.bf16.mxu0 0
        %2403 = vmatpush1.bf16.msra.mxu0 0
        %2404 = vmatprep.subr.bf16.mxu0 0
        %2405 = vmatpush1.bf16.msra.mxu0 0
        %2406 = vmatprep.subr.bf16.mxu0 0
        %2407 = vmatpush1.bf16.msra.mxu0 0
        %2408 = vmatprep.subr.bf16.mxu0 0
        %2409 = vmatpush1.bf16.msra.mxu0 0
        %2410 = vmatprep.subr.bf16.mxu0 0
        %2411 = vmatpush1.bf16.msra.mxu0 0
        %2412 = vmatprep.subr.bf16.mxu0 0
        %2413 = vmatpush1.bf16.msra.mxu0 0
        %2414 = vmatprep.subr.bf16.mxu0 0
        %2415 = vmatpush1.bf16.msra.mxu0 0
        %2416 = vmatprep.subr.bf16.mxu0 0
        %2417 = vmatpush1.bf16.msra.mxu0 0
        %2418 = vmatprep.mubr.bf16.mxu0 0
        %2419 = vmatmul.mubr.bf16.gmra.mrb[0].mxu0 %v2381
        %v2420 = vpop.f32.mrb[0].mxu0
        %v2421 = vadd.f32 0.0, %v2420
        %v2422 = vpop.f32.mrb[0].mxu0
        %v2423 = vpop.f32.mrb[0].mxu0
        %v2424 = vadd.f32 0.0, %v2423
        %v2425 = vpop.f32.mrb[0].mxu0
        %2426 = vmatprep.mubr.bf16.mxu0 0
        %2427 = vmatmul.mubr.bf16.gmra.mrb[0].mxu0 %v2384
        %v2428 = vpop.f32.mrb[0].mxu0
        %v2429 = vadd.f32 0.0, %v2428
        %v2430 = vpop.f32.mrb[0].mxu0
        %v2431 = vpop.f32.mrb[0].mxu0
        %v2432 = vadd.f32 0.0, %v2431
        %v2433 = vpop.f32.mrb[0].mxu0
        %2434 = vdwg.mxu0
        %v2435 = vpack.c.bf16 %v2369, %v2366
        %v2436 = vpack.c.bf16 %v2377, %v2374
        %v2437 = vpack.c.bf16 %v2424, %v2421
        %v2438 = vpack.c.bf16 %v2432, %v2429
        %s2439 = scalar_lea.vmem %s662, 16
        %v2440 = vld [vmem:[%s2439] sm:$0xf]
        %v2441 = vld [vmem:[%s2439 + $0x4] sm:$0xf]
        %v2442 = vld [vmem:[%s2439 + $0x8] sm:$0xf]
        %v2443 = vld [vmem:[%s2439 + $0xc] sm:$0xf]
        %v2448 = vunpack.c.l.b16 %v2440
        %v2449 = vunpack.c.l.b16 %v2441
        %v2450 = vunpack.c.l.b16 %v2442
        %v2451 = vunpack.c.l.b16 %v2443
        %v2452 = vpack.c.b16 %v2449, %v2448
        %v2453 = vpack.c.b16 %v2451, %v2450
        %v2457 = vsel %vm1364, %v2435, 0
        %v2460 = vsel %vm1364, %v2436, 0
        %v2463 = vsel %vm1364, %v2437, 0
        %v2466 = vsel %vm1364, %v2438, 0
        %2468 = vmatprep.subr.bf16.mxu0 0
        %2469 = vmatpush1.bf16.msra.mxu0 %v2452
        %2470 = vmatprep.subr.bf16.mxu0 0
        %2471 = vmatpush1.bf16.msra.mxu0 %v2453
        %2472 = vmatprep.subr.bf16.mxu0 0
        %2473 = vmatpush1.bf16.msra.mxu0 0
        %2474 = vmatprep.subr.bf16.mxu0 0
        %2475 = vmatpush1.bf16.msra.mxu0 0
        %2476 = vmatprep.subr.bf16.mxu0 0
        %2477 = vmatpush1.bf16.msra.mxu0 0
        %2478 = vmatprep.subr.bf16.mxu0 0
        %2479 = vmatpush1.bf16.msra.mxu0 0
        %2480 = vmatprep.subr.bf16.mxu0 0
        %2481 = vmatpush1.bf16.msra.mxu0 0
        %2482 = vmatprep.subr.bf16.mxu0 0
        %2483 = vmatpush1.bf16.msra.mxu0 0
        %2484 = vmatprep.subr.bf16.mxu0 0
        %2485 = vmatpush1.bf16.msra.mxu0 0
        %2486 = vmatprep.subr.bf16.mxu0 0
        %2487 = vmatpush1.bf16.msra.mxu0 0
        %2488 = vmatprep.subr.bf16.mxu0 0
        %2489 = vmatpush1.bf16.msra.mxu0 0
        %2490 = vmatprep.subr.bf16.mxu0 0
        %2491 = vmatpush1.bf16.msra.mxu0 0
        %2492 = vmatprep.subr.bf16.mxu0 0
        %2493 = vmatpush1.bf16.msra.mxu0 0
        %2494 = vmatprep.subr.bf16.mxu0 0
        %2495 = vmatpush1.bf16.msra.mxu0 0
        %2496 = vmatprep.subr.bf16.mxu0 0
        %2497 = vmatpush1.bf16.msra.mxu0 0
        %2498 = vmatprep.subr.bf16.mxu0 0
        %2499 = vmatpush1.bf16.msra.mxu0 0
        %2500 = vmatprep.mubr.bf16.mxu0 0
        %2501 = vmatmul.mubr.bf16.gmra.mrb[0].mxu0 %v2457
        %v2502 = vpop.f32.mrb[0].mxu0
        %v2503 = vadd.f32 0.0, %v2502
        %v2504 = vpop.f32.mrb[0].mxu0
        %v2505 = vpop.f32.mrb[0].mxu0
        %v2506 = vadd.f32 0.0, %v2505
        %v2507 = vpop.f32.mrb[0].mxu0
        %2508 = vmatprep.mubr.bf16.mxu0 0
        %2509 = vmatmul.mubr.bf16.gmra.mrb[0].mxu0 %v2460
        %v2510 = vpop.f32.mrb[0].mxu0
        %v2511 = vadd.f32 0.0, %v2510
        %v2512 = vpop.f32.mrb[0].mxu0
        %v2513 = vpop.f32.mrb[0].mxu0
        %v2514 = vadd.f32 0.0, %v2513
        %v2515 = vpop.f32.mrb[0].mxu0
        %2516 = vmatprep.mubr.bf16.mxu0 0
        %2517 = vmatmul.mubr.bf16.gmra.mrb[0].mxu0 %v2463
        %v2518 = vpop.f32.mrb[0].mxu0
        %v2519 = vadd.f32 0.0, %v2518
        %v2520 = vpop.f32.mrb[0].mxu0
        %v2521 = vpop.f32.mrb[0].mxu0
        %v2522 = vadd.f32 0.0, %v2521
        %v2523 = vpop.f32.mrb[0].mxu0
        %2524 = vmatprep.mubr.bf16.mxu0 0
        %2525 = vmatmul.mubr.bf16.gmra.mrb[0].mxu0 %v2466
        %v2526 = vpop.f32.mrb[0].mxu0
        %v2527 = vadd.f32 0.0, %v2526
        %v2528 = vpop.f32.mrb[0].mxu0
        %v2529 = vpop.f32.mrb[0].mxu0
        %v2530 = vadd.f32 0.0, %v2529
        %v2531 = vpop.f32.mrb[0].mxu0
        %2532 = vdwg.mxu0
        %v2537 = vunpack.c.l.b16 %v1697
        %v2538 = vunpack.c.l.b16 %v1698
        %v2539 = vunpack.c.l.b16 %v1699
        %v2540 = vunpack.c.l.b16 %v1700
        %v2541 = vpack.c.b16 %v2538, %v2537
        %v2542 = vpack.c.b16 %v2540, %v2539
        %v2546 = vsel %vm1364, %v1693, 0
        %v2549 = vsel %vm1364, %v1694, 0
        %v2552 = vsel %vm1364, %v1695, 0
        %v2555 = vsel %vm1364, %v1696, 0
        %2557 = vmatprep.subr.bf16.mxu0 0
        %2558 = vmatpush1.bf16.msra.mxu0 %v2541
        %2559 = vmatprep.subr.bf16.mxu0 0
        %2560 = vmatpush1.bf16.msra.mxu0 %v2542
        %2561 = vmatprep.subr.bf16.mxu0 0
        %2562 = vmatpush1.bf16.msra.mxu0 0
        %2563 = vmatprep.subr.bf16.mxu0 0
        %2564 = vmatpush1.bf16.msra.mxu0 0
        %2565 = vmatprep.subr.bf16.mxu0 0
        %2566 = vmatpush1.bf16.msra.mxu0 0
        %2567 = vmatprep.subr.bf16.mxu0 0
        %2568 = vmatpush1.bf16.msra.mxu0 0
        %2569 = vmatprep.subr.bf16.mxu0 0
        %2570 = vmatpush1.bf16.msra.mxu0 0
        %2571 = vmatprep.subr.bf16.mxu0 0
        %2572 = vmatpush1.bf16.msra.mxu0 0
        %2573 = vmatprep.subr.bf16.mxu0 0
        %2574 = vmatpush1.bf16.msra.mxu0 0
        %2575 = vmatprep.subr.bf16.mxu0 0
        %2576 = vmatpush1.bf16.msra.mxu0 0
        %2577 = vmatprep.subr.bf16.mxu0 0
        %2578 = vmatpush1.bf16.msra.mxu0 0
        %2579 = vmatprep.subr.bf16.mxu0 0
        %2580 = vmatpush1.bf16.msra.mxu0 0
        %2581 = vmatprep.subr.bf16.mxu0 0
        %2582 = vmatpush1.bf16.msra.mxu0 0
        %2583 = vmatprep.subr.bf16.mxu0 0
        %2584 = vmatpush1.bf16.msra.mxu0 0
        %2585 = vmatprep.subr.bf16.mxu0 0
        %2586 = vmatpush1.bf16.msra.mxu0 0
        %2587 = vmatprep.subr.bf16.mxu0 0
        %2588 = vmatpush1.bf16.msra.mxu0 0
        %2589 = vmatprep.mubr.bf16.mxu0 0
        %2590 = vmatmul.mubr.bf16.gmra.mrb[0].mxu0 %v2546
        %v2591 = vpop.f32.mrb[0].mxu0
        %v2592 = vadd.f32 %v2503, %v2591
        %v2593 = vpop.f32.mrb[0].mxu0
        %v2594 = vpop.f32.mrb[0].mxu0
        %v2595 = vadd.f32 %v2506, %v2594
        %v2596 = vpop.f32.mrb[0].mxu0
        %2597 = vmatprep.mubr.bf16.mxu0 0
        %2598 = vmatmul.mubr.bf16.gmra.mrb[0].mxu0 %v2549
        %v2599 = vpop.f32.mrb[0].mxu0
        %v2600 = vadd.f32 %v2511, %v2599
        %v2601 = vpop.f32.mrb[0].mxu0
        %v2602 = vpop.f32.mrb[0].mxu0
        %v2603 = vadd.f32 %v2514, %v2602
        %v2604 = vpop.f32.mrb[0].mxu0
        %2605 = vmatprep.mubr.bf16.mxu0 0
        %2606 = vmatmul.mubr.bf16.gmra.mrb[0].mxu0 %v2552
        %v2607 = vpop.f32.mrb[0].mxu0
        %v2608 = vadd.f32 %v2519, %v2607
        %v2609 = vpop.f32.mrb[0].mxu0
        %v2610 = vpop.f32.mrb[0].mxu0
        %v2611 = vadd.f32 %v2522, %v2610
        %v2612 = vpop.f32.mrb[0].mxu0
        %2613 = vmatprep.mubr.bf16.mxu0 0
        %2614 = vmatmul.mubr.bf16.gmra.mrb[0].mxu0 %v2555
        %v2615 = vpop.f32.mrb[0].mxu0
        %v2616 = vadd.f32 %v2527, %v2615
        %v2617 = vpop.f32.mrb[0].mxu0
        %v2618 = vpop.f32.mrb[0].mxu0
        %v2619 = vadd.f32 %v2530, %v2618
        %v2620 = vpop.f32.mrb[0].mxu0
        %2621 = vdwg.mxu0
        %s2622 = scalar_lea.vmem %s657, 128
        %v2623 = vld [vmem:[%s2622] sm:$0xf]
        %v2624 = vld [vmem:[%s2622 + $0x4] sm:$0xf]
        %v2625 = vld [vmem:[%s2622 + $0x8] sm:$0xf]
        %v2626 = vld [vmem:[%s2622 + $0xc] sm:$0xf]
        %v2627 = vld [vmem:[%s2622 + $0x10] sm:$0xf]
        %v2628 = vld [vmem:[%s2622 + $0x14] sm:$0xf]
        %v2629 = vld [vmem:[%s2622 + $0x18] sm:$0xf]
        %v2630 = vld [vmem:[%s2622 + $0x1c] sm:$0xf]
        %v2631 = vld [vmem:[%s2622 + $0x20] sm:$0xf]
        %v2632 = vld [vmem:[%s2622 + $0x24] sm:$0xf]
        %v2633 = vld [vmem:[%s2622 + $0x28] sm:$0xf]
        %v2634 = vld [vmem:[%s2622 + $0x2c] sm:$0xf]
        %v2635 = vld [vmem:[%s2622 + $0x30] sm:$0xf]
        %v2636 = vld [vmem:[%s2622 + $0x34] sm:$0xf]
        %v2637 = vld [vmem:[%s2622 + $0x38] sm:$0xf]
        %v2638 = vld [vmem:[%s2622 + $0x3c] sm:$0xf]
        %v2639 = vlaneseq
        %v2640 = vshrl.u32 %v2639, 7
        %v2641 = vsub.s32 2, %v2640
        %v2642 = vrot.slane %v841, %v2641
        %v2659 = vunpack.c.l.b16 %v2623
        %v2660 = vunpack.c.l.b16 %v2624
        %v2661 = vunpack.c.l.b16 %v2625
        %v2662 = vunpack.c.l.b16 %v2626
        %v2663 = vunpack.c.l.b16 %v2627
        %v2664 = vunpack.c.l.b16 %v2628
        %v2665 = vunpack.c.l.b16 %v2629
        %v2666 = vunpack.c.l.b16 %v2630
        %v2667 = vunpack.c.l.b16 %v2631
        %v2668 = vunpack.c.l.b16 %v2632
        %v2669 = vunpack.c.l.b16 %v2633
        %v2670 = vunpack.c.l.b16 %v2634
        %v2671 = vunpack.c.l.b16 %v2635
        %v2672 = vunpack.c.l.b16 %v2636
        %v2673 = vunpack.c.l.b16 %v2637
        %v2674 = vunpack.c.l.b16 %v2638
        %v2675 = vpack.c.b16 %v2660, %v2659
        %v2676 = vpack.c.b16 %v2662, %v2661
        %v2677 = vpack.c.b16 %v2664, %v2663
        %v2678 = vpack.c.b16 %v2666, %v2665
        %v2679 = vpack.c.b16 %v2668, %v2667
        %v2680 = vpack.c.b16 %v2670, %v2669
        %v2681 = vpack.c.b16 %v2672, %v2671
        %v2682 = vpack.c.b16 %v2674, %v2673
        %2691 = vmatprep.subr.bf16.mxu0 0
        %2692 = vmatpush1.bf16.msra.mxu0 %v2675
        %2693 = vmatprep.subr.bf16.mxu0 0
        %2694 = vmatpush1.bf16.msra.mxu0 %v2676
        %2695 = vmatprep.subr.bf16.mxu0 0
        %2696 = vmatpush1.bf16.msra.mxu0 %v2677
        %2697 = vmatprep.subr.bf16.mxu0 0
        %2698 = vmatpush1.bf16.msra.mxu0 %v2678
        %2699 = vmatprep.subr.bf16.mxu0 0
        %2700 = vmatpush1.bf16.msra.mxu0 %v2679
        %2701 = vmatprep.subr.bf16.mxu0 0
        %2702 = vmatpush1.bf16.msra.mxu0 %v2680
        %2703 = vmatprep.subr.bf16.mxu0 0
        %2704 = vmatpush1.bf16.msra.mxu0 %v2681
        %2705 = vmatprep.subr.bf16.mxu0 0
        %2706 = vmatpush1.bf16.msra.mxu0 %v2682
        %2707 = vmatprep.subr.bf16.mxu0 0
        %2708 = vmatpush1.bf16.msra.mxu0 0
        %2709 = vmatprep.subr.bf16.mxu0 0
        %2710 = vmatpush1.bf16.msra.mxu0 0
        %2711 = vmatprep.subr.bf16.mxu0 0
        %2712 = vmatpush1.bf16.msra.mxu0 0
        %2713 = vmatprep.subr.bf16.mxu0 0
        %2714 = vmatpush1.bf16.msra.mxu0 0
        %2715 = vmatprep.subr.bf16.mxu0 0
        %2716 = vmatpush1.bf16.msra.mxu0 0
        %2717 = vmatprep.subr.bf16.mxu0 0
        %2718 = vmatpush1.bf16.msra.mxu0 0
        %2719 = vmatprep.subr.bf16.mxu0 0
        %2720 = vmatpush1.bf16.msra.mxu0 0
        %2721 = vmatprep.subr.bf16.mxu0 0
        %2722 = vmatpush1.bf16.msra.mxu0 0
        %2723 = vmatprep.mubr.bf16.mxu0 0
        %2724 = vmatmul.mubr.bf16.gmra.mrb[0].mxu0 %v955
        %v2725 = vpop.f32.mrb[0].mxu0
        %v2726 = vadd.f32 %v2642, %v2725
        %v2727 = vpop.f32.mrb[0].mxu0
        %v2728 = vpop.f32.mrb[0].mxu0
        %v2729 = vadd.f32 %v2642, %v2728
        %v2730 = vpop.f32.mrb[0].mxu0
        %2731 = vmatprep.mubr.bf16.mxu0 0
        %2732 = vmatmul.mubr.bf16.gmra.mrb[0].mxu0 %v956
        %v2733 = vpop.f32.mrb[0].mxu0
        %v2734 = vadd.f32 %v2642, %v2733
        %v2735 = vpop.f32.mrb[0].mxu0
        %v2736 = vpop.f32.mrb[0].mxu0
        %v2737 = vadd.f32 %v2642, %v2736
        %v2738 = vpop.f32.mrb[0].mxu0
        %2739 = vmatprep.mubr.bf16.mxu0 0
        %2740 = vmatmul.mubr.bf16.gmra.mrb[0].mxu0 %v957
        %v2741 = vpop.f32.mrb[0].mxu0
        %v2742 = vadd.f32 %v2642, %v2741
        %v2743 = vpop.f32.mrb[0].mxu0
        %v2744 = vpop.f32.mrb[0].mxu0
        %v2745 = vadd.f32 %v2642, %v2744
        %v2746 = vpop.f32.mrb[0].mxu0
        %2747 = vmatprep.mubr.bf16.mxu0 0
        %2748 = vmatmul.mubr.bf16.gmra.mrb[0].mxu0 %v958
        %v2749 = vpop.f32.mrb[0].mxu0
        %v2750 = vadd.f32 %v2642, %v2749
        %v2751 = vpop.f32.mrb[0].mxu0
        %v2752 = vpop.f32.mrb[0].mxu0
        %v2753 = vadd.f32 %v2642, %v2752
        %v2754 = vpop.f32.mrb[0].mxu0
        %2755 = vdwg.mxu0
        %s2756 = scalar_lea.vmem %s657, 384
        %v2757 = vld [vmem:[%s2756] sm:$0xf]
        %v2758 = vld [vmem:[%s2756 + $0x4] sm:$0xf]
        %v2759 = vld [vmem:[%s2756 + $0x8] sm:$0xf]
        %v2760 = vld [vmem:[%s2756 + $0xc] sm:$0xf]
        %v2761 = vld [vmem:[%s2756 + $0x10] sm:$0xf]
        %v2762 = vld [vmem:[%s2756 + $0x14] sm:$0xf]
        %v2763 = vld [vmem:[%s2756 + $0x18] sm:$0xf]
        %v2764 = vld [vmem:[%s2756 + $0x1c] sm:$0xf]
        %v2765 = vld [vmem:[%s2756 + $0x20] sm:$0xf]
        %v2766 = vld [vmem:[%s2756 + $0x24] sm:$0xf]
        %v2767 = vld [vmem:[%s2756 + $0x28] sm:$0xf]
        %v2768 = vld [vmem:[%s2756 + $0x2c] sm:$0xf]
        %v2769 = vld [vmem:[%s2756 + $0x30] sm:$0xf]
        %v2770 = vld [vmem:[%s2756 + $0x34] sm:$0xf]
        %v2771 = vld [vmem:[%s2756 + $0x38] sm:$0xf]
        %v2772 = vld [vmem:[%s2756 + $0x3c] sm:$0xf]
        %v2773 = vlaneseq
        %v2774 = vshrl.u32 %v2773, 7
        %v2775 = vsub.s32 6, %v2774
        %v2776 = vrot.slane %v841, %v2775
        %v2793 = vunpack.c.l.b16 %v2757
        %v2794 = vunpack.c.l.b16 %v2758
        %v2795 = vunpack.c.l.b16 %v2759
        %v2796 = vunpack.c.l.b16 %v2760
        %v2797 = vunpack.c.l.b16 %v2761
        %v2798 = vunpack.c.l.b16 %v2762
        %v2799 = vunpack.c.l.b16 %v2763
        %v2800 = vunpack.c.l.b16 %v2764
        %v2801 = vunpack.c.l.b16 %v2765
        %v2802 = vunpack.c.l.b16 %v2766
        %v2803 = vunpack.c.l.b16 %v2767
        %v2804 = vunpack.c.l.b16 %v2768
        %v2805 = vunpack.c.l.b16 %v2769
        %v2806 = vunpack.c.l.b16 %v2770
        %v2807 = vunpack.c.l.b16 %v2771
        %v2808 = vunpack.c.l.b16 %v2772
        %v2809 = vpack.c.b16 %v2794, %v2793
        %v2810 = vpack.c.b16 %v2796, %v2795
        %v2811 = vpack.c.b16 %v2798, %v2797
        %v2812 = vpack.c.b16 %v2800, %v2799
        %v2813 = vpack.c.b16 %v2802, %v2801
        %v2814 = vpack.c.b16 %v2804, %v2803
        %v2815 = vpack.c.b16 %v2806, %v2805
        %v2816 = vpack.c.b16 %v2808, %v2807
        %2825 = vmatprep.subr.bf16.mxu0 0
        %2826 = vmatpush1.bf16.msra.mxu0 %v2809
        %2827 = vmatprep.subr.bf16.mxu0 0
        %2828 = vmatpush1.bf16.msra.mxu0 %v2810
        %2829 = vmatprep.subr.bf16.mxu0 0
        %2830 = vmatpush1.bf16.msra.mxu0 %v2811
        %2831 = vmatprep.subr.bf16.mxu0 0
        %2832 = vmatpush1.bf16.msra.mxu0 %v2812
        %2833 = vmatprep.subr.bf16.mxu0 0
        %2834 = vmatpush1.bf16.msra.mxu0 %v2813
        %2835 = vmatprep.subr.bf16.mxu0 0
        %2836 = vmatpush1.bf16.msra.mxu0 %v2814
        %2837 = vmatprep.subr.bf16.mxu0 0
        %2838 = vmatpush1.bf16.msra.mxu0 %v2815
        %2839 = vmatprep.subr.bf16.mxu0 0
        %2840 = vmatpush1.bf16.msra.mxu0 %v2816
        %2841 = vmatprep.subr.bf16.mxu0 0
        %2842 = vmatpush1.bf16.msra.mxu0 0
        %2843 = vmatprep.subr.bf16.mxu0 0
        %2844 = vmatpush1.bf16.msra.mxu0 0
        %2845 = vmatprep.subr.bf16.mxu0 0
        %2846 = vmatpush1.bf16.msra.mxu0 0
        %2847 = vmatprep.subr.bf16.mxu0 0
        %2848 = vmatpush1.bf16.msra.mxu0 0
        %2849 = vmatprep.subr.bf16.mxu0 0
        %2850 = vmatpush1.bf16.msra.mxu0 0
        %2851 = vmatprep.subr.bf16.mxu0 0
        %2852 = vmatpush1.bf16.msra.mxu0 0
        %2853 = vmatprep.subr.bf16.mxu0 0
        %2854 = vmatpush1.bf16.msra.mxu0 0
        %2855 = vmatprep.subr.bf16.mxu0 0
        %2856 = vmatpush1.bf16.msra.mxu0 0
        %2857 = vmatprep.mubr.bf16.mxu0 0
        %2858 = vmatmul.mubr.bf16.gmra.mrb[0].mxu0 %v955
        %v2859 = vpop.f32.mrb[0].mxu0
        %v2860 = vadd.f32 %v2776, %v2859
        %v2861 = vpop.f32.mrb[0].mxu0
        %v2862 = vpop.f32.mrb[0].mxu0
        %v2863 = vadd.f32 %v2776, %v2862
        %v2864 = vpop.f32.mrb[0].mxu0
        %2865 = vmatprep.mubr.bf16.mxu0 0
        %2866 = vmatmul.mubr.bf16.gmra.mrb[0].mxu0 %v956
        %v2867 = vpop.f32.mrb[0].mxu0
        %v2868 = vadd.f32 %v2776, %v2867
        %v2869 = vpop.f32.mrb[0].mxu0
        %v2870 = vpop.f32.mrb[0].mxu0
        %v2871 = vadd.f32 %v2776, %v2870
        %v2872 = vpop.f32.mrb[0].mxu0
        %2873 = vmatprep.mubr.bf16.mxu0 0
        %2874 = vmatmul.mubr.bf16.gmra.mrb[0].mxu0 %v957
        %v2875 = vpop.f32.mrb[0].mxu0
        %v2876 = vadd.f32 %v2776, %v2875
        %v2877 = vpop.f32.mrb[0].mxu0
        %v2878 = vpop.f32.mrb[0].mxu0
        %v2879 = vadd.f32 %v2776, %v2878
        %v2880 = vpop.f32.mrb[0].mxu0
        %2881 = vmatprep.mubr.bf16.mxu0 0
        %2882 = vmatmul.mubr.bf16.gmra.mrb[0].mxu0 %v958
        %v2883 = vpop.f32.mrb[0].mxu0
        %v2884 = vadd.f32 %v2776, %v2883
        %v2885 = vpop.f32.mrb[0].mxu0
        %v2886 = vpop.f32.mrb[0].mxu0
        %v2887 = vadd.f32 %v2776, %v2886
        %v2888 = vpop.f32.mrb[0].mxu0
        %2889 = vdwg.mxu0
        %s2890 = scalar_lea.vmem %s657, 640
        %v2891 = vld [vmem:[%s2890] sm:$0xf]
        %v2892 = vld [vmem:[%s2890 + $0x4] sm:$0xf]
        %v2893 = vld [vmem:[%s2890 + $0x8] sm:$0xf]
        %v2894 = vld [vmem:[%s2890 + $0xc] sm:$0xf]
        %v2895 = vld [vmem:[%s2890 + $0x10] sm:$0xf]
        %v2896 = vld [vmem:[%s2890 + $0x14] sm:$0xf]
        %v2897 = vld [vmem:[%s2890 + $0x18] sm:$0xf]
        %v2898 = vld [vmem:[%s2890 + $0x1c] sm:$0xf]
        %v2899 = vld [vmem:[%s2890 + $0x20] sm:$0xf]
        %v2900 = vld [vmem:[%s2890 + $0x24] sm:$0xf]
        %v2901 = vld [vmem:[%s2890 + $0x28] sm:$0xf]
        %v2902 = vld [vmem:[%s2890 + $0x2c] sm:$0xf]
        %v2903 = vld [vmem:[%s2890 + $0x30] sm:$0xf]
        %v2904 = vld [vmem:[%s2890 + $0x34] sm:$0xf]
        %v2905 = vld [vmem:[%s2890 + $0x38] sm:$0xf]
        %v2906 = vld [vmem:[%s2890 + $0x3c] sm:$0xf]
        %v2923 = vunpack.c.l.b16 %v2891
        %v2924 = vunpack.c.l.b16 %v2892
        %v2925 = vunpack.c.l.b16 %v2893
        %v2926 = vunpack.c.l.b16 %v2894
        %v2927 = vunpack.c.l.b16 %v2895
        %v2928 = vunpack.c.l.b16 %v2896
        %v2929 = vunpack.c.l.b16 %v2897
        %v2930 = vunpack.c.l.b16 %v2898
        %v2931 = vunpack.c.l.b16 %v2899
        %v2932 = vunpack.c.l.b16 %v2900
        %v2933 = vunpack.c.l.b16 %v2901
        %v2934 = vunpack.c.l.b16 %v2902
        %v2935 = vunpack.c.l.b16 %v2903
        %v2936 = vunpack.c.l.b16 %v2904
        %v2937 = vunpack.c.l.b16 %v2905
        %v2938 = vunpack.c.l.b16 %v2906
        %v2939 = vpack.c.b16 %v2924, %v2923
        %v2940 = vpack.c.b16 %v2926, %v2925
        %v2941 = vpack.c.b16 %v2928, %v2927
        %v2942 = vpack.c.b16 %v2930, %v2929
        %v2943 = vpack.c.b16 %v2932, %v2931
        %v2944 = vpack.c.b16 %v2934, %v2933
        %v2945 = vpack.c.b16 %v2936, %v2935
        %v2946 = vpack.c.b16 %v2938, %v2937
        %2955 = vmatprep.subr.bf16.mxu0 0
        %2956 = vmatpush1.bf16.msra.mxu0 %v2939
        %2957 = vmatprep.subr.bf16.mxu0 0
        %2958 = vmatpush1.bf16.msra.mxu0 %v2940
        %2959 = vmatprep.subr.bf16.mxu0 0
        %2960 = vmatpush1.bf16.msra.mxu0 %v2941
        %2961 = vmatprep.subr.bf16.mxu0 0
        %2962 = vmatpush1.bf16.msra.mxu0 %v2942
        %2963 = vmatprep.subr.bf16.mxu0 0
        %2964 = vmatpush1.bf16.msra.mxu0 %v2943
        %2965 = vmatprep.subr.bf16.mxu0 0
        %2966 = vmatpush1.bf16.msra.mxu0 %v2944
        %2967 = vmatprep.subr.bf16.mxu0 0
        %2968 = vmatpush1.bf16.msra.mxu0 %v2945
        %2969 = vmatprep.subr.bf16.mxu0 0
        %2970 = vmatpush1.bf16.msra.mxu0 %v2946
        %2971 = vmatprep.subr.bf16.mxu0 0
        %2972 = vmatpush1.bf16.msra.mxu0 0
        %2973 = vmatprep.subr.bf16.mxu0 0
        %2974 = vmatpush1.bf16.msra.mxu0 0
        %2975 = vmatprep.subr.bf16.mxu0 0
        %2976 = vmatpush1.bf16.msra.mxu0 0
        %2977 = vmatprep.subr.bf16.mxu0 0
        %2978 = vmatpush1.bf16.msra.mxu0 0
        %2979 = vmatprep.subr.bf16.mxu0 0
        %2980 = vmatpush1.bf16.msra.mxu0 0
        %2981 = vmatprep.subr.bf16.mxu0 0
        %2982 = vmatpush1.bf16.msra.mxu0 0
        %2983 = vmatprep.subr.bf16.mxu0 0
        %2984 = vmatpush1.bf16.msra.mxu0 0
        %2985 = vmatprep.subr.bf16.mxu0 0
        %2986 = vmatpush1.bf16.msra.mxu0 0
        %2987 = vmatprep.mubr.bf16.mxu0 0
        %2988 = vmatmul.mubr.bf16.gmra.mrb[0].mxu0 %v955
        %v2989 = vpop.f32.mrb[0].mxu0
        %v2990 = vadd.f32 0.0, %v2989
        %v2991 = vpop.f32.mrb[0].mxu0
        %v2992 = vpop.f32.mrb[0].mxu0
        %v2993 = vadd.f32 0.0, %v2992
        %v2994 = vpop.f32.mrb[0].mxu0
        %2995 = vmatprep.mubr.bf16.mxu0 0
        %2996 = vmatmul.mubr.bf16.gmra.mrb[0].mxu0 %v956
        %v2997 = vpop.f32.mrb[0].mxu0
        %v2998 = vadd.f32 0.0, %v2997
        %v2999 = vpop.f32.mrb[0].mxu0
        %v3000 = vpop.f32.mrb[0].mxu0
        %v3001 = vadd.f32 0.0, %v3000
        %v3002 = vpop.f32.mrb[0].mxu0
        %3003 = vmatprep.mubr.bf16.mxu0 0
        %3004 = vmatmul.mubr.bf16.gmra.mrb[0].mxu0 %v957
        %v3005 = vpop.f32.mrb[0].mxu0
        %v3006 = vadd.f32 0.0, %v3005
        %v3007 = vpop.f32.mrb[0].mxu0
        %v3008 = vpop.f32.mrb[0].mxu0
        %v3009 = vadd.f32 0.0, %v3008
        %v3010 = vpop.f32.mrb[0].mxu0
        %3011 = vmatprep.mubr.bf16.mxu0 0
        %3012 = vmatmul.mubr.bf16.gmra.mrb[0].mxu0 %v958
        %v3013 = vpop.f32.mrb[0].mxu0
        %v3014 = vadd.f32 0.0, %v3013
        %v3015 = vpop.f32.mrb[0].mxu0
        %v3016 = vpop.f32.mrb[0].mxu0
        %v3017 = vadd.f32 0.0, %v3016
        %v3018 = vpop.f32.mrb[0].mxu0
        %3019 = vdwg.mxu0
        %v3020 = vpack.c.bf16 %v2729, %v2726
        %v3021 = vpack.c.bf16 %v2737, %v2734
        %v3022 = vpack.c.bf16 %v2745, %v2742
        %v3023 = vpack.c.bf16 %v2753, %v2750
        %v3024 = vpack.c.bf16 %v2863, %v2860
        %v3025 = vpack.c.bf16 %v2871, %v2868
        %v3026 = vpack.c.bf16 %v2879, %v2876
        %v3027 = vpack.c.bf16 %v2887, %v2884
        %v3029 = vsel %vm1364, %v3020, 0
        %v3032 = vsel %vm1364, %v3021, 0
        %v3035 = vsel %vm1364, %v3024, 0
        %v3038 = vsel %vm1364, %v3025, 0
        %3040 = vmatprep.subr.bf16.mxu0 0
        %3041 = vmatpush1.bf16.xpose.msra.mxu0 %v3035
        %3042 = vmatprep.subr.bf16.mxu0 0
        %3043 = vmatpush1.bf16.xpose.msra.mxu0 %v3038
        %3044 = vmatprep.subr.bf16.mxu0 0
        %3045 = vmatpush1.bf16.xpose.msra.mxu0 0
        %3046 = vmatprep.subr.bf16.mxu0 0
        %3047 = vmatpush1.bf16.xpose.msra.mxu0 0
        %3048 = vmatprep.subr.bf16.mxu0 0
        %3049 = vmatpush1.bf16.xpose.msra.mxu0 0
        %3050 = vmatprep.subr.bf16.mxu0 0
        %3051 = vmatpush1.bf16.xpose.msra.mxu0 0
        %3052 = vmatprep.subr.bf16.mxu0 0
        %3053 = vmatpush1.bf16.xpose.msra.mxu0 0
        %3054 = vmatprep.subr.bf16.mxu0 0
        %3055 = vmatpush1.bf16.xpose.msra.mxu0 0
        %3056 = vmatprep.subr.bf16.mxu0 0
        %3057 = vmatpush1.bf16.xpose.msra.mxu0 0
        %3058 = vmatprep.subr.bf16.mxu0 0
        %3059 = vmatpush1.bf16.xpose.msra.mxu0 0
        %3060 = vmatprep.subr.bf16.mxu0 0
        %3061 = vmatpush1.bf16.xpose.msra.mxu0 0
        %3062 = vmatprep.subr.bf16.mxu0 0
        %3063 = vmatpush1.bf16.xpose.msra.mxu0 0
        %3064 = vmatprep.subr.bf16.mxu0 0
        %3065 = vmatpush1.bf16.xpose.msra.mxu0 0
        %3066 = vmatprep.subr.bf16.mxu0 0
        %3067 = vmatpush1.bf16.xpose.msra.mxu0 0
        %3068 = vmatprep.subr.bf16.mxu0 0
        %3069 = vmatpush1.bf16.xpose.msra.mxu0 0
        %3070 = vmatprep.subr.bf16.mxu0 0
        %3071 = vmatpush1.bf16.xpose.msra.mxu0 0
        %3072 = vmatprep.mubr.bf16.mxu0 0
        %3073 = vmatmul.mubr.bf16.gmra.mrb[0].mxu0 %v3029
        %v3074 = vpop.f32.mrb[0].mxu0
        %v3075 = vadd.f32 0.0, %v3074
        %v3076 = vpop.f32.mrb[0].mxu0
        %v3077 = vpop.f32.mrb[0].mxu0
        %v3078 = vadd.f32 0.0, %v3077
        %v3079 = vpop.f32.mrb[0].mxu0
        %3080 = vmatprep.mubr.bf16.mxu0 0
        %3081 = vmatmul.mubr.bf16.gmra.mrb[0].mxu0 %v3032
        %v3082 = vpop.f32.mrb[0].mxu0
        %v3083 = vadd.f32 0.0, %v3082
        %v3084 = vpop.f32.mrb[0].mxu0
        %v3085 = vpop.f32.mrb[0].mxu0
        %v3086 = vadd.f32 0.0, %v3085
        %v3087 = vpop.f32.mrb[0].mxu0
        %3088 = vdwg.mxu0
        %v3090 = vsel %vm1364, %v3022, 0
        %v3093 = vsel %vm1364, %v3023, 0
        %v3096 = vsel %vm1364, %v3026, 0
        %v3099 = vsel %vm1364, %v3027, 0
        %3101 = vmatprep.subr.bf16.mxu0 0
        %3102 = vmatpush1.bf16.xpose.msra.mxu0 %v3096
        %3103 = vmatprep.subr.bf16.mxu0 0
        %3104 = vmatpush1.bf16.xpose.msra.mxu0 %v3099
        %3105 = vmatprep.subr.bf16.mxu0 0
        %3106 = vmatpush1.bf16.xpose.msra.mxu0 0
        %3107 = vmatprep.subr.bf16.mxu0 0
        %3108 = vmatpush1.bf16.xpose.msra.mxu0 0
        %3109 = vmatprep.subr.bf16.mxu0 0
        %3110 = vmatpush1.bf16.xpose.msra.mxu0 0
        %3111 = vmatprep.subr.bf16.mxu0 0
        %3112 = vmatpush1.bf16.xpose.msra.mxu0 0
        %3113 = vmatprep.subr.bf16.mxu0 0
        %3114 = vmatpush1.bf16.xpose.msra.mxu0 0
        %3115 = vmatprep.subr.bf16.mxu0 0
        %3116 = vmatpush1.bf16.xpose.msra.mxu0 0
        %3117 = vmatprep.subr.bf16.mxu0 0
        %3118 = vmatpush1.bf16.xpose.msra.mxu0 0
        %3119 = vmatprep.subr.bf16.mxu0 0
        %3120 = vmatpush1.bf16.xpose.msra.mxu0 0
        %3121 = vmatprep.subr.bf16.mxu0 0
        %3122 = vmatpush1.bf16.xpose.msra.mxu0 0
        %3123 = vmatprep.subr.bf16.mxu0 0
        %3124 = vmatpush1.bf16.xpose.msra.mxu0 0
        %3125 = vmatprep.subr.bf16.mxu0 0
        %3126 = vmatpush1.bf16.xpose.msra.mxu0 0
        %3127 = vmatprep.subr.bf16.mxu0 0
        %3128 = vmatpush1.bf16.xpose.msra.mxu0 0
        %3129 = vmatprep.subr.bf16.mxu0 0
        %3130 = vmatpush1.bf16.xpose.msra.mxu0 0
        %3131 = vmatprep.subr.bf16.mxu0 0
        %3132 = vmatpush1.bf16.xpose.msra.mxu0 0
        %3133 = vmatprep.mubr.bf16.mxu0 0
        %3134 = vmatmul.mubr.bf16.gmra.mrb[0].mxu0 %v3090
        %v3135 = vpop.f32.mrb[0].mxu0
        %v3136 = vadd.f32 0.0, %v3135
        %v3137 = vpop.f32.mrb[0].mxu0
        %v3138 = vpop.f32.mrb[0].mxu0
        %v3139 = vadd.f32 0.0, %v3138
        %v3140 = vpop.f32.mrb[0].mxu0
        %3141 = vmatprep.mubr.bf16.mxu0 0
        %3142 = vmatmul.mubr.bf16.gmra.mrb[0].mxu0 %v3093
        %v3143 = vpop.f32.mrb[0].mxu0
        %v3144 = vadd.f32 0.0, %v3143
        %v3145 = vpop.f32.mrb[0].mxu0
        %v3146 = vpop.f32.mrb[0].mxu0
        %v3147 = vadd.f32 0.0, %v3146
        %v3148 = vpop.f32.mrb[0].mxu0
        %3149 = vdwg.mxu0
        %v3150 = vsel %vm1364, %v3075, -inf
        %3151 = vmax.xlane.f32.xlu0 %v3150
        %v3152 = vpop.xlane.xlu0 %3151
        %v3153 = vsel %vm1364, %v3078, -inf
        %3154 = vmax.xlane.f32.xlu0 %v3153
        %v3155 = vpop.xlane.xlu0 %3154
        %v3156 = vsel %vm1364, %v3083, -inf
        %3157 = vmax.xlane.f32.xlu0 %v3156
        %v3158 = vpop.xlane.xlu0 %3157
        %v3159 = vsel %vm1364, %v3086, -inf
        %3160 = vmax.xlane.f32.xlu0 %v3159
        %v3161 = vpop.xlane.xlu0 %3160
        %v3162 = vsel %vm1364, %v3136, -inf
        %3163 = vmax.xlane.f32.xlu0 %v3162
        %v3164 = vpop.xlane.xlu0 %3163
        %v3165 = vsel %vm1364, %v3139, -inf
        %3166 = vmax.xlane.f32.xlu0 %v3165
        %v3167 = vpop.xlane.xlu0 %3166
        %v3168 = vsel %vm1364, %v3144, -inf
        %3169 = vmax.xlane.f32.xlu0 %v3168
        %v3170 = vpop.xlane.xlu0 %3169
        %v3171 = vsel %vm1364, %v3147, -inf
        %3172 = vmax.xlane.f32.xlu0 %v3171
        %v3173 = vpop.xlane.xlu0 %3172
        %v3174 = vsub.f32 %v3075, %v3152
        %v3175 = vsub.f32 %v3078, %v3155
        %v3176 = vsub.f32 %v3083, %v3158
        %v3177 = vsub.f32 %v3086, %v3161
        %v3178 = vsub.f32 %v3136, %v3164
        %v3179 = vsub.f32 %v3139, %v3167
        %v3180 = vsub.f32 %v3144, %v3170
        %v3181 = vsub.f32 %v3147, %v3173
        %v3182 = vmul.f32 %v3174, 1.442695
        %v3183 = vpow.pop %v3182
        %v3184 = vmul.f32 %v3175, 1.442695
        %v3185 = vpow.pop %v3184
        %v3186 = vmul.f32 %v3176, 1.442695
        %v3187 = vpow.pop %v3186
        %v3188 = vmul.f32 %v3177, 1.442695
        %v3189 = vpow.pop %v3188
        %v3190 = vmul.f32 %v3178, 1.442695
        %v3191 = vpow.pop %v3190
        %v3192 = vmul.f32 %v3179, 1.442695
        %v3193 = vpow.pop %v3192
        %v3194 = vmul.f32 %v3180, 1.442695
        %v3195 = vpow.pop %v3194
        %v3196 = vmul.f32 %v3181, 1.442695
        %v3197 = vpow.pop %v3196
        %v3198 = vsel %vm1364, %v3183, 0.0
        %3199 = vadd.xlane.f32.xlu0 %v3198
        %v3200 = vpop.xlane.xlu0 %3199
        %v3201 = vsel %vm1364, %v3185, 0.0
        %3202 = vadd.xlane.f32.xlu0 %v3201
        %v3203 = vpop.xlane.xlu0 %3202
        %v3204 = vsel %vm1364, %v3187, 0.0
        %3205 = vadd.xlane.f32.xlu0 %v3204
        %v3206 = vpop.xlane.xlu0 %3205
        %v3207 = vsel %vm1364, %v3189, 0.0
        %3208 = vadd.xlane.f32.xlu0 %v3207
        %v3209 = vpop.xlane.xlu0 %3208
        %v3210 = vsel %vm1364, %v3191, 0.0
        %3211 = vadd.xlane.f32.xlu0 %v3210
        %v3212 = vpop.xlane.xlu0 %3211
        %v3213 = vsel %vm1364, %v3193, 0.0
        %3214 = vadd.xlane.f32.xlu0 %v3213
        %v3215 = vpop.xlane.xlu0 %3214
        %v3216 = vsel %vm1364, %v3195, 0.0
        %3217 = vadd.xlane.f32.xlu0 %v3216
        %v3218 = vpop.xlane.xlu0 %3217
        %v3219 = vsel %vm1364, %v3197, 0.0
        %3220 = vadd.xlane.f32.xlu0 %v3219
        %v3221 = vpop.xlane.xlu0 %3220
        %v3222 = vrcp.pop %v3200
        %v3223 = vrcp.pop %v3203
        %v3224 = vrcp.pop %v3206
        %v3225 = vrcp.pop %v3209
        %v3226 = vrcp.pop %v3212
        %v3227 = vrcp.pop %v3215
        %v3228 = vrcp.pop %v3218
        %v3229 = vrcp.pop %v3221
        %v3230 = vmul.f32 %v3183, %v3222
        %v3231 = vmul.f32 %v3185, %v3223
        %v3232 = vmul.f32 %v3187, %v3224
        %v3233 = vmul.f32 %v3189, %v3225
        %v3234 = vmul.f32 %v3191, %v3226
        %v3235 = vmul.f32 %v3193, %v3227
        %v3236 = vmul.f32 %v3195, %v3228
        %v3237 = vmul.f32 %v3197, %v3229
        %v3238 = vpack.c.bf16 %v3231, %v3230
        %v3239 = vpack.c.bf16 %v3233, %v3232
        %v3240 = vpack.c.bf16 %v3235, %v3234
        %v3241 = vpack.c.bf16 %v3237, %v3236
        %v3242 = vpack.c.bf16 %v2993, %v2990
        %v3243 = vpack.c.bf16 %v3001, %v2998
        %v3244 = vpack.c.bf16 %v3009, %v3006
        %v3245 = vpack.c.bf16 %v3017, %v3014
        %v3247 = vsel %vm1364, %v3238, 0
        %v3250 = vsel %vm1364, %v3239, 0
        %3252 = vmatprep.subr.bf16.mxu0 0
        %3253 = vmatpush1.bf16.msra.mxu0 %v3242
        %3254 = vmatprep.subr.bf16.mxu0 0
        %3255 = vmatpush1.bf16.msra.mxu0 %v3243
        %3256 = vmatprep.subr.bf16.mxu0 0
        %3257 = vmatpush1.bf16.msra.mxu0 0
        %3258 = vmatprep.subr.bf16.mxu0 0
        %3259 = vmatpush1.bf16.msra.mxu0 0
        %3260 = vmatprep.subr.bf16.mxu0 0
        %3261 = vmatpush1.bf16.msra.mxu0 0
        %3262 = vmatprep.subr.bf16.mxu0 0
        %3263 = vmatpush1.bf16.msra.mxu0 0
        %3264 = vmatprep.subr.bf16.mxu0 0
        %3265 = vmatpush1.bf16.msra.mxu0 0
        %3266 = vmatprep.subr.bf16.mxu0 0
        %3267 = vmatpush1.bf16.msra.mxu0 0
        %3268 = vmatprep.subr.bf16.mxu0 0
        %3269 = vmatpush1.bf16.msra.mxu0 0
        %3270 = vmatprep.subr.bf16.mxu0 0
        %3271 = vmatpush1.bf16.msra.mxu0 0
        %3272 = vmatprep.subr.bf16.mxu0 0
        %3273 = vmatpush1.bf16.msra.mxu0 0
        %3274 = vmatprep.subr.bf16.mxu0 0
        %3275 = vmatpush1.bf16.msra.mxu0 0
        %3276 = vmatprep.subr.bf16.mxu0 0
        %3277 = vmatpush1.bf16.msra.mxu0 0
        %3278 = vmatprep.subr.bf16.mxu0 0
        %3279 = vmatpush1.bf16.msra.mxu0 0
        %3280 = vmatprep.subr.bf16.mxu0 0
        %3281 = vmatpush1.bf16.msra.mxu0 0
        %3282 = vmatprep.subr.bf16.mxu0 0
        %3283 = vmatpush1.bf16.msra.mxu0 0
        %3284 = vmatprep.mubr.bf16.mxu0 0
        %3285 = vmatmul.mubr.bf16.gmra.mrb[0].mxu0 %v3247
        %v3286 = vpop.f32.mrb[0].mxu0
        %v3287 = vadd.f32 0.0, %v3286
        %v3288 = vpop.f32.mrb[0].mxu0
        %v3289 = vpop.f32.mrb[0].mxu0
        %v3290 = vadd.f32 0.0, %v3289
        %v3291 = vpop.f32.mrb[0].mxu0
        %3292 = vmatprep.mubr.bf16.mxu0 0
        %3293 = vmatmul.mubr.bf16.gmra.mrb[0].mxu0 %v3250
        %v3294 = vpop.f32.mrb[0].mxu0
        %v3295 = vadd.f32 0.0, %v3294
        %v3296 = vpop.f32.mrb[0].mxu0
        %v3297 = vpop.f32.mrb[0].mxu0
        %v3298 = vadd.f32 0.0, %v3297
        %v3299 = vpop.f32.mrb[0].mxu0
        %3300 = vdwg.mxu0
        %v3302 = vsel %vm1364, %v3240, 0
        %v3305 = vsel %vm1364, %v3241, 0
        %3307 = vmatprep.subr.bf16.mxu0 0
        %3308 = vmatpush1.bf16.msra.mxu0 %v3244
        %3309 = vmatprep.subr.bf16.mxu0 0
        %3310 = vmatpush1.bf16.msra.mxu0 %v3245
        %3311 = vmatprep.subr.bf16.mxu0 0
        %3312 = vmatpush1.bf16.msra.mxu0 0
        %3313 = vmatprep.subr.bf16.mxu0 0
        %3314 = vmatpush1.bf16.msra.mxu0 0
        %3315 = vmatprep.subr.bf16.mxu0 0
        %3316 = vmatpush1.bf16.msra.mxu0 0
        %3317 = vmatprep.subr.bf16.mxu0 0
        %3318 = vmatpush1.bf16.msra.mxu0 0
        %3319 = vmatprep.subr.bf16.mxu0 0
        %3320 = vmatpush1.bf16.msra.mxu0 0
        %3321 = vmatprep.subr.bf16.mxu0 0
        %3322 = vmatpush1.bf16.msra.mxu0 0
        %3323 = vmatprep.subr.bf16.mxu0 0
        %3324 = vmatpush1.bf16.msra.mxu0 0
        %3325 = vmatprep.subr.bf16.mxu0 0
        %3326 = vmatpush1.bf16.msra.mxu0 0
        %3327 = vmatprep.subr.bf16.mxu0 0
        %3328 = vmatpush1.bf16.msra.mxu0 0
        %3329 = vmatprep.subr.bf16.mxu0 0
        %3330 = vmatpush1.bf16.msra.mxu0 0
        %3331 = vmatprep.subr.bf16.mxu0 0
        %3332 = vmatpush1.bf16.msra.mxu0 0
        %3333 = vmatprep.subr.bf16.mxu0 0
        %3334 = vmatpush1.bf16.msra.mxu0 0
        %3335 = vmatprep.subr.bf16.mxu0 0
        %3336 = vmatpush1.bf16.msra.mxu0 0
        %3337 = vmatprep.subr.bf16.mxu0 0
        %3338 = vmatpush1.bf16.msra.mxu0 0
        %3339 = vmatprep.mubr.bf16.mxu0 0
        %3340 = vmatmul.mubr.bf16.gmra.mrb[0].mxu0 %v3302
        %v3341 = vpop.f32.mrb[0].mxu0
        %v3342 = vadd.f32 0.0, %v3341
        %v3343 = vpop.f32.mrb[0].mxu0
        %v3344 = vpop.f32.mrb[0].mxu0
        %v3345 = vadd.f32 0.0, %v3344
        %v3346 = vpop.f32.mrb[0].mxu0
        %3347 = vmatprep.mubr.bf16.mxu0 0
        %3348 = vmatmul.mubr.bf16.gmra.mrb[0].mxu0 %v3305
        %v3349 = vpop.f32.mrb[0].mxu0
        %v3350 = vadd.f32 0.0, %v3349
        %v3351 = vpop.f32.mrb[0].mxu0
        %v3352 = vpop.f32.mrb[0].mxu0
        %v3353 = vadd.f32 0.0, %v3352
        %v3354 = vpop.f32.mrb[0].mxu0
        %3355 = vdwg.mxu0
        %v3356 = vpack.c.bf16 %v3290, %v3287
        %v3357 = vpack.c.bf16 %v3298, %v3295
        %v3358 = vpack.c.bf16 %v3345, %v3342
        %v3359 = vpack.c.bf16 %v3353, %v3350
        %s3360 = scalar_lea.vmem %s662, 32
        %v3361 = vld [vmem:[%s3360] sm:$0xf]
        %v3362 = vld [vmem:[%s3360 + $0x4] sm:$0xf]
        %v3363 = vld [vmem:[%s3360 + $0x8] sm:$0xf]
        %v3364 = vld [vmem:[%s3360 + $0xc] sm:$0xf]
        %v3369 = vunpack.c.l.b16 %v3361
        %v3370 = vunpack.c.l.b16 %v3362
        %v3371 = vunpack.c.l.b16 %v3363
        %v3372 = vunpack.c.l.b16 %v3364
        %v3373 = vpack.c.b16 %v3370, %v3369
        %v3374 = vpack.c.b16 %v3372, %v3371
        %v3378 = vsel %vm1364, %v3356, 0
        %v3381 = vsel %vm1364, %v3357, 0
        %v3384 = vsel %vm1364, %v3358, 0
        %v3387 = vsel %vm1364, %v3359, 0
        %3389 = vmatprep.subr.bf16.mxu0 0
        %3390 = vmatpush1.bf16.msra.mxu0 %v3373
        %3391 = vmatprep.subr.bf16.mxu0 0
        %3392 = vmatpush1.bf16.msra.mxu0 %v3374
        %3393 = vmatprep.subr.bf16.mxu0 0
        %3394 = vmatpush1.bf16.msra.mxu0 0
        %3395 = vmatprep.subr.bf16.mxu0 0
        %3396 = vmatpush1.bf16.msra.mxu0 0
        %3397 = vmatprep.subr.bf16.mxu0 0
        %3398 = vmatpush1.bf16.msra.mxu0 0
        %3399 = vmatprep.subr.bf16.mxu0 0
        %3400 = vmatpush1.bf16.msra.mxu0 0
        %3401 = vmatprep.subr.bf16.mxu0 0
        %3402 = vmatpush1.bf16.msra.mxu0 0
        %3403 = vmatprep.subr.bf16.mxu0 0
        %3404 = vmatpush1.bf16.msra.mxu0 0
        %3405 = vmatprep.subr.bf16.mxu0 0
        %3406 = vmatpush1.bf16.msra.mxu0 0
        %3407 = vmatprep.subr.bf16.mxu0 0
        %3408 = vmatpush1.bf16.msra.mxu0 0
        %3409 = vmatprep.subr.bf16.mxu0 0
        %3410 = vmatpush1.bf16.msra.mxu0 0
        %3411 = vmatprep.subr.bf16.mxu0 0
        %3412 = vmatpush1.bf16.msra.mxu0 0
        %3413 = vmatprep.subr.bf16.mxu0 0
        %3414 = vmatpush1.bf16.msra.mxu0 0
        %3415 = vmatprep.subr.bf16.mxu0 0
        %3416 = vmatpush1.bf16.msra.mxu0 0
        %3417 = vmatprep.subr.bf16.mxu0 0
        %3418 = vmatpush1.bf16.msra.mxu0 0
        %3419 = vmatprep.subr.bf16.mxu0 0
        %3420 = vmatpush1.bf16.msra.mxu0 0
        %3421 = vmatprep.mubr.bf16.mxu0 0
        %3422 = vmatmul.mubr.bf16.gmra.mrb[0].mxu0 %v3378
        %v3423 = vpop.f32.mrb[0].mxu0
        %v3424 = vadd.f32 0.0, %v3423
        %v3425 = vpop.f32.mrb[0].mxu0
        %v3426 = vpop.f32.mrb[0].mxu0
        %v3427 = vadd.f32 0.0, %v3426
        %v3428 = vpop.f32.mrb[0].mxu0
        %3429 = vmatprep.mubr.bf16.mxu0 0
        %3430 = vmatmul.mubr.bf16.gmra.mrb[0].mxu0 %v3381
        %v3431 = vpop.f32.mrb[0].mxu0
        %v3432 = vadd.f32 0.0, %v3431
        %v3433 = vpop.f32.mrb[0].mxu0
        %v3434 = vpop.f32.mrb[0].mxu0
        %v3435 = vadd.f32 0.0, %v3434
        %v3436 = vpop.f32.mrb[0].mxu0
        %3437 = vmatprep.mubr.bf16.mxu0 0
        %3438 = vmatmul.mubr.bf16.gmra.mrb[0].mxu0 %v3384
        %v3439 = vpop.f32.mrb[0].mxu0
        %v3440 = vadd.f32 0.0, %v3439
        %v3441 = vpop.f32.mrb[0].mxu0
        %v3442 = vpop.f32.mrb[0].mxu0
        %v3443 = vadd.f32 0.0, %v3442
        %v3444 = vpop.f32.mrb[0].mxu0
        %3445 = vmatprep.mubr.bf16.mxu0 0
        %3446 = vmatmul.mubr.bf16.gmra.mrb[0].mxu0 %v3387
        %v3447 = vpop.f32.mrb[0].mxu0
        %v3448 = vadd.f32 0.0, %v3447
        %v3449 = vpop.f32.mrb[0].mxu0
        %v3450 = vpop.f32.mrb[0].mxu0
        %v3451 = vadd.f32 0.0, %v3450
        %v3452 = vpop.f32.mrb[0].mxu0
        %3453 = vdwg.mxu0
        %v3454 = vadd.f32 %v2592, %v3424
        %v3455 = vadd.f32 %v2595, %v3427
        %v3456 = vadd.f32 %v2600, %v3432
        %v3457 = vadd.f32 %v2603, %v3435
        %v3458 = vadd.f32 %v2608, %v3440
        %v3459 = vadd.f32 %v2611, %v3443
        %v3460 = vadd.f32 %v2616, %v3448
        %v3461 = vadd.f32 %v2619, %v3451
        %s3462 = scalar_lea.vmem %s657, 192
        %v3463 = vld [vmem:[%s3462] sm:$0xf]
        %v3464 = vld [vmem:[%s3462 + $0x4] sm:$0xf]
        %v3465 = vld [vmem:[%s3462 + $0x8] sm:$0xf]
        %v3466 = vld [vmem:[%s3462 + $0xc] sm:$0xf]
        %v3467 = vld [vmem:[%s3462 + $0x10] sm:$0xf]
        %v3468 = vld [vmem:[%s3462 + $0x14] sm:$0xf]
        %v3469 = vld [vmem:[%s3462 + $0x18] sm:$0xf]
        %v3470 = vld [vmem:[%s3462 + $0x1c] sm:$0xf]
        %v3471 = vld [vmem:[%s3462 + $0x20] sm:$0xf]
        %v3472 = vld [vmem:[%s3462 + $0x24] sm:$0xf]
        %v3473 = vld [vmem:[%s3462 + $0x28] sm:$0xf]
        %v3474 = vld [vmem:[%s3462 + $0x2c] sm:$0xf]
        %v3475 = vld [vmem:[%s3462 + $0x30] sm:$0xf]
        %v3476 = vld [vmem:[%s3462 + $0x34] sm:$0xf]
        %v3477 = vld [vmem:[%s3462 + $0x38] sm:$0xf]
        %v3478 = vld [vmem:[%s3462 + $0x3c] sm:$0xf]
        %v3479 = vlaneseq
        %v3480 = vshrl.u32 %v3479, 7
        %v3481 = vsub.s32 3, %v3480
        %v3482 = vrot.slane %v841, %v3481
        %v3499 = vunpack.c.l.b16 %v3463
        %v3500 = vunpack.c.l.b16 %v3464
        %v3501 = vunpack.c.l.b16 %v3465
        %v3502 = vunpack.c.l.b16 %v3466
        %v3503 = vunpack.c.l.b16 %v3467
        %v3504 = vunpack.c.l.b16 %v3468
        %v3505 = vunpack.c.l.b16 %v3469
        %v3506 = vunpack.c.l.b16 %v3470
        %v3507 = vunpack.c.l.b16 %v3471
        %v3508 = vunpack.c.l.b16 %v3472
        %v3509 = vunpack.c.l.b16 %v3473
        %v3510 = vunpack.c.l.b16 %v3474
        %v3511 = vunpack.c.l.b16 %v3475
        %v3512 = vunpack.c.l.b16 %v3476
        %v3513 = vunpack.c.l.b16 %v3477
        %v3514 = vunpack.c.l.b16 %v3478
        %v3515 = vpack.c.b16 %v3500, %v3499
        %v3516 = vpack.c.b16 %v3502, %v3501
        %v3517 = vpack.c.b16 %v3504, %v3503
        %v3518 = vpack.c.b16 %v3506, %v3505
        %v3519 = vpack.c.b16 %v3508, %v3507
        %v3520 = vpack.c.b16 %v3510, %v3509
        %v3521 = vpack.c.b16 %v3512, %v3511
        %v3522 = vpack.c.b16 %v3514, %v3513
        %3531 = vmatprep.subr.bf16.mxu0 0
        %3532 = vmatpush1.bf16.msra.mxu0 %v3515
        %3533 = vmatprep.subr.bf16.mxu0 0
        %3534 = vmatpush1.bf16.msra.mxu0 %v3516
        %3535 = vmatprep.subr.bf16.mxu0 0
        %3536 = vmatpush1.bf16.msra.mxu0 %v3517
        %3537 = vmatprep.subr.bf16.mxu0 0
        %3538 = vmatpush1.bf16.msra.mxu0 %v3518
        %3539 = vmatprep.subr.bf16.mxu0 0
        %3540 = vmatpush1.bf16.msra.mxu0 %v3519
        %3541 = vmatprep.subr.bf16.mxu0 0
        %3542 = vmatpush1.bf16.msra.mxu0 %v3520
        %3543 = vmatprep.subr.bf16.mxu0 0
        %3544 = vmatpush1.bf16.msra.mxu0 %v3521
        %3545 = vmatprep.subr.bf16.mxu0 0
        %3546 = vmatpush1.bf16.msra.mxu0 %v3522
        %3547 = vmatprep.subr.bf16.mxu0 0
        %3548 = vmatpush1.bf16.msra.mxu0 0
        %3549 = vmatprep.subr.bf16.mxu0 0
        %3550 = vmatpush1.bf16.msra.mxu0 0
        %3551 = vmatprep.subr.bf16.mxu0 0
        %3552 = vmatpush1.bf16.msra.mxu0 0
        %3553 = vmatprep.subr.bf16.mxu0 0
        %3554 = vmatpush1.bf16.msra.mxu0 0
        %3555 = vmatprep.subr.bf16.mxu0 0
        %3556 = vmatpush1.bf16.msra.mxu0 0
        %3557 = vmatprep.subr.bf16.mxu0 0
        %3558 = vmatpush1.bf16.msra.mxu0 0
        %3559 = vmatprep.subr.bf16.mxu0 0
        %3560 = vmatpush1.bf16.msra.mxu0 0
        %3561 = vmatprep.subr.bf16.mxu0 0
        %3562 = vmatpush1.bf16.msra.mxu0 0
        %3563 = vmatprep.mubr.bf16.mxu0 0
        %3564 = vmatmul.mubr.bf16.gmra.mrb[0].mxu0 %v955
        %v3565 = vpop.f32.mrb[0].mxu0
        %v3566 = vadd.f32 %v3482, %v3565
        %v3567 = vpop.f32.mrb[0].mxu0
        %v3568 = vpop.f32.mrb[0].mxu0
        %v3569 = vadd.f32 %v3482, %v3568
        %v3570 = vpop.f32.mrb[0].mxu0
        %3571 = vmatprep.mubr.bf16.mxu0 0
        %3572 = vmatmul.mubr.bf16.gmra.mrb[0].mxu0 %v956
        %v3573 = vpop.f32.mrb[0].mxu0
        %v3574 = vadd.f32 %v3482, %v3573
        %v3575 = vpop.f32.mrb[0].mxu0
        %v3576 = vpop.f32.mrb[0].mxu0
        %v3577 = vadd.f32 %v3482, %v3576
        %v3578 = vpop.f32.mrb[0].mxu0
        %3579 = vmatprep.mubr.bf16.mxu0 0
        %3580 = vmatmul.mubr.bf16.gmra.mrb[0].mxu0 %v957
        %v3581 = vpop.f32.mrb[0].mxu0
        %v3582 = vadd.f32 %v3482, %v3581
        %v3583 = vpop.f32.mrb[0].mxu0
        %v3584 = vpop.f32.mrb[0].mxu0
        %v3585 = vadd.f32 %v3482, %v3584
        %v3586 = vpop.f32.mrb[0].mxu0
        %3587 = vmatprep.mubr.bf16.mxu0 0
        %3588 = vmatmul.mubr.bf16.gmra.mrb[0].mxu0 %v958
        %v3589 = vpop.f32.mrb[0].mxu0
        %v3590 = vadd.f32 %v3482, %v3589
        %v3591 = vpop.f32.mrb[0].mxu0
        %v3592 = vpop.f32.mrb[0].mxu0
        %v3593 = vadd.f32 %v3482, %v3592
        %v3594 = vpop.f32.mrb[0].mxu0
        %3595 = vdwg.mxu0
        %s3596 = scalar_lea.vmem %s657, 448
        %v3597 = vld [vmem:[%s3596] sm:$0xf]
        %v3598 = vld [vmem:[%s3596 + $0x4] sm:$0xf]
        %v3599 = vld [vmem:[%s3596 + $0x8] sm:$0xf]
        %v3600 = vld [vmem:[%s3596 + $0xc] sm:$0xf]
        %v3601 = vld [vmem:[%s3596 + $0x10] sm:$0xf]
        %v3602 = vld [vmem:[%s3596 + $0x14] sm:$0xf]
        %v3603 = vld [vmem:[%s3596 + $0x18] sm:$0xf]
        %v3604 = vld [vmem:[%s3596 + $0x1c] sm:$0xf]
        %v3605 = vld [vmem:[%s3596 + $0x20] sm:$0xf]
        %v3606 = vld [vmem:[%s3596 + $0x24] sm:$0xf]
        %v3607 = vld [vmem:[%s3596 + $0x28] sm:$0xf]
        %v3608 = vld [vmem:[%s3596 + $0x2c] sm:$0xf]
        %v3609 = vld [vmem:[%s3596 + $0x30] sm:$0xf]
        %v3610 = vld [vmem:[%s3596 + $0x34] sm:$0xf]
        %v3611 = vld [vmem:[%s3596 + $0x38] sm:$0xf]
        %v3612 = vld [vmem:[%s3596 + $0x3c] sm:$0xf]
        %v3613 = vlaneseq
        %v3614 = vshrl.u32 %v3613, 7
        %v3615 = vsub.s32 7, %v3614
        %v3616 = vrot.slane %v841, %v3615
        %v3633 = vunpack.c.l.b16 %v3597
        %v3634 = vunpack.c.l.b16 %v3598
        %v3635 = vunpack.c.l.b16 %v3599
        %v3636 = vunpack.c.l.b16 %v3600
        %v3637 = vunpack.c.l.b16 %v3601
        %v3638 = vunpack.c.l.b16 %v3602
        %v3639 = vunpack.c.l.b16 %v3603
        %v3640 = vunpack.c.l.b16 %v3604
        %v3641 = vunpack.c.l.b16 %v3605
        %v3642 = vunpack.c.l.b16 %v3606
        %v3643 = vunpack.c.l.b16 %v3607
        %v3644 = vunpack.c.l.b16 %v3608
        %v3645 = vunpack.c.l.b16 %v3609
        %v3646 = vunpack.c.l.b16 %v3610
        %v3647 = vunpack.c.l.b16 %v3611
        %v3648 = vunpack.c.l.b16 %v3612
        %v3649 = vpack.c.b16 %v3634, %v3633
        %v3650 = vpack.c.b16 %v3636, %v3635
        %v3651 = vpack.c.b16 %v3638, %v3637
        %v3652 = vpack.c.b16 %v3640, %v3639
        %v3653 = vpack.c.b16 %v3642, %v3641
        %v3654 = vpack.c.b16 %v3644, %v3643
        %v3655 = vpack.c.b16 %v3646, %v3645
        %v3656 = vpack.c.b16 %v3648, %v3647
        %3665 = vmatprep.subr.bf16.mxu0 0
        %3666 = vmatpush1.bf16.msra.mxu0 %v3649
        %3667 = vmatprep.subr.bf16.mxu0 0
        %3668 = vmatpush1.bf16.msra.mxu0 %v3650
        %3669 = vmatprep.subr.bf16.mxu0 0
        %3670 = vmatpush1.bf16.msra.mxu0 %v3651
        %3671 = vmatprep.subr.bf16.mxu0 0
        %3672 = vmatpush1.bf16.msra.mxu0 %v3652
        %3673 = vmatprep.subr.bf16.mxu0 0
        %3674 = vmatpush1.bf16.msra.mxu0 %v3653
        %3675 = vmatprep.subr.bf16.mxu0 0
        %3676 = vmatpush1.bf16.msra.mxu0 %v3654
        %3677 = vmatprep.subr.bf16.mxu0 0
        %3678 = vmatpush1.bf16.msra.mxu0 %v3655
        %3679 = vmatprep.subr.bf16.mxu0 0
        %3680 = vmatpush1.bf16.msra.mxu0 %v3656
        %3681 = vmatprep.subr.bf16.mxu0 0
        %3682 = vmatpush1.bf16.msra.mxu0 0
        %3683 = vmatprep.subr.bf16.mxu0 0
        %3684 = vmatpush1.bf16.msra.mxu0 0
        %3685 = vmatprep.subr.bf16.mxu0 0
        %3686 = vmatpush1.bf16.msra.mxu0 0
        %3687 = vmatprep.subr.bf16.mxu0 0
        %3688 = vmatpush1.bf16.msra.mxu0 0
        %3689 = vmatprep.subr.bf16.mxu0 0
        %3690 = vmatpush1.bf16.msra.mxu0 0
        %3691 = vmatprep.subr.bf16.mxu0 0
        %3692 = vmatpush1.bf16.msra.mxu0 0
        %3693 = vmatprep.subr.bf16.mxu0 0
        %3694 = vmatpush1.bf16.msra.mxu0 0
        %3695 = vmatprep.subr.bf16.mxu0 0
        %3696 = vmatpush1.bf16.msra.mxu0 0
        %3697 = vmatprep.mubr.bf16.mxu0 0
        %3698 = vmatmul.mubr.bf16.gmra.mrb[0].mxu0 %v955
        %v3699 = vpop.f32.mrb[0].mxu0
        %v3700 = vadd.f32 %v3616, %v3699
        %v3701 = vpop.f32.mrb[0].mxu0
        %v3702 = vpop.f32.mrb[0].mxu0
        %v3703 = vadd.f32 %v3616, %v3702
        %v3704 = vpop.f32.mrb[0].mxu0
        %3705 = vmatprep.mubr.bf16.mxu0 0
        %3706 = vmatmul.mubr.bf16.gmra.mrb[0].mxu0 %v956
        %v3707 = vpop.f32.mrb[0].mxu0
        %v3708 = vadd.f32 %v3616, %v3707
        %v3709 = vpop.f32.mrb[0].mxu0
        %v3710 = vpop.f32.mrb[0].mxu0
        %v3711 = vadd.f32 %v3616, %v3710
        %v3712 = vpop.f32.mrb[0].mxu0
        %3713 = vmatprep.mubr.bf16.mxu0 0
        %3714 = vmatmul.mubr.bf16.gmra.mrb[0].mxu0 %v957
        %v3715 = vpop.f32.mrb[0].mxu0
        %v3716 = vadd.f32 %v3616, %v3715
        %v3717 = vpop.f32.mrb[0].mxu0
        %v3718 = vpop.f32.mrb[0].mxu0
        %v3719 = vadd.f32 %v3616, %v3718
        %v3720 = vpop.f32.mrb[0].mxu0
        %3721 = vmatprep.mubr.bf16.mxu0 0
        %3722 = vmatmul.mubr.bf16.gmra.mrb[0].mxu0 %v958
        %v3723 = vpop.f32.mrb[0].mxu0
        %v3724 = vadd.f32 %v3616, %v3723
        %v3725 = vpop.f32.mrb[0].mxu0
        %v3726 = vpop.f32.mrb[0].mxu0
        %v3727 = vadd.f32 %v3616, %v3726
        %v3728 = vpop.f32.mrb[0].mxu0
        %3729 = vdwg.mxu0
        %s3730 = scalar_lea.vmem %s657, 704
        %v3731 = vld [vmem:[%s3730] sm:$0xf]
        %v3732 = vld [vmem:[%s3730 + $0x4] sm:$0xf]
        %v3733 = vld [vmem:[%s3730 + $0x8] sm:$0xf]
        %v3734 = vld [vmem:[%s3730 + $0xc] sm:$0xf]
        %v3735 = vld [vmem:[%s3730 + $0x10] sm:$0xf]
        %v3736 = vld [vmem:[%s3730 + $0x14] sm:$0xf]
        %v3737 = vld [vmem:[%s3730 + $0x18] sm:$0xf]
        %v3738 = vld [vmem:[%s3730 + $0x1c] sm:$0xf]
        %v3739 = vld [vmem:[%s3730 + $0x20] sm:$0xf]
        %v3740 = vld [vmem:[%s3730 + $0x24] sm:$0xf]
        %v3741 = vld [vmem:[%s3730 + $0x28] sm:$0xf]
        %v3742 = vld [vmem:[%s3730 + $0x2c] sm:$0xf]
        %v3743 = vld [vmem:[%s3730 + $0x30] sm:$0xf]
        %v3744 = vld [vmem:[%s3730 + $0x34] sm:$0xf]
        %v3745 = vld [vmem:[%s3730 + $0x38] sm:$0xf]
        %v3746 = vld [vmem:[%s3730 + $0x3c] sm:$0xf]
        %v3763 = vunpack.c.l.b16 %v3731
        %v3764 = vunpack.c.l.b16 %v3732
        %v3765 = vunpack.c.l.b16 %v3733
        %v3766 = vunpack.c.l.b16 %v3734
        %v3767 = vunpack.c.l.b16 %v3735
        %v3768 = vunpack.c.l.b16 %v3736
        %v3769 = vunpack.c.l.b16 %v3737
        %v3770 = vunpack.c.l.b16 %v3738
        %v3771 = vunpack.c.l.b16 %v3739
        %v3772 = vunpack.c.l.b16 %v3740
        %v3773 = vunpack.c.l.b16 %v3741
        %v3774 = vunpack.c.l.b16 %v3742
        %v3775 = vunpack.c.l.b16 %v3743
        %v3776 = vunpack.c.l.b16 %v3744
        %v3777 = vunpack.c.l.b16 %v3745
        %v3778 = vunpack.c.l.b16 %v3746
        %v3779 = vpack.c.b16 %v3764, %v3763
        %v3780 = vpack.c.b16 %v3766, %v3765
        %v3781 = vpack.c.b16 %v3768, %v3767
        %v3782 = vpack.c.b16 %v3770, %v3769
        %v3783 = vpack.c.b16 %v3772, %v3771
        %v3784 = vpack.c.b16 %v3774, %v3773
        %v3785 = vpack.c.b16 %v3776, %v3775
        %v3786 = vpack.c.b16 %v3778, %v3777
        %3795 = vmatprep.subr.bf16.mxu0 0
        %3796 = vmatpush1.bf16.msra.mxu0 %v3779
        %3797 = vmatprep.subr.bf16.mxu0 0
        %3798 = vmatpush1.bf16.msra.mxu0 %v3780
        %3799 = vmatprep.subr.bf16.mxu0 0
        %3800 = vmatpush1.bf16.msra.mxu0 %v3781
        %3801 = vmatprep.subr.bf16.mxu0 0
        %3802 = vmatpush1.bf16.msra.mxu0 %v3782
        %3803 = vmatprep.subr.bf16.mxu0 0
        %3804 = vmatpush1.bf16.msra.mxu0 %v3783
        %3805 = vmatprep.subr.bf16.mxu0 0
        %3806 = vmatpush1.bf16.msra.mxu0 %v3784
        %3807 = vmatprep.subr.bf16.mxu0 0
        %3808 = vmatpush1.bf16.msra.mxu0 %v3785
        %3809 = vmatprep.subr.bf16.mxu0 0
        %3810 = vmatpush1.bf16.msra.mxu0 %v3786
        %3811 = vmatprep.subr.bf16.mxu0 0
        %3812 = vmatpush1.bf16.msra.mxu0 0
        %3813 = vmatprep.subr.bf16.mxu0 0
        %3814 = vmatpush1.bf16.msra.mxu0 0
        %3815 = vmatprep.subr.bf16.mxu0 0
        %3816 = vmatpush1.bf16.msra.mxu0 0
        %3817 = vmatprep.subr.bf16.mxu0 0
        %3818 = vmatpush1.bf16.msra.mxu0 0
        %3819 = vmatprep.subr.bf16.mxu0 0
        %3820 = vmatpush1.bf16.msra.mxu0 0
        %3821 = vmatprep.subr.bf16.mxu0 0
        %3822 = vmatpush1.bf16.msra.mxu0 0
        %3823 = vmatprep.subr.bf16.mxu0 0
        %3824 = vmatpush1.bf16.msra.mxu0 0
        %3825 = vmatprep.subr.bf16.mxu0 0
        %3826 = vmatpush1.bf16.msra.mxu0 0
        %3827 = vmatprep.mubr.bf16.mxu0 0
        %3828 = vmatmul.mubr.bf16.gmra.mrb[0].mxu0 %v955
        %v3829 = vpop.f32.mrb[0].mxu0
        %v3830 = vadd.f32 0.0, %v3829
        %v3831 = vpop.f32.mrb[0].mxu0
        %v3832 = vpop.f32.mrb[0].mxu0
        %v3833 = vadd.f32 0.0, %v3832
        %v3834 = vpop.f32.mrb[0].mxu0
        %3835 = vmatprep.mubr.bf16.mxu0 0
        %3836 = vmatmul.mubr.bf16.gmra.mrb[0].mxu0 %v956
        %v3837 = vpop.f32.mrb[0].mxu0
        %v3838 = vadd.f32 0.0, %v3837
        %v3839 = vpop.f32.mrb[0].mxu0
        %v3840 = vpop.f32.mrb[0].mxu0
        %v3841 = vadd.f32 0.0, %v3840
        %v3842 = vpop.f32.mrb[0].mxu0
        %3843 = vmatprep.mubr.bf16.mxu0 0
        %3844 = vmatmul.mubr.bf16.gmra.mrb[0].mxu0 %v957
        %v3845 = vpop.f32.mrb[0].mxu0
        %v3846 = vadd.f32 0.0, %v3845
        %v3847 = vpop.f32.mrb[0].mxu0
        %v3848 = vpop.f32.mrb[0].mxu0
        %v3849 = vadd.f32 0.0, %v3848
        %v3850 = vpop.f32.mrb[0].mxu0
        %3851 = vmatprep.mubr.bf16.mxu0 0
        %3852 = vmatmul.mubr.bf16.gmra.mrb[0].mxu0 %v958
        %v3853 = vpop.f32.mrb[0].mxu0
        %v3854 = vadd.f32 0.0, %v3853
        %v3855 = vpop.f32.mrb[0].mxu0
        %v3856 = vpop.f32.mrb[0].mxu0
        %v3857 = vadd.f32 0.0, %v3856
        %v3858 = vpop.f32.mrb[0].mxu0
        %3859 = vdwg.mxu0
        %v3860 = vpack.c.bf16 %v3569, %v3566
        %v3861 = vpack.c.bf16 %v3577, %v3574
        %v3862 = vpack.c.bf16 %v3585, %v3582
        %v3863 = vpack.c.bf16 %v3593, %v3590
        %v3864 = vpack.c.bf16 %v3703, %v3700
        %v3865 = vpack.c.bf16 %v3711, %v3708
        %v3866 = vpack.c.bf16 %v3719, %v3716
        %v3867 = vpack.c.bf16 %v3727, %v3724
        %v3869 = vsel %vm1364, %v3860, 0
        %v3872 = vsel %vm1364, %v3861, 0
        %v3875 = vsel %vm1364, %v3864, 0
        %v3878 = vsel %vm1364, %v3865, 0
        %3880 = vmatprep.subr.bf16.mxu0 0
        %3881 = vmatpush1.bf16.xpose.msra.mxu0 %v3875
        %3882 = vmatprep.subr.bf16.mxu0 0
        %3883 = vmatpush1.bf16.xpose.msra.mxu0 %v3878
        %3884 = vmatprep.subr.bf16.mxu0 0
        %3885 = vmatpush1.bf16.xpose.msra.mxu0 0
        %3886 = vmatprep.subr.bf16.mxu0 0
        %3887 = vmatpush1.bf16.xpose.msra.mxu0 0
        %3888 = vmatprep.subr.bf16.mxu0 0
        %3889 = vmatpush1.bf16.xpose.msra.mxu0 0
        %3890 = vmatprep.subr.bf16.mxu0 0
        %3891 = vmatpush1.bf16.xpose.msra.mxu0 0
        %3892 = vmatprep.subr.bf16.mxu0 0
        %3893 = vmatpush1.bf16.xpose.msra.mxu0 0
        %3894 = vmatprep.subr.bf16.mxu0 0
        %3895 = vmatpush1.bf16.xpose.msra.mxu0 0
        %3896 = vmatprep.subr.bf16.mxu0 0
        %3897 = vmatpush1.bf16.xpose.msra.mxu0 0
        %3898 = vmatprep.subr.bf16.mxu0 0
        %3899 = vmatpush1.bf16.xpose.msra.mxu0 0
        %3900 = vmatprep.subr.bf16.mxu0 0
        %3901 = vmatpush1.bf16.xpose.msra.mxu0 0
        %3902 = vmatprep.subr.bf16.mxu0 0
        %3903 = vmatpush1.bf16.xpose.msra.mxu0 0
        %3904 = vmatprep.subr.bf16.mxu0 0
        %3905 = vmatpush1.bf16.xpose.msra.mxu0 0
        %3906 = vmatprep.subr.bf16.mxu0 0
        %3907 = vmatpush1.bf16.xpose.msra.mxu0 0
        %3908 = vmatprep.subr.bf16.mxu0 0
        %3909 = vmatpush1.bf16.xpose.msra.mxu0 0
        %3910 = vmatprep.subr.bf16.mxu0 0
        %3911 = vmatpush1.bf16.xpose.msra.mxu0 0
        %3912 = vmatprep.mubr.bf16.mxu0 0
        %3913 = vmatmul.mubr.bf16.gmra.mrb[0].mxu0 %v3869
        %v3914 = vpop.f32.mrb[0].mxu0
        %v3915 = vadd.f32 0.0, %v3914
        %v3916 = vpop.f32.mrb[0].mxu0
        %v3917 = vpop.f32.mrb[0].mxu0
        %v3918 = vadd.f32 0.0, %v3917
        %v3919 = vpop.f32.mrb[0].mxu0
        %3920 = vmatprep.mubr.bf16.mxu0 0
        %3921 = vmatmul.mubr.bf16.gmra.mrb[0].mxu0 %v3872
        %v3922 = vpop.f32.mrb[0].mxu0
        %v3923 = vadd.f32 0.0, %v3922
        %v3924 = vpop.f32.mrb[0].mxu0
        %v3925 = vpop.f32.mrb[0].mxu0
        %v3926 = vadd.f32 0.0, %v3925
        %v3927 = vpop.f32.mrb[0].mxu0
        %3928 = vdwg.mxu0
        %v3930 = vsel %vm1364, %v3862, 0
        %v3933 = vsel %vm1364, %v3863, 0
        %v3936 = vsel %vm1364, %v3866, 0
        %v3939 = vsel %vm1364, %v3867, 0
        %3941 = vmatprep.subr.bf16.mxu0 0
        %3942 = vmatpush1.bf16.xpose.msra.mxu0 %v3936
        %3943 = vmatprep.subr.bf16.mxu0 0
        %3944 = vmatpush1.bf16.xpose.msra.mxu0 %v3939
        %3945 = vmatprep.subr.bf16.mxu0 0
        %3946 = vmatpush1.bf16.xpose.msra.mxu0 0
        %3947 = vmatprep.subr.bf16.mxu0 0
        %3948 = vmatpush1.bf16.xpose.msra.mxu0 0
        %3949 = vmatprep.subr.bf16.mxu0 0
        %3950 = vmatpush1.bf16.xpose.msra.mxu0 0
        %3951 = vmatprep.subr.bf16.mxu0 0
        %3952 = vmatpush1.bf16.xpose.msra.mxu0 0
        %3953 = vmatprep.subr.bf16.mxu0 0
        %3954 = vmatpush1.bf16.xpose.msra.mxu0 0
        %3955 = vmatprep.subr.bf16.mxu0 0
        %3956 = vmatpush1.bf16.xpose.msra.mxu0 0
        %3957 = vmatprep.subr.bf16.mxu0 0
        %3958 = vmatpush1.bf16.xpose.msra.mxu0 0
        %3959 = vmatprep.subr.bf16.mxu0 0
        %3960 = vmatpush1.bf16.xpose.msra.mxu0 0
        %3961 = vmatprep.subr.bf16.mxu0 0
        %3962 = vmatpush1.bf16.xpose.msra.mxu0 0
        %3963 = vmatprep.subr.bf16.mxu0 0
        %3964 = vmatpush1.bf16.xpose.msra.mxu0 0
        %3965 = vmatprep.subr.bf16.mxu0 0
        %3966 = vmatpush1.bf16.xpose.msra.mxu0 0
        %3967 = vmatprep.subr.bf16.mxu0 0
        %3968 = vmatpush1.bf16.xpose.msra.mxu0 0
        %3969 = vmatprep.subr.bf16.mxu0 0
        %3970 = vmatpush1.bf16.xpose.msra.mxu0 0
        %3971 = vmatprep.subr.bf16.mxu0 0
        %3972 = vmatpush1.bf16.xpose.msra.mxu0 0
        %3973 = vmatprep.mubr.bf16.mxu0 0
        %3974 = vmatmul.mubr.bf16.gmra.mrb[0].mxu0 %v3930
        %v3975 = vpop.f32.mrb[0].mxu0
        %v3976 = vadd.f32 0.0, %v3975
        %v3977 = vpop.f32.mrb[0].mxu0
        %v3978 = vpop.f32.mrb[0].mxu0
        %v3979 = vadd.f32 0.0, %v3978
        %v3980 = vpop.f32.mrb[0].mxu0
        %3981 = vmatprep.mubr.bf16.mxu0 0
        %3982 = vmatmul.mubr.bf16.gmra.mrb[0].mxu0 %v3933
        %v3983 = vpop.f32.mrb[0].mxu0
        %v3984 = vadd.f32 0.0, %v3983
        %v3985 = vpop.f32.mrb[0].mxu0
        %v3986 = vpop.f32.mrb[0].mxu0
        %v3987 = vadd.f32 0.0, %v3986
        %v3988 = vpop.f32.mrb[0].mxu0
        %3989 = vdwg.mxu0
        %v3990 = vsel %vm1364, %v3915, -inf
        %3991 = vmax.xlane.f32.xlu0 %v3990
        %v3992 = vpop.xlane.xlu0 %3991
        %v3993 = vsel %vm1364, %v3918, -inf
        %3994 = vmax.xlane.f32.xlu0 %v3993
        %v3995 = vpop.xlane.xlu0 %3994
        %v3996 = vsel %vm1364, %v3923, -inf
        %3997 = vmax.xlane.f32.xlu0 %v3996
        %v3998 = vpop.xlane.xlu0 %3997
        %v3999 = vsel %vm1364, %v3926, -inf
        %4000 = vmax.xlane.f32.xlu0 %v3999
        %v4001 = vpop.xlane.xlu0 %4000
        %v4002 = vsel %vm1364, %v3976, -inf
        %4003 = vmax.xlane.f32.xlu0 %v4002
        %v4004 = vpop.xlane.xlu0 %4003
        %v4005 = vsel %vm1364, %v3979, -inf
        %4006 = vmax.xlane.f32.xlu0 %v4005
        %v4007 = vpop.xlane.xlu0 %4006
        %v4008 = vsel %vm1364, %v3984, -inf
        %4009 = vmax.xlane.f32.xlu0 %v4008
        %v4010 = vpop.xlane.xlu0 %4009
        %v4011 = vsel %vm1364, %v3987, -inf
        %4012 = vmax.xlane.f32.xlu0 %v4011
        %v4013 = vpop.xlane.xlu0 %4012
        %v4014 = vsub.f32 %v3915, %v3992
        %v4015 = vsub.f32 %v3918, %v3995
        %v4016 = vsub.f32 %v3923, %v3998
        %v4017 = vsub.f32 %v3926, %v4001
        %v4018 = vsub.f32 %v3976, %v4004
        %v4019 = vsub.f32 %v3979, %v4007
        %v4020 = vsub.f32 %v3984, %v4010
        %v4021 = vsub.f32 %v3987, %v4013
        %v4022 = vmul.f32 %v4014, 1.442695
        %v4023 = vpow.pop %v4022
        %v4024 = vmul.f32 %v4015, 1.442695
        %v4025 = vpow.pop %v4024
        %v4026 = vmul.f32 %v4016, 1.442695
        %v4027 = vpow.pop %v4026
        %v4028 = vmul.f32 %v4017, 1.442695
        %v4029 = vpow.pop %v4028
        %v4030 = vmul.f32 %v4018, 1.442695
        %v4031 = vpow.pop %v4030
        %v4032 = vmul.f32 %v4019, 1.442695
        %v4033 = vpow.pop %v4032
        %v4034 = vmul.f32 %v4020, 1.442695
        %v4035 = vpow.pop %v4034
        %v4036 = vmul.f32 %v4021, 1.442695
        %v4037 = vpow.pop %v4036
        %v4038 = vsel %vm1364, %v4023, 0.0
        %4039 = vadd.xlane.f32.xlu0 %v4038
        %v4040 = vpop.xlane.xlu0 %4039
        %v4041 = vsel %vm1364, %v4025, 0.0
        %4042 = vadd.xlane.f32.xlu0 %v4041
        %v4043 = vpop.xlane.xlu0 %4042
        %v4044 = vsel %vm1364, %v4027, 0.0
        %4045 = vadd.xlane.f32.xlu0 %v4044
        %v4046 = vpop.xlane.xlu0 %4045
        %v4047 = vsel %vm1364, %v4029, 0.0
        %4048 = vadd.xlane.f32.xlu0 %v4047
        %v4049 = vpop.xlane.xlu0 %4048
        %v4050 = vsel %vm1364, %v4031, 0.0
        %4051 = vadd.xlane.f32.xlu0 %v4050
        %v4052 = vpop.xlane.xlu0 %4051
        %v4053 = vsel %vm1364, %v4033, 0.0
        %4054 = vadd.xlane.f32.xlu0 %v4053
        %v4055 = vpop.xlane.xlu0 %4054
        %v4056 = vsel %vm1364, %v4035, 0.0
        %4057 = vadd.xlane.f32.xlu0 %v4056
        %v4058 = vpop.xlane.xlu0 %4057
        %v4059 = vsel %vm1364, %v4037, 0.0
        %4060 = vadd.xlane.f32.xlu0 %v4059
        %v4061 = vpop.xlane.xlu0 %4060
        %v4062 = vrcp.pop %v4040
        %v4063 = vrcp.pop %v4043
        %v4064 = vrcp.pop %v4046
        %v4065 = vrcp.pop %v4049
        %v4066 = vrcp.pop %v4052
        %v4067 = vrcp.pop %v4055
        %v4068 = vrcp.pop %v4058
        %v4069 = vrcp.pop %v4061
        %v4070 = vmul.f32 %v4023, %v4062
        %v4071 = vmul.f32 %v4025, %v4063
        %v4072 = vmul.f32 %v4027, %v4064
        %v4073 = vmul.f32 %v4029, %v4065
        %v4074 = vmul.f32 %v4031, %v4066
        %v4075 = vmul.f32 %v4033, %v4067
        %v4076 = vmul.f32 %v4035, %v4068
        %v4077 = vmul.f32 %v4037, %v4069
        %v4078 = vpack.c.bf16 %v4071, %v4070
        %v4079 = vpack.c.bf16 %v4073, %v4072
        %v4080 = vpack.c.bf16 %v4075, %v4074
        %v4081 = vpack.c.bf16 %v4077, %v4076
        %v4082 = vpack.c.bf16 %v3833, %v3830
        %v4083 = vpack.c.bf16 %v3841, %v3838
        %v4084 = vpack.c.bf16 %v3849, %v3846
        %v4085 = vpack.c.bf16 %v3857, %v3854
        %v4087 = vsel %vm1364, %v4078, 0
        %v4090 = vsel %vm1364, %v4079, 0
        %4092 = vmatprep.subr.bf16.mxu0 0
        %4093 = vmatpush1.bf16.msra.mxu0 %v4082
        %4094 = vmatprep.subr.bf16.mxu0 0
        %4095 = vmatpush1.bf16.msra.mxu0 %v4083
        %4096 = vmatprep.subr.bf16.mxu0 0
        %4097 = vmatpush1.bf16.msra.mxu0 0
        %4098 = vmatprep.subr.bf16.mxu0 0
        %4099 = vmatpush1.bf16.msra.mxu0 0
        %4100 = vmatprep.subr.bf16.mxu0 0
        %4101 = vmatpush1.bf16.msra.mxu0 0
        %4102 = vmatprep.subr.bf16.mxu0 0
        %4103 = vmatpush1.bf16.msra.mxu0 0
        %4104 = vmatprep.subr.bf16.mxu0 0
        %4105 = vmatpush1.bf16.msra.mxu0 0
        %4106 = vmatprep.subr.bf16.mxu0 0
        %4107 = vmatpush1.bf16.msra.mxu0 0
        %4108 = vmatprep.subr.bf16.mxu0 0
        %4109 = vmatpush1.bf16.msra.mxu0 0
        %4110 = vmatprep.subr.bf16.mxu0 0
        %4111 = vmatpush1.bf16.msra.mxu0 0
        %4112 = vmatprep.subr.bf16.mxu0 0
        %4113 = vmatpush1.bf16.msra.mxu0 0
        %4114 = vmatprep.subr.bf16.mxu0 0
        %4115 = vmatpush1.bf16.msra.mxu0 0
        %4116 = vmatprep.subr.bf16.mxu0 0
        %4117 = vmatpush1.bf16.msra.mxu0 0
        %4118 = vmatprep.subr.bf16.mxu0 0
        %4119 = vmatpush1.bf16.msra.mxu0 0
        %4120 = vmatprep.subr.bf16.mxu0 0
        %4121 = vmatpush1.bf16.msra.mxu0 0
        %4122 = vmatprep.subr.bf16.mxu0 0
        %4123 = vmatpush1.bf16.msra.mxu0 0
        %4124 = vmatprep.mubr.bf16.mxu0 0
        %4125 = vmatmul.mubr.bf16.gmra.mrb[0].mxu0 %v4087
        %v4126 = vpop.f32.mrb[0].mxu0
        %v4127 = vadd.f32 0.0, %v4126
        %v4128 = vpop.f32.mrb[0].mxu0
        %v4129 = vpop.f32.mrb[0].mxu0
        %v4130 = vadd.f32 0.0, %v4129
        %v4131 = vpop.f32.mrb[0].mxu0
        %4132 = vmatprep.mubr.bf16.mxu0 0
        %4133 = vmatmul.mubr.bf16.gmra.mrb[0].mxu0 %v4090
        %v4134 = vpop.f32.mrb[0].mxu0
        %v4135 = vadd.f32 0.0, %v4134
        %v4136 = vpop.f32.mrb[0].mxu0
        %v4137 = vpop.f32.mrb[0].mxu0
        %v4138 = vadd.f32 0.0, %v4137
        %v4139 = vpop.f32.mrb[0].mxu0
        %4140 = vdwg.mxu0
        %v4142 = vsel %vm1364, %v4080, 0
        %v4145 = vsel %vm1364, %v4081, 0
        %4147 = vmatprep.subr.bf16.mxu0 0
        %4148 = vmatpush1.bf16.msra.mxu0 %v4084
        %4149 = vmatprep.subr.bf16.mxu0 0
        %4150 = vmatpush1.bf16.msra.mxu0 %v4085
        %4151 = vmatprep.subr.bf16.mxu0 0
        %4152 = vmatpush1.bf16.msra.mxu0 0
        %4153 = vmatprep.subr.bf16.mxu0 0
        %4154 = vmatpush1.bf16.msra.mxu0 0
        %4155 = vmatprep.subr.bf16.mxu0 0
        %4156 = vmatpush1.bf16.msra.mxu0 0
        %4157 = vmatprep.subr.bf16.mxu0 0
        %4158 = vmatpush1.bf16.msra.mxu0 0
        %4159 = vmatprep.subr.bf16.mxu0 0
        %4160 = vmatpush1.bf16.msra.mxu0 0
        %4161 = vmatprep.subr.bf16.mxu0 0
        %4162 = vmatpush1.bf16.msra.mxu0 0
        %4163 = vmatprep.subr.bf16.mxu0 0
        %4164 = vmatpush1.bf16.msra.mxu0 0
        %4165 = vmatprep.subr.bf16.mxu0 0
        %4166 = vmatpush1.bf16.msra.mxu0 0
        %4167 = vmatprep.subr.bf16.mxu0 0
        %4168 = vmatpush1.bf16.msra.mxu0 0
        %4169 = vmatprep.subr.bf16.mxu0 0
        %4170 = vmatpush1.bf16.msra.mxu0 0
        %4171 = vmatprep.subr.bf16.mxu0 0
        %4172 = vmatpush1.bf16.msra.mxu0 0
        %4173 = vmatprep.subr.bf16.mxu0 0
        %4174 = vmatpush1.bf16.msra.mxu0 0
        %4175 = vmatprep.subr.bf16.mxu0 0
        %4176 = vmatpush1.bf16.msra.mxu0 0
        %4177 = vmatprep.subr.bf16.mxu0 0
        %4178 = vmatpush1.bf16.msra.mxu0 0
        %4179 = vmatprep.mubr.bf16.mxu0 0
        %4180 = vmatmul.mubr.bf16.gmra.mrb[0].mxu0 %v4142
        %v4181 = vpop.f32.mrb[0].mxu0
        %v4182 = vadd.f32 0.0, %v4181
        %v4183 = vpop.f32.mrb[0].mxu0
        %v4184 = vpop.f32.mrb[0].mxu0
        %v4185 = vadd.f32 0.0, %v4184
        %v4186 = vpop.f32.mrb[0].mxu0
        %4187 = vmatprep.mubr.bf16.mxu0 0
        %4188 = vmatmul.mubr.bf16.gmra.mrb[0].mxu0 %v4145
        %v4189 = vpop.f32.mrb[0].mxu0
        %v4190 = vadd.f32 0.0, %v4189
        %v4191 = vpop.f32.mrb[0].mxu0
        %v4192 = vpop.f32.mrb[0].mxu0
        %v4193 = vadd.f32 0.0, %v4192
        %v4194 = vpop.f32.mrb[0].mxu0
        %4195 = vdwg.mxu0
        %v4196 = vpack.c.bf16 %v4130, %v4127
        %v4197 = vpack.c.bf16 %v4138, %v4135
        %v4198 = vpack.c.bf16 %v4185, %v4182
        %v4199 = vpack.c.bf16 %v4193, %v4190
        %s4200 = scalar_lea.vmem %s662, 48
        %v4201 = vld [vmem:[%s4200] sm:$0xf]
        %v4202 = vld [vmem:[%s4200 + $0x4] sm:$0xf]
        %v4203 = vld [vmem:[%s4200 + $0x8] sm:$0xf]
        %v4204 = vld [vmem:[%s4200 + $0xc] sm:$0xf]
        %v4209 = vunpack.c.l.b16 %v4201
        %v4210 = vunpack.c.l.b16 %v4202
        %v4211 = vunpack.c.l.b16 %v4203
        %v4212 = vunpack.c.l.b16 %v4204
        %v4213 = vpack.c.b16 %v4210, %v4209
        %v4214 = vpack.c.b16 %v4212, %v4211
        %v4218 = vsel %vm1364, %v4196, 0
        %v4221 = vsel %vm1364, %v4197, 0
        %v4224 = vsel %vm1364, %v4198, 0
        %v4227 = vsel %vm1364, %v4199, 0
        %4229 = vmatprep.subr.bf16.mxu0 0
        %4230 = vmatpush1.bf16.msra.mxu0 %v4213
        %4231 = vmatprep.subr.bf16.mxu0 0
        %4232 = vmatpush1.bf16.msra.mxu0 %v4214
        %4233 = vmatprep.subr.bf16.mxu0 0
        %4234 = vmatpush1.bf16.msra.mxu0 0
        %4235 = vmatprep.subr.bf16.mxu0 0
        %4236 = vmatpush1.bf16.msra.mxu0 0
        %4237 = vmatprep.subr.bf16.mxu0 0
        %4238 = vmatpush1.bf16.msra.mxu0 0
        %4239 = vmatprep.subr.bf16.mxu0 0
        %4240 = vmatpush1.bf16.msra.mxu0 0
        %4241 = vmatprep.subr.bf16.mxu0 0
        %4242 = vmatpush1.bf16.msra.mxu0 0
        %4243 = vmatprep.subr.bf16.mxu0 0
        %4244 = vmatpush1.bf16.msra.mxu0 0
        %4245 = vmatprep.subr.bf16.mxu0 0
        %4246 = vmatpush1.bf16.msra.mxu0 0
        %4247 = vmatprep.subr.bf16.mxu0 0
        %4248 = vmatpush1.bf16.msra.mxu0 0
        %4249 = vmatprep.subr.bf16.mxu0 0
        %4250 = vmatpush1.bf16.msra.mxu0 0
        %4251 = vmatprep.subr.bf16.mxu0 0
        %4252 = vmatpush1.bf16.msra.mxu0 0
        %4253 = vmatprep.subr.bf16.mxu0 0
        %4254 = vmatpush1.bf16.msra.mxu0 0
        %4255 = vmatprep.subr.bf16.mxu0 0
        %4256 = vmatpush1.bf16.msra.mxu0 0
        %4257 = vmatprep.subr.bf16.mxu0 0
        %4258 = vmatpush1.bf16.msra.mxu0 0
        %4259 = vmatprep.subr.bf16.mxu0 0
        %4260 = vmatpush1.bf16.msra.mxu0 0
        %4261 = vmatprep.mubr.bf16.mxu0 0
        %4262 = vmatmul.mubr.bf16.gmra.mrb[0].mxu0 %v4218
        %v4263 = vpop.f32.mrb[0].mxu0
        %v4264 = vadd.f32 0.0, %v4263
        %v4265 = vpop.f32.mrb[0].mxu0
        %v4266 = vpop.f32.mrb[0].mxu0
        %v4267 = vadd.f32 0.0, %v4266
        %v4268 = vpop.f32.mrb[0].mxu0
        %4269 = vmatprep.mubr.bf16.mxu0 0
        %4270 = vmatmul.mubr.bf16.gmra.mrb[0].mxu0 %v4221
        %v4271 = vpop.f32.mrb[0].mxu0
        %v4272 = vadd.f32 0.0, %v4271
        %v4273 = vpop.f32.mrb[0].mxu0
        %v4274 = vpop.f32.mrb[0].mxu0
        %v4275 = vadd.f32 0.0, %v4274
        %v4276 = vpop.f32.mrb[0].mxu0
        %4277 = vmatprep.mubr.bf16.mxu0 0
        %4278 = vmatmul.mubr.bf16.gmra.mrb[0].mxu0 %v4224
        %v4279 = vpop.f32.mrb[0].mxu0
        %v4280 = vadd.f32 0.0, %v4279
        %v4281 = vpop.f32.mrb[0].mxu0
        %v4282 = vpop.f32.mrb[0].mxu0
        %v4283 = vadd.f32 0.0, %v4282
        %v4284 = vpop.f32.mrb[0].mxu0
        %4285 = vmatprep.mubr.bf16.mxu0 0
        %4286 = vmatmul.mubr.bf16.gmra.mrb[0].mxu0 %v4227
        %v4287 = vpop.f32.mrb[0].mxu0
        %v4288 = vadd.f32 0.0, %v4287
        %v4289 = vpop.f32.mrb[0].mxu0
        %v4290 = vpop.f32.mrb[0].mxu0
        %v4291 = vadd.f32 0.0, %v4290
        %v4292 = vpop.f32.mrb[0].mxu0
        %4293 = vdwg.mxu0
        %v4294 = vadd.f32 %v3454, %v4264
        %v4295 = vadd.f32 %v3455, %v4267
        %v4296 = vadd.f32 %v3456, %v4272
        %v4297 = vadd.f32 %v3457, %v4275
        %v4298 = vadd.f32 %v3458, %v4280
        %v4299 = vadd.f32 %v3459, %v4283
        %v4300 = vadd.f32 %v3460, %v4288
        %v4301 = vadd.f32 %v3461, %v4291
        %v4302 = vadd.f32 %v832, %v4294
        %v4303 = vadd.f32 %v833, %v4295
        %v4304 = vadd.f32 %v834, %v4296
        %v4305 = vadd.f32 %v835, %v4297
        %v4306 = vadd.f32 %v836, %v4298
        %v4307 = vadd.f32 %v837, %v4299
        %v4308 = vadd.f32 %v838, %v4300
        %v4309 = vadd.f32 %v839, %v4301
        %v4310 = vlaneseq
        %v4311 = vshrl.u32 %v4310, 7
        %v4312 = vsub.s32 4, %v4311
        %v4313 = vrot.slane %v840, %v4312
        %v4314 = vadd.f32 %v4302, %v4313
        %v4315 = vadd.f32 %v4303, %v4313
        %v4316 = vadd.f32 %v4304, %v4313
        %v4317 = vadd.f32 %v4305, %v4313
        %v4318 = vadd.f32 %v4306, %v4313
        %v4319 = vadd.f32 %v4307, %v4313
        %v4320 = vadd.f32 %v4308, %v4313
        %v4321 = vadd.f32 %v4309, %v4313
        %4322 = vadd.xlane.f32.xlu0 %v4314
        %v4323 = vpop.xlane.xlu0 %4322
        %4324 = vadd.xlane.f32.xlu0 %v4315
        %v4325 = vpop.xlane.xlu0 %4324
        %4326 = vadd.xlane.f32.xlu0 %v4316
        %v4327 = vpop.xlane.xlu0 %4326
        %4328 = vadd.xlane.f32.xlu0 %v4317
        %v4329 = vpop.xlane.xlu0 %4328
        %4330 = vadd.xlane.f32.xlu0 %v4318
        %v4331 = vpop.xlane.xlu0 %4330
        %4332 = vadd.xlane.f32.xlu0 %v4319
        %v4333 = vpop.xlane.xlu0 %4332
        %4334 = vadd.xlane.f32.xlu0 %v4320
        %v4335 = vpop.xlane.xlu0 %4334
        %4336 = vadd.xlane.f32.xlu0 %v4321
        %v4337 = vpop.xlane.xlu0 %4336
        %v4338 = vmul.f32 %v4323, %v858
        %v4339 = vmul.f32 %v4325, %v858
        %v4340 = vmul.f32 %v4327, %v858
        %v4341 = vmul.f32 %v4329, %v858
        %v4342 = vmul.f32 %v4331, %v858
        %v4343 = vmul.f32 %v4333, %v858
        %v4344 = vmul.f32 %v4335, %v858
        %v4345 = vmul.f32 %v4337, %v858
        %v4346 = vsub.f32 %v4314, %v4338
        %v4347 = vsub.f32 %v4315, %v4339
        %v4348 = vsub.f32 %v4316, %v4340
        %v4349 = vsub.f32 %v4317, %v4341
        %v4350 = vsub.f32 %v4318, %v4342
        %v4351 = vsub.f32 %v4319, %v4343
        %v4352 = vsub.f32 %v4320, %v4344
        %v4353 = vsub.f32 %v4321, %v4345
        %v4354 = vmul.f32 %v4346, %v4346
        %v4355 = vmul.f32 %v4347, %v4347
        %v4356 = vmul.f32 %v4348, %v4348
        %v4357 = vmul.f32 %v4349, %v4349
        %v4358 = vmul.f32 %v4350, %v4350
        %v4359 = vmul.f32 %v4351, %v4351
        %v4360 = vmul.f32 %v4352, %v4352
        %v4361 = vmul.f32 %v4353, %v4353
        %4362 = vadd.xlane.f32.xlu0 %v4354
        %v4363 = vpop.xlane.xlu0 %4362
        %4364 = vadd.xlane.f32.xlu0 %v4355
        %v4365 = vpop.xlane.xlu0 %4364
        %4366 = vadd.xlane.f32.xlu0 %v4356
        %v4367 = vpop.xlane.xlu0 %4366
        %4368 = vadd.xlane.f32.xlu0 %v4357
        %v4369 = vpop.xlane.xlu0 %4368
        %4370 = vadd.xlane.f32.xlu0 %v4358
        %v4371 = vpop.xlane.xlu0 %4370
        %4372 = vadd.xlane.f32.xlu0 %v4359
        %v4373 = vpop.xlane.xlu0 %4372
        %4374 = vadd.xlane.f32.xlu0 %v4360
        %v4375 = vpop.xlane.xlu0 %4374
        %4376 = vadd.xlane.f32.xlu0 %v4361
        %v4377 = vpop.xlane.xlu0 %4376
        %v4378 = vmul.f32 %v4363, %v858
        %v4379 = vmul.f32 %v4365, %v858
        %v4380 = vmul.f32 %v4367, %v858
        %v4381 = vmul.f32 %v4369, %v858
        %v4382 = vmul.f32 %v4371, %v858
        %v4383 = vmul.f32 %v4373, %v858
        %v4384 = vmul.f32 %v4375, %v858
        %v4385 = vmul.f32 %v4377, %v858
        %v4386 = vadd.f32 %v4378, 1e-06
        %v4387 = vadd.f32 %v4379, 1e-06
        %v4388 = vadd.f32 %v4380, 1e-06
        %v4389 = vadd.f32 %v4381, 1e-06
        %v4390 = vadd.f32 %v4382, 1e-06
        %v4391 = vadd.f32 %v4383, 1e-06
        %v4392 = vadd.f32 %v4384, 1e-06
        %v4393 = vadd.f32 %v4385, 1e-06
        %v4394 = vrsqrt.pop %v4386
        %v4395 = vrsqrt.pop %v4387
        %v4396 = vrsqrt.pop %v4388
        %v4397 = vrsqrt.pop %v4389
        %v4398 = vrsqrt.pop %v4390
        %v4399 = vrsqrt.pop %v4391
        %v4400 = vrsqrt.pop %v4392
        %v4401 = vrsqrt.pop %v4393
        %v4402 = vmul.f32 %v4346, %v4394
        %v4403 = vmul.f32 %v4347, %v4395
        %v4404 = vmul.f32 %v4348, %v4396
        %v4405 = vmul.f32 %v4349, %v4397
        %v4406 = vmul.f32 %v4350, %v4398
        %v4407 = vmul.f32 %v4351, %v4399
        %v4408 = vmul.f32 %v4352, %v4400
        %v4409 = vmul.f32 %v4353, %v4401
        %v4410 = vlaneseq
        %v4411 = vshrl.u32 %v4410, 7
        %v4412 = vsub.s32 2, %v4411
        %v4413 = vrot.slane %v840, %v4412
        %v4414 = vmul.f32 %v4402, %v4413
        %v4415 = vmul.f32 %v4403, %v4413
        %v4416 = vmul.f32 %v4404, %v4413
        %v4417 = vmul.f32 %v4405, %v4413
        %v4418 = vmul.f32 %v4406, %v4413
        %v4419 = vmul.f32 %v4407, %v4413
        %v4420 = vmul.f32 %v4408, %v4413
        %v4421 = vmul.f32 %v4409, %v4413
        %v4422 = vlaneseq
        %v4423 = vshrl.u32 %v4422, 7
        %v4424 = vsub.s32 3, %v4423
        %v4425 = vrot.slane %v840, %v4424
        %v4426 = vadd.f32 %v4414, %v4425
        %v4427 = vadd.f32 %v4415, %v4425
        %v4428 = vadd.f32 %v4416, %v4425
        %v4429 = vadd.f32 %v4417, %v4425
        %v4430 = vadd.f32 %v4418, %v4425
        %v4431 = vadd.f32 %v4419, %v4425
        %v4432 = vadd.f32 %v4420, %v4425
        %v4433 = vadd.f32 %v4421, %v4425
        %v4434 = vpack.c.bf16 %v4427, %v4426
        %v4435 = vpack.c.bf16 %v4429, %v4428
        %v4436 = vpack.c.bf16 %v4431, %v4430
        %v4437 = vpack.c.bf16 %v4433, %v4432
        %v4438 = vld [vmem:[%s667] sm:$0xff]
        %v4439 = vld [vmem:[%s667 + $0x8] sm:$0xff]
        %v4440 = vld [vmem:[%s667 + $0x10] sm:$0xff]
        %v4441 = vld [vmem:[%s667 + $0x18] sm:$0xff]
        %v4442 = vld [vmem:[%s667 + $0x20] sm:$0xff]
        %v4443 = vld [vmem:[%s667 + $0x28] sm:$0xff]
        %v4444 = vld [vmem:[%s667 + $0x30] sm:$0xff]
        %v4445 = vld [vmem:[%s667 + $0x38] sm:$0xff]
        %v4446 = vld [vmem:[%s667 + $0x40] sm:$0xff]
        %v4447 = vld [vmem:[%s667 + $0x48] sm:$0xff]
        %v4448 = vld [vmem:[%s667 + $0x50] sm:$0xff]
        %v4449 = vld [vmem:[%s667 + $0x58] sm:$0xff]
        %v4450 = vld [vmem:[%s667 + $0x60] sm:$0xff]
        %v4451 = vld [vmem:[%s667 + $0x68] sm:$0xff]
        %v4452 = vld [vmem:[%s667 + $0x70] sm:$0xff]
        %v4453 = vld [vmem:[%s667 + $0x78] sm:$0xff]
        %v4454 = vld [vmem:[%s667 + $0x80] sm:$0xff]
        %v4455 = vld [vmem:[%s667 + $0x88] sm:$0xff]
        %v4456 = vld [vmem:[%s667 + $0x90] sm:$0xff]
        %v4457 = vld [vmem:[%s667 + $0x98] sm:$0xff]
        %v4458 = vld [vmem:[%s667 + $0xa0] sm:$0xff]
        %v4459 = vld [vmem:[%s667 + $0xa8] sm:$0xff]
        %v4460 = vld [vmem:[%s667 + $0xb0] sm:$0xff]
        %v4461 = vld [vmem:[%s667 + $0xb8] sm:$0xff]
        %v4462 = vld [vmem:[%s667 + $0xc0] sm:$0xff]
        %v4463 = vld [vmem:[%s667 + $0xc8] sm:$0xff]
        %v4464 = vld [vmem:[%s667 + $0xd0] sm:$0xff]
        %v4465 = vld [vmem:[%s667 + $0xd8] sm:$0xff]
        %v4466 = vld [vmem:[%s667 + $0xe0] sm:$0xff]
        %v4467 = vld [vmem:[%s667 + $0xe8] sm:$0xff]
        %v4468 = vld [vmem:[%s667 + $0xf0] sm:$0xff]
        %v4469 = vld [vmem:[%s667 + $0xf8] sm:$0xff]
        %v4470 = vld [vmem:[%s648] sm:$0xf]
        %v4472 = vlaneseq
        %v4473 = vshrl.u32 %v4472, 7
        %v4474 = vsub.s32 0, %v4473
        %v4475 = vrot.slane %v4470, %v4474
        %v4476 = vlaneseq
        %v4477 = vshrl.u32 %v4476, 7
        %v4478 = vsub.s32 1, %v4477
        %v4479 = vrot.slane %v4470, %v4478
        %v4480 = vlaneseq
        %v4481 = vshrl.u32 %v4480, 7
        %v4482 = vsub.s32 2, %v4481
        %v4483 = vrot.slane %v4470, %v4482
        %v4484 = vlaneseq
        %v4485 = vshrl.u32 %v4484, 7
        %v4486 = vsub.s32 3, %v4485
        %v4487 = vrot.slane %v4470, %v4486
        %v4524 = vunpack.c.l.b16 %v4438
        %v4525 = vunpack.c.h.b16 %v4438
        %v4526 = vunpack.c.l.b16 %v4439
        %v4527 = vunpack.c.h.b16 %v4439
        %v4528 = vunpack.c.l.b16 %v4440
        %v4529 = vunpack.c.h.b16 %v4440
        %v4530 = vunpack.c.l.b16 %v4441
        %v4531 = vunpack.c.h.b16 %v4441
        %v4532 = vunpack.c.l.b16 %v4442
        %v4533 = vunpack.c.h.b16 %v4442
        %v4534 = vunpack.c.l.b16 %v4443
        %v4535 = vunpack.c.h.b16 %v4443
        %v4536 = vunpack.c.l.b16 %v4444
        %v4537 = vunpack.c.h.b16 %v4444
        %v4538 = vunpack.c.l.b16 %v4445
        %v4539 = vunpack.c.h.b16 %v4445
        %v4540 = vunpack.c.l.b16 %v4446
        %v4541 = vunpack.c.h.b16 %v4446
        %v4542 = vunpack.c.l.b16 %v4447
        %v4543 = vunpack.c.h.b16 %v4447
        %v4544 = vunpack.c.l.b16 %v4448
        %v4545 = vunpack.c.h.b16 %v4448
        %v4546 = vunpack.c.l.b16 %v4449
        %v4547 = vunpack.c.h.b16 %v4449
        %v4548 = vunpack.c.l.b16 %v4450
        %v4549 = vunpack.c.h.b16 %v4450
        %v4550 = vunpack.c.l.b16 %v4451
        %v4551 = vunpack.c.h.b16 %v4451
        %v4552 = vunpack.c.l.b16 %v4452
        %v4553 = vunpack.c.h.b16 %v4452
        %v4554 = vunpack.c.l.b16 %v4453
        %v4555 = vunpack.c.h.b16 %v4453
        %v4556 = vunpack.c.l.b16 %v4454
        %v4557 = vunpack.c.h.b16 %v4454
        %v4558 = vunpack.c.l.b16 %v4455
        %v4559 = vunpack.c.h.b16 %v4455
        %v4560 = vunpack.c.l.b16 %v4456
        %v4561 = vunpack.c.h.b16 %v4456
        %v4562 = vunpack.c.l.b16 %v4457
        %v4563 = vunpack.c.h.b16 %v4457
        %v4564 = vunpack.c.l.b16 %v4458
        %v4565 = vunpack.c.h.b16 %v4458
        %v4566 = vunpack.c.l.b16 %v4459
        %v4567 = vunpack.c.h.b16 %v4459
        %v4568 = vunpack.c.l.b16 %v4460
        %v4569 = vunpack.c.h.b16 %v4460
        %v4570 = vunpack.c.l.b16 %v4461
        %v4571 = vunpack.c.h.b16 %v4461
        %v4572 = vunpack.c.l.b16 %v4462
        %v4573 = vunpack.c.h.b16 %v4462
        %v4574 = vunpack.c.l.b16 %v4463
        %v4575 = vunpack.c.h.b16 %v4463
        %v4576 = vunpack.c.l.b16 %v4464
        %v4577 = vunpack.c.h.b16 %v4464
        %v4578 = vunpack.c.l.b16 %v4465
        %v4579 = vunpack.c.h.b16 %v4465
        %v4580 = vunpack.c.l.b16 %v4466
        %v4581 = vunpack.c.h.b16 %v4466
        %v4582 = vunpack.c.l.b16 %v4467
        %v4583 = vunpack.c.h.b16 %v4467
        %v4584 = vunpack.c.l.b16 %v4468
        %v4585 = vunpack.c.h.b16 %v4468
        %v4586 = vunpack.c.l.b16 %v4469
        %v4587 = vunpack.c.h.b16 %v4469
        %v4588 = vpack.c.b16 %v4528, %v4524
        %v4589 = vpack.c.b16 %v4529, %v4525
        %v4590 = vpack.c.b16 %v4530, %v4526
        %v4591 = vpack.c.b16 %v4531, %v4527
        %v4592 = vpack.c.b16 %v4536, %v4532
        %v4593 = vpack.c.b16 %v4537, %v4533
        %v4594 = vpack.c.b16 %v4538, %v4534
        %v4595 = vpack.c.b16 %v4539, %v4535
        %v4596 = vpack.c.b16 %v4544, %v4540
        %v4597 = vpack.c.b16 %v4545, %v4541
        %v4598 = vpack.c.b16 %v4546, %v4542
        %v4599 = vpack.c.b16 %v4547, %v4543
        %v4600 = vpack.c.b16 %v4552, %v4548
        %v4601 = vpack.c.b16 %v4553, %v4549
        %v4602 = vpack.c.b16 %v4554, %v4550
        %v4603 = vpack.c.b16 %v4555, %v4551
        %v4604 = vpack.c.b16 %v4560, %v4556
        %v4605 = vpack.c.b16 %v4561, %v4557
        %v4606 = vpack.c.b16 %v4562, %v4558
        %v4607 = vpack.c.b16 %v4563, %v4559
        %v4608 = vpack.c.b16 %v4568, %v4564
        %v4609 = vpack.c.b16 %v4569, %v4565
        %v4610 = vpack.c.b16 %v4570, %v4566
        %v4611 = vpack.c.b16 %v4571, %v4567
        %v4612 = vpack.c.b16 %v4576, %v4572
        %v4613 = vpack.c.b16 %v4577, %v4573
        %v4614 = vpack.c.b16 %v4578, %v4574
        %v4615 = vpack.c.b16 %v4579, %v4575
        %v4616 = vpack.c.b16 %v4584, %v4580
        %v4617 = vpack.c.b16 %v4585, %v4581
        %v4618 = vpack.c.b16 %v4586, %v4582
        %v4619 = vpack.c.b16 %v4587, %v4583
        %4652 = vmatprep.subr.bf16.mxu0 %v4589
        %4653 = vmatpush1.bf16.msra.mxu0 %v4588
        %4654 = vmatprep.subr.bf16.mxu0 %v4593
        %4655 = vmatpush1.bf16.msra.mxu0 %v4592
        %4656 = vmatprep.subr.bf16.mxu0 %v4597
        %4657 = vmatpush1.bf16.msra.mxu0 %v4596
        %4658 = vmatprep.subr.bf16.mxu0 %v4601
        %4659 = vmatpush1.bf16.msra.mxu0 %v4600
        %4660 = vmatprep.subr.bf16.mxu0 %v4605
        %4661 = vmatpush1.bf16.msra.mxu0 %v4604
        %4662 = vmatprep.subr.bf16.mxu0 %v4609
        %4663 = vmatpush1.bf16.msra.mxu0 %v4608
        %4664 = vmatprep.subr.bf16.mxu0 %v4613
        %4665 = vmatpush1.bf16.msra.mxu0 %v4612
        %4666 = vmatprep.subr.bf16.mxu0 %v4617
        %4667 = vmatpush1.bf16.msra.mxu0 %v4616
        %4668 = vmatprep.subr.bf16.mxu0 0
        %4669 = vmatpush1.bf16.msra.mxu0 0
        %4670 = vmatprep.subr.bf16.mxu0 0
        %4671 = vmatpush1.bf16.msra.mxu0 0
        %4672 = vmatprep.subr.bf16.mxu0 0
        %4673 = vmatpush1.bf16.msra.mxu0 0
        %4674 = vmatprep.subr.bf16.mxu0 0
        %4675 = vmatpush1.bf16.msra.mxu0 0
        %4676 = vmatprep.subr.bf16.mxu0 0
        %4677 = vmatpush1.bf16.msra.mxu0 0
        %4678 = vmatprep.subr.bf16.mxu0 0
        %4679 = vmatpush1.bf16.msra.mxu0 0
        %4680 = vmatprep.subr.bf16.mxu0 0
        %4681 = vmatpush1.bf16.msra.mxu0 0
        %4682 = vmatprep.subr.bf16.mxu0 0
        %4683 = vmatpush1.bf16.msra.mxu0 0
        %4684 = vmatprep.mubr.bf16.mxu0 0
        %4685 = vmatmul.mubr.bf16.gmra.mrb[0].mxu0 %v4434
        %v4686 = vpop.f32.mrb[0].mxu0
        %v4687 = vadd.f32 %v4475, %v4686
        %v4688 = vpop.f32.mrb[0].mxu0
        %v4689 = vadd.f32 %v4479, %v4688
        %v4690 = vpop.f32.mrb[0].mxu0
        %v4691 = vadd.f32 %v4475, %v4690
        %v4692 = vpop.f32.mrb[0].mxu0
        %v4693 = vadd.f32 %v4479, %v4692
        %4694 = vmatprep.mubr.bf16.mxu0 0
        %4695 = vmatmul.mubr.bf16.gmra.mrb[0].mxu0 %v4435
        %v4696 = vpop.f32.mrb[0].mxu0
        %v4697 = vadd.f32 %v4475, %v4696
        %v4698 = vpop.f32.mrb[0].mxu0
        %v4699 = vadd.f32 %v4479, %v4698
        %v4700 = vpop.f32.mrb[0].mxu0
        %v4701 = vadd.f32 %v4475, %v4700
        %v4702 = vpop.f32.mrb[0].mxu0
        %v4703 = vadd.f32 %v4479, %v4702
        %4704 = vmatprep.mubr.bf16.mxu0 0
        %4705 = vmatmul.mubr.bf16.gmra.mrb[0].mxu0 %v4436
        %v4706 = vpop.f32.mrb[0].mxu0
        %v4707 = vadd.f32 %v4475, %v4706
        %v4708 = vpop.f32.mrb[0].mxu0
        %v4709 = vadd.f32 %v4479, %v4708
        %v4710 = vpop.f32.mrb[0].mxu0
        %v4711 = vadd.f32 %v4475, %v4710
        %v4712 = vpop.f32.mrb[0].mxu0
        %v4713 = vadd.f32 %v4479, %v4712
        %4714 = vmatprep.mubr.bf16.mxu0 0
        %4715 = vmatmul.mubr.bf16.gmra.mrb[0].mxu0 %v4437
        %v4716 = vpop.f32.mrb[0].mxu0
        %v4717 = vadd.f32 %v4475, %v4716
        %v4718 = vpop.f32.mrb[0].mxu0
        %v4719 = vadd.f32 %v4479, %v4718
        %v4720 = vpop.f32.mrb[0].mxu0
        %v4721 = vadd.f32 %v4475, %v4720
        %v4722 = vpop.f32.mrb[0].mxu0
        %v4723 = vadd.f32 %v4479, %v4722
        %4724 = vdwg.mxu0
        %4725 = vmatprep.subr.bf16.mxu0 %v4591
        %4726 = vmatpush1.bf16.msra.mxu0 %v4590
        %4727 = vmatprep.subr.bf16.mxu0 %v4595
        %4728 = vmatpush1.bf16.msra.mxu0 %v4594
        %4729 = vmatprep.subr.bf16.mxu0 %v4599
        %4730 = vmatpush1.bf16.msra.mxu0 %v4598
        %4731 = vmatprep.subr.bf16.mxu0 %v4603
        %4732 = vmatpush1.bf16.msra.mxu0 %v4602
        %4733 = vmatprep.subr.bf16.mxu0 %v4607
        %4734 = vmatpush1.bf16.msra.mxu0 %v4606
        %4735 = vmatprep.subr.bf16.mxu0 %v4611
        %4736 = vmatpush1.bf16.msra.mxu0 %v4610
        %4737 = vmatprep.subr.bf16.mxu0 %v4615
        %4738 = vmatpush1.bf16.msra.mxu0 %v4614
        %4739 = vmatprep.subr.bf16.mxu0 %v4619
        %4740 = vmatpush1.bf16.msra.mxu0 %v4618
        %4741 = vmatprep.subr.bf16.mxu0 0
        %4742 = vmatpush1.bf16.msra.mxu0 0
        %4743 = vmatprep.subr.bf16.mxu0 0
        %4744 = vmatpush1.bf16.msra.mxu0 0
        %4745 = vmatprep.subr.bf16.mxu0 0
        %4746 = vmatpush1.bf16.msra.mxu0 0
        %4747 = vmatprep.subr.bf16.mxu0 0
        %4748 = vmatpush1.bf16.msra.mxu0 0
        %4749 = vmatprep.subr.bf16.mxu0 0
        %4750 = vmatpush1.bf16.msra.mxu0 0
        %4751 = vmatprep.subr.bf16.mxu0 0
        %4752 = vmatpush1.bf16.msra.mxu0 0
        %4753 = vmatprep.subr.bf16.mxu0 0
        %4754 = vmatpush1.bf16.msra.mxu0 0
        %4755 = vmatprep.subr.bf16.mxu0 0
        %4756 = vmatpush1.bf16.msra.mxu0 0
        %4757 = vmatprep.mubr.bf16.mxu0 0
        %4758 = vmatmul.mubr.bf16.gmra.mrb[0].mxu0 %v4434
        %v4759 = vpop.f32.mrb[0].mxu0
        %v4760 = vadd.f32 %v4483, %v4759
        %v4761 = vpop.f32.mrb[0].mxu0
        %v4762 = vadd.f32 %v4487, %v4761
        %v4763 = vpop.f32.mrb[0].mxu0
        %v4764 = vadd.f32 %v4483, %v4763
        %v4765 = vpop.f32.mrb[0].mxu0
        %v4766 = vadd.f32 %v4487, %v4765
        %4767 = vmatprep.mubr.bf16.mxu0 0
        %4768 = vmatmul.mubr.bf16.gmra.mrb[0].mxu0 %v4435
        %v4769 = vpop.f32.mrb[0].mxu0
        %v4770 = vadd.f32 %v4483, %v4769
        %v4771 = vpop.f32.mrb[0].mxu0
        %v4772 = vadd.f32 %v4487, %v4771
        %v4773 = vpop.f32.mrb[0].mxu0
        %v4774 = vadd.f32 %v4483, %v4773
        %v4775 = vpop.f32.mrb[0].mxu0
        %v4776 = vadd.f32 %v4487, %v4775
        %4777 = vmatprep.mubr.bf16.mxu0 0
        %4778 = vmatmul.mubr.bf16.gmra.mrb[0].mxu0 %v4436
        %v4779 = vpop.f32.mrb[0].mxu0
        %v4780 = vadd.f32 %v4483, %v4779
        %v4781 = vpop.f32.mrb[0].mxu0
        %v4782 = vadd.f32 %v4487, %v4781
        %v4783 = vpop.f32.mrb[0].mxu0
        %v4784 = vadd.f32 %v4483, %v4783
        %v4785 = vpop.f32.mrb[0].mxu0
        %v4786 = vadd.f32 %v4487, %v4785
        %4787 = vmatprep.mubr.bf16.mxu0 0
        %4788 = vmatmul.mubr.bf16.gmra.mrb[0].mxu0 %v4437
        %v4789 = vpop.f32.mrb[0].mxu0
        %v4790 = vadd.f32 %v4483, %v4789
        %v4791 = vpop.f32.mrb[0].mxu0
        %v4792 = vadd.f32 %v4487, %v4791
        %v4793 = vpop.f32.mrb[0].mxu0
        %v4794 = vadd.f32 %v4483, %v4793
        %v4795 = vpop.f32.mrb[0].mxu0
        %v4796 = vadd.f32 %v4487, %v4795
        %4797 = vdwg.mxu0
        %v4798 = vmul.f32 %v4687, %v4687
        %v4799 = vmul.f32 %v4689, %v4689
        %v4800 = vmul.f32 %v4760, %v4760
        %v4801 = vmul.f32 %v4762, %v4762
        %v4802 = vmul.f32 %v4691, %v4691
        %v4803 = vmul.f32 %v4693, %v4693
        %v4804 = vmul.f32 %v4764, %v4764
        %v4805 = vmul.f32 %v4766, %v4766
        %v4806 = vmul.f32 %v4697, %v4697
        %v4807 = vmul.f32 %v4699, %v4699
        %v4808 = vmul.f32 %v4770, %v4770
        %v4809 = vmul.f32 %v4772, %v4772
        %v4810 = vmul.f32 %v4701, %v4701
        %v4811 = vmul.f32 %v4703, %v4703
        %v4812 = vmul.f32 %v4774, %v4774
        %v4813 = vmul.f32 %v4776, %v4776
        %v4814 = vmul.f32 %v4707, %v4707
        %v4815 = vmul.f32 %v4709, %v4709
        %v4816 = vmul.f32 %v4780, %v4780
        %v4817 = vmul.f32 %v4782, %v4782
        %v4818 = vmul.f32 %v4711, %v4711
        %v4819 = vmul.f32 %v4713, %v4713
        %v4820 = vmul.f32 %v4784, %v4784
        %v4821 = vmul.f32 %v4786, %v4786
        %v4822 = vmul.f32 %v4717, %v4717
        %v4823 = vmul.f32 %v4719, %v4719
        %v4824 = vmul.f32 %v4790, %v4790
        %v4825 = vmul.f32 %v4792, %v4792
        %v4826 = vmul.f32 %v4721, %v4721
        %v4827 = vmul.f32 %v4723, %v4723
        %v4828 = vmul.f32 %v4794, %v4794
        %v4829 = vmul.f32 %v4796, %v4796
        %v4830 = vmul.f32 %v4687, %v4798
        %v4831 = vmul.f32 %v4689, %v4799
        %v4832 = vmul.f32 %v4760, %v4800
        %v4833 = vmul.f32 %v4762, %v4801
        %v4834 = vmul.f32 %v4691, %v4802
        %v4835 = vmul.f32 %v4693, %v4803
        %v4836 = vmul.f32 %v4764, %v4804
        %v4837 = vmul.f32 %v4766, %v4805
        %v4838 = vmul.f32 %v4697, %v4806
        %v4839 = vmul.f32 %v4699, %v4807
        %v4840 = vmul.f32 %v4770, %v4808
        %v4841 = vmul.f32 %v4772, %v4809
        %v4842 = vmul.f32 %v4701, %v4810
        %v4843 = vmul.f32 %v4703, %v4811
        %v4844 = vmul.f32 %v4774, %v4812
        %v4845 = vmul.f32 %v4776, %v4813
        %v4846 = vmul.f32 %v4707, %v4814
        %v4847 = vmul.f32 %v4709, %v4815
        %v4848 = vmul.f32 %v4780, %v4816
        %v4849 = vmul.f32 %v4782, %v4817
        %v4850 = vmul.f32 %v4711, %v4818
        %v4851 = vmul.f32 %v4713, %v4819
        %v4852 = vmul.f32 %v4784, %v4820
        %v4853 = vmul.f32 %v4786, %v4821
        %v4854 = vmul.f32 %v4717, %v4822
        %v4855 = vmul.f32 %v4719, %v4823
        %v4856 = vmul.f32 %v4790, %v4824
        %v4857 = vmul.f32 %v4792, %v4825
        %v4858 = vmul.f32 %v4721, %v4826
        %v4859 = vmul.f32 %v4723, %v4827
        %v4860 = vmul.f32 %v4794, %v4828
        %v4861 = vmul.f32 %v4796, %v4829
        %v4862 = vmul.f32 %v4830, 0.044715
        %v4863 = vmul.f32 %v4831, 0.044715
        %v4864 = vmul.f32 %v4832, 0.044715
        %v4865 = vmul.f32 %v4833, 0.044715
        %v4866 = vmul.f32 %v4834, 0.044715
        %v4867 = vmul.f32 %v4835, 0.044715
        %v4868 = vmul.f32 %v4836, 0.044715
        %v4869 = vmul.f32 %v4837, 0.044715
        %v4870 = vmul.f32 %v4838, 0.044715
        %v4871 = vmul.f32 %v4839, 0.044715
        %v4872 = vmul.f32 %v4840, 0.044715
        %v4873 = vmul.f32 %v4841, 0.044715
        %v4874 = vmul.f32 %v4842, 0.044715
        %v4875 = vmul.f32 %v4843, 0.044715
        %v4876 = vmul.f32 %v4844, 0.044715
        %v4877 = vmul.f32 %v4845, 0.044715
        %v4878 = vmul.f32 %v4846, 0.044715
        %v4879 = vmul.f32 %v4847, 0.044715
        %v4880 = vmul.f32 %v4848, 0.044715
        %v4881 = vmul.f32 %v4849, 0.044715
        %v4882 = vmul.f32 %v4850, 0.044715
        %v4883 = vmul.f32 %v4851, 0.044715
        %v4884 = vmul.f32 %v4852, 0.044715
        %v4885 = vmul.f32 %v4853, 0.044715
        %v4886 = vmul.f32 %v4854, 0.044715
        %v4887 = vmul.f32 %v4855, 0.044715
        %v4888 = vmul.f32 %v4856, 0.044715
        %v4889 = vmul.f32 %v4857, 0.044715
        %v4890 = vmul.f32 %v4858, 0.044715
        %v4891 = vmul.f32 %v4859, 0.044715
        %v4892 = vmul.f32 %v4860, 0.044715
        %v4893 = vmul.f32 %v4861, 0.044715
        %v4894 = vadd.f32 %v4687, %v4862
        %v4895 = vadd.f32 %v4689, %v4863
        %v4896 = vadd.f32 %v4760, %v4864
        %v4897 = vadd.f32 %v4762, %v4865
        %v4898 = vadd.f32 %v4691, %v4866
        %v4899 = vadd.f32 %v4693, %v4867
        %v4900 = vadd.f32 %v4764, %v4868
        %v4901 = vadd.f32 %v4766, %v4869
        %v4902 = vadd.f32 %v4697, %v4870
        %v4903 = vadd.f32 %v4699, %v4871
        %v4904 = vadd.f32 %v4770, %v4872
        %v4905 = vadd.f32 %v4772, %v4873
        %v4906 = vadd.f32 %v4701, %v4874
        %v4907 = vadd.f32 %v4703, %v4875
        %v4908 = vadd.f32 %v4774, %v4876
        %v4909 = vadd.f32 %v4776, %v4877
        %v4910 = vadd.f32 %v4707, %v4878
        %v4911 = vadd.f32 %v4709, %v4879
        %v4912 = vadd.f32 %v4780, %v4880
        %v4913 = vadd.f32 %v4782, %v4881
        %v4914 = vadd.f32 %v4711, %v4882
        %v4915 = vadd.f32 %v4713, %v4883
        %v4916 = vadd.f32 %v4784, %v4884
        %v4917 = vadd.f32 %v4786, %v4885
        %v4918 = vadd.f32 %v4717, %v4886
        %v4919 = vadd.f32 %v4719, %v4887
        %v4920 = vadd.f32 %v4790, %v4888
        %v4921 = vadd.f32 %v4792, %v4889
        %v4922 = vadd.f32 %v4721, %v4890
        %v4923 = vadd.f32 %v4723, %v4891
        %v4924 = vadd.f32 %v4794, %v4892
        %v4925 = vadd.f32 %v4796, %v4893
        %v4926 = vmul.f32 %v4894, 0.7978846
        %v4927 = vmul.f32 %v4895, 0.7978846
        %v4928 = vmul.f32 %v4896, 0.7978846
        %v4929 = vmul.f32 %v4897, 0.7978846
        %v4930 = vmul.f32 %v4898, 0.7978846
        %v4931 = vmul.f32 %v4899, 0.7978846
        %v4932 = vmul.f32 %v4900, 0.7978846
        %v4933 = vmul.f32 %v4901, 0.7978846
        %v4934 = vmul.f32 %v4902, 0.7978846
        %v4935 = vmul.f32 %v4903, 0.7978846
        %v4936 = vmul.f32 %v4904, 0.7978846
        %v4937 = vmul.f32 %v4905, 0.7978846
        %v4938 = vmul.f32 %v4906, 0.7978846
        %v4939 = vmul.f32 %v4907, 0.7978846
        %v4940 = vmul.f32 %v4908, 0.7978846
        %v4941 = vmul.f32 %v4909, 0.7978846
        %v4942 = vmul.f32 %v4910, 0.7978846
        %v4943 = vmul.f32 %v4911, 0.7978846
        %v4944 = vmul.f32 %v4912, 0.7978846
        %v4945 = vmul.f32 %v4913, 0.7978846
        %v4946 = vmul.f32 %v4914, 0.7978846
        %v4947 = vmul.f32 %v4915, 0.7978846
        %v4948 = vmul.f32 %v4916, 0.7978846
        %v4949 = vmul.f32 %v4917, 0.7978846
        %v4950 = vmul.f32 %v4918, 0.7978846
        %v4951 = vmul.f32 %v4919, 0.7978846
        %v4952 = vmul.f32 %v4920, 0.7978846
        %v4953 = vmul.f32 %v4921, 0.7978846
        %v4954 = vmul.f32 %v4922, 0.7978846
        %v4955 = vmul.f32 %v4923, 0.7978846
        %v4956 = vmul.f32 %v4924, 0.7978846
        %v4957 = vmul.f32 %v4925, 0.7978846
        %v4958 = vtanh.pop %v4926
        %v4959 = vtanh.pop %v4927
        %v4960 = vtanh.pop %v4928
        %v4961 = vtanh.pop %v4929
        %v4962 = vtanh.pop %v4930
        %v4963 = vtanh.pop %v4931
        %v4964 = vtanh.pop %v4932
        %v4965 = vtanh.pop %v4933
        %v4966 = vtanh.pop %v4934
        %v4967 = vtanh.pop %v4935
        %v4968 = vtanh.pop %v4936
        %v4969 = vtanh.pop %v4937
        %v4970 = vtanh.pop %v4938
        %v4971 = vtanh.pop %v4939
        %v4972 = vtanh.pop %v4940
        %v4973 = vtanh.pop %v4941
        %v4974 = vtanh.pop %v4942
        %v4975 = vtanh.pop %v4943
        %v4976 = vtanh.pop %v4944
        %v4977 = vtanh.pop %v4945
        %v4978 = vtanh.pop %v4946
        %v4979 = vtanh.pop %v4947
        %v4980 = vtanh.pop %v4948
        %v4981 = vtanh.pop %v4949
        %v4982 = vtanh.pop %v4950
        %v4983 = vtanh.pop %v4951
        %v4984 = vtanh.pop %v4952
        %v4985 = vtanh.pop %v4953
        %v4986 = vtanh.pop %v4954
        %v4987 = vtanh.pop %v4955
        %v4988 = vtanh.pop %v4956
        %v4989 = vtanh.pop %v4957
        %v4990 = vadd.f32 %v4958, 1.0
        %v4991 = vadd.f32 %v4959, 1.0
        %v4992 = vadd.f32 %v4960, 1.0
        %v4993 = vadd.f32 %v4961, 1.0
        %v4994 = vadd.f32 %v4962, 1.0
        %v4995 = vadd.f32 %v4963, 1.0
        %v4996 = vadd.f32 %v4964, 1.0
        %v4997 = vadd.f32 %v4965, 1.0
        %v4998 = vadd.f32 %v4966, 1.0
        %v4999 = vadd.f32 %v4967, 1.0
        %v5000 = vadd.f32 %v4968, 1.0
        %v5001 = vadd.f32 %v4969, 1.0
        %v5002 = vadd.f32 %v4970, 1.0
        %v5003 = vadd.f32 %v4971, 1.0
        %v5004 = vadd.f32 %v4972, 1.0
        %v5005 = vadd.f32 %v4973, 1.0
        %v5006 = vadd.f32 %v4974, 1.0
        %v5007 = vadd.f32 %v4975, 1.0
        %v5008 = vadd.f32 %v4976, 1.0
        %v5009 = vadd.f32 %v4977, 1.0
        %v5010 = vadd.f32 %v4978, 1.0
        %v5011 = vadd.f32 %v4979, 1.0
        %v5012 = vadd.f32 %v4980, 1.0
        %v5013 = vadd.f32 %v4981, 1.0
        %v5014 = vadd.f32 %v4982, 1.0
        %v5015 = vadd.f32 %v4983, 1.0
        %v5016 = vadd.f32 %v4984, 1.0
        %v5017 = vadd.f32 %v4985, 1.0
        %v5018 = vadd.f32 %v4986, 1.0
        %v5019 = vadd.f32 %v4987, 1.0
        %v5020 = vadd.f32 %v4988, 1.0
        %v5021 = vadd.f32 %v4989, 1.0
        %v5022 = vmul.f32 %v4990, 0.5
        %v5023 = vmul.f32 %v4991, 0.5
        %v5024 = vmul.f32 %v4992, 0.5
        %v5025 = vmul.f32 %v4993, 0.5
        %v5026 = vmul.f32 %v4994, 0.5
        %v5027 = vmul.f32 %v4995, 0.5
        %v5028 = vmul.f32 %v4996, 0.5
        %v5029 = vmul.f32 %v4997, 0.5
        %v5030 = vmul.f32 %v4998, 0.5
        %v5031 = vmul.f32 %v4999, 0.5
        %v5032 = vmul.f32 %v5000, 0.5
        %v5033 = vmul.f32 %v5001, 0.5
        %v5034 = vmul.f32 %v5002, 0.5
        %v5035 = vmul.f32 %v5003, 0.5
        %v5036 = vmul.f32 %v5004, 0.5
        %v5037 = vmul.f32 %v5005, 0.5
        %v5038 = vmul.f32 %v5006, 0.5
        %v5039 = vmul.f32 %v5007, 0.5
        %v5040 = vmul.f32 %v5008, 0.5
        %v5041 = vmul.f32 %v5009, 0.5
        %v5042 = vmul.f32 %v5010, 0.5
        %v5043 = vmul.f32 %v5011, 0.5
        %v5044 = vmul.f32 %v5012, 0.5
        %v5045 = vmul.f32 %v5013, 0.5
        %v5046 = vmul.f32 %v5014, 0.5
        %v5047 = vmul.f32 %v5015, 0.5
        %v5048 = vmul.f32 %v5016, 0.5
        %v5049 = vmul.f32 %v5017, 0.5
        %v5050 = vmul.f32 %v5018, 0.5
        %v5051 = vmul.f32 %v5019, 0.5
        %v5052 = vmul.f32 %v5020, 0.5
        %v5053 = vmul.f32 %v5021, 0.5
        %v5054 = vmul.f32 %v4687, %v5022
        %v5055 = vmul.f32 %v4689, %v5023
        %v5056 = vmul.f32 %v4760, %v5024
        %v5057 = vmul.f32 %v4762, %v5025
        %v5058 = vmul.f32 %v4691, %v5026
        %v5059 = vmul.f32 %v4693, %v5027
        %v5060 = vmul.f32 %v4764, %v5028
        %v5061 = vmul.f32 %v4766, %v5029
        %v5062 = vmul.f32 %v4697, %v5030
        %v5063 = vmul.f32 %v4699, %v5031
        %v5064 = vmul.f32 %v4770, %v5032
        %v5065 = vmul.f32 %v4772, %v5033
        %v5066 = vmul.f32 %v4701, %v5034
        %v5067 = vmul.f32 %v4703, %v5035
        %v5068 = vmul.f32 %v4774, %v5036
        %v5069 = vmul.f32 %v4776, %v5037
        %v5070 = vmul.f32 %v4707, %v5038
        %v5071 = vmul.f32 %v4709, %v5039
        %v5072 = vmul.f32 %v4780, %v5040
        %v5073 = vmul.f32 %v4782, %v5041
        %v5074 = vmul.f32 %v4711, %v5042
        %v5075 = vmul.f32 %v4713, %v5043
        %v5076 = vmul.f32 %v4784, %v5044
        %v5077 = vmul.f32 %v4786, %v5045
        %v5078 = vmul.f32 %v4717, %v5046
        %v5079 = vmul.f32 %v4719, %v5047
        %v5080 = vmul.f32 %v4790, %v5048
        %v5081 = vmul.f32 %v4792, %v5049
        %v5082 = vmul.f32 %v4721, %v5050
        %v5083 = vmul.f32 %v4723, %v5051
        %v5084 = vmul.f32 %v4794, %v5052
        %v5085 = vmul.f32 %v4796, %v5053
        %v5086 = vpack.c.bf16 %v5058, %v5054
        %v5087 = vpack.c.bf16 %v5059, %v5055
        %v5088 = vpack.c.bf16 %v5060, %v5056
        %v5089 = vpack.c.bf16 %v5061, %v5057
        %v5090 = vpack.c.bf16 %v5066, %v5062
        %v5091 = vpack.c.bf16 %v5067, %v5063
        %v5092 = vpack.c.bf16 %v5068, %v5064
        %v5093 = vpack.c.bf16 %v5069, %v5065
        %v5094 = vpack.c.bf16 %v5074, %v5070
        %v5095 = vpack.c.bf16 %v5075, %v5071
        %v5096 = vpack.c.bf16 %v5076, %v5072
        %v5097 = vpack.c.bf16 %v5077, %v5073
        %v5098 = vpack.c.bf16 %v5082, %v5078
        %v5099 = vpack.c.bf16 %v5083, %v5079
        %v5100 = vpack.c.bf16 %v5084, %v5080
        %v5101 = vpack.c.bf16 %v5085, %v5081
        %v5102 = vld [vmem:[%s672] sm:$0xf]
        %v5103 = vld [vmem:[%s672 + $0x4] sm:$0xf]
        %v5104 = vld [vmem:[%s672 + $0x8] sm:$0xf]
        %v5105 = vld [vmem:[%s672 + $0xc] sm:$0xf]
        %v5106 = vld [vmem:[%s672 + $0x10] sm:$0xf]
        %v5107 = vld [vmem:[%s672 + $0x14] sm:$0xf]
        %v5108 = vld [vmem:[%s672 + $0x18] sm:$0xf]
        %v5109 = vld [vmem:[%s672 + $0x1c] sm:$0xf]
        %v5110 = vld [vmem:[%s672 + $0x20] sm:$0xf]
        %v5111 = vld [vmem:[%s672 + $0x24] sm:$0xf]
        %v5112 = vld [vmem:[%s672 + $0x28] sm:$0xf]
        %v5113 = vld [vmem:[%s672 + $0x2c] sm:$0xf]
        %v5114 = vld [vmem:[%s672 + $0x30] sm:$0xf]
        %v5115 = vld [vmem:[%s672 + $0x34] sm:$0xf]
        %v5116 = vld [vmem:[%s672 + $0x38] sm:$0xf]
        %v5117 = vld [vmem:[%s672 + $0x3c] sm:$0xf]
        %v5118 = vld [vmem:[%s672 + $0x40] sm:$0xf]
        %v5119 = vld [vmem:[%s672 + $0x44] sm:$0xf]
        %v5120 = vld [vmem:[%s672 + $0x48] sm:$0xf]
        %v5121 = vld [vmem:[%s672 + $0x4c] sm:$0xf]
        %v5122 = vld [vmem:[%s672 + $0x50] sm:$0xf]
        %v5123 = vld [vmem:[%s672 + $0x54] sm:$0xf]
        %v5124 = vld [vmem:[%s672 + $0x58] sm:$0xf]
        %v5125 = vld [vmem:[%s672 + $0x5c] sm:$0xf]
        %v5126 = vld [vmem:[%s672 + $0x60] sm:$0xf]
        %v5127 = vld [vmem:[%s672 + $0x64] sm:$0xf]
        %v5128 = vld [vmem:[%s672 + $0x68] sm:$0xf]
        %v5129 = vld [vmem:[%s672 + $0x6c] sm:$0xf]
        %v5130 = vld [vmem:[%s672 + $0x70] sm:$0xf]
        %v5131 = vld [vmem:[%s672 + $0x74] sm:$0xf]
        %v5132 = vld [vmem:[%s672 + $0x78] sm:$0xf]
        %v5133 = vld [vmem:[%s672 + $0x7c] sm:$0xf]
        %v5134 = vld [vmem:[%s672 + $0x80] sm:$0xf]
        %v5135 = vld [vmem:[%s672 + $0x84] sm:$0xf]
        %v5136 = vld [vmem:[%s672 + $0x88] sm:$0xf]
        %v5137 = vld [vmem:[%s672 + $0x8c] sm:$0xf]
        %v5138 = vld [vmem:[%s672 + $0x90] sm:$0xf]
        %v5139 = vld [vmem:[%s672 + $0x94] sm:$0xf]
        %v5140 = vld [vmem:[%s672 + $0x98] sm:$0xf]
        %v5141 = vld [vmem:[%s672 + $0x9c] sm:$0xf]
        %v5142 = vld [vmem:[%s672 + $0xa0] sm:$0xf]
        %v5143 = vld [vmem:[%s672 + $0xa4] sm:$0xf]
        %v5144 = vld [vmem:[%s672 + $0xa8] sm:$0xf]
        %v5145 = vld [vmem:[%s672 + $0xac] sm:$0xf]
        %v5146 = vld [vmem:[%s672 + $0xb0] sm:$0xf]
        %v5147 = vld [vmem:[%s672 + $0xb4] sm:$0xf]
        %v5148 = vld [vmem:[%s672 + $0xb8] sm:$0xf]
        %v5149 = vld [vmem:[%s672 + $0xbc] sm:$0xf]
        %v5150 = vld [vmem:[%s672 + $0xc0] sm:$0xf]
        %v5151 = vld [vmem:[%s672 + $0xc4] sm:$0xf]
        %v5152 = vld [vmem:[%s672 + $0xc8] sm:$0xf]
        %v5153 = vld [vmem:[%s672 + $0xcc] sm:$0xf]
        %v5154 = vld [vmem:[%s672 + $0xd0] sm:$0xf]
        %v5155 = vld [vmem:[%s672 + $0xd4] sm:$0xf]
        %v5156 = vld [vmem:[%s672 + $0xd8] sm:$0xf]
        %v5157 = vld [vmem:[%s672 + $0xdc] sm:$0xf]
        %v5158 = vld [vmem:[%s672 + $0xe0] sm:$0xf]
        %v5159 = vld [vmem:[%s672 + $0xe4] sm:$0xf]
        %v5160 = vld [vmem:[%s672 + $0xe8] sm:$0xf]
        %v5161 = vld [vmem:[%s672 + $0xec] sm:$0xf]
        %v5162 = vld [vmem:[%s672 + $0xf0] sm:$0xf]
        %v5163 = vld [vmem:[%s672 + $0xf4] sm:$0xf]
        %v5164 = vld [vmem:[%s672 + $0xf8] sm:$0xf]
        %v5165 = vld [vmem:[%s672 + $0xfc] sm:$0xf]
        %v5230 = vunpack.c.l.b16 %v5102
        %v5231 = vunpack.c.l.b16 %v5103
        %v5232 = vunpack.c.l.b16 %v5104
        %v5233 = vunpack.c.l.b16 %v5105
        %v5234 = vunpack.c.l.b16 %v5106
        %v5235 = vunpack.c.l.b16 %v5107
        %v5236 = vunpack.c.l.b16 %v5108
        %v5237 = vunpack.c.l.b16 %v5109
        %v5238 = vunpack.c.l.b16 %v5110
        %v5239 = vunpack.c.l.b16 %v5111
        %v5240 = vunpack.c.l.b16 %v5112
        %v5241 = vunpack.c.l.b16 %v5113
        %v5242 = vunpack.c.l.b16 %v5114
        %v5243 = vunpack.c.l.b16 %v5115
        %v5244 = vunpack.c.l.b16 %v5116
        %v5245 = vunpack.c.l.b16 %v5117
        %v5246 = vunpack.c.l.b16 %v5118
        %v5247 = vunpack.c.l.b16 %v5119
        %v5248 = vunpack.c.l.b16 %v5120
        %v5249 = vunpack.c.l.b16 %v5121
        %v5250 = vunpack.c.l.b16 %v5122
        %v5251 = vunpack.c.l.b16 %v5123
        %v5252 = vunpack.c.l.b16 %v5124
        %v5253 = vunpack.c.l.b16 %v5125
        %v5254 = vunpack.c.l.b16 %v5126
        %v5255 = vunpack.c.l.b16 %v5127
        %v5256 = vunpack.c.l.b16 %v5128
        %v5257 = vunpack.c.l.b16 %v5129
        %v5258 = vunpack.c.l.b16 %v5130
        %v5259 = vunpack.c.l.b16 %v5131
        %v5260 = vunpack.c.l.b16 %v5132
        %v5261 = vunpack.c.l.b16 %v5133
        %v5262 = vunpack.c.l.b16 %v5134
        %v5263 = vunpack.c.l.b16 %v5135
        %v5264 = vunpack.c.l.b16 %v5136
        %v5265 = vunpack.c.l.b16 %v5137
        %v5266 = vunpack.c.l.b16 %v5138
        %v5267 = vunpack.c.l.b16 %v5139
        %v5268 = vunpack.c.l.b16 %v5140
        %v5269 = vunpack.c.l.b16 %v5141
        %v5270 = vunpack.c.l.b16 %v5142
        %v5271 = vunpack.c.l.b16 %v5143
        %v5272 = vunpack.c.l.b16 %v5144
        %v5273 = vunpack.c.l.b16 %v5145
        %v5274 = vunpack.c.l.b16 %v5146
        %v5275 = vunpack.c.l.b16 %v5147
        %v5276 = vunpack.c.l.b16 %v5148
        %v5277 = vunpack.c.l.b16 %v5149
        %v5278 = vunpack.c.l.b16 %v5150
        %v5279 = vunpack.c.l.b16 %v5151
        %v5280 = vunpack.c.l.b16 %v5152
        %v5281 = vunpack.c.l.b16 %v5153
        %v5282 = vunpack.c.l.b16 %v5154
        %v5283 = vunpack.c.l.b16 %v5155
        %v5284 = vunpack.c.l.b16 %v5156
        %v5285 = vunpack.c.l.b16 %v5157
        %v5286 = vunpack.c.l.b16 %v5158
        %v5287 = vunpack.c.l.b16 %v5159
        %v5288 = vunpack.c.l.b16 %v5160
        %v5289 = vunpack.c.l.b16 %v5161
        %v5290 = vunpack.c.l.b16 %v5162
        %v5291 = vunpack.c.l.b16 %v5163
        %v5292 = vunpack.c.l.b16 %v5164
        %v5293 = vunpack.c.l.b16 %v5165
        %v5294 = vpack.c.b16 %v5231, %v5230
        %v5295 = vpack.c.b16 %v5233, %v5232
        %v5296 = vpack.c.b16 %v5235, %v5234
        %v5297 = vpack.c.b16 %v5237, %v5236
        %v5298 = vpack.c.b16 %v5239, %v5238
        %v5299 = vpack.c.b16 %v5241, %v5240
        %v5300 = vpack.c.b16 %v5243, %v5242
        %v5301 = vpack.c.b16 %v5245, %v5244
        %v5302 = vpack.c.b16 %v5247, %v5246
        %v5303 = vpack.c.b16 %v5249, %v5248
        %v5304 = vpack.c.b16 %v5251, %v5250
        %v5305 = vpack.c.b16 %v5253, %v5252
        %v5306 = vpack.c.b16 %v5255, %v5254
        %v5307 = vpack.c.b16 %v5257, %v5256
        %v5308 = vpack.c.b16 %v5259, %v5258
        %v5309 = vpack.c.b16 %v5261, %v5260
        %v5310 = vpack.c.b16 %v5263, %v5262
        %v5311 = vpack.c.b16 %v5265, %v5264
        %v5312 = vpack.c.b16 %v5267, %v5266
        %v5313 = vpack.c.b16 %v5269, %v5268
        %v5314 = vpack.c.b16 %v5271, %v5270
        %v5315 = vpack.c.b16 %v5273, %v5272
        %v5316 = vpack.c.b16 %v5275, %v5274
        %v5317 = vpack.c.b16 %v5277, %v5276
        %v5318 = vpack.c.b16 %v5279, %v5278
        %v5319 = vpack.c.b16 %v5281, %v5280
        %v5320 = vpack.c.b16 %v5283, %v5282
        %v5321 = vpack.c.b16 %v5285, %v5284
        %v5322 = vpack.c.b16 %v5287, %v5286
        %v5323 = vpack.c.b16 %v5289, %v5288
        %v5324 = vpack.c.b16 %v5291, %v5290
        %v5325 = vpack.c.b16 %v5293, %v5292
        %5358 = vmatprep.subr.bf16.mxu0 0
        %5359 = vmatpush1.bf16.msra.mxu0 %v5294
        %5360 = vmatprep.subr.bf16.mxu0 0
        %5361 = vmatpush1.bf16.msra.mxu0 %v5295
        %5362 = vmatprep.subr.bf16.mxu0 0
        %5363 = vmatpush1.bf16.msra.mxu0 %v5296
        %5364 = vmatprep.subr.bf16.mxu0 0
        %5365 = vmatpush1.bf16.msra.mxu0 %v5297
        %5366 = vmatprep.subr.bf16.mxu0 0
        %5367 = vmatpush1.bf16.msra.mxu0 %v5298
        %5368 = vmatprep.subr.bf16.mxu0 0
        %5369 = vmatpush1.bf16.msra.mxu0 %v5299
        %5370 = vmatprep.subr.bf16.mxu0 0
        %5371 = vmatpush1.bf16.msra.mxu0 %v5300
        %5372 = vmatprep.subr.bf16.mxu0 0
        %5373 = vmatpush1.bf16.msra.mxu0 %v5301
        %5374 = vmatprep.subr.bf16.mxu0 0
        %5375 = vmatpush1.bf16.msra.mxu0 %v5302
        %5376 = vmatprep.subr.bf16.mxu0 0
        %5377 = vmatpush1.bf16.msra.mxu0 %v5303
        %5378 = vmatprep.subr.bf16.mxu0 0
        %5379 = vmatpush1.bf16.msra.mxu0 %v5304
        %5380 = vmatprep.subr.bf16.mxu0 0
        %5381 = vmatpush1.bf16.msra.mxu0 %v5305
        %5382 = vmatprep.subr.bf16.mxu0 0
        %5383 = vmatpush1.bf16.msra.mxu0 %v5306
        %5384 = vmatprep.subr.bf16.mxu0 0
        %5385 = vmatpush1.bf16.msra.mxu0 %v5307
        %5386 = vmatprep.subr.bf16.mxu0 0
        %5387 = vmatpush1.bf16.msra.mxu0 %v5308
        %5388 = vmatprep.subr.bf16.mxu0 0
        %5389 = vmatpush1.bf16.msra.mxu0 %v5309
        %5390 = vmatprep.mubr.bf16.mxu0 %v5087
        %5391 = vmatmul.mubr.bf16.gmra.mrb[0].mxu0 %v5086
        %v5392 = vpop.f32.mrb[0].mxu0
        %v5393 = vadd.f32 0.0, %v5392
        %v5394 = vpop.f32.mrb[0].mxu0
        %v5395 = vpop.f32.mrb[0].mxu0
        %v5396 = vadd.f32 0.0, %v5395
        %v5397 = vpop.f32.mrb[0].mxu0
        %5398 = vmatprep.mubr.bf16.mxu0 %v5091
        %5399 = vmatmul.mubr.bf16.gmra.mrb[0].mxu0 %v5090
        %v5400 = vpop.f32.mrb[0].mxu0
        %v5401 = vadd.f32 0.0, %v5400
        %v5402 = vpop.f32.mrb[0].mxu0
        %v5403 = vpop.f32.mrb[0].mxu0
        %v5404 = vadd.f32 0.0, %v5403
        %v5405 = vpop.f32.mrb[0].mxu0
        %5406 = vmatprep.mubr.bf16.mxu0 %v5095
        %5407 = vmatmul.mubr.bf16.gmra.mrb[0].mxu0 %v5094
        %v5408 = vpop.f32.mrb[0].mxu0
        %v5409 = vadd.f32 0.0, %v5408
        %v5410 = vpop.f32.mrb[0].mxu0
        %v5411 = vpop.f32.mrb[0].mxu0
        %v5412 = vadd.f32 0.0, %v5411
        %v5413 = vpop.f32.mrb[0].mxu0
        %5414 = vmatprep.mubr.bf16.mxu0 %v5099
        %5415 = vmatmul.mubr.bf16.gmra.mrb[0].mxu0 %v5098
        %v5416 = vpop.f32.mrb[0].mxu0
        %v5417 = vadd.f32 0.0, %v5416
        %v5418 = vpop.f32.mrb[0].mxu0
        %v5419 = vpop.f32.mrb[0].mxu0
        %v5420 = vadd.f32 0.0, %v5419
        %v5421 = vpop.f32.mrb[0].mxu0
        %5422 = vdwg.mxu0
        %5423 = vmatprep.subr.bf16.mxu0 0
        %5424 = vmatpush1.bf16.msra.mxu0 %v5310
        %5425 = vmatprep.subr.bf16.mxu0 0
        %5426 = vmatpush1.bf16.msra.mxu0 %v5311
        %5427 = vmatprep.subr.bf16.mxu0 0
        %5428 = vmatpush1.bf16.msra.mxu0 %v5312
        %5429 = vmatprep.subr.bf16.mxu0 0
        %5430 = vmatpush1.bf16.msra.mxu0 %v5313
        %5431 = vmatprep.subr.bf16.mxu0 0
        %5432 = vmatpush1.bf16.msra.mxu0 %v5314
        %5433 = vmatprep.subr.bf16.mxu0 0
        %5434 = vmatpush1.bf16.msra.mxu0 %v5315
        %5435 = vmatprep.subr.bf16.mxu0 0
        %5436 = vmatpush1.bf16.msra.mxu0 %v5316
        %5437 = vmatprep.subr.bf16.mxu0 0
        %5438 = vmatpush1.bf16.msra.mxu0 %v5317
        %5439 = vmatprep.subr.bf16.mxu0 0
        %5440 = vmatpush1.bf16.msra.mxu0 %v5318
        %5441 = vmatprep.subr.bf16.mxu0 0
        %5442 = vmatpush1.bf16.msra.mxu0 %v5319
        %5443 = vmatprep.subr.bf16.mxu0 0
        %5444 = vmatpush1.bf16.msra.mxu0 %v5320
        %5445 = vmatprep.subr.bf16.mxu0 0
        %5446 = vmatpush1.bf16.msra.mxu0 %v5321
        %5447 = vmatprep.subr.bf16.mxu0 0
        %5448 = vmatpush1.bf16.msra.mxu0 %v5322
        %5449 = vmatprep.subr.bf16.mxu0 0
        %5450 = vmatpush1.bf16.msra.mxu0 %v5323
        %5451 = vmatprep.subr.bf16.mxu0 0
        %5452 = vmatpush1.bf16.msra.mxu0 %v5324
        %5453 = vmatprep.subr.bf16.mxu0 0
        %5454 = vmatpush1.bf16.msra.mxu0 %v5325
        %5455 = vmatprep.mubr.bf16.mxu0 %v5089
        %5456 = vmatmul.mubr.bf16.gmra.mrb[0].mxu0 %v5088
        %v5457 = vpop.f32.mrb[0].mxu0
        %v5458 = vadd.f32 %v5393, %v5457
        %v5459 = vpop.f32.mrb[0].mxu0
        %v5460 = vpop.f32.mrb[0].mxu0
        %v5461 = vadd.f32 %v5396, %v5460
        %v5462 = vpop.f32.mrb[0].mxu0
        %5463 = vmatprep.mubr.bf16.mxu0 %v5093
        %5464 = vmatmul.mubr.bf16.gmra.mrb[0].mxu0 %v5092
        %v5465 = vpop.f32.mrb[0].mxu0
        %v5466 = vadd.f32 %v5401, %v5465
        %v5467 = vpop.f32.mrb[0].mxu0
        %v5468 = vpop.f32.mrb[0].mxu0
        %v5469 = vadd.f32 %v5404, %v5468
        %v5470 = vpop.f32.mrb[0].mxu0
        %5471 = vmatprep.mubr.bf16.mxu0 %v5097
        %5472 = vmatmul.mubr.bf16.gmra.mrb[0].mxu0 %v5096
        %v5473 = vpop.f32.mrb[0].mxu0
        %v5474 = vadd.f32 %v5409, %v5473
        %v5475 = vpop.f32.mrb[0].mxu0
        %v5476 = vpop.f32.mrb[0].mxu0
        %v5477 = vadd.f32 %v5412, %v5476
        %v5478 = vpop.f32.mrb[0].mxu0
        %5479 = vmatprep.mubr.bf16.mxu0 %v5101
        %5480 = vmatmul.mubr.bf16.gmra.mrb[0].mxu0 %v5100
        %v5481 = vpop.f32.mrb[0].mxu0
        %v5482 = vadd.f32 %v5417, %v5481
        %v5483 = vpop.f32.mrb[0].mxu0
        %v5484 = vpop.f32.mrb[0].mxu0
        %v5485 = vadd.f32 %v5420, %v5484
        %v5486 = vpop.f32.mrb[0].mxu0
        %5487 = vdwg.mxu0
        %v5488 = vadd.f32 %v4314, %v5458
        %v5489 = vadd.f32 %v4315, %v5461
        %v5490 = vadd.f32 %v4316, %v5466
        %v5491 = vadd.f32 %v4317, %v5469
        %v5492 = vadd.f32 %v4318, %v5474
        %v5493 = vadd.f32 %v4319, %v5477
        %v5494 = vadd.f32 %v4320, %v5482
        %v5495 = vadd.f32 %v4321, %v5485
        %v5496 = vlaneseq
        %v5497 = vshrl.u32 %v5496, 7
        %v5498 = vsub.s32 5, %v5497
        %v5499 = vrot.slane %v840, %v5498
        %v5500 = vadd.f32 %v5488, %v5499
        %v5501 = vadd.f32 %v5489, %v5499
        %v5502 = vadd.f32 %v5490, %v5499
        %v5503 = vadd.f32 %v5491, %v5499
        %v5504 = vadd.f32 %v5492, %v5499
        %v5505 = vadd.f32 %v5493, %v5499
        %v5506 = vadd.f32 %v5494, %v5499
        %v5507 = vadd.f32 %v5495, %v5499
        %5508 = vst [vmem:[#allocation2] sm:$0xff] %v5500
        %5509 = vst [vmem:[#allocation2 + $0x8] sm:$0xff] %v5501
        %5510 = vst [vmem:[#allocation2 + $0x10] sm:$0xff] %v5502
        %5511 = vst [vmem:[#allocation2 + $0x18] sm:$0xff] %v5503
        %5512 = vst [vmem:[#allocation2 + $0x20] sm:$0xff] %v5504
        %5513 = vst [vmem:[#allocation2 + $0x28] sm:$0xff] %v5505
        %5514 = vst [vmem:[#allocation2 + $0x30] sm:$0xff] %v5506
        %5515 = vst [vmem:[#allocation2 + $0x38] sm:$0xff] %v5507
        %p5516 = scmp.eq.s32.totalorder %s30, 1
        // Predicated region
        $region97: #{upt_context_perc_approximator.1} parent=91 // pred_check
          %p5517 = pneg %p5516
        $region98: #{upt_context_perc_approximator.1} parent=91 // pred_check_branch
          %5519 = sbr.rel (%p5517) target = $region100
        $region99: #{upt_context_perc_approximator.1} parent=91 // pred_region
          %v5520 = vld [vmem:[%s11] sm:$0xff]
          %v5521 = vld [vmem:[%s10] sm:$0xff]
          %5522 = vadd.xlane.f32.xlu0 %v5521
          %v5523 = vpop.xlane.xlu0 %5522
          %v5524 = vmul.f32 %v5523, %v858
          %v5525 = vsub.f32 %v5521, %v5524
          %v5526 = vmul.f32 %v5525, %v5525
          %5527 = vadd.xlane.f32.xlu0 %v5526
          %v5528 = vpop.xlane.xlu0 %5527
          %v5529 = vmul.f32 %v5528, %v858
          %v5530 = vadd.f32 %v5529, 1e-06
          %v5531 = vrsqrt.pop %v5530
          %v5532 = vmul.f32 %v5525, %v5531
          %v5533 = vlaneseq
          %v5534 = vshrl.u32 %v5533, 7
          %v5535 = vsub.s32 0, %v5534
          %v5536 = vrot.slane %v5520, %v5535
          %v5537 = vmul.f32 %v5532, %v5536
          %v5538 = vlaneseq
          %v5539 = vshrl.u32 %v5538, 7
          %v5540 = vsub.s32 1, %v5539
          %v5541 = vrot.slane %v5520, %v5540
          %v5542 = vadd.f32 %v5537, %v5541
          %v5543 = vpack.c.bf16 %v5542, %v5542
          %5544 = vadd.xlane.f32.xlu0 %v5500
          %v5545 = vpop.xlane.xlu0 %5544
          %5546 = vadd.xlane.f32.xlu0 %v5501
          %v5547 = vpop.xlane.xlu0 %5546
          %5548 = vadd.xlane.f32.xlu0 %v5502
          %v5549 = vpop.xlane.xlu0 %5548
          %5550 = vadd.xlane.f32.xlu0 %v5503
          %v5551 = vpop.xlane.xlu0 %5550
          %5552 = vadd.xlane.f32.xlu0 %v5504
          %v5553 = vpop.xlane.xlu0 %5552
          %5554 = vadd.xlane.f32.xlu0 %v5505
          %v5555 = vpop.xlane.xlu0 %5554
          %5556 = vadd.xlane.f32.xlu0 %v5506
          %v5557 = vpop.xlane.xlu0 %5556
          %5558 = vadd.xlane.f32.xlu0 %v5507
          %v5559 = vpop.xlane.xlu0 %5558
          %v5560 = vmul.f32 %v5545, %v858
          %v5561 = vmul.f32 %v5547, %v858
          %v5562 = vmul.f32 %v5549, %v858
          %v5563 = vmul.f32 %v5551, %v858
          %v5564 = vmul.f32 %v5553, %v858
          %v5565 = vmul.f32 %v5555, %v858
          %v5566 = vmul.f32 %v5557, %v858
          %v5567 = vmul.f32 %v5559, %v858
          %v5568 = vsub.f32 %v5500, %v5560
          %v5569 = vsub.f32 %v5501, %v5561
          %v5570 = vsub.f32 %v5502, %v5562
          %v5571 = vsub.f32 %v5503, %v5563
          %v5572 = vsub.f32 %v5504, %v5564
          %v5573 = vsub.f32 %v5505, %v5565
          %v5574 = vsub.f32 %v5506, %v5566
          %v5575 = vsub.f32 %v5507, %v5567
          %v5576 = vmul.f32 %v5568, %v5568
          %v5577 = vmul.f32 %v5569, %v5569
          %v5578 = vmul.f32 %v5570, %v5570
          %v5579 = vmul.f32 %v5571, %v5571
          %v5580 = vmul.f32 %v5572, %v5572
          %v5581 = vmul.f32 %v5573, %v5573
          %v5582 = vmul.f32 %v5574, %v5574
          %v5583 = vmul.f32 %v5575, %v5575
          %5584 = vadd.xlane.f32.xlu0 %v5576
          %v5585 = vpop.xlane.xlu0 %5584
          %5586 = vadd.xlane.f32.xlu0 %v5577
          %v5587 = vpop.xlane.xlu0 %5586
          %5588 = vadd.xlane.f32.xlu0 %v5578
          %v5589 = vpop.xlane.xlu0 %5588
          %5590 = vadd.xlane.f32.xlu0 %v5579
          %v5591 = vpop.xlane.xlu0 %5590
          %5592 = vadd.xlane.f32.xlu0 %v5580
          %v5593 = vpop.xlane.xlu0 %5592
          %5594 = vadd.xlane.f32.xlu0 %v5581
          %v5595 = vpop.xlane.xlu0 %5594
          %5596 = vadd.xlane.f32.xlu0 %v5582
          %v5597 = vpop.xlane.xlu0 %5596
          %5598 = vadd.xlane.f32.xlu0 %v5583
          %v5599 = vpop.xlane.xlu0 %5598
          %v5600 = vmul.f32 %v5585, %v858
          %v5601 = vmul.f32 %v5587, %v858
          %v5602 = vmul.f32 %v5589, %v858
          %v5603 = vmul.f32 %v5591, %v858
          %v5604 = vmul.f32 %v5593, %v858
          %v5605 = vmul.f32 %v5595, %v858
          %v5606 = vmul.f32 %v5597, %v858
          %v5607 = vmul.f32 %v5599, %v858
          %v5608 = vadd.f32 %v5600, 1e-06
          %v5609 = vadd.f32 %v5601, 1e-06
          %v5610 = vadd.f32 %v5602, 1e-06
          %v5611 = vadd.f32 %v5603, 1e-06
          %v5612 = vadd.f32 %v5604, 1e-06
          %v5613 = vadd.f32 %v5605, 1e-06
          %v5614 = vadd.f32 %v5606, 1e-06
          %v5615 = vadd.f32 %v5607, 1e-06
          %v5616 = vrsqrt.pop %v5608
          %v5617 = vrsqrt.pop %v5609
          %v5618 = vrsqrt.pop %v5610
          %v5619 = vrsqrt.pop %v5611
          %v5620 = vrsqrt.pop %v5612
          %v5621 = vrsqrt.pop %v5613
          %v5622 = vrsqrt.pop %v5614
          %v5623 = vrsqrt.pop %v5615
          %v5624 = vmul.f32 %v5568, %v5616
          %v5625 = vmul.f32 %v5569, %v5617
          %v5626 = vmul.f32 %v5570, %v5618
          %v5627 = vmul.f32 %v5571, %v5619
          %v5628 = vmul.f32 %v5572, %v5620
          %v5629 = vmul.f32 %v5573, %v5621
          %v5630 = vmul.f32 %v5574, %v5622
          %v5631 = vmul.f32 %v5575, %v5623
          %v5632 = vlaneseq
          %v5633 = vshrl.u32 %v5632, 7
          %v5634 = vsub.s32 2, %v5633
          %v5635 = vrot.slane %v5520, %v5634
          %v5636 = vmul.f32 %v5624, %v5635
          %v5637 = vmul.f32 %v5625, %v5635
          %v5638 = vmul.f32 %v5626, %v5635
          %v5639 = vmul.f32 %v5627, %v5635
          %v5640 = vmul.f32 %v5628, %v5635
          %v5641 = vmul.f32 %v5629, %v5635
          %v5642 = vmul.f32 %v5630, %v5635
          %v5643 = vmul.f32 %v5631, %v5635
          %v5644 = vlaneseq
          %v5645 = vshrl.u32 %v5644, 7
          %v5646 = vsub.s32 3, %v5645
          %v5647 = vrot.slane %v5520, %v5646
          %v5648 = vadd.f32 %v5636, %v5647
          %v5649 = vadd.f32 %v5637, %v5647
          %v5650 = vadd.f32 %v5638, %v5647
          %v5651 = vadd.f32 %v5639, %v5647
          %v5652 = vadd.f32 %v5640, %v5647
          %v5653 = vadd.f32 %v5641, %v5647
          %v5654 = vadd.f32 %v5642, %v5647
          %v5655 = vadd.f32 %v5643, %v5647
          %v5656 = vpack.c.bf16 %v5649, %v5648
          %v5657 = vpack.c.bf16 %v5651, %v5650
          %v5658 = vpack.c.bf16 %v5653, %v5652
          %v5659 = vpack.c.bf16 %v5655, %v5654
          %v5660 = vld [vmem:[%s13] sm:$0xff]
          %v5661 = vld [vmem:[%s14] sm:$0xf]
          %v5662 = vld [vmem:[%s14 + $0x4] sm:$0xf]
          %v5663 = vld [vmem:[%s14 + $0x8] sm:$0xf]
          %v5664 = vld [vmem:[%s14 + $0xc] sm:$0xf]
          %v5665 = vld [vmem:[%s14 + $0x10] sm:$0xf]
          %v5666 = vld [vmem:[%s14 + $0x14] sm:$0xf]
          %v5667 = vld [vmem:[%s14 + $0x18] sm:$0xf]
          %v5668 = vld [vmem:[%s14 + $0x1c] sm:$0xf]
          %v5669 = vld [vmem:[%s14 + $0x20] sm:$0xf]
          %v5670 = vld [vmem:[%s14 + $0x24] sm:$0xf]
          %v5671 = vld [vmem:[%s14 + $0x28] sm:$0xf]
          %v5672 = vld [vmem:[%s14 + $0x2c] sm:$0xf]
          %v5673 = vld [vmem:[%s14 + $0x30] sm:$0xf]
          %v5674 = vld [vmem:[%s14 + $0x34] sm:$0xf]
          %v5675 = vld [vmem:[%s14 + $0x38] sm:$0xf]
          %v5676 = vld [vmem:[%s14 + $0x3c] sm:$0xf]
          %v5677 = vlaneseq
          %v5678 = vshrl.u32 %v5677, 7
          %v5679 = vsub.s32 0, %v5678
          %v5680 = vrot.slane %v5660, %v5679
          %v5697 = vunpack.c.l.b16 %v5661
          %v5698 = vunpack.c.l.b16 %v5662
          %v5699 = vunpack.c.l.b16 %v5663
          %v5700 = vunpack.c.l.b16 %v5664
          %v5701 = vunpack.c.l.b16 %v5665
          %v5702 = vunpack.c.l.b16 %v5666
          %v5703 = vunpack.c.l.b16 %v5667
          %v5704 = vunpack.c.l.b16 %v5668
          %v5705 = vunpack.c.l.b16 %v5669
          %v5706 = vunpack.c.l.b16 %v5670
          %v5707 = vunpack.c.l.b16 %v5671
          %v5708 = vunpack.c.l.b16 %v5672
          %v5709 = vunpack.c.l.b16 %v5673
          %v5710 = vunpack.c.l.b16 %v5674
          %v5711 = vunpack.c.l.b16 %v5675
          %v5712 = vunpack.c.l.b16 %v5676
          %v5713 = vpack.c.b16 %v5698, %v5697
          %v5714 = vpack.c.b16 %v5700, %v5699
          %v5715 = vpack.c.b16 %v5702, %v5701
          %v5716 = vpack.c.b16 %v5704, %v5703
          %v5717 = vpack.c.b16 %v5706, %v5705
          %v5718 = vpack.c.b16 %v5708, %v5707
          %v5719 = vpack.c.b16 %v5710, %v5709
          %v5720 = vpack.c.b16 %v5712, %v5711
          %5729 = vmatprep.subr.bf16.mxu0 0
          %5730 = vmatpush1.bf16.msra.mxu0 %v5713
          %5731 = vmatprep.subr.bf16.mxu0 0
          %5732 = vmatpush1.bf16.msra.mxu0 %v5714
          %5733 = vmatprep.subr.bf16.mxu0 0
          %5734 = vmatpush1.bf16.msra.mxu0 %v5715
          %5735 = vmatprep.subr.bf16.mxu0 0
          %5736 = vmatpush1.bf16.msra.mxu0 %v5716
          %5737 = vmatprep.subr.bf16.mxu0 0
          %5738 = vmatpush1.bf16.msra.mxu0 %v5717
          %5739 = vmatprep.subr.bf16.mxu0 0
          %5740 = vmatpush1.bf16.msra.mxu0 %v5718
          %5741 = vmatprep.subr.bf16.mxu0 0
          %5742 = vmatpush1.bf16.msra.mxu0 %v5719
          %5743 = vmatprep.subr.bf16.mxu0 0
          %5744 = vmatpush1.bf16.msra.mxu0 %v5720
          %5745 = vmatprep.subr.bf16.mxu0 0
          %5746 = vmatpush1.bf16.msra.mxu0 0
          %5747 = vmatprep.subr.bf16.mxu0 0
          %5748 = vmatpush1.bf16.msra.mxu0 0
          %5749 = vmatprep.subr.bf16.mxu0 0
          %5750 = vmatpush1.bf16.msra.mxu0 0
          %5751 = vmatprep.subr.bf16.mxu0 0
          %5752 = vmatpush1.bf16.msra.mxu0 0
          %5753 = vmatprep.subr.bf16.mxu0 0
          %5754 = vmatpush1.bf16.msra.mxu0 0
          %5755 = vmatprep.subr.bf16.mxu0 0
          %5756 = vmatpush1.bf16.msra.mxu0 0
          %5757 = vmatprep.subr.bf16.mxu0 0
          %5758 = vmatpush1.bf16.msra.mxu0 0
          %5759 = vmatprep.subr.bf16.mxu0 0
          %5760 = vmatpush1.bf16.msra.mxu0 0
          %5761 = vmatprep.mubr.bf16.mxu0 0
          %5762 = vmatmul.mubr.bf16.gmra.mrb[0].mxu0 %v5543
          %v5763 = vpop.f32.mrb[0].mxu0
          %v5764 = vadd.f32 %v5680, %v5763
          %v5765 = vpop.f32.mrb[0].mxu0
          %v5766 = vpop.f32.mrb[0].mxu0
          %v5767 = vpop.f32.mrb[0].mxu0
          %5768 = vdwg.mxu0
          %s5769 = scalar_lea.vmem %s14, 256
          %v5770 = vld [vmem:[%s5769] sm:$0xf]
          %v5771 = vld [vmem:[%s5769 + $0x4] sm:$0xf]
          %v5772 = vld [vmem:[%s5769 + $0x8] sm:$0xf]
          %v5773 = vld [vmem:[%s5769 + $0xc] sm:$0xf]
          %v5774 = vld [vmem:[%s5769 + $0x10] sm:$0xf]
          %v5775 = vld [vmem:[%s5769 + $0x14] sm:$0xf]
          %v5776 = vld [vmem:[%s5769 + $0x18] sm:$0xf]
          %v5777 = vld [vmem:[%s5769 + $0x1c] sm:$0xf]
          %v5778 = vld [vmem:[%s5769 + $0x20] sm:$0xf]
          %v5779 = vld [vmem:[%s5769 + $0x24] sm:$0xf]
          %v5780 = vld [vmem:[%s5769 + $0x28] sm:$0xf]
          %v5781 = vld [vmem:[%s5769 + $0x2c] sm:$0xf]
          %v5782 = vld [vmem:[%s5769 + $0x30] sm:$0xf]
          %v5783 = vld [vmem:[%s5769 + $0x34] sm:$0xf]
          %v5784 = vld [vmem:[%s5769 + $0x38] sm:$0xf]
          %v5785 = vld [vmem:[%s5769 + $0x3c] sm:$0xf]
          %v5786 = vlaneseq
          %v5787 = vshrl.u32 %v5786, 7
          %v5788 = vsub.s32 4, %v5787
          %v5789 = vrot.slane %v5660, %v5788
          %v5806 = vunpack.c.l.b16 %v5770
          %v5807 = vunpack.c.l.b16 %v5771
          %v5808 = vunpack.c.l.b16 %v5772
          %v5809 = vunpack.c.l.b16 %v5773
          %v5810 = vunpack.c.l.b16 %v5774
          %v5811 = vunpack.c.l.b16 %v5775
          %v5812 = vunpack.c.l.b16 %v5776
          %v5813 = vunpack.c.l.b16 %v5777
          %v5814 = vunpack.c.l.b16 %v5778
          %v5815 = vunpack.c.l.b16 %v5779
          %v5816 = vunpack.c.l.b16 %v5780
          %v5817 = vunpack.c.l.b16 %v5781
          %v5818 = vunpack.c.l.b16 %v5782
          %v5819 = vunpack.c.l.b16 %v5783
          %v5820 = vunpack.c.l.b16 %v5784
          %v5821 = vunpack.c.l.b16 %v5785
          %v5822 = vpack.c.b16 %v5807, %v5806
          %v5823 = vpack.c.b16 %v5809, %v5808
          %v5824 = vpack.c.b16 %v5811, %v5810
          %v5825 = vpack.c.b16 %v5813, %v5812
          %v5826 = vpack.c.b16 %v5815, %v5814
          %v5827 = vpack.c.b16 %v5817, %v5816
          %v5828 = vpack.c.b16 %v5819, %v5818
          %v5829 = vpack.c.b16 %v5821, %v5820
          %5838 = vmatprep.subr.bf16.mxu0 0
          %5839 = vmatpush1.bf16.msra.mxu0 %v5822
          %5840 = vmatprep.subr.bf16.mxu0 0
          %5841 = vmatpush1.bf16.msra.mxu0 %v5823
          %5842 = vmatprep.subr.bf16.mxu0 0
          %5843 = vmatpush1.bf16.msra.mxu0 %v5824
          %5844 = vmatprep.subr.bf16.mxu0 0
          %5845 = vmatpush1.bf16.msra.mxu0 %v5825
          %5846 = vmatprep.subr.bf16.mxu0 0
          %5847 = vmatpush1.bf16.msra.mxu0 %v5826
          %5848 = vmatprep.subr.bf16.mxu0 0
          %5849 = vmatpush1.bf16.msra.mxu0 %v5827
          %5850 = vmatprep.subr.bf16.mxu0 0
          %5851 = vmatpush1.bf16.msra.mxu0 %v5828
          %5852 = vmatprep.subr.bf16.mxu0 0
          %5853 = vmatpush1.bf16.msra.mxu0 %v5829
          %5854 = vmatprep.subr.bf16.mxu0 0
          %5855 = vmatpush1.bf16.msra.mxu0 0
          %5856 = vmatprep.subr.bf16.mxu0 0
          %5857 = vmatpush1.bf16.msra.mxu0 0
          %5858 = vmatprep.subr.bf16.mxu0 0
          %5859 = vmatpush1.bf16.msra.mxu0 0
          %5860 = vmatprep.subr.bf16.mxu0 0
          %5861 = vmatpush1.bf16.msra.mxu0 0
          %5862 = vmatprep.subr.bf16.mxu0 0
          %5863 = vmatpush1.bf16.msra.mxu0 0
          %5864 = vmatprep.subr.bf16.mxu0 0
          %5865 = vmatpush1.bf16.msra.mxu0 0
          %5866 = vmatprep.subr.bf16.mxu0 0
          %5867 = vmatpush1.bf16.msra.mxu0 0
          %5868 = vmatprep.subr.bf16.mxu0 0
          %5869 = vmatpush1.bf16.msra.mxu0 0
          %5870 = vmatprep.mubr.bf16.mxu0 0
          %5871 = vmatmul.mubr.bf16.gmra.mrb[0].mxu0 %v5656
          %v5872 = vpop.f32.mrb[0].mxu0
          %v5873 = vadd.f32 %v5789, %v5872
          %v5874 = vpop.f32.mrb[0].mxu0
          %v5875 = vpop.f32.mrb[0].mxu0
          %v5876 = vadd.f32 %v5789, %v5875
          %v5877 = vpop.f32.mrb[0].mxu0
          %5878 = vmatprep.mubr.bf16.mxu0 0
          %5879 = vmatmul.mubr.bf16.gmra.mrb[0].mxu0 %v5657
          %v5880 = vpop.f32.mrb[0].mxu0
          %v5881 = vadd.f32 %v5789, %v5880
          %v5882 = vpop.f32.mrb[0].mxu0
          %v5883 = vpop.f32.mrb[0].mxu0
          %v5884 = vadd.f32 %v5789, %v5883
          %v5885 = vpop.f32.mrb[0].mxu0
          %5886 = vmatprep.mubr.bf16.mxu0 0
          %5887 = vmatmul.mubr.bf16.gmra.mrb[0].mxu0 %v5658
          %v5888 = vpop.f32.mrb[0].mxu0
          %v5889 = vadd.f32 %v5789, %v5888
          %v5890 = vpop.f32.mrb[0].mxu0
          %v5891 = vpop.f32.mrb[0].mxu0
          %v5892 = vadd.f32 %v5789, %v5891
          %v5893 = vpop.f32.mrb[0].mxu0
          %5894 = vmatprep.mubr.bf16.mxu0 0
          %5895 = vmatmul.mubr.bf16.gmra.mrb[0].mxu0 %v5659
          %v5896 = vpop.f32.mrb[0].mxu0
          %v5897 = vadd.f32 %v5789, %v5896
          %v5898 = vpop.f32.mrb[0].mxu0
          %v5899 = vpop.f32.mrb[0].mxu0
          %v5900 = vadd.f32 %v5789, %v5899
          %v5901 = vpop.f32.mrb[0].mxu0
          %5902 = vdwg.mxu0
          %s5903 = scalar_lea.vmem %s14, 512
          %v5904 = vld [vmem:[%s5903] sm:$0xf]
          %v5905 = vld [vmem:[%s5903 + $0x4] sm:$0xf]
          %v5906 = vld [vmem:[%s5903 + $0x8] sm:$0xf]
          %v5907 = vld [vmem:[%s5903 + $0xc] sm:$0xf]
          %v5908 = vld [vmem:[%s5903 + $0x10] sm:$0xf]
          %v5909 = vld [vmem:[%s5903 + $0x14] sm:$0xf]
          %v5910 = vld [vmem:[%s5903 + $0x18] sm:$0xf]
          %v5911 = vld [vmem:[%s5903 + $0x1c] sm:$0xf]
          %v5912 = vld [vmem:[%s5903 + $0x20] sm:$0xf]
          %v5913 = vld [vmem:[%s5903 + $0x24] sm:$0xf]
          %v5914 = vld [vmem:[%s5903 + $0x28] sm:$0xf]
          %v5915 = vld [vmem:[%s5903 + $0x2c] sm:$0xf]
          %v5916 = vld [vmem:[%s5903 + $0x30] sm:$0xf]
          %v5917 = vld [vmem:[%s5903 + $0x34] sm:$0xf]
          %v5918 = vld [vmem:[%s5903 + $0x38] sm:$0xf]
          %v5919 = vld [vmem:[%s5903 + $0x3c] sm:$0xf]
          %v5936 = vunpack.c.l.b16 %v5904
          %v5937 = vunpack.c.l.b16 %v5905
          %v5938 = vunpack.c.l.b16 %v5906
          %v5939 = vunpack.c.l.b16 %v5907
          %v5940 = vunpack.c.l.b16 %v5908
          %v5941 = vunpack.c.l.b16 %v5909
          %v5942 = vunpack.c.l.b16 %v5910
          %v5943 = vunpack.c.l.b16 %v5911
          %v5944 = vunpack.c.l.b16 %v5912
          %v5945 = vunpack.c.l.b16 %v5913
          %v5946 = vunpack.c.l.b16 %v5914
          %v5947 = vunpack.c.l.b16 %v5915
          %v5948 = vunpack.c.l.b16 %v5916
          %v5949 = vunpack.c.l.b16 %v5917
          %v5950 = vunpack.c.l.b16 %v5918
          %v5951 = vunpack.c.l.b16 %v5919
          %v5952 = vpack.c.b16 %v5937, %v5936
          %v5953 = vpack.c.b16 %v5939, %v5938
          %v5954 = vpack.c.b16 %v5941, %v5940
          %v5955 = vpack.c.b16 %v5943, %v5942
          %v5956 = vpack.c.b16 %v5945, %v5944
          %v5957 = vpack.c.b16 %v5947, %v5946
          %v5958 = vpack.c.b16 %v5949, %v5948
          %v5959 = vpack.c.b16 %v5951, %v5950
          %5968 = vmatprep.subr.bf16.mxu0 0
          %5969 = vmatpush1.bf16.msra.mxu0 %v5952
          %5970 = vmatprep.subr.bf16.mxu0 0
          %5971 = vmatpush1.bf16.msra.mxu0 %v5953
          %5972 = vmatprep.subr.bf16.mxu0 0
          %5973 = vmatpush1.bf16.msra.mxu0 %v5954
          %5974 = vmatprep.subr.bf16.mxu0 0
          %5975 = vmatpush1.bf16.msra.mxu0 %v5955
          %5976 = vmatprep.subr.bf16.mxu0 0
          %5977 = vmatpush1.bf16.msra.mxu0 %v5956
          %5978 = vmatprep.subr.bf16.mxu0 0
          %5979 = vmatpush1.bf16.msra.mxu0 %v5957
          %5980 = vmatprep.subr.bf16.mxu0 0
          %5981 = vmatpush1.bf16.msra.mxu0 %v5958
          %5982 = vmatprep.subr.bf16.mxu0 0
          %5983 = vmatpush1.bf16.msra.mxu0 %v5959
          %5984 = vmatprep.subr.bf16.mxu0 0
          %5985 = vmatpush1.bf16.msra.mxu0 0
          %5986 = vmatprep.subr.bf16.mxu0 0
          %5987 = vmatpush1.bf16.msra.mxu0 0
          %5988 = vmatprep.subr.bf16.mxu0 0
          %5989 = vmatpush1.bf16.msra.mxu0 0
          %5990 = vmatprep.subr.bf16.mxu0 0
          %5991 = vmatpush1.bf16.msra.mxu0 0
          %5992 = vmatprep.subr.bf16.mxu0 0
          %5993 = vmatpush1.bf16.msra.mxu0 0
          %5994 = vmatprep.subr.bf16.mxu0 0
          %5995 = vmatpush1.bf16.msra.mxu0 0
          %5996 = vmatprep.subr.bf16.mxu0 0
          %5997 = vmatpush1.bf16.msra.mxu0 0
          %5998 = vmatprep.subr.bf16.mxu0 0
          %5999 = vmatpush1.bf16.msra.mxu0 0
          %6000 = vmatprep.mubr.bf16.mxu0 0
          %6001 = vmatmul.mubr.bf16.gmra.mrb[0].mxu0 %v5656
          %v6002 = vpop.f32.mrb[0].mxu0
          %v6003 = vadd.f32 0.0, %v6002
          %v6004 = vpop.f32.mrb[0].mxu0
          %v6005 = vpop.f32.mrb[0].mxu0
          %v6006 = vadd.f32 0.0, %v6005
          %v6007 = vpop.f32.mrb[0].mxu0
          %6008 = vmatprep.mubr.bf16.mxu0 0
          %6009 = vmatmul.mubr.bf16.gmra.mrb[0].mxu0 %v5657
          %v6010 = vpop.f32.mrb[0].mxu0
          %v6011 = vadd.f32 0.0, %v6010
          %v6012 = vpop.f32.mrb[0].mxu0
          %v6013 = vpop.f32.mrb[0].mxu0
          %v6014 = vadd.f32 0.0, %v6013
          %v6015 = vpop.f32.mrb[0].mxu0
          %6016 = vmatprep.mubr.bf16.mxu0 0
          %6017 = vmatmul.mubr.bf16.gmra.mrb[0].mxu0 %v5658
          %v6018 = vpop.f32.mrb[0].mxu0
          %v6019 = vadd.f32 0.0, %v6018
          %v6020 = vpop.f32.mrb[0].mxu0
          %v6021 = vpop.f32.mrb[0].mxu0
          %v6022 = vadd.f32 0.0, %v6021
          %v6023 = vpop.f32.mrb[0].mxu0
          %6024 = vmatprep.mubr.bf16.mxu0 0
          %6025 = vmatmul.mubr.bf16.gmra.mrb[0].mxu0 %v5659
          %v6026 = vpop.f32.mrb[0].mxu0
          %v6027 = vadd.f32 0.0, %v6026
          %v6028 = vpop.f32.mrb[0].mxu0
          %v6029 = vpop.f32.mrb[0].mxu0
          %v6030 = vadd.f32 0.0, %v6029
          %v6031 = vpop.f32.mrb[0].mxu0
          %6032 = vdwg.mxu0
          %v6033 = vpack.c.bf16 %v5764, %v5764
          %v6034 = vpack.c.bf16 %v5876, %v5873
          %v6035 = vpack.c.bf16 %v5884, %v5881
          %v6036 = vpack.c.bf16 %v5892, %v5889
          %v6037 = vpack.c.bf16 %v5900, %v5897
          %v6039 = vsel %vm1364, %v6033, 0
          %v6042 = vsel %vm1364, %v6034, 0
          %v6045 = vsel %vm1364, %v6035, 0
          %6047 = vmatprep.subr.bf16.mxu0 0
          %6048 = vmatpush1.bf16.xpose.msra.mxu0 %v6042
          %6049 = vmatprep.subr.bf16.mxu0 0
          %6050 = vmatpush1.bf16.xpose.msra.mxu0 %v6045
          %6051 = vmatprep.subr.bf16.mxu0 0
          %6052 = vmatpush1.bf16.xpose.msra.mxu0 0
          %6053 = vmatprep.subr.bf16.mxu0 0
          %6054 = vmatpush1.bf16.xpose.msra.mxu0 0
          %6055 = vmatprep.subr.bf16.mxu0 0
          %6056 = vmatpush1.bf16.xpose.msra.mxu0 0
          %6057 = vmatprep.subr.bf16.mxu0 0
          %6058 = vmatpush1.bf16.xpose.msra.mxu0 0
          %6059 = vmatprep.subr.bf16.mxu0 0
          %6060 = vmatpush1.bf16.xpose.msra.mxu0 0
          %6061 = vmatprep.subr.bf16.mxu0 0
          %6062 = vmatpush1.bf16.xpose.msra.mxu0 0
          %6063 = vmatprep.subr.bf16.mxu0 0
          %6064 = vmatpush1.bf16.xpose.msra.mxu0 0
          %6065 = vmatprep.subr.bf16.mxu0 0
          %6066 = vmatpush1.bf16.xpose.msra.mxu0 0
          %6067 = vmatprep.subr.bf16.mxu0 0
          %6068 = vmatpush1.bf16.xpose.msra.mxu0 0
          %6069 = vmatprep.subr.bf16.mxu0 0
          %6070 = vmatpush1.bf16.xpose.msra.mxu0 0
          %6071 = vmatprep.subr.bf16.mxu0 0
          %6072 = vmatpush1.bf16.xpose.msra.mxu0 0
          %6073 = vmatprep.subr.bf16.mxu0 0
          %6074 = vmatpush1.bf16.xpose.msra.mxu0 0
          %6075 = vmatprep.subr.bf16.mxu0 0
          %6076 = vmatpush1.bf16.xpose.msra.mxu0 0
          %6077 = vmatprep.subr.bf16.mxu0 0
          %6078 = vmatpush1.bf16.xpose.msra.mxu0 0
          %6079 = vmatprep.mubr.bf16.mxu0 0
          %6080 = vmatmul.mubr.bf16.gmra.mrb[0].mxu0 %v6039
          %v6081 = vpop.f32.mrb[0].mxu0
          %v6082 = vadd.f32 0.0, %v6081
          %v6083 = vpop.f32.mrb[0].mxu0
          %v6084 = vpop.f32.mrb[0].mxu0
          %v6085 = vpop.f32.mrb[0].mxu0
          %6086 = vdwg.mxu0
          %v6088 = vsel %vm1364, %v6036, 0
          %v6091 = vsel %vm1364, %v6037, 0
          %6093 = vmatprep.subr.bf16.mxu0 0
          %6094 = vmatpush1.bf16.xpose.msra.mxu0 %v6088
          %6095 = vmatprep.subr.bf16.mxu0 0
          %6096 = vmatpush1.bf16.xpose.msra.mxu0 %v6091
          %6097 = vmatprep.subr.bf16.mxu0 0
          %6098 = vmatpush1.bf16.xpose.msra.mxu0 0
          %6099 = vmatprep.subr.bf16.mxu0 0
          %6100 = vmatpush1.bf16.xpose.msra.mxu0 0
          %6101 = vmatprep.subr.bf16.mxu0 0
          %6102 = vmatpush1.bf16.xpose.msra.mxu0 0
          %6103 = vmatprep.subr.bf16.mxu0 0
          %6104 = vmatpush1.bf16.xpose.msra.mxu0 0
          %6105 = vmatprep.subr.bf16.mxu0 0
          %6106 = vmatpush1.bf16.xpose.msra.mxu0 0
          %6107 = vmatprep.subr.bf16.mxu0 0
          %6108 = vmatpush1.bf16.xpose.msra.mxu0 0
          %6109 = vmatprep.subr.bf16.mxu0 0
          %6110 = vmatpush1.bf16.xpose.msra.mxu0 0
          %6111 = vmatprep.subr.bf16.mxu0 0
          %6112 = vmatpush1.bf16.xpose.msra.mxu0 0
          %6113 = vmatprep.subr.bf16.mxu0 0
          %6114 = vmatpush1.bf16.xpose.msra.mxu0 0
          %6115 = vmatprep.subr.bf16.mxu0 0
          %6116 = vmatpush1.bf16.xpose.msra.mxu0 0
          %6117 = vmatprep.subr.bf16.mxu0 0
          %6118 = vmatpush1.bf16.xpose.msra.mxu0 0
          %6119 = vmatprep.subr.bf16.mxu0 0
          %6120 = vmatpush1.bf16.xpose.msra.mxu0 0
          %6121 = vmatprep.subr.bf16.mxu0 0
          %6122 = vmatpush1.bf16.xpose.msra.mxu0 0
          %6123 = vmatprep.subr.bf16.mxu0 0
          %6124 = vmatpush1.bf16.xpose.msra.mxu0 0
          %6125 = vmatprep.mubr.bf16.mxu0 0
          %6126 = vmatmul.mubr.bf16.gmra.mrb[0].mxu0 %v6039
          %v6127 = vpop.f32.mrb[0].mxu0
          %v6128 = vadd.f32 0.0, %v6127
          %v6129 = vpop.f32.mrb[0].mxu0
          %v6130 = vpop.f32.mrb[0].mxu0
          %v6131 = vpop.f32.mrb[0].mxu0
          %6132 = vdwg.mxu0
          %v6133 = vsel %vm1364, %v6082, -inf
          %6134 = vmax.xlane.f32.xlu0 %v6133
          %v6135 = vpop.xlane.xlu0 %6134
          %v6136 = vsel %vm1364, %v6128, -inf
          %6137 = vmax.xlane.f32.xlu0 %v6136
          %v6138 = vpop.xlane.xlu0 %6137
          %v6139 = vsub.f32 %v6082, %v6135
          %v6140 = vsub.f32 %v6128, %v6138
          %v6141 = vmul.f32 %v6139, 1.442695
          %v6142 = vpow.pop %v6141
          %v6143 = vmul.f32 %v6140, 1.442695
          %v6144 = vpow.pop %v6143
          %v6145 = vsel %vm1364, %v6142, 0.0
          %6146 = vadd.xlane.f32.xlu0 %v6145
          %v6147 = vpop.xlane.xlu0 %6146
          %v6148 = vsel %vm1364, %v6144, 0.0
          %6149 = vadd.xlane.f32.xlu0 %v6148
          %v6150 = vpop.xlane.xlu0 %6149
          %v6151 = vrcp.pop %v6147
          %v6152 = vrcp.pop %v6150
          %v6153 = vmul.f32 %v6142, %v6151
          %v6154 = vmul.f32 %v6144, %v6152
          %v6155 = vpack.c.bf16 %v6153, %v6153
          %v6156 = vpack.c.bf16 %v6154, %v6154
          %v6157 = vpack.c.bf16 %v6006, %v6003
          %v6158 = vpack.c.bf16 %v6014, %v6011
          %v6159 = vpack.c.bf16 %v6022, %v6019
          %v6160 = vpack.c.bf16 %v6030, %v6027
          %v6162 = vsel %vm1364, %v6155, 0
          %6164 = vmatprep.subr.bf16.mxu0 0
          %6165 = vmatpush1.bf16.msra.mxu0 %v6157
          %6166 = vmatprep.subr.bf16.mxu0 0
          %6167 = vmatpush1.bf16.msra.mxu0 %v6158
          %6168 = vmatprep.subr.bf16.mxu0 0
          %6169 = vmatpush1.bf16.msra.mxu0 0
          %6170 = vmatprep.subr.bf16.mxu0 0
          %6171 = vmatpush1.bf16.msra.mxu0 0
          %6172 = vmatprep.subr.bf16.mxu0 0
          %6173 = vmatpush1.bf16.msra.mxu0 0
          %6174 = vmatprep.subr.bf16.mxu0 0
          %6175 = vmatpush1.bf16.msra.mxu0 0
          %6176 = vmatprep.subr.bf16.mxu0 0
          %6177 = vmatpush1.bf16.msra.mxu0 0
          %6178 = vmatprep.subr.bf16.mxu0 0
          %6179 = vmatpush1.bf16.msra.mxu0 0
          %6180 = vmatprep.subr.bf16.mxu0 0
          %6181 = vmatpush1.bf16.msra.mxu0 0
          %6182 = vmatprep.subr.bf16.mxu0 0
          %6183 = vmatpush1.bf16.msra.mxu0 0
          %6184 = vmatprep.subr.bf16.mxu0 0
          %6185 = vmatpush1.bf16.msra.mxu0 0
          %6186 = vmatprep.subr.bf16.mxu0 0
          %6187 = vmatpush1.bf16.msra.mxu0 0
          %6188 = vmatprep.subr.bf16.mxu0 0
          %6189 = vmatpush1.bf16.msra.mxu0 0
          %6190 = vmatprep.subr.bf16.mxu0 0
          %6191 = vmatpush1.bf16.msra.mxu0 0
          %6192 = vmatprep.subr.bf16.mxu0 0
          %6193 = vmatpush1.bf16.msra.mxu0 0
          %6194 = vmatprep.subr.bf16.mxu0 0
          %6195 = vmatpush1.bf16.msra.mxu0 0
          %6196 = vmatprep.mubr.bf16.mxu0 0
          %6197 = vmatmul.mubr.bf16.gmra.mrb[0].mxu0 %v6162
          %v6198 = vpop.f32.mrb[0].mxu0
          %v6199 = vadd.f32 0.0, %v6198
          %v6200 = vpop.f32.mrb[0].mxu0
          %v6201 = vpop.f32.mrb[0].mxu0
          %v6202 = vpop.f32.mrb[0].mxu0
          %6203 = vdwg.mxu0
          %v6205 = vsel %vm1364, %v6156, 0
          %6207 = vmatprep.subr.bf16.mxu0 0
          %6208 = vmatpush1.bf16.msra.mxu0 %v6159
          %6209 = vmatprep.subr.bf16.mxu0 0
          %6210 = vmatpush1.bf16.msra.mxu0 %v6160
          %6211 = vmatprep.subr.bf16.mxu0 0
          %6212 = vmatpush1.bf16.msra.mxu0 0
          %6213 = vmatprep.subr.bf16.mxu0 0
          %6214 = vmatpush1.bf16.msra.mxu0 0
          %6215 = vmatprep.subr.bf16.mxu0 0
          %6216 = vmatpush1.bf16.msra.mxu0 0
          %6217 = vmatprep.subr.bf16.mxu0 0
          %6218 = vmatpush1.bf16.msra.mxu0 0
          %6219 = vmatprep.subr.bf16.mxu0 0
          %6220 = vmatpush1.bf16.msra.mxu0 0
          %6221 = vmatprep.subr.bf16.mxu0 0
          %6222 = vmatpush1.bf16.msra.mxu0 0
          %6223 = vmatprep.subr.bf16.mxu0 0
          %6224 = vmatpush1.bf16.msra.mxu0 0
          %6225 = vmatprep.subr.bf16.mxu0 0
          %6226 = vmatpush1.bf16.msra.mxu0 0
          %6227 = vmatprep.subr.bf16.mxu0 0
          %6228 = vmatpush1.bf16.msra.mxu0 0
          %6229 = vmatprep.subr.bf16.mxu0 0
          %6230 = vmatpush1.bf16.msra.mxu0 0
          %6231 = vmatprep.subr.bf16.mxu0 0
          %6232 = vmatpush1.bf16.msra.mxu0 0
          %6233 = vmatprep.subr.bf16.mxu0 0
          %6234 = vmatpush1.bf16.msra.mxu0 0
          %6235 = vmatprep.subr.bf16.mxu0 0
          %6236 = vmatpush1.bf16.msra.mxu0 0
          %6237 = vmatprep.subr.bf16.mxu0 0
          %6238 = vmatpush1.bf16.msra.mxu0 0
          %6239 = vmatprep.mubr.bf16.mxu0 0
          %6240 = vmatmul.mubr.bf16.gmra.mrb[0].mxu0 %v6205
          %v6241 = vpop.f32.mrb[0].mxu0
          %v6242 = vadd.f32 0.0, %v6241
          %v6243 = vpop.f32.mrb[0].mxu0
          %v6244 = vpop.f32.mrb[0].mxu0
          %v6245 = vpop.f32.mrb[0].mxu0
          %6246 = vdwg.mxu0
          %v6247 = vpack.c.bf16 %v6242, %v6199
          %v6248 = vld [vmem:[%s15] sm:$0xf]
          %v6249 = vld [vmem:[%s15 + $0x4] sm:$0xf]
          %v6250 = vld [vmem:[%s15 + $0x8] sm:$0xf]
          %v6251 = vld [vmem:[%s15 + $0xc] sm:$0xf]
          %s6252 = scalar_lea.vmem %s14, 64
          %v6253 = vld [vmem:[%s6252] sm:$0xf]
          %v6254 = vld [vmem:[%s6252 + $0x4] sm:$0xf]
          %v6255 = vld [vmem:[%s6252 + $0x8] sm:$0xf]
          %v6256 = vld [vmem:[%s6252 + $0xc] sm:$0xf]
          %v6257 = vld [vmem:[%s6252 + $0x10] sm:$0xf]
          %v6258 = vld [vmem:[%s6252 + $0x14] sm:$0xf]
          %v6259 = vld [vmem:[%s6252 + $0x18] sm:$0xf]
          %v6260 = vld [vmem:[%s6252 + $0x1c] sm:$0xf]
          %v6261 = vld [vmem:[%s6252 + $0x20] sm:$0xf]
          %v6262 = vld [vmem:[%s6252 + $0x24] sm:$0xf]
          %v6263 = vld [vmem:[%s6252 + $0x28] sm:$0xf]
          %v6264 = vld [vmem:[%s6252 + $0x2c] sm:$0xf]
          %v6265 = vld [vmem:[%s6252 + $0x30] sm:$0xf]
          %v6266 = vld [vmem:[%s6252 + $0x34] sm:$0xf]
          %v6267 = vld [vmem:[%s6252 + $0x38] sm:$0xf]
          %v6268 = vld [vmem:[%s6252 + $0x3c] sm:$0xf]
          %v6269 = vlaneseq
          %v6270 = vshrl.u32 %v6269, 7
          %v6271 = vsub.s32 1, %v6270
          %v6272 = vrot.slane %v5660, %v6271
          %v6289 = vunpack.c.l.b16 %v6253
          %v6290 = vunpack.c.l.b16 %v6254
          %v6291 = vunpack.c.l.b16 %v6255
          %v6292 = vunpack.c.l.b16 %v6256
          %v6293 = vunpack.c.l.b16 %v6257
          %v6294 = vunpack.c.l.b16 %v6258
          %v6295 = vunpack.c.l.b16 %v6259
          %v6296 = vunpack.c.l.b16 %v6260
          %v6297 = vunpack.c.l.b16 %v6261
          %v6298 = vunpack.c.l.b16 %v6262
          %v6299 = vunpack.c.l.b16 %v6263
          %v6300 = vunpack.c.l.b16 %v6264
          %v6301 = vunpack.c.l.b16 %v6265
          %v6302 = vunpack.c.l.b16 %v6266
          %v6303 = vunpack.c.l.b16 %v6267
          %v6304 = vunpack.c.l.b16 %v6268
          %v6305 = vpack.c.b16 %v6290, %v6289
          %v6306 = vpack.c.b16 %v6292, %v6291
          %v6307 = vpack.c.b16 %v6294, %v6293
          %v6308 = vpack.c.b16 %v6296, %v6295
          %v6309 = vpack.c.b16 %v6298, %v6297
          %v6310 = vpack.c.b16 %v6300, %v6299
          %v6311 = vpack.c.b16 %v6302, %v6301
          %v6312 = vpack.c.b16 %v6304, %v6303
          %6321 = vmatprep.subr.bf16.mxu0 0
          %6322 = vmatpush1.bf16.msra.mxu0 %v6305
          %6323 = vmatprep.subr.bf16.mxu0 0
          %6324 = vmatpush1.bf16.msra.mxu0 %v6306
          %6325 = vmatprep.subr.bf16.mxu0 0
          %6326 = vmatpush1.bf16.msra.mxu0 %v6307
          %6327 = vmatprep.subr.bf16.mxu0 0
          %6328 = vmatpush1.bf16.msra.mxu0 %v6308
          %6329 = vmatprep.subr.bf16.mxu0 0
          %6330 = vmatpush1.bf16.msra.mxu0 %v6309
          %6331 = vmatprep.subr.bf16.mxu0 0
          %6332 = vmatpush1.bf16.msra.mxu0 %v6310
          %6333 = vmatprep.subr.bf16.mxu0 0
          %6334 = vmatpush1.bf16.msra.mxu0 %v6311
          %6335 = vmatprep.subr.bf16.mxu0 0
          %6336 = vmatpush1.bf16.msra.mxu0 %v6312
          %6337 = vmatprep.subr.bf16.mxu0 0
          %6338 = vmatpush1.bf16.msra.mxu0 0
          %6339 = vmatprep.subr.bf16.mxu0 0
          %6340 = vmatpush1.bf16.msra.mxu0 0
          %6341 = vmatprep.subr.bf16.mxu0 0
          %6342 = vmatpush1.bf16.msra.mxu0 0
          %6343 = vmatprep.subr.bf16.mxu0 0
          %6344 = vmatpush1.bf16.msra.mxu0 0
          %6345 = vmatprep.subr.bf16.mxu0 0
          %6346 = vmatpush1.bf16.msra.mxu0 0
          %6347 = vmatprep.subr.bf16.mxu0 0
          %6348 = vmatpush1.bf16.msra.mxu0 0
          %6349 = vmatprep.subr.bf16.mxu0 0
          %6350 = vmatpush1.bf16.msra.mxu0 0
          %6351 = vmatprep.subr.bf16.mxu0 0
          %6352 = vmatpush1.bf16.msra.mxu0 0
          %6353 = vmatprep.mubr.bf16.mxu0 0
          %6354 = vmatmul.mubr.bf16.gmra.mrb[0].mxu0 %v5543
          %v6355 = vpop.f32.mrb[0].mxu0
          %v6356 = vadd.f32 %v6272, %v6355
          %v6357 = vpop.f32.mrb[0].mxu0
          %v6358 = vpop.f32.mrb[0].mxu0
          %v6359 = vpop.f32.mrb[0].mxu0
          %6360 = vdwg.mxu0
          %s6361 = scalar_lea.vmem %s14, 320
          %v6362 = vld [vmem:[%s6361] sm:$0xf]
          %v6363 = vld [vmem:[%s6361 + $0x4] sm:$0xf]
          %v6364 = vld [vmem:[%s6361 + $0x8] sm:$0xf]
          %v6365 = vld [vmem:[%s6361 + $0xc] sm:$0xf]
          %v6366 = vld [vmem:[%s6361 + $0x10] sm:$0xf]
          %v6367 = vld [vmem:[%s6361 + $0x14] sm:$0xf]
          %v6368 = vld [vmem:[%s6361 + $0x18] sm:$0xf]
          %v6369 = vld [vmem:[%s6361 + $0x1c] sm:$0xf]
          %v6370 = vld [vmem:[%s6361 + $0x20] sm:$0xf]
          %v6371 = vld [vmem:[%s6361 + $0x24] sm:$0xf]
          %v6372 = vld [vmem:[%s6361 + $0x28] sm:$0xf]
          %v6373 = vld [vmem:[%s6361 + $0x2c] sm:$0xf]
          %v6374 = vld [vmem:[%s6361 + $0x30] sm:$0xf]
          %v6375 = vld [vmem:[%s6361 + $0x34] sm:$0xf]
          %v6376 = vld [vmem:[%s6361 + $0x38] sm:$0xf]
          %v6377 = vld [vmem:[%s6361 + $0x3c] sm:$0xf]
          %v6378 = vlaneseq
          %v6379 = vshrl.u32 %v6378, 7
          %v6380 = vsub.s32 5, %v6379
          %v6381 = vrot.slane %v5660, %v6380
          %v6398 = vunpack.c.l.b16 %v6362
          %v6399 = vunpack.c.l.b16 %v6363
          %v6400 = vunpack.c.l.b16 %v6364
          %v6401 = vunpack.c.l.b16 %v6365
          %v6402 = vunpack.c.l.b16 %v6366
          %v6403 = vunpack.c.l.b16 %v6367
          %v6404 = vunpack.c.l.b16 %v6368
          %v6405 = vunpack.c.l.b16 %v6369
          %v6406 = vunpack.c.l.b16 %v6370
          %v6407 = vunpack.c.l.b16 %v6371
          %v6408 = vunpack.c.l.b16 %v6372
          %v6409 = vunpack.c.l.b16 %v6373
          %v6410 = vunpack.c.l.b16 %v6374
          %v6411 = vunpack.c.l.b16 %v6375
          %v6412 = vunpack.c.l.b16 %v6376
          %v6413 = vunpack.c.l.b16 %v6377
          %v6414 = vpack.c.b16 %v6399, %v6398
          %v6415 = vpack.c.b16 %v6401, %v6400
          %v6416 = vpack.c.b16 %v6403, %v6402
          %v6417 = vpack.c.b16 %v6405, %v6404
          %v6418 = vpack.c.b16 %v6407, %v6406
          %v6419 = vpack.c.b16 %v6409, %v6408
          %v6420 = vpack.c.b16 %v6411, %v6410
          %v6421 = vpack.c.b16 %v6413, %v6412
          %6430 = vmatprep.subr.bf16.mxu0 0
          %6431 = vmatpush1.bf16.msra.mxu0 %v6414
          %6432 = vmatprep.subr.bf16.mxu0 0
          %6433 = vmatpush1.bf16.msra.mxu0 %v6415
          %6434 = vmatprep.subr.bf16.mxu0 0
          %6435 = vmatpush1.bf16.msra.mxu0 %v6416
          %6436 = vmatprep.subr.bf16.mxu0 0
          %6437 = vmatpush1.bf16.msra.mxu0 %v6417
          %6438 = vmatprep.subr.bf16.mxu0 0
          %6439 = vmatpush1.bf16.msra.mxu0 %v6418
          %6440 = vmatprep.subr.bf16.mxu0 0
          %6441 = vmatpush1.bf16.msra.mxu0 %v6419
          %6442 = vmatprep.subr.bf16.mxu0 0
          %6443 = vmatpush1.bf16.msra.mxu0 %v6420
          %6444 = vmatprep.subr.bf16.mxu0 0
          %6445 = vmatpush1.bf16.msra.mxu0 %v6421
          %6446 = vmatprep.subr.bf16.mxu0 0
          %6447 = vmatpush1.bf16.msra.mxu0 0
          %6448 = vmatprep.subr.bf16.mxu0 0
          %6449 = vmatpush1.bf16.msra.mxu0 0
          %6450 = vmatprep.subr.bf16.mxu0 0
          %6451 = vmatpush1.bf16.msra.mxu0 0
          %6452 = vmatprep.subr.bf16.mxu0 0
          %6453 = vmatpush1.bf16.msra.mxu0 0
          %6454 = vmatprep.subr.bf16.mxu0 0
          %6455 = vmatpush1.bf16.msra.mxu0 0
          %6456 = vmatprep.subr.bf16.mxu0 0
          %6457 = vmatpush1.bf16.msra.mxu0 0
          %6458 = vmatprep.subr.bf16.mxu0 0
          %6459 = vmatpush1.bf16.msra.mxu0 0
          %6460 = vmatprep.subr.bf16.mxu0 0
          %6461 = vmatpush1.bf16.msra.mxu0 0
          %6462 = vmatprep.mubr.bf16.mxu0 0
          %6463 = vmatmul.mubr.bf16.gmra.mrb[0].mxu0 %v5656
          %v6464 = vpop.f32.mrb[0].mxu0
          %v6465 = vadd.f32 %v6381, %v6464
          %v6466 = vpop.f32.mrb[0].mxu0
          %v6467 = vpop.f32.mrb[0].mxu0
          %v6468 = vadd.f32 %v6381, %v6467
          %v6469 = vpop.f32.mrb[0].mxu0
          %6470 = vmatprep.mubr.bf16.mxu0 0
          %6471 = vmatmul.mubr.bf16.gmra.mrb[0].mxu0 %v5657
          %v6472 = vpop.f32.mrb[0].mxu0
          %v6473 = vadd.f32 %v6381, %v6472
          %v6474 = vpop.f32.mrb[0].mxu0
          %v6475 = vpop.f32.mrb[0].mxu0
          %v6476 = vadd.f32 %v6381, %v6475
          %v6477 = vpop.f32.mrb[0].mxu0
          %6478 = vmatprep.mubr.bf16.mxu0 0
          %6479 = vmatmul.mubr.bf16.gmra.mrb[0].mxu0 %v5658
          %v6480 = vpop.f32.mrb[0].mxu0
          %v6481 = vadd.f32 %v6381, %v6480
          %v6482 = vpop.f32.mrb[0].mxu0
          %v6483 = vpop.f32.mrb[0].mxu0
          %v6484 = vadd.f32 %v6381, %v6483
          %v6485 = vpop.f32.mrb[0].mxu0
          %6486 = vmatprep.mubr.bf16.mxu0 0
          %6487 = vmatmul.mubr.bf16.gmra.mrb[0].mxu0 %v5659
          %v6488 = vpop.f32.mrb[0].mxu0
          %v6489 = vadd.f32 %v6381, %v6488
          %v6490 = vpop.f32.mrb[0].mxu0
          %v6491 = vpop.f32.mrb[0].mxu0
          %v6492 = vadd.f32 %v6381, %v6491
          %v6493 = vpop.f32.mrb[0].mxu0
          %6494 = vdwg.mxu0
          %s6495 = scalar_lea.vmem %s14, 576
          %v6496 = vld [vmem:[%s6495] sm:$0xf]
          %v6497 = vld [vmem:[%s6495 + $0x4] sm:$0xf]
          %v6498 = vld [vmem:[%s6495 + $0x8] sm:$0xf]
          %v6499 = vld [vmem:[%s6495 + $0xc] sm:$0xf]
          %v6500 = vld [vmem:[%s6495 + $0x10] sm:$0xf]
          %v6501 = vld [vmem:[%s6495 + $0x14] sm:$0xf]
          %v6502 = vld [vmem:[%s6495 + $0x18] sm:$0xf]
          %v6503 = vld [vmem:[%s6495 + $0x1c] sm:$0xf]
          %v6504 = vld [vmem:[%s6495 + $0x20] sm:$0xf]
          %v6505 = vld [vmem:[%s6495 + $0x24] sm:$0xf]
          %v6506 = vld [vmem:[%s6495 + $0x28] sm:$0xf]
          %v6507 = vld [vmem:[%s6495 + $0x2c] sm:$0xf]
          %v6508 = vld [vmem:[%s6495 + $0x30] sm:$0xf]
          %v6509 = vld [vmem:[%s6495 + $0x34] sm:$0xf]
          %v6510 = vld [vmem:[%s6495 + $0x38] sm:$0xf]
          %v6511 = vld [vmem:[%s6495 + $0x3c] sm:$0xf]
          %v6528 = vunpack.c.l.b16 %v6496
          %v6529 = vunpack.c.l.b16 %v6497
          %v6530 = vunpack.c.l.b16 %v6498
          %v6531 = vunpack.c.l.b16 %v6499
          %v6532 = vunpack.c.l.b16 %v6500
          %v6533 = vunpack.c.l.b16 %v6501
          %v6534 = vunpack.c.l.b16 %v6502
          %v6535 = vunpack.c.l.b16 %v6503
          %v6536 = vunpack.c.l.b16 %v6504
          %v6537 = vunpack.c.l.b16 %v6505
          %v6538 = vunpack.c.l.b16 %v6506
          %v6539 = vunpack.c.l.b16 %v6507
          %v6540 = vunpack.c.l.b16 %v6508
          %v6541 = vunpack.c.l.b16 %v6509
          %v6542 = vunpack.c.l.b16 %v6510
          %v6543 = vunpack.c.l.b16 %v6511
          %v6544 = vpack.c.b16 %v6529, %v6528
          %v6545 = vpack.c.b16 %v6531, %v6530
          %v6546 = vpack.c.b16 %v6533, %v6532
          %v6547 = vpack.c.b16 %v6535, %v6534
          %v6548 = vpack.c.b16 %v6537, %v6536
          %v6549 = vpack.c.b16 %v6539, %v6538
          %v6550 = vpack.c.b16 %v6541, %v6540
          %v6551 = vpack.c.b16 %v6543, %v6542
          %6560 = vmatprep.subr.bf16.mxu0 0
          %6561 = vmatpush1.bf16.msra.mxu0 %v6544
          %6562 = vmatprep.subr.bf16.mxu0 0
          %6563 = vmatpush1.bf16.msra.mxu0 %v6545
          %6564 = vmatprep.subr.bf16.mxu0 0
          %6565 = vmatpush1.bf16.msra.mxu0 %v6546
          %6566 = vmatprep.subr.bf16.mxu0 0
          %6567 = vmatpush1.bf16.msra.mxu0 %v6547
          %6568 = vmatprep.subr.bf16.mxu0 0
          %6569 = vmatpush1.bf16.msra.mxu0 %v6548
          %6570 = vmatprep.subr.bf16.mxu0 0
          %6571 = vmatpush1.bf16.msra.mxu0 %v6549
          %6572 = vmatprep.subr.bf16.mxu0 0
          %6573 = vmatpush1.bf16.msra.mxu0 %v6550
          %6574 = vmatprep.subr.bf16.mxu0 0
          %6575 = vmatpush1.bf16.msra.mxu0 %v6551
          %6576 = vmatprep.subr.bf16.mxu0 0
          %6577 = vmatpush1.bf16.msra.mxu0 0
          %6578 = vmatprep.subr.bf16.mxu0 0
          %6579 = vmatpush1.bf16.msra.mxu0 0
          %6580 = vmatprep.subr.bf16.mxu0 0
          %6581 = vmatpush1.bf16.msra.mxu0 0
          %6582 = vmatprep.subr.bf16.mxu0 0
          %6583 = vmatpush1.bf16.msra.mxu0 0
          %6584 = vmatprep.subr.bf16.mxu0 0
          %6585 = vmatpush1.bf16.msra.mxu0 0
          %6586 = vmatprep.subr.bf16.mxu0 0
          %6587 = vmatpush1.bf16.msra.mxu0 0
          %6588 = vmatprep.subr.bf16.mxu0 0
          %6589 = vmatpush1.bf16.msra.mxu0 0
          %6590 = vmatprep.subr.bf16.mxu0 0
          %6591 = vmatpush1.bf16.msra.mxu0 0
          %6592 = vmatprep.mubr.bf16.mxu0 0
          %6593 = vmatmul.mubr.bf16.gmra.mrb[0].mxu0 %v5656
          %v6594 = vpop.f32.mrb[0].mxu0
          %v6595 = vadd.f32 0.0, %v6594
          %v6596 = vpop.f32.mrb[0].mxu0
          %v6597 = vpop.f32.mrb[0].mxu0
          %v6598 = vadd.f32 0.0, %v6597
          %v6599 = vpop.f32.mrb[0].mxu0
          %6600 = vmatprep.mubr.bf16.mxu0 0
          %6601 = vmatmul.mubr.bf16.gmra.mrb[0].mxu0 %v5657
          %v6602 = vpop.f32.mrb[0].mxu0
          %v6603 = vadd.f32 0.0, %v6602
          %v6604 = vpop.f32.mrb[0].mxu0
          %v6605 = vpop.f32.mrb[0].mxu0
          %v6606 = vadd.f32 0.0, %v6605
          %v6607 = vpop.f32.mrb[0].mxu0
          %6608 = vmatprep.mubr.bf16.mxu0 0
          %6609 = vmatmul.mubr.bf16.gmra.mrb[0].mxu0 %v5658
          %v6610 = vpop.f32.mrb[0].mxu0
          %v6611 = vadd.f32 0.0, %v6610
          %v6612 = vpop.f32.mrb[0].mxu0
          %v6613 = vpop.f32.mrb[0].mxu0
          %v6614 = vadd.f32 0.0, %v6613
          %v6615 = vpop.f32.mrb[0].mxu0
          %6616 = vmatprep.mubr.bf16.mxu0 0
          %6617 = vmatmul.mubr.bf16.gmra.mrb[0].mxu0 %v5659
          %v6618 = vpop.f32.mrb[0].mxu0
          %v6619 = vadd.f32 0.0, %v6618
          %v6620 = vpop.f32.mrb[0].mxu0
          %v6621 = vpop.f32.mrb[0].mxu0
          %v6622 = vadd.f32 0.0, %v6621
          %v6623 = vpop.f32.mrb[0].mxu0
          %6624 = vdwg.mxu0
          %v6625 = vpack.c.bf16 %v6356, %v6356
          %v6626 = vpack.c.bf16 %v6468, %v6465
          %v6627 = vpack.c.bf16 %v6476, %v6473
          %v6628 = vpack.c.bf16 %v6484, %v6481
          %v6629 = vpack.c.bf16 %v6492, %v6489
          %v6631 = vsel %vm1364, %v6625, 0
          %v6634 = vsel %vm1364, %v6626, 0
          %v6637 = vsel %vm1364, %v6627, 0
          %6639 = vmatprep.subr.bf16.mxu0 0
          %6640 = vmatpush1.bf16.xpose.msra.mxu0 %v6634
          %6641 = vmatprep.subr.bf16.mxu0 0
          %6642 = vmatpush1.bf16.xpose.msra.mxu0 %v6637
          %6643 = vmatprep.subr.bf16.mxu0 0
          %6644 = vmatpush1.bf16.xpose.msra.mxu0 0
          %6645 = vmatprep.subr.bf16.mxu0 0
          %6646 = vmatpush1.bf16.xpose.msra.mxu0 0
          %6647 = vmatprep.subr.bf16.mxu0 0
          %6648 = vmatpush1.bf16.xpose.msra.mxu0 0
          %6649 = vmatprep.subr.bf16.mxu0 0
          %6650 = vmatpush1.bf16.xpose.msra.mxu0 0
          %6651 = vmatprep.subr.bf16.mxu0 0
          %6652 = vmatpush1.bf16.xpose.msra.mxu0 0
          %6653 = vmatprep.subr.bf16.mxu0 0
          %6654 = vmatpush1.bf16.xpose.msra.mxu0 0
          %6655 = vmatprep.subr.bf16.mxu0 0
          %6656 = vmatpush1.bf16.xpose.msra.mxu0 0
          %6657 = vmatprep.subr.bf16.mxu0 0
          %6658 = vmatpush1.bf16.xpose.msra.mxu0 0
          %6659 = vmatprep.subr.bf16.mxu0 0
          %6660 = vmatpush1.bf16.xpose.msra.mxu0 0
          %6661 = vmatprep.subr.bf16.mxu0 0
          %6662 = vmatpush1.bf16.xpose.msra.mxu0 0
          %6663 = vmatprep.subr.bf16.mxu0 0
          %6664 = vmatpush1.bf16.xpose.msra.mxu0 0
          %6665 = vmatprep.subr.bf16.mxu0 0
          %6666 = vmatpush1.bf16.xpose.msra.mxu0 0
          %6667 = vmatprep.subr.bf16.mxu0 0
          %6668 = vmatpush1.bf16.xpose.msra.mxu0 0
          %6669 = vmatprep.subr.bf16.mxu0 0
          %6670 = vmatpush1.bf16.xpose.msra.mxu0 0
          %6671 = vmatprep.mubr.bf16.mxu0 0
          %6672 = vmatmul.mubr.bf16.gmra.mrb[0].mxu0 %v6631
          %v6673 = vpop.f32.mrb[0].mxu0
          %v6674 = vadd.f32 0.0, %v6673
          %v6675 = vpop.f32.mrb[0].mxu0
          %v6676 = vpop.f32.mrb[0].mxu0
          %v6677 = vpop.f32.mrb[0].mxu0
          %6678 = vdwg.mxu0
          %v6680 = vsel %vm1364, %v6628, 0
          %v6683 = vsel %vm1364, %v6629, 0
          %6685 = vmatprep.subr.bf16.mxu0 0
          %6686 = vmatpush1.bf16.xpose.msra.mxu0 %v6680
          %6687 = vmatprep.subr.bf16.mxu0 0
          %6688 = vmatpush1.bf16.xpose.msra.mxu0 %v6683
          %6689 = vmatprep.subr.bf16.mxu0 0
          %6690 = vmatpush1.bf16.xpose.msra.mxu0 0
          %6691 = vmatprep.subr.bf16.mxu0 0
          %6692 = vmatpush1.bf16.xpose.msra.mxu0 0
          %6693 = vmatprep.subr.bf16.mxu0 0
          %6694 = vmatpush1.bf16.xpose.msra.mxu0 0
          %6695 = vmatprep.subr.bf16.mxu0 0
          %6696 = vmatpush1.bf16.xpose.msra.mxu0 0
          %6697 = vmatprep.subr.bf16.mxu0 0
          %6698 = vmatpush1.bf16.xpose.msra.mxu0 0
          %6699 = vmatprep.subr.bf16.mxu0 0
          %6700 = vmatpush1.bf16.xpose.msra.mxu0 0
          %6701 = vmatprep.subr.bf16.mxu0 0
          %6702 = vmatpush1.bf16.xpose.msra.mxu0 0
          %6703 = vmatprep.subr.bf16.mxu0 0
          %6704 = vmatpush1.bf16.xpose.msra.mxu0 0
          %6705 = vmatprep.subr.bf16.mxu0 0
          %6706 = vmatpush1.bf16.xpose.msra.mxu0 0
          %6707 = vmatprep.subr.bf16.mxu0 0
          %6708 = vmatpush1.bf16.xpose.msra.mxu0 0
          %6709 = vmatprep.subr.bf16.mxu0 0
          %6710 = vmatpush1.bf16.xpose.msra.mxu0 0
          %6711 = vmatprep.subr.bf16.mxu0 0
          %6712 = vmatpush1.bf16.xpose.msra.mxu0 0
          %6713 = vmatprep.subr.bf16.mxu0 0
          %6714 = vmatpush1.bf16.xpose.msra.mxu0 0
          %6715 = vmatprep.subr.bf16.mxu0 0
          %6716 = vmatpush1.bf16.xpose.msra.mxu0 0
          %6717 = vmatprep.mubr.bf16.mxu0 0
          %6718 = vmatmul.mubr.bf16.gmra.mrb[0].mxu0 %v6631
          %v6719 = vpop.f32.mrb[0].mxu0
          %v6720 = vadd.f32 0.0, %v6719
          %v6721 = vpop.f32.mrb[0].mxu0
          %v6722 = vpop.f32.mrb[0].mxu0
          %v6723 = vpop.f32.mrb[0].mxu0
          %6724 = vdwg.mxu0
          %v6725 = vsel %vm1364, %v6674, -inf
          %6726 = vmax.xlane.f32.xlu0 %v6725
          %v6727 = vpop.xlane.xlu0 %6726
          %v6728 = vsel %vm1364, %v6720, -inf
          %6729 = vmax.xlane.f32.xlu0 %v6728
          %v6730 = vpop.xlane.xlu0 %6729
          %v6731 = vsub.f32 %v6674, %v6727
          %v6732 = vsub.f32 %v6720, %v6730
          %v6733 = vmul.f32 %v6731, 1.442695
          %v6734 = vpow.pop %v6733
          %v6735 = vmul.f32 %v6732, 1.442695
          %v6736 = vpow.pop %v6735
          %v6737 = vsel %vm1364, %v6734, 0.0
          %6738 = vadd.xlane.f32.xlu0 %v6737
          %v6739 = vpop.xlane.xlu0 %6738
          %v6740 = vsel %vm1364, %v6736, 0.0
          %6741 = vadd.xlane.f32.xlu0 %v6740
          %v6742 = vpop.xlane.xlu0 %6741
          %v6743 = vrcp.pop %v6739
          %v6744 = vrcp.pop %v6742
          %v6745 = vmul.f32 %v6734, %v6743
          %v6746 = vmul.f32 %v6736, %v6744
          %v6747 = vpack.c.bf16 %v6745, %v6745
          %v6748 = vpack.c.bf16 %v6746, %v6746
          %v6749 = vpack.c.bf16 %v6598, %v6595
          %v6750 = vpack.c.bf16 %v6606, %v6603
          %v6751 = vpack.c.bf16 %v6614, %v6611
          %v6752 = vpack.c.bf16 %v6622, %v6619
          %v6754 = vsel %vm1364, %v6747, 0
          %6756 = vmatprep.subr.bf16.mxu0 0
          %6757 = vmatpush1.bf16.msra.mxu0 %v6749
          %6758 = vmatprep.subr.bf16.mxu0 0
          %6759 = vmatpush1.bf16.msra.mxu0 %v6750
          %6760 = vmatprep.subr.bf16.mxu0 0
          %6761 = vmatpush1.bf16.msra.mxu0 0
          %6762 = vmatprep.subr.bf16.mxu0 0
          %6763 = vmatpush1.bf16.msra.mxu0 0
          %6764 = vmatprep.subr.bf16.mxu0 0
          %6765 = vmatpush1.bf16.msra.mxu0 0
          %6766 = vmatprep.subr.bf16.mxu0 0
          %6767 = vmatpush1.bf16.msra.mxu0 0
          %6768 = vmatprep.subr.bf16.mxu0 0
          %6769 = vmatpush1.bf16.msra.mxu0 0
          %6770 = vmatprep.subr.bf16.mxu0 0
          %6771 = vmatpush1.bf16.msra.mxu0 0
          %6772 = vmatprep.subr.bf16.mxu0 0
          %6773 = vmatpush1.bf16.msra.mxu0 0
          %6774 = vmatprep.subr.bf16.mxu0 0
          %6775 = vmatpush1.bf16.msra.mxu0 0
          %6776 = vmatprep.subr.bf16.mxu0 0
          %6777 = vmatpush1.bf16.msra.mxu0 0
          %6778 = vmatprep.subr.bf16.mxu0 0
          %6779 = vmatpush1.bf16.msra.mxu0 0
          %6780 = vmatprep.subr.bf16.mxu0 0
          %6781 = vmatpush1.bf16.msra.mxu0 0
          %6782 = vmatprep.subr.bf16.mxu0 0
          %6783 = vmatpush1.bf16.msra.mxu0 0
          %6784 = vmatprep.subr.bf16.mxu0 0
          %6785 = vmatpush1.bf16.msra.mxu0 0
          %6786 = vmatprep.subr.bf16.mxu0 0
          %6787 = vmatpush1.bf16.msra.mxu0 0
          %6788 = vmatprep.mubr.bf16.mxu0 0
          %6789 = vmatmul.mubr.bf16.gmra.mrb[0].mxu0 %v6754
          %v6790 = vpop.f32.mrb[0].mxu0
          %v6791 = vadd.f32 0.0, %v6790
          %v6792 = vpop.f32.mrb[0].mxu0
          %v6793 = vpop.f32.mrb[0].mxu0
          %v6794 = vpop.f32.mrb[0].mxu0
          %6795 = vdwg.mxu0
          %v6797 = vsel %vm1364, %v6748, 0
          %6799 = vmatprep.subr.bf16.mxu0 0
          %6800 = vmatpush1.bf16.msra.mxu0 %v6751
          %6801 = vmatprep.subr.bf16.mxu0 0
          %6802 = vmatpush1.bf16.msra.mxu0 %v6752
          %6803 = vmatprep.subr.bf16.mxu0 0
          %6804 = vmatpush1.bf16.msra.mxu0 0
          %6805 = vmatprep.subr.bf16.mxu0 0
          %6806 = vmatpush1.bf16.msra.mxu0 0
          %6807 = vmatprep.subr.bf16.mxu0 0
          %6808 = vmatpush1.bf16.msra.mxu0 0
          %6809 = vmatprep.subr.bf16.mxu0 0
          %6810 = vmatpush1.bf16.msra.mxu0 0
          %6811 = vmatprep.subr.bf16.mxu0 0
          %6812 = vmatpush1.bf16.msra.mxu0 0
          %6813 = vmatprep.subr.bf16.mxu0 0
          %6814 = vmatpush1.bf16.msra.mxu0 0
          %6815 = vmatprep.subr.bf16.mxu0 0
          %6816 = vmatpush1.bf16.msra.mxu0 0
          %6817 = vmatprep.subr.bf16.mxu0 0
          %6818 = vmatpush1.bf16.msra.mxu0 0
          %6819 = vmatprep.subr.bf16.mxu0 0
          %6820 = vmatpush1.bf16.msra.mxu0 0
          %6821 = vmatprep.subr.bf16.mxu0 0
          %6822 = vmatpush1.bf16.msra.mxu0 0
          %6823 = vmatprep.subr.bf16.mxu0 0
          %6824 = vmatpush1.bf16.msra.mxu0 0
          %6825 = vmatprep.subr.bf16.mxu0 0
          %6826 = vmatpush1.bf16.msra.mxu0 0
          %6827 = vmatprep.subr.bf16.mxu0 0
          %6828 = vmatpush1.bf16.msra.mxu0 0
          %6829 = vmatprep.subr.bf16.mxu0 0
          %6830 = vmatpush1.bf16.msra.mxu0 0
          %6831 = vmatprep.mubr.bf16.mxu0 0
          %6832 = vmatmul.mubr.bf16.gmra.mrb[0].mxu0 %v6797
          %v6833 = vpop.f32.mrb[0].mxu0
          %v6834 = vadd.f32 0.0, %v6833
          %v6835 = vpop.f32.mrb[0].mxu0
          %v6836 = vpop.f32.mrb[0].mxu0
          %v6837 = vpop.f32.mrb[0].mxu0
          %6838 = vdwg.mxu0
          %v6839 = vpack.c.bf16 %v6834, %v6791
          %s6840 = scalar_lea.vmem %s15, 16
          %v6841 = vld [vmem:[%s6840] sm:$0xf]
          %v6842 = vld [vmem:[%s6840 + $0x4] sm:$0xf]
          %v6843 = vld [vmem:[%s6840 + $0x8] sm:$0xf]
          %v6844 = vld [vmem:[%s6840 + $0xc] sm:$0xf]
          %v6849 = vunpack.c.l.b16 %v6841
          %v6850 = vunpack.c.l.b16 %v6842
          %v6851 = vunpack.c.l.b16 %v6843
          %v6852 = vunpack.c.l.b16 %v6844
          %v6853 = vpack.c.b16 %v6850, %v6849
          %v6854 = vpack.c.b16 %v6852, %v6851
          %v6858 = vsel %vm1364, %v6839, 0
          %6860 = vmatprep.subr.bf16.mxu0 0
          %6861 = vmatpush1.bf16.msra.mxu0 %v6853
          %6862 = vmatprep.subr.bf16.mxu0 0
          %6863 = vmatpush1.bf16.msra.mxu0 %v6854
          %6864 = vmatprep.subr.bf16.mxu0 0
          %6865 = vmatpush1.bf16.msra.mxu0 0
          %6866 = vmatprep.subr.bf16.mxu0 0
          %6867 = vmatpush1.bf16.msra.mxu0 0
          %6868 = vmatprep.subr.bf16.mxu0 0
          %6869 = vmatpush1.bf16.msra.mxu0 0
          %6870 = vmatprep.subr.bf16.mxu0 0
          %6871 = vmatpush1.bf16.msra.mxu0 0
          %6872 = vmatprep.subr.bf16.mxu0 0
          %6873 = vmatpush1.bf16.msra.mxu0 0
          %6874 = vmatprep.subr.bf16.mxu0 0
          %6875 = vmatpush1.bf16.msra.mxu0 0
          %6876 = vmatprep.subr.bf16.mxu0 0
          %6877 = vmatpush1.bf16.msra.mxu0 0
          %6878 = vmatprep.subr.bf16.mxu0 0
          %6879 = vmatpush1.bf16.msra.mxu0 0
          %6880 = vmatprep.subr.bf16.mxu0 0
          %6881 = vmatpush1.bf16.msra.mxu0 0
          %6882 = vmatprep.subr.bf16.mxu0 0
          %6883 = vmatpush1.bf16.msra.mxu0 0
          %6884 = vmatprep.subr.bf16.mxu0 0
          %6885 = vmatpush1.bf16.msra.mxu0 0
          %6886 = vmatprep.subr.bf16.mxu0 0
          %6887 = vmatpush1.bf16.msra.mxu0 0
          %6888 = vmatprep.subr.bf16.mxu0 0
          %6889 = vmatpush1.bf16.msra.mxu0 0
          %6890 = vmatprep.subr.bf16.mxu0 0
          %6891 = vmatpush1.bf16.msra.mxu0 0
          %6892 = vmatprep.mubr.bf16.mxu0 0
          %6893 = vmatmul.mubr.bf16.gmra.mrb[0].mxu0 %v6858
          %v6894 = vpop.f32.mrb[0].mxu0
          %v6895 = vadd.f32 0.0, %v6894
          %v6896 = vpop.f32.mrb[0].mxu0
          %v6897 = vpop.f32.mrb[0].mxu0
          %v6898 = vadd.f32 0.0, %v6897
          %v6899 = vpop.f32.mrb[0].mxu0
          %6900 = vdwg.mxu0
          %v6905 = vunpack.c.l.b16 %v6248
          %v6906 = vunpack.c.l.b16 %v6249
          %v6907 = vunpack.c.l.b16 %v6250
          %v6908 = vunpack.c.l.b16 %v6251
          %v6909 = vpack.c.b16 %v6906, %v6905
          %v6910 = vpack.c.b16 %v6908, %v6907
          %v6914 = vsel %vm1364, %v6247, 0
          %6916 = vmatprep.subr.bf16.mxu0 0
          %6917 = vmatpush1.bf16.msra.mxu0 %v6909
          %6918 = vmatprep.subr.bf16.mxu0 0
          %6919 = vmatpush1.bf16.msra.mxu0 %v6910
          %6920 = vmatprep.subr.bf16.mxu0 0
          %6921 = vmatpush1.bf16.msra.mxu0 0
          %6922 = vmatprep.subr.bf16.mxu0 0
          %6923 = vmatpush1.bf16.msra.mxu0 0
          %6924 = vmatprep.subr.bf16.mxu0 0
          %6925 = vmatpush1.bf16.msra.mxu0 0
          %6926 = vmatprep.subr.bf16.mxu0 0
          %6927 = vmatpush1.bf16.msra.mxu0 0
          %6928 = vmatprep.subr.bf16.mxu0 0
          %6929 = vmatpush1.bf16.msra.mxu0 0
          %6930 = vmatprep.subr.bf16.mxu0 0
          %6931 = vmatpush1.bf16.msra.mxu0 0
          %6932 = vmatprep.subr.bf16.mxu0 0
          %6933 = vmatpush1.bf16.msra.mxu0 0
          %6934 = vmatprep.subr.bf16.mxu0 0
          %6935 = vmatpush1.bf16.msra.mxu0 0
          %6936 = vmatprep.subr.bf16.mxu0 0
          %6937 = vmatpush1.bf16.msra.mxu0 0
          %6938 = vmatprep.subr.bf16.mxu0 0
          %6939 = vmatpush1.bf16.msra.mxu0 0
          %6940 = vmatprep.subr.bf16.mxu0 0
          %6941 = vmatpush1.bf16.msra.mxu0 0
          %6942 = vmatprep.subr.bf16.mxu0 0
          %6943 = vmatpush1.bf16.msra.mxu0 0
          %6944 = vmatprep.subr.bf16.mxu0 0
          %6945 = vmatpush1.bf16.msra.mxu0 0
          %6946 = vmatprep.subr.bf16.mxu0 0
          %6947 = vmatpush1.bf16.msra.mxu0 0
          %6948 = vmatprep.mubr.bf16.mxu0 0
          %6949 = vmatmul.mubr.bf16.gmra.mrb[0].mxu0 %v6914
          %v6950 = vpop.f32.mrb[0].mxu0
          %v6951 = vadd.f32 %v6895, %v6950
          %v6952 = vpop.f32.mrb[0].mxu0
          %v6953 = vpop.f32.mrb[0].mxu0
          %v6954 = vadd.f32 %v6898, %v6953
          %v6955 = vpop.f32.mrb[0].mxu0
          %6956 = vdwg.mxu0
          %s6957 = scalar_lea.vmem %s14, 128
          %v6958 = vld [vmem:[%s6957] sm:$0xf]
          %v6959 = vld [vmem:[%s6957 + $0x4] sm:$0xf]
          %v6960 = vld [vmem:[%s6957 + $0x8] sm:$0xf]
          %v6961 = vld [vmem:[%s6957 + $0xc] sm:$0xf]
          %v6962 = vld [vmem:[%s6957 + $0x10] sm:$0xf]
          %v6963 = vld [vmem:[%s6957 + $0x14] sm:$0xf]
          %v6964 = vld [vmem:[%s6957 + $0x18] sm:$0xf]
          %v6965 = vld [vmem:[%s6957 + $0x1c] sm:$0xf]
          %v6966 = vld [vmem:[%s6957 + $0x20] sm:$0xf]
          %v6967 = vld [vmem:[%s6957 + $0x24] sm:$0xf]
          %v6968 = vld [vmem:[%s6957 + $0x28] sm:$0xf]
          %v6969 = vld [vmem:[%s6957 + $0x2c] sm:$0xf]
          %v6970 = vld [vmem:[%s6957 + $0x30] sm:$0xf]
          %v6971 = vld [vmem:[%s6957 + $0x34] sm:$0xf]
          %v6972 = vld [vmem:[%s6957 + $0x38] sm:$0xf]
          %v6973 = vld [vmem:[%s6957 + $0x3c] sm:$0xf]
          %v6974 = vlaneseq
          %v6975 = vshrl.u32 %v6974, 7
          %v6976 = vsub.s32 2, %v6975
          %v6977 = vrot.slane %v5660, %v6976
          %v6994 = vunpack.c.l.b16 %v6958
          %v6995 = vunpack.c.l.b16 %v6959
          %v6996 = vunpack.c.l.b16 %v6960
          %v6997 = vunpack.c.l.b16 %v6961
          %v6998 = vunpack.c.l.b16 %v6962
          %v6999 = vunpack.c.l.b16 %v6963
          %v7000 = vunpack.c.l.b16 %v6964
          %v7001 = vunpack.c.l.b16 %v6965
          %v7002 = vunpack.c.l.b16 %v6966
          %v7003 = vunpack.c.l.b16 %v6967
          %v7004 = vunpack.c.l.b16 %v6968
          %v7005 = vunpack.c.l.b16 %v6969
          %v7006 = vunpack.c.l.b16 %v6970
          %v7007 = vunpack.c.l.b16 %v6971
          %v7008 = vunpack.c.l.b16 %v6972
          %v7009 = vunpack.c.l.b16 %v6973
          %v7010 = vpack.c.b16 %v6995, %v6994
          %v7011 = vpack.c.b16 %v6997, %v6996
          %v7012 = vpack.c.b16 %v6999, %v6998
          %v7013 = vpack.c.b16 %v7001, %v7000
          %v7014 = vpack.c.b16 %v7003, %v7002
          %v7015 = vpack.c.b16 %v7005, %v7004
          %v7016 = vpack.c.b16 %v7007, %v7006
          %v7017 = vpack.c.b16 %v7009, %v7008
          %7026 = vmatprep.subr.bf16.mxu0 0
          %7027 = vmatpush1.bf16.msra.mxu0 %v7010
          %7028 = vmatprep.subr.bf16.mxu0 0
          %7029 = vmatpush1.bf16.msra.mxu0 %v7011
          %7030 = vmatprep.subr.bf16.mxu0 0
          %7031 = vmatpush1.bf16.msra.mxu0 %v7012
          %7032 = vmatprep.subr.bf16.mxu0 0
          %7033 = vmatpush1.bf16.msra.mxu0 %v7013
          %7034 = vmatprep.subr.bf16.mxu0 0
          %7035 = vmatpush1.bf16.msra.mxu0 %v7014
          %7036 = vmatprep.subr.bf16.mxu0 0
          %7037 = vmatpush1.bf16.msra.mxu0 %v7015
          %7038 = vmatprep.subr.bf16.mxu0 0
          %7039 = vmatpush1.bf16.msra.mxu0 %v7016
          %7040 = vmatprep.subr.bf16.mxu0 0
          %7041 = vmatpush1.bf16.msra.mxu0 %v7017
          %7042 = vmatprep.subr.bf16.mxu0 0
          %7043 = vmatpush1.bf16.msra.mxu0 0
          %7044 = vmatprep.subr.bf16.mxu0 0
          %7045 = vmatpush1.bf16.msra.mxu0 0
          %7046 = vmatprep.subr.bf16.mxu0 0
          %7047 = vmatpush1.bf16.msra.mxu0 0
          %7048 = vmatprep.subr.bf16.mxu0 0
          %7049 = vmatpush1.bf16.msra.mxu0 0
          %7050 = vmatprep.subr.bf16.mxu0 0
          %7051 = vmatpush1.bf16.msra.mxu0 0
          %7052 = vmatprep.subr.bf16.mxu0 0
          %7053 = vmatpush1.bf16.msra.mxu0 0
          %7054 = vmatprep.subr.bf16.mxu0 0
          %7055 = vmatpush1.bf16.msra.mxu0 0
          %7056 = vmatprep.subr.bf16.mxu0 0
          %7057 = vmatpush1.bf16.msra.mxu0 0
          %7058 = vmatprep.mubr.bf16.mxu0 0
          %7059 = vmatmul.mubr.bf16.gmra.mrb[0].mxu0 %v5543
          %v7060 = vpop.f32.mrb[0].mxu0
          %v7061 = vadd.f32 %v6977, %v7060
          %v7062 = vpop.f32.mrb[0].mxu0
          %v7063 = vpop.f32.mrb[0].mxu0
          %v7064 = vpop.f32.mrb[0].mxu0
          %7065 = vdwg.mxu0
          %s7066 = scalar_lea.vmem %s14, 384
          %v7067 = vld [vmem:[%s7066] sm:$0xf]
          %v7068 = vld [vmem:[%s7066 + $0x4] sm:$0xf]
          %v7069 = vld [vmem:[%s7066 + $0x8] sm:$0xf]
          %v7070 = vld [vmem:[%s7066 + $0xc] sm:$0xf]
          %v7071 = vld [vmem:[%s7066 + $0x10] sm:$0xf]
          %v7072 = vld [vmem:[%s7066 + $0x14] sm:$0xf]
          %v7073 = vld [vmem:[%s7066 + $0x18] sm:$0xf]
          %v7074 = vld [vmem:[%s7066 + $0x1c] sm:$0xf]
          %v7075 = vld [vmem:[%s7066 + $0x20] sm:$0xf]
          %v7076 = vld [vmem:[%s7066 + $0x24] sm:$0xf]
          %v7077 = vld [vmem:[%s7066 + $0x28] sm:$0xf]
          %v7078 = vld [vmem:[%s7066 + $0x2c] sm:$0xf]
          %v7079 = vld [vmem:[%s7066 + $0x30] sm:$0xf]
          %v7080 = vld [vmem:[%s7066 + $0x34] sm:$0xf]
          %v7081 = vld [vmem:[%s7066 + $0x38] sm:$0xf]
          %v7082 = vld [vmem:[%s7066 + $0x3c] sm:$0xf]
          %v7083 = vlaneseq
          %v7084 = vshrl.u32 %v7083, 7
          %v7085 = vsub.s32 6, %v7084
          %v7086 = vrot.slane %v5660, %v7085
          %v7103 = vunpack.c.l.b16 %v7067
          %v7104 = vunpack.c.l.b16 %v7068
          %v7105 = vunpack.c.l.b16 %v7069
          %v7106 = vunpack.c.l.b16 %v7070
          %v7107 = vunpack.c.l.b16 %v7071
          %v7108 = vunpack.c.l.b16 %v7072
          %v7109 = vunpack.c.l.b16 %v7073
          %v7110 = vunpack.c.l.b16 %v7074
          %v7111 = vunpack.c.l.b16 %v7075
          %v7112 = vunpack.c.l.b16 %v7076
          %v7113 = vunpack.c.l.b16 %v7077
          %v7114 = vunpack.c.l.b16 %v7078
          %v7115 = vunpack.c.l.b16 %v7079
          %v7116 = vunpack.c.l.b16 %v7080
          %v7117 = vunpack.c.l.b16 %v7081
          %v7118 = vunpack.c.l.b16 %v7082
          %v7119 = vpack.c.b16 %v7104, %v7103
          %v7120 = vpack.c.b16 %v7106, %v7105
          %v7121 = vpack.c.b16 %v7108, %v7107
          %v7122 = vpack.c.b16 %v7110, %v7109
          %v7123 = vpack.c.b16 %v7112, %v7111
          %v7124 = vpack.c.b16 %v7114, %v7113
          %v7125 = vpack.c.b16 %v7116, %v7115
          %v7126 = vpack.c.b16 %v7118, %v7117
          %7135 = vmatprep.subr.bf16.mxu0 0
          %7136 = vmatpush1.bf16.msra.mxu0 %v7119
          %7137 = vmatprep.subr.bf16.mxu0 0
          %7138 = vmatpush1.bf16.msra.mxu0 %v7120
          %7139 = vmatprep.subr.bf16.mxu0 0
          %7140 = vmatpush1.bf16.msra.mxu0 %v7121
          %7141 = vmatprep.subr.bf16.mxu0 0
          %7142 = vmatpush1.bf16.msra.mxu0 %v7122
          %7143 = vmatprep.subr.bf16.mxu0 0
          %7144 = vmatpush1.bf16.msra.mxu0 %v7123
          %7145 = vmatprep.subr.bf16.mxu0 0
          %7146 = vmatpush1.bf16.msra.mxu0 %v7124
          %7147 = vmatprep.subr.bf16.mxu0 0
          %7148 = vmatpush1.bf16.msra.mxu0 %v7125
          %7149 = vmatprep.subr.bf16.mxu0 0
          %7150 = vmatpush1.bf16.msra.mxu0 %v7126
          %7151 = vmatprep.subr.bf16.mxu0 0
          %7152 = vmatpush1.bf16.msra.mxu0 0
          %7153 = vmatprep.subr.bf16.mxu0 0
          %7154 = vmatpush1.bf16.msra.mxu0 0
          %7155 = vmatprep.subr.bf16.mxu0 0
          %7156 = vmatpush1.bf16.msra.mxu0 0
          %7157 = vmatprep.subr.bf16.mxu0 0
          %7158 = vmatpush1.bf16.msra.mxu0 0
          %7159 = vmatprep.subr.bf16.mxu0 0
          %7160 = vmatpush1.bf16.msra.mxu0 0
          %7161 = vmatprep.subr.bf16.mxu0 0
          %7162 = vmatpush1.bf16.msra.mxu0 0
          %7163 = vmatprep.subr.bf16.mxu0 0
          %7164 = vmatpush1.bf16.msra.mxu0 0
          %7165 = vmatprep.subr.bf16.mxu0 0
          %7166 = vmatpush1.bf16.msra.mxu0 0
          %7167 = vmatprep.mubr.bf16.mxu0 0
          %7168 = vmatmul.mubr.bf16.gmra.mrb[0].mxu0 %v5656
          %v7169 = vpop.f32.mrb[0].mxu0
          %v7170 = vadd.f32 %v7086, %v7169
          %v7171 = vpop.f32.mrb[0].mxu0
          %v7172 = vpop.f32.mrb[0].mxu0
          %v7173 = vadd.f32 %v7086, %v7172
          %v7174 = vpop.f32.mrb[0].mxu0
          %7175 = vmatprep.mubr.bf16.mxu0 0
          %7176 = vmatmul.mubr.bf16.gmra.mrb[0].mxu0 %v5657
          %v7177 = vpop.f32.mrb[0].mxu0
          %v7178 = vadd.f32 %v7086, %v7177
          %v7179 = vpop.f32.mrb[0].mxu0
          %v7180 = vpop.f32.mrb[0].mxu0
          %v7181 = vadd.f32 %v7086, %v7180
          %v7182 = vpop.f32.mrb[0].mxu0
          %7183 = vmatprep.mubr.bf16.mxu0 0
          %7184 = vmatmul.mubr.bf16.gmra.mrb[0].mxu0 %v5658
          %v7185 = vpop.f32.mrb[0].mxu0
          %v7186 = vadd.f32 %v7086, %v7185
          %v7187 = vpop.f32.mrb[0].mxu0
          %v7188 = vpop.f32.mrb[0].mxu0
          %v7189 = vadd.f32 %v7086, %v7188
          %v7190 = vpop.f32.mrb[0].mxu0
          %7191 = vmatprep.mubr.bf16.mxu0 0
          %7192 = vmatmul.mubr.bf16.gmra.mrb[0].mxu0 %v5659
          %v7193 = vpop.f32.mrb[0].mxu0
          %v7194 = vadd.f32 %v7086, %v7193
          %v7195 = vpop.f32.mrb[0].mxu0
          %v7196 = vpop.f32.mrb[0].mxu0
          %v7197 = vadd.f32 %v7086, %v7196
          %v7198 = vpop.f32.mrb[0].mxu0
          %7199 = vdwg.mxu0
          %s7200 = scalar_lea.vmem %s14, 640
          %v7201 = vld [vmem:[%s7200] sm:$0xf]
          %v7202 = vld [vmem:[%s7200 + $0x4] sm:$0xf]
          %v7203 = vld [vmem:[%s7200 + $0x8] sm:$0xf]
          %v7204 = vld [vmem:[%s7200 + $0xc] sm:$0xf]
          %v7205 = vld [vmem:[%s7200 + $0x10] sm:$0xf]
          %v7206 = vld [vmem:[%s7200 + $0x14] sm:$0xf]
          %v7207 = vld [vmem:[%s7200 + $0x18] sm:$0xf]
          %v7208 = vld [vmem:[%s7200 + $0x1c] sm:$0xf]
          %v7209 = vld [vmem:[%s7200 + $0x20] sm:$0xf]
          %v7210 = vld [vmem:[%s7200 + $0x24] sm:$0xf]
          %v7211 = vld [vmem:[%s7200 + $0x28] sm:$0xf]
          %v7212 = vld [vmem:[%s7200 + $0x2c] sm:$0xf]
          %v7213 = vld [vmem:[%s7200 + $0x30] sm:$0xf]
          %v7214 = vld [vmem:[%s7200 + $0x34] sm:$0xf]
          %v7215 = vld [vmem:[%s7200 + $0x38] sm:$0xf]
          %v7216 = vld [vmem:[%s7200 + $0x3c] sm:$0xf]
          %v7233 = vunpack.c.l.b16 %v7201
          %v7234 = vunpack.c.l.b16 %v7202
          %v7235 = vunpack.c.l.b16 %v7203
          %v7236 = vunpack.c.l.b16 %v7204
          %v7237 = vunpack.c.l.b16 %v7205
          %v7238 = vunpack.c.l.b16 %v7206
          %v7239 = vunpack.c.l.b16 %v7207
          %v7240 = vunpack.c.l.b16 %v7208
          %v7241 = vunpack.c.l.b16 %v7209
          %v7242 = vunpack.c.l.b16 %v7210
          %v7243 = vunpack.c.l.b16 %v7211
          %v7244 = vunpack.c.l.b16 %v7212
          %v7245 = vunpack.c.l.b16 %v7213
          %v7246 = vunpack.c.l.b16 %v7214
          %v7247 = vunpack.c.l.b16 %v7215
          %v7248 = vunpack.c.l.b16 %v7216
          %v7249 = vpack.c.b16 %v7234, %v7233
          %v7250 = vpack.c.b16 %v7236, %v7235
          %v7251 = vpack.c.b16 %v7238, %v7237
          %v7252 = vpack.c.b16 %v7240, %v7239
          %v7253 = vpack.c.b16 %v7242, %v7241
          %v7254 = vpack.c.b16 %v7244, %v7243
          %v7255 = vpack.c.b16 %v7246, %v7245
          %v7256 = vpack.c.b16 %v7248, %v7247
          %7265 = vmatprep.subr.bf16.mxu0 0
          %7266 = vmatpush1.bf16.msra.mxu0 %v7249
          %7267 = vmatprep.subr.bf16.mxu0 0
          %7268 = vmatpush1.bf16.msra.mxu0 %v7250
          %7269 = vmatprep.subr.bf16.mxu0 0
          %7270 = vmatpush1.bf16.msra.mxu0 %v7251
          %7271 = vmatprep.subr.bf16.mxu0 0
          %7272 = vmatpush1.bf16.msra.mxu0 %v7252
          %7273 = vmatprep.subr.bf16.mxu0 0
          %7274 = vmatpush1.bf16.msra.mxu0 %v7253
          %7275 = vmatprep.subr.bf16.mxu0 0
          %7276 = vmatpush1.bf16.msra.mxu0 %v7254
          %7277 = vmatprep.subr.bf16.mxu0 0
          %7278 = vmatpush1.bf16.msra.mxu0 %v7255
          %7279 = vmatprep.subr.bf16.mxu0 0
          %7280 = vmatpush1.bf16.msra.mxu0 %v7256
          %7281 = vmatprep.subr.bf16.mxu0 0
          %7282 = vmatpush1.bf16.msra.mxu0 0
          %7283 = vmatprep.subr.bf16.mxu0 0
          %7284 = vmatpush1.bf16.msra.mxu0 0
          %7285 = vmatprep.subr.bf16.mxu0 0
          %7286 = vmatpush1.bf16.msra.mxu0 0
          %7287 = vmatprep.subr.bf16.mxu0 0
          %7288 = vmatpush1.bf16.msra.mxu0 0
          %7289 = vmatprep.subr.bf16.mxu0 0
          %7290 = vmatpush1.bf16.msra.mxu0 0
          %7291 = vmatprep.subr.bf16.mxu0 0
          %7292 = vmatpush1.bf16.msra.mxu0 0
          %7293 = vmatprep.subr.bf16.mxu0 0
          %7294 = vmatpush1.bf16.msra.mxu0 0
          %7295 = vmatprep.subr.bf16.mxu0 0
          %7296 = vmatpush1.bf16.msra.mxu0 0
          %7297 = vmatprep.mubr.bf16.mxu0 0
          %7298 = vmatmul.mubr.bf16.gmra.mrb[0].mxu0 %v5656
          %v7299 = vpop.f32.mrb[0].mxu0
          %v7300 = vadd.f32 0.0, %v7299
          %v7301 = vpop.f32.mrb[0].mxu0
          %v7302 = vpop.f32.mrb[0].mxu0
          %v7303 = vadd.f32 0.0, %v7302
          %v7304 = vpop.f32.mrb[0].mxu0
          %7305 = vmatprep.mubr.bf16.mxu0 0
          %7306 = vmatmul.mubr.bf16.gmra.mrb[0].mxu0 %v5657
          %v7307 = vpop.f32.mrb[0].mxu0
          %v7308 = vadd.f32 0.0, %v7307
          %v7309 = vpop.f32.mrb[0].mxu0
          %v7310 = vpop.f32.mrb[0].mxu0
          %v7311 = vadd.f32 0.0, %v7310
          %v7312 = vpop.f32.mrb[0].mxu0
          %7313 = vmatprep.mubr.bf16.mxu0 0
          %7314 = vmatmul.mubr.bf16.gmra.mrb[0].mxu0 %v5658
          %v7315 = vpop.f32.mrb[0].mxu0
          %v7316 = vadd.f32 0.0, %v7315
          %v7317 = vpop.f32.mrb[0].mxu0
          %v7318 = vpop.f32.mrb[0].mxu0
          %v7319 = vadd.f32 0.0, %v7318
          %v7320 = vpop.f32.mrb[0].mxu0
          %7321 = vmatprep.mubr.bf16.mxu0 0
          %7322 = vmatmul.mubr.bf16.gmra.mrb[0].mxu0 %v5659
          %v7323 = vpop.f32.mrb[0].mxu0
          %v7324 = vadd.f32 0.0, %v7323
          %v7325 = vpop.f32.mrb[0].mxu0
          %v7326 = vpop.f32.mrb[0].mxu0
          %v7327 = vadd.f32 0.0, %v7326
          %v7328 = vpop.f32.mrb[0].mxu0
          %7329 = vdwg.mxu0
          %v7330 = vpack.c.bf16 %v7061, %v7061
          %v7331 = vpack.c.bf16 %v7173, %v7170
          %v7332 = vpack.c.bf16 %v7181, %v7178
          %v7333 = vpack.c.bf16 %v7189, %v7186
          %v7334 = vpack.c.bf16 %v7197, %v7194
          %v7336 = vsel %vm1364, %v7330, 0
          %v7339 = vsel %vm1364, %v7331, 0
          %v7342 = vsel %vm1364, %v7332, 0
          %7344 = vmatprep.subr.bf16.mxu0 0
          %7345 = vmatpush1.bf16.xpose.msra.mxu0 %v7339
          %7346 = vmatprep.subr.bf16.mxu0 0
          %7347 = vmatpush1.bf16.xpose.msra.mxu0 %v7342
          %7348 = vmatprep.subr.bf16.mxu0 0
          %7349 = vmatpush1.bf16.xpose.msra.mxu0 0
          %7350 = vmatprep.subr.bf16.mxu0 0
          %7351 = vmatpush1.bf16.xpose.msra.mxu0 0
          %7352 = vmatprep.subr.bf16.mxu0 0
          %7353 = vmatpush1.bf16.xpose.msra.mxu0 0
          %7354 = vmatprep.subr.bf16.mxu0 0
          %7355 = vmatpush1.bf16.xpose.msra.mxu0 0
          %7356 = vmatprep.subr.bf16.mxu0 0
          %7357 = vmatpush1.bf16.xpose.msra.mxu0 0
          %7358 = vmatprep.subr.bf16.mxu0 0
          %7359 = vmatpush1.bf16.xpose.msra.mxu0 0
          %7360 = vmatprep.subr.bf16.mxu0 0
          %7361 = vmatpush1.bf16.xpose.msra.mxu0 0
          %7362 = vmatprep.subr.bf16.mxu0 0
          %7363 = vmatpush1.bf16.xpose.msra.mxu0 0
          %7364 = vmatprep.subr.bf16.mxu0 0
          %7365 = vmatpush1.bf16.xpose.msra.mxu0 0
          %7366 = vmatprep.subr.bf16.mxu0 0
          %7367 = vmatpush1.bf16.xpose.msra.mxu0 0
          %7368 = vmatprep.subr.bf16.mxu0 0
          %7369 = vmatpush1.bf16.xpose.msra.mxu0 0
          %7370 = vmatprep.subr.bf16.mxu0 0
          %7371 = vmatpush1.bf16.xpose.msra.mxu0 0
          %7372 = vmatprep.subr.bf16.mxu0 0
          %7373 = vmatpush1.bf16.xpose.msra.mxu0 0
          %7374 = vmatprep.subr.bf16.mxu0 0
          %7375 = vmatpush1.bf16.xpose.msra.mxu0 0
          %7376 = vmatprep.mubr.bf16.mxu0 0
          %7377 = vmatmul.mubr.bf16.gmra.mrb[0].mxu0 %v7336
          %v7378 = vpop.f32.mrb[0].mxu0
          %v7379 = vadd.f32 0.0, %v7378
          %v7380 = vpop.f32.mrb[0].mxu0
          %v7381 = vpop.f32.mrb[0].mxu0
          %v7382 = vpop.f32.mrb[0].mxu0
          %7383 = vdwg.mxu0
          %v7385 = vsel %vm1364, %v7333, 0
          %v7388 = vsel %vm1364, %v7334, 0
          %7390 = vmatprep.subr.bf16.mxu0 0
          %7391 = vmatpush1.bf16.xpose.msra.mxu0 %v7385
          %7392 = vmatprep.subr.bf16.mxu0 0
          %7393 = vmatpush1.bf16.xpose.msra.mxu0 %v7388
          %7394 = vmatprep.subr.bf16.mxu0 0
          %7395 = vmatpush1.bf16.xpose.msra.mxu0 0
          %7396 = vmatprep.subr.bf16.mxu0 0
          %7397 = vmatpush1.bf16.xpose.msra.mxu0 0
          %7398 = vmatprep.subr.bf16.mxu0 0
          %7399 = vmatpush1.bf16.xpose.msra.mxu0 0
          %7400 = vmatprep.subr.bf16.mxu0 0
          %7401 = vmatpush1.bf16.xpose.msra.mxu0 0
          %7402 = vmatprep.subr.bf16.mxu0 0
          %7403 = vmatpush1.bf16.xpose.msra.mxu0 0
          %7404 = vmatprep.subr.bf16.mxu0 0
          %7405 = vmatpush1.bf16.xpose.msra.mxu0 0
          %7406 = vmatprep.subr.bf16.mxu0 0
          %7407 = vmatpush1.bf16.xpose.msra.mxu0 0
          %7408 = vmatprep.subr.bf16.mxu0 0
          %7409 = vmatpush1.bf16.xpose.msra.mxu0 0
          %7410 = vmatprep.subr.bf16.mxu0 0
          %7411 = vmatpush1.bf16.xpose.msra.mxu0 0
          %7412 = vmatprep.subr.bf16.mxu0 0
          %7413 = vmatpush1.bf16.xpose.msra.mxu0 0
          %7414 = vmatprep.subr.bf16.mxu0 0
          %7415 = vmatpush1.bf16.xpose.msra.mxu0 0
          %7416 = vmatprep.subr.bf16.mxu0 0
          %7417 = vmatpush1.bf16.xpose.msra.mxu0 0
          %7418 = vmatprep.subr.bf16.mxu0 0
          %7419 = vmatpush1.bf16.xpose.msra.mxu0 0
          %7420 = vmatprep.subr.bf16.mxu0 0
          %7421 = vmatpush1.bf16.xpose.msra.mxu0 0
          %7422 = vmatprep.mubr.bf16.mxu0 0
          %7423 = vmatmul.mubr.bf16.gmra.mrb[0].mxu0 %v7336
          %v7424 = vpop.f32.mrb[0].mxu0
          %v7425 = vadd.f32 0.0, %v7424
          %v7426 = vpop.f32.mrb[0].mxu0
          %v7427 = vpop.f32.mrb[0].mxu0
          %v7428 = vpop.f32.mrb[0].mxu0
          %7429 = vdwg.mxu0
          %v7430 = vsel %vm1364, %v7379, -inf
          %7431 = vmax.xlane.f32.xlu0 %v7430
          %v7432 = vpop.xlane.xlu0 %7431
          %v7433 = vsel %vm1364, %v7425, -inf
          %7434 = vmax.xlane.f32.xlu0 %v7433
          %v7435 = vpop.xlane.xlu0 %7434
          %v7436 = vsub.f32 %v7379, %v7432
          %v7437 = vsub.f32 %v7425, %v7435
          %v7438 = vmul.f32 %v7436, 1.442695
          %v7439 = vpow.pop %v7438
          %v7440 = vmul.f32 %v7437, 1.442695
          %v7441 = vpow.pop %v7440
          %v7442 = vsel %vm1364, %v7439, 0.0
          %7443 = vadd.xlane.f32.xlu0 %v7442
          %v7444 = vpop.xlane.xlu0 %7443
          %v7445 = vsel %vm1364, %v7441, 0.0
          %7446 = vadd.xlane.f32.xlu0 %v7445
          %v7447 = vpop.xlane.xlu0 %7446
          %v7448 = vrcp.pop %v7444
          %v7449 = vrcp.pop %v7447
          %v7450 = vmul.f32 %v7439, %v7448
          %v7451 = vmul.f32 %v7441, %v7449
          %v7452 = vpack.c.bf16 %v7450, %v7450
          %v7453 = vpack.c.bf16 %v7451, %v7451
          %v7454 = vpack.c.bf16 %v7303, %v7300
          %v7455 = vpack.c.bf16 %v7311, %v7308
          %v7456 = vpack.c.bf16 %v7319, %v7316
          %v7457 = vpack.c.bf16 %v7327, %v7324
          %v7459 = vsel %vm1364, %v7452, 0
          %7461 = vmatprep.subr.bf16.mxu0 0
          %7462 = vmatpush1.bf16.msra.mxu0 %v7454
          %7463 = vmatprep.subr.bf16.mxu0 0
          %7464 = vmatpush1.bf16.msra.mxu0 %v7455
          %7465 = vmatprep.subr.bf16.mxu0 0
          %7466 = vmatpush1.bf16.msra.mxu0 0
          %7467 = vmatprep.subr.bf16.mxu0 0
          %7468 = vmatpush1.bf16.msra.mxu0 0
          %7469 = vmatprep.subr.bf16.mxu0 0
          %7470 = vmatpush1.bf16.msra.mxu0 0
          %7471 = vmatprep.subr.bf16.mxu0 0
          %7472 = vmatpush1.bf16.msra.mxu0 0
          %7473 = vmatprep.subr.bf16.mxu0 0
          %7474 = vmatpush1.bf16.msra.mxu0 0
          %7475 = vmatprep.subr.bf16.mxu0 0
          %7476 = vmatpush1.bf16.msra.mxu0 0
          %7477 = vmatprep.subr.bf16.mxu0 0
          %7478 = vmatpush1.bf16.msra.mxu0 0
          %7479 = vmatprep.subr.bf16.mxu0 0
          %7480 = vmatpush1.bf16.msra.mxu0 0
          %7481 = vmatprep.subr.bf16.mxu0 0
          %7482 = vmatpush1.bf16.msra.mxu0 0
          %7483 = vmatprep.subr.bf16.mxu0 0
          %7484 = vmatpush1.bf16.msra.mxu0 0
          %7485 = vmatprep.subr.bf16.mxu0 0
          %7486 = vmatpush1.bf16.msra.mxu0 0
          %7487 = vmatprep.subr.bf16.mxu0 0
          %7488 = vmatpush1.bf16.msra.mxu0 0
          %7489 = vmatprep.subr.bf16.mxu0 0
          %7490 = vmatpush1.bf16.msra.mxu0 0
          %7491 = vmatprep.subr.bf16.mxu0 0
          %7492 = vmatpush1.bf16.msra.mxu0 0
          %7493 = vmatprep.mubr.bf16.mxu0 0
          %7494 = vmatmul.mubr.bf16.gmra.mrb[0].mxu0 %v7459
          %v7495 = vpop.f32.mrb[0].mxu0
          %v7496 = vadd.f32 0.0, %v7495
          %v7497 = vpop.f32.mrb[0].mxu0
          %v7498 = vpop.f32.mrb[0].mxu0
          %v7499 = vpop.f32.mrb[0].mxu0
          %7500 = vdwg.mxu0
          %v7502 = vsel %vm1364, %v7453, 0
          %7504 = vmatprep.subr.bf16.mxu0 0
          %7505 = vmatpush1.bf16.msra.mxu0 %v7456
          %7506 = vmatprep.subr.bf16.mxu0 0
          %7507 = vmatpush1.bf16.msra.mxu0 %v7457
          %7508 = vmatprep.subr.bf16.mxu0 0
          %7509 = vmatpush1.bf16.msra.mxu0 0
          %7510 = vmatprep.subr.bf16.mxu0 0
          %7511 = vmatpush1.bf16.msra.mxu0 0
          %7512 = vmatprep.subr.bf16.mxu0 0
          %7513 = vmatpush1.bf16.msra.mxu0 0
          %7514 = vmatprep.subr.bf16.mxu0 0
          %7515 = vmatpush1.bf16.msra.mxu0 0
          %7516 = vmatprep.subr.bf16.mxu0 0
          %7517 = vmatpush1.bf16.msra.mxu0 0
          %7518 = vmatprep.subr.bf16.mxu0 0
          %7519 = vmatpush1.bf16.msra.mxu0 0
          %7520 = vmatprep.subr.bf16.mxu0 0
          %7521 = vmatpush1.bf16.msra.mxu0 0
          %7522 = vmatprep.subr.bf16.mxu0 0
          %7523 = vmatpush1.bf16.msra.mxu0 0
          %7524 = vmatprep.subr.bf16.mxu0 0
          %7525 = vmatpush1.bf16.msra.mxu0 0
          %7526 = vmatprep.subr.bf16.mxu0 0
          %7527 = vmatpush1.bf16.msra.mxu0 0
          %7528 = vmatprep.subr.bf16.mxu0 0
          %7529 = vmatpush1.bf16.msra.mxu0 0
          %7530 = vmatprep.subr.bf16.mxu0 0
          %7531 = vmatpush1.bf16.msra.mxu0 0
          %7532 = vmatprep.subr.bf16.mxu0 0
          %7533 = vmatpush1.bf16.msra.mxu0 0
          %7534 = vmatprep.subr.bf16.mxu0 0
          %7535 = vmatpush1.bf16.msra.mxu0 0
          %7536 = vmatprep.mubr.bf16.mxu0 0
          %7537 = vmatmul.mubr.bf16.gmra.mrb[0].mxu0 %v7502
          %v7538 = vpop.f32.mrb[0].mxu0
          %v7539 = vadd.f32 0.0, %v7538
          %v7540 = vpop.f32.mrb[0].mxu0
          %v7541 = vpop.f32.mrb[0].mxu0
          %v7542 = vpop.f32.mrb[0].mxu0
          %7543 = vdwg.mxu0
          %v7544 = vpack.c.bf16 %v7539, %v7496
          %s7545 = scalar_lea.vmem %s15, 32
          %v7546 = vld [vmem:[%s7545] sm:$0xf]
          %v7547 = vld [vmem:[%s7545 + $0x4] sm:$0xf]
          %v7548 = vld [vmem:[%s7545 + $0x8] sm:$0xf]
          %v7549 = vld [vmem:[%s7545 + $0xc] sm:$0xf]
          %v7554 = vunpack.c.l.b16 %v7546
          %v7555 = vunpack.c.l.b16 %v7547
          %v7556 = vunpack.c.l.b16 %v7548
          %v7557 = vunpack.c.l.b16 %v7549
          %v7558 = vpack.c.b16 %v7555, %v7554
          %v7559 = vpack.c.b16 %v7557, %v7556
          %v7563 = vsel %vm1364, %v7544, 0
          %7565 = vmatprep.subr.bf16.mxu0 0
          %7566 = vmatpush1.bf16.msra.mxu0 %v7558
          %7567 = vmatprep.subr.bf16.mxu0 0
          %7568 = vmatpush1.bf16.msra.mxu0 %v7559
          %7569 = vmatprep.subr.bf16.mxu0 0
          %7570 = vmatpush1.bf16.msra.mxu0 0
          %7571 = vmatprep.subr.bf16.mxu0 0
          %7572 = vmatpush1.bf16.msra.mxu0 0
          %7573 = vmatprep.subr.bf16.mxu0 0
          %7574 = vmatpush1.bf16.msra.mxu0 0
          %7575 = vmatprep.subr.bf16.mxu0 0
          %7576 = vmatpush1.bf16.msra.mxu0 0
          %7577 = vmatprep.subr.bf16.mxu0 0
          %7578 = vmatpush1.bf16.msra.mxu0 0
          %7579 = vmatprep.subr.bf16.mxu0 0
          %7580 = vmatpush1.bf16.msra.mxu0 0
          %7581 = vmatprep.subr.bf16.mxu0 0
          %7582 = vmatpush1.bf16.msra.mxu0 0
          %7583 = vmatprep.subr.bf16.mxu0 0
          %7584 = vmatpush1.bf16.msra.mxu0 0
          %7585 = vmatprep.subr.bf16.mxu0 0
          %7586 = vmatpush1.bf16.msra.mxu0 0
          %7587 = vmatprep.subr.bf16.mxu0 0
          %7588 = vmatpush1.bf16.msra.mxu0 0
          %7589 = vmatprep.subr.bf16.mxu0 0
          %7590 = vmatpush1.bf16.msra.mxu0 0
          %7591 = vmatprep.subr.bf16.mxu0 0
          %7592 = vmatpush1.bf16.msra.mxu0 0
          %7593 = vmatprep.subr.bf16.mxu0 0
          %7594 = vmatpush1.bf16.msra.mxu0 0
          %7595 = vmatprep.subr.bf16.mxu0 0
          %7596 = vmatpush1.bf16.msra.mxu0 0
          %7597 = vmatprep.mubr.bf16.mxu0 0
          %7598 = vmatmul.mubr.bf16.gmra.mrb[0].mxu0 %v7563
          %v7599 = vpop.f32.mrb[0].mxu0
          %v7600 = vadd.f32 0.0, %v7599
          %v7601 = vpop.f32.mrb[0].mxu0
          %v7602 = vpop.f32.mrb[0].mxu0
          %v7603 = vadd.f32 0.0, %v7602
          %v7604 = vpop.f32.mrb[0].mxu0
          %7605 = vdwg.mxu0
          %v7606 = vadd.f32 %v6951, %v7600
          %v7607 = vadd.f32 %v6954, %v7603
          %s7608 = scalar_lea.vmem %s14, 192
          %v7609 = vld [vmem:[%s7608] sm:$0xf]
          %v7610 = vld [vmem:[%s7608 + $0x4] sm:$0xf]
          %v7611 = vld [vmem:[%s7608 + $0x8] sm:$0xf]
          %v7612 = vld [vmem:[%s7608 + $0xc] sm:$0xf]
          %v7613 = vld [vmem:[%s7608 + $0x10] sm:$0xf]
          %v7614 = vld [vmem:[%s7608 + $0x14] sm:$0xf]
          %v7615 = vld [vmem:[%s7608 + $0x18] sm:$0xf]
          %v7616 = vld [vmem:[%s7608 + $0x1c] sm:$0xf]
          %v7617 = vld [vmem:[%s7608 + $0x20] sm:$0xf]
          %v7618 = vld [vmem:[%s7608 + $0x24] sm:$0xf]
          %v7619 = vld [vmem:[%s7608 + $0x28] sm:$0xf]
          %v7620 = vld [vmem:[%s7608 + $0x2c] sm:$0xf]
          %v7621 = vld [vmem:[%s7608 + $0x30] sm:$0xf]
          %v7622 = vld [vmem:[%s7608 + $0x34] sm:$0xf]
          %v7623 = vld [vmem:[%s7608 + $0x38] sm:$0xf]
          %v7624 = vld [vmem:[%s7608 + $0x3c] sm:$0xf]
          %v7625 = vlaneseq
          %v7626 = vshrl.u32 %v7625, 7
          %v7627 = vsub.s32 3, %v7626
          %v7628 = vrot.slane %v5660, %v7627
          %v7645 = vunpack.c.l.b16 %v7609
          %v7646 = vunpack.c.l.b16 %v7610
          %v7647 = vunpack.c.l.b16 %v7611
          %v7648 = vunpack.c.l.b16 %v7612
          %v7649 = vunpack.c.l.b16 %v7613
          %v7650 = vunpack.c.l.b16 %v7614
          %v7651 = vunpack.c.l.b16 %v7615
          %v7652 = vunpack.c.l.b16 %v7616
          %v7653 = vunpack.c.l.b16 %v7617
          %v7654 = vunpack.c.l.b16 %v7618
          %v7655 = vunpack.c.l.b16 %v7619
          %v7656 = vunpack.c.l.b16 %v7620
          %v7657 = vunpack.c.l.b16 %v7621
          %v7658 = vunpack.c.l.b16 %v7622
          %v7659 = vunpack.c.l.b16 %v7623
          %v7660 = vunpack.c.l.b16 %v7624
          %v7661 = vpack.c.b16 %v7646, %v7645
          %v7662 = vpack.c.b16 %v7648, %v7647
          %v7663 = vpack.c.b16 %v7650, %v7649
          %v7664 = vpack.c.b16 %v7652, %v7651
          %v7665 = vpack.c.b16 %v7654, %v7653
          %v7666 = vpack.c.b16 %v7656, %v7655
          %v7667 = vpack.c.b16 %v7658, %v7657
          %v7668 = vpack.c.b16 %v7660, %v7659
          %7677 = vmatprep.subr.bf16.mxu0 0
          %7678 = vmatpush1.bf16.msra.mxu0 %v7661
          %7679 = vmatprep.subr.bf16.mxu0 0
          %7680 = vmatpush1.bf16.msra.mxu0 %v7662
          %7681 = vmatprep.subr.bf16.mxu0 0
          %7682 = vmatpush1.bf16.msra.mxu0 %v7663
          %7683 = vmatprep.subr.bf16.mxu0 0
          %7684 = vmatpush1.bf16.msra.mxu0 %v7664
          %7685 = vmatprep.subr.bf16.mxu0 0
          %7686 = vmatpush1.bf16.msra.mxu0 %v7665
          %7687 = vmatprep.subr.bf16.mxu0 0
          %7688 = vmatpush1.bf16.msra.mxu0 %v7666
          %7689 = vmatprep.subr.bf16.mxu0 0
          %7690 = vmatpush1.bf16.msra.mxu0 %v7667
          %7691 = vmatprep.subr.bf16.mxu0 0
          %7692 = vmatpush1.bf16.msra.mxu0 %v7668
          %7693 = vmatprep.subr.bf16.mxu0 0
          %7694 = vmatpush1.bf16.msra.mxu0 0
          %7695 = vmatprep.subr.bf16.mxu0 0
          %7696 = vmatpush1.bf16.msra.mxu0 0
          %7697 = vmatprep.subr.bf16.mxu0 0
          %7698 = vmatpush1.bf16.msra.mxu0 0
          %7699 = vmatprep.subr.bf16.mxu0 0
          %7700 = vmatpush1.bf16.msra.mxu0 0
          %7701 = vmatprep.subr.bf16.mxu0 0
          %7702 = vmatpush1.bf16.msra.mxu0 0
          %7703 = vmatprep.subr.bf16.mxu0 0
          %7704 = vmatpush1.bf16.msra.mxu0 0
          %7705 = vmatprep.subr.bf16.mxu0 0
          %7706 = vmatpush1.bf16.msra.mxu0 0
          %7707 = vmatprep.subr.bf16.mxu0 0
          %7708 = vmatpush1.bf16.msra.mxu0 0
          %7709 = vmatprep.mubr.bf16.mxu0 0
          %7710 = vmatmul.mubr.bf16.gmra.mrb[0].mxu0 %v5543
          %v7711 = vpop.f32.mrb[0].mxu0
          %v7712 = vadd.f32 %v7628, %v7711
          %v7713 = vpop.f32.mrb[0].mxu0
          %v7714 = vpop.f32.mrb[0].mxu0
          %v7715 = vpop.f32.mrb[0].mxu0
          %7716 = vdwg.mxu0
          %s7717 = scalar_lea.vmem %s14, 448
          %v7718 = vld [vmem:[%s7717] sm:$0xf]
          %v7719 = vld [vmem:[%s7717 + $0x4] sm:$0xf]
          %v7720 = vld [vmem:[%s7717 + $0x8] sm:$0xf]
          %v7721 = vld [vmem:[%s7717 + $0xc] sm:$0xf]
          %v7722 = vld [vmem:[%s7717 + $0x10] sm:$0xf]
          %v7723 = vld [vmem:[%s7717 + $0x14] sm:$0xf]
          %v7724 = vld [vmem:[%s7717 + $0x18] sm:$0xf]
          %v7725 = vld [vmem:[%s7717 + $0x1c] sm:$0xf]
          %v7726 = vld [vmem:[%s7717 + $0x20] sm:$0xf]
          %v7727 = vld [vmem:[%s7717 + $0x24] sm:$0xf]
          %v7728 = vld [vmem:[%s7717 + $0x28] sm:$0xf]
          %v7729 = vld [vmem:[%s7717 + $0x2c] sm:$0xf]
          %v7730 = vld [vmem:[%s7717 + $0x30] sm:$0xf]
          %v7731 = vld [vmem:[%s7717 + $0x34] sm:$0xf]
          %v7732 = vld [vmem:[%s7717 + $0x38] sm:$0xf]
          %v7733 = vld [vmem:[%s7717 + $0x3c] sm:$0xf]
          %v7734 = vlaneseq
          %v7735 = vshrl.u32 %v7734, 7
          %v7736 = vsub.s32 7, %v7735
          %v7737 = vrot.slane %v5660, %v7736
          %v7754 = vunpack.c.l.b16 %v7718
          %v7755 = vunpack.c.l.b16 %v7719
          %v7756 = vunpack.c.l.b16 %v7720
          %v7757 = vunpack.c.l.b16 %v7721
          %v7758 = vunpack.c.l.b16 %v7722
          %v7759 = vunpack.c.l.b16 %v7723
          %v7760 = vunpack.c.l.b16 %v7724
          %v7761 = vunpack.c.l.b16 %v7725
          %v7762 = vunpack.c.l.b16 %v7726
          %v7763 = vunpack.c.l.b16 %v7727
          %v7764 = vunpack.c.l.b16 %v7728
          %v7765 = vunpack.c.l.b16 %v7729
          %v7766 = vunpack.c.l.b16 %v7730
          %v7767 = vunpack.c.l.b16 %v7731
          %v7768 = vunpack.c.l.b16 %v7732
          %v7769 = vunpack.c.l.b16 %v7733
          %v7770 = vpack.c.b16 %v7755, %v7754
          %v7771 = vpack.c.b16 %v7757, %v7756
          %v7772 = vpack.c.b16 %v7759, %v7758
          %v7773 = vpack.c.b16 %v7761, %v7760
          %v7774 = vpack.c.b16 %v7763, %v7762
          %v7775 = vpack.c.b16 %v7765, %v7764
          %v7776 = vpack.c.b16 %v7767, %v7766
          %v7777 = vpack.c.b16 %v7769, %v7768
          %7786 = vmatprep.subr.bf16.mxu0 0
          %7787 = vmatpush1.bf16.msra.mxu0 %v7770
          %7788 = vmatprep.subr.bf16.mxu0 0
          %7789 = vmatpush1.bf16.msra.mxu0 %v7771
          %7790 = vmatprep.subr.bf16.mxu0 0
          %7791 = vmatpush1.bf16.msra.mxu0 %v7772
          %7792 = vmatprep.subr.bf16.mxu0 0
          %7793 = vmatpush1.bf16.msra.mxu0 %v7773
          %7794 = vmatprep.subr.bf16.mxu0 0
          %7795 = vmatpush1.bf16.msra.mxu0 %v7774
          %7796 = vmatprep.subr.bf16.mxu0 0
          %7797 = vmatpush1.bf16.msra.mxu0 %v7775
          %7798 = vmatprep.subr.bf16.mxu0 0
          %7799 = vmatpush1.bf16.msra.mxu0 %v7776
          %7800 = vmatprep.subr.bf16.mxu0 0
          %7801 = vmatpush1.bf16.msra.mxu0 %v7777
          %7802 = vmatprep.subr.bf16.mxu0 0
          %7803 = vmatpush1.bf16.msra.mxu0 0
          %7804 = vmatprep.subr.bf16.mxu0 0
          %7805 = vmatpush1.bf16.msra.mxu0 0
          %7806 = vmatprep.subr.bf16.mxu0 0
          %7807 = vmatpush1.bf16.msra.mxu0 0
          %7808 = vmatprep.subr.bf16.mxu0 0
          %7809 = vmatpush1.bf16.msra.mxu0 0
          %7810 = vmatprep.subr.bf16.mxu0 0
          %7811 = vmatpush1.bf16.msra.mxu0 0
          %7812 = vmatprep.subr.bf16.mxu0 0
          %7813 = vmatpush1.bf16.msra.mxu0 0
          %7814 = vmatprep.subr.bf16.mxu0 0
          %7815 = vmatpush1.bf16.msra.mxu0 0
          %7816 = vmatprep.subr.bf16.mxu0 0
          %7817 = vmatpush1.bf16.msra.mxu0 0
          %7818 = vmatprep.mubr.bf16.mxu0 0
          %7819 = vmatmul.mubr.bf16.gmra.mrb[0].mxu0 %v5656
          %v7820 = vpop.f32.mrb[0].mxu0
          %v7821 = vadd.f32 %v7737, %v7820
          %v7822 = vpop.f32.mrb[0].mxu0
          %v7823 = vpop.f32.mrb[0].mxu0
          %v7824 = vadd.f32 %v7737, %v7823
          %v7825 = vpop.f32.mrb[0].mxu0
          %7826 = vmatprep.mubr.bf16.mxu0 0
          %7827 = vmatmul.mubr.bf16.gmra.mrb[0].mxu0 %v5657
          %v7828 = vpop.f32.mrb[0].mxu0
          %v7829 = vadd.f32 %v7737, %v7828
          %v7830 = vpop.f32.mrb[0].mxu0
          %v7831 = vpop.f32.mrb[0].mxu0
          %v7832 = vadd.f32 %v7737, %v7831
          %v7833 = vpop.f32.mrb[0].mxu0
          %7834 = vmatprep.mubr.bf16.mxu0 0
          %7835 = vmatmul.mubr.bf16.gmra.mrb[0].mxu0 %v5658
          %v7836 = vpop.f32.mrb[0].mxu0
          %v7837 = vadd.f32 %v7737, %v7836
          %v7838 = vpop.f32.mrb[0].mxu0
          %v7839 = vpop.f32.mrb[0].mxu0
          %v7840 = vadd.f32 %v7737, %v7839
          %v7841 = vpop.f32.mrb[0].mxu0
          %7842 = vmatprep.mubr.bf16.mxu0 0
          %7843 = vmatmul.mubr.bf16.gmra.mrb[0].mxu0 %v5659
          %v7844 = vpop.f32.mrb[0].mxu0
          %v7845 = vadd.f32 %v7737, %v7844
          %v7846 = vpop.f32.mrb[0].mxu0
          %v7847 = vpop.f32.mrb[0].mxu0
          %v7848 = vadd.f32 %v7737, %v7847
          %v7849 = vpop.f32.mrb[0].mxu0
          %7850 = vdwg.mxu0
          %s7851 = scalar_lea.vmem %s14, 704
          %v7852 = vld [vmem:[%s7851] sm:$0xf]
          %v7853 = vld [vmem:[%s7851 + $0x4] sm:$0xf]
          %v7854 = vld [vmem:[%s7851 + $0x8] sm:$0xf]
          %v7855 = vld [vmem:[%s7851 + $0xc] sm:$0xf]
          %v7856 = vld [vmem:[%s7851 + $0x10] sm:$0xf]
          %v7857 = vld [vmem:[%s7851 + $0x14] sm:$0xf]
          %v7858 = vld [vmem:[%s7851 + $0x18] sm:$0xf]
          %v7859 = vld [vmem:[%s7851 + $0x1c] sm:$0xf]
          %v7860 = vld [vmem:[%s7851 + $0x20] sm:$0xf]
          %v7861 = vld [vmem:[%s7851 + $0x24] sm:$0xf]
          %v7862 = vld [vmem:[%s7851 + $0x28] sm:$0xf]
          %v7863 = vld [vmem:[%s7851 + $0x2c] sm:$0xf]
          %v7864 = vld [vmem:[%s7851 + $0x30] sm:$0xf]
          %v7865 = vld [vmem:[%s7851 + $0x34] sm:$0xf]
          %v7866 = vld [vmem:[%s7851 + $0x38] sm:$0xf]
          %v7867 = vld [vmem:[%s7851 + $0x3c] sm:$0xf]
          %v7884 = vunpack.c.l.b16 %v7852
          %v7885 = vunpack.c.l.b16 %v7853
          %v7886 = vunpack.c.l.b16 %v7854
          %v7887 = vunpack.c.l.b16 %v7855
          %v7888 = vunpack.c.l.b16 %v7856
          %v7889 = vunpack.c.l.b16 %v7857
          %v7890 = vunpack.c.l.b16 %v7858
          %v7891 = vunpack.c.l.b16 %v7859
          %v7892 = vunpack.c.l.b16 %v7860
          %v7893 = vunpack.c.l.b16 %v7861
          %v7894 = vunpack.c.l.b16 %v7862
          %v7895 = vunpack.c.l.b16 %v7863
          %v7896 = vunpack.c.l.b16 %v7864
          %v7897 = vunpack.c.l.b16 %v7865
          %v7898 = vunpack.c.l.b16 %v7866
          %v7899 = vunpack.c.l.b16 %v7867
          %v7900 = vpack.c.b16 %v7885, %v7884
          %v7901 = vpack.c.b16 %v7887, %v7886
          %v7902 = vpack.c.b16 %v7889, %v7888
          %v7903 = vpack.c.b16 %v7891, %v7890
          %v7904 = vpack.c.b16 %v7893, %v7892
          %v7905 = vpack.c.b16 %v7895, %v7894
          %v7906 = vpack.c.b16 %v7897, %v7896
          %v7907 = vpack.c.b16 %v7899, %v7898
          %7916 = vmatprep.subr.bf16.mxu0 0
          %7917 = vmatpush1.bf16.msra.mxu0 %v7900
          %7918 = vmatprep.subr.bf16.mxu0 0
          %7919 = vmatpush1.bf16.msra.mxu0 %v7901
          %7920 = vmatprep.subr.bf16.mxu0 0
          %7921 = vmatpush1.bf16.msra.mxu0 %v7902
          %7922 = vmatprep.subr.bf16.mxu0 0
          %7923 = vmatpush1.bf16.msra.mxu0 %v7903
          %7924 = vmatprep.subr.bf16.mxu0 0
          %7925 = vmatpush1.bf16.msra.mxu0 %v7904
          %7926 = vmatprep.subr.bf16.mxu0 0
          %7927 = vmatpush1.bf16.msra.mxu0 %v7905
          %7928 = vmatprep.subr.bf16.mxu0 0
          %7929 = vmatpush1.bf16.msra.mxu0 %v7906
          %7930 = vmatprep.subr.bf16.mxu0 0
          %7931 = vmatpush1.bf16.msra.mxu0 %v7907
          %7932 = vmatprep.subr.bf16.mxu0 0
          %7933 = vmatpush1.bf16.msra.mxu0 0
          %7934 = vmatprep.subr.bf16.mxu0 0
          %7935 = vmatpush1.bf16.msra.mxu0 0
          %7936 = vmatprep.subr.bf16.mxu0 0
          %7937 = vmatpush1.bf16.msra.mxu0 0
          %7938 = vmatprep.subr.bf16.mxu0 0
          %7939 = vmatpush1.bf16.msra.mxu0 0
          %7940 = vmatprep.subr.bf16.mxu0 0
          %7941 = vmatpush1.bf16.msra.mxu0 0
          %7942 = vmatprep.subr.bf16.mxu0 0
          %7943 = vmatpush1.bf16.msra.mxu0 0
          %7944 = vmatprep.subr.bf16.mxu0 0
          %7945 = vmatpush1.bf16.msra.mxu0 0
          %7946 = vmatprep.subr.bf16.mxu0 0
          %7947 = vmatpush1.bf16.msra.mxu0 0
          %7948 = vmatprep.mubr.bf16.mxu0 0
          %7949 = vmatmul.mubr.bf16.gmra.mrb[0].mxu0 %v5656
          %v7950 = vpop.f32.mrb[0].mxu0
          %v7951 = vadd.f32 0.0, %v7950
          %v7952 = vpop.f32.mrb[0].mxu0
          %v7953 = vpop.f32.mrb[0].mxu0
          %v7954 = vadd.f32 0.0, %v7953
          %v7955 = vpop.f32.mrb[0].mxu0
          %7956 = vmatprep.mubr.bf16.mxu0 0
          %7957 = vmatmul.mubr.bf16.gmra.mrb[0].mxu0 %v5657
          %v7958 = vpop.f32.mrb[0].mxu0
          %v7959 = vadd.f32 0.0, %v7958
          %v7960 = vpop.f32.mrb[0].mxu0
          %v7961 = vpop.f32.mrb[0].mxu0
          %v7962 = vadd.f32 0.0, %v7961
          %v7963 = vpop.f32.mrb[0].mxu0
          %7964 = vmatprep.mubr.bf16.mxu0 0
          %7965 = vmatmul.mubr.bf16.gmra.mrb[0].mxu0 %v5658
          %v7966 = vpop.f32.mrb[0].mxu0
          %v7967 = vadd.f32 0.0, %v7966
          %v7968 = vpop.f32.mrb[0].mxu0
          %v7969 = vpop.f32.mrb[0].mxu0
          %v7970 = vadd.f32 0.0, %v7969
          %v7971 = vpop.f32.mrb[0].mxu0
          %7972 = vmatprep.mubr.bf16.mxu0 0
          %7973 = vmatmul.mubr.bf16.gmra.mrb[0].mxu0 %v5659
          %v7974 = vpop.f32.mrb[0].mxu0
          %v7975 = vadd.f32 0.0, %v7974
          %v7976 = vpop.f32.mrb[0].mxu0
          %v7977 = vpop.f32.mrb[0].mxu0
          %v7978 = vadd.f32 0.0, %v7977
          %v7979 = vpop.f32.mrb[0].mxu0
          %7980 = vdwg.mxu0
          %v7981 = vpack.c.bf16 %v7712, %v7712
          %v7982 = vpack.c.bf16 %v7824, %v7821
          %v7983 = vpack.c.bf16 %v7832, %v7829
          %v7984 = vpack.c.bf16 %v7840, %v7837
          %v7985 = vpack.c.bf16 %v7848, %v7845
          %v7987 = vsel %vm1364, %v7981, 0
          %v7990 = vsel %vm1364, %v7982, 0
          %v7993 = vsel %vm1364, %v7983, 0
          %7995 = vmatprep.subr.bf16.mxu0 0
          %7996 = vmatpush1.bf16.xpose.msra.mxu0 %v7990
          %7997 = vmatprep.subr.bf16.mxu0 0
          %7998 = vmatpush1.bf16.xpose.msra.mxu0 %v7993
          %7999 = vmatprep.subr.bf16.mxu0 0
          %8000 = vmatpush1.bf16.xpose.msra.mxu0 0
          %8001 = vmatprep.subr.bf16.mxu0 0
          %8002 = vmatpush1.bf16.xpose.msra.mxu0 0
          %8003 = vmatprep.subr.bf16.mxu0 0
          %8004 = vmatpush1.bf16.xpose.msra.mxu0 0
          %8005 = vmatprep.subr.bf16.mxu0 0
          %8006 = vmatpush1.bf16.xpose.msra.mxu0 0
          %8007 = vmatprep.subr.bf16.mxu0 0
          %8008 = vmatpush1.bf16.xpose.msra.mxu0 0
          %8009 = vmatprep.subr.bf16.mxu0 0
          %8010 = vmatpush1.bf16.xpose.msra.mxu0 0
          %8011 = vmatprep.subr.bf16.mxu0 0
          %8012 = vmatpush1.bf16.xpose.msra.mxu0 0
          %8013 = vmatprep.subr.bf16.mxu0 0
          %8014 = vmatpush1.bf16.xpose.msra.mxu0 0
          %8015 = vmatprep.subr.bf16.mxu0 0
          %8016 = vmatpush1.bf16.xpose.msra.mxu0 0
          %8017 = vmatprep.subr.bf16.mxu0 0
          %8018 = vmatpush1.bf16.xpose.msra.mxu0 0
          %8019 = vmatprep.subr.bf16.mxu0 0
          %8020 = vmatpush1.bf16.xpose.msra.mxu0 0
          %8021 = vmatprep.subr.bf16.mxu0 0
          %8022 = vmatpush1.bf16.xpose.msra.mxu0 0
          %8023 = vmatprep.subr.bf16.mxu0 0
          %8024 = vmatpush1.bf16.xpose.msra.mxu0 0
          %8025 = vmatprep.subr.bf16.mxu0 0
          %8026 = vmatpush1.bf16.xpose.msra.mxu0 0
          %8027 = vmatprep.mubr.bf16.mxu0 0
          %8028 = vmatmul.mubr.bf16.gmra.mrb[0].mxu0 %v7987
          %v8029 = vpop.f32.mrb[0].mxu0
          %v8030 = vadd.f32 0.0, %v8029
          %v8031 = vpop.f32.mrb[0].mxu0
          %v8032 = vpop.f32.mrb[0].mxu0
          %v8033 = vpop.f32.mrb[0].mxu0
          %8034 = vdwg.mxu0
          %v8036 = vsel %vm1364, %v7984, 0
          %v8039 = vsel %vm1364, %v7985, 0
          %8041 = vmatprep.subr.bf16.mxu0 0
          %8042 = vmatpush1.bf16.xpose.msra.mxu0 %v8036
          %8043 = vmatprep.subr.bf16.mxu0 0
          %8044 = vmatpush1.bf16.xpose.msra.mxu0 %v8039
          %8045 = vmatprep.subr.bf16.mxu0 0
          %8046 = vmatpush1.bf16.xpose.msra.mxu0 0
          %8047 = vmatprep.subr.bf16.mxu0 0
          %8048 = vmatpush1.bf16.xpose.msra.mxu0 0
          %8049 = vmatprep.subr.bf16.mxu0 0
          %8050 = vmatpush1.bf16.xpose.msra.mxu0 0
          %8051 = vmatprep.subr.bf16.mxu0 0
          %8052 = vmatpush1.bf16.xpose.msra.mxu0 0
          %8053 = vmatprep.subr.bf16.mxu0 0
          %8054 = vmatpush1.bf16.xpose.msra.mxu0 0
          %8055 = vmatprep.subr.bf16.mxu0 0
          %8056 = vmatpush1.bf16.xpose.msra.mxu0 0
          %8057 = vmatprep.subr.bf16.mxu0 0
          %8058 = vmatpush1.bf16.xpose.msra.mxu0 0
          %8059 = vmatprep.subr.bf16.mxu0 0
          %8060 = vmatpush1.bf16.xpose.msra.mxu0 0
          %8061 = vmatprep.subr.bf16.mxu0 0
          %8062 = vmatpush1.bf16.xpose.msra.mxu0 0
          %8063 = vmatprep.subr.bf16.mxu0 0
          %8064 = vmatpush1.bf16.xpose.msra.mxu0 0
          %8065 = vmatprep.subr.bf16.mxu0 0
          %8066 = vmatpush1.bf16.xpose.msra.mxu0 0
          %8067 = vmatprep.subr.bf16.mxu0 0
          %8068 = vmatpush1.bf16.xpose.msra.mxu0 0
          %8069 = vmatprep.subr.bf16.mxu0 0
          %8070 = vmatpush1.bf16.xpose.msra.mxu0 0
          %8071 = vmatprep.subr.bf16.mxu0 0
          %8072 = vmatpush1.bf16.xpose.msra.mxu0 0
          %8073 = vmatprep.mubr.bf16.mxu0 0
          %8074 = vmatmul.mubr.bf16.gmra.mrb[0].mxu0 %v7987
          %v8075 = vpop.f32.mrb[0].mxu0
          %v8076 = vadd.f32 0.0, %v8075
          %v8077 = vpop.f32.mrb[0].mxu0
          %v8078 = vpop.f32.mrb[0].mxu0
          %v8079 = vpop.f32.mrb[0].mxu0
          %8080 = vdwg.mxu0
          %v8081 = vsel %vm1364, %v8030, -inf
          %8082 = vmax.xlane.f32.xlu0 %v8081
          %v8083 = vpop.xlane.xlu0 %8082
          %v8084 = vsel %vm1364, %v8076, -inf
          %8085 = vmax.xlane.f32.xlu0 %v8084
          %v8086 = vpop.xlane.xlu0 %8085
          %v8087 = vsub.f32 %v8030, %v8083
          %v8088 = vsub.f32 %v8076, %v8086
          %v8089 = vmul.f32 %v8087, 1.442695
          %v8090 = vpow.pop %v8089
          %v8091 = vmul.f32 %v8088, 1.442695
          %v8092 = vpow.pop %v8091
          %v8093 = vsel %vm1364, %v8090, 0.0
          %8094 = vadd.xlane.f32.xlu0 %v8093
          %v8095 = vpop.xlane.xlu0 %8094
          %v8096 = vsel %vm1364, %v8092, 0.0
          %8097 = vadd.xlane.f32.xlu0 %v8096
          %v8098 = vpop.xlane.xlu0 %8097
          %v8099 = vrcp.pop %v8095
          %v8100 = vrcp.pop %v8098
          %v8101 = vmul.f32 %v8090, %v8099
          %v8102 = vmul.f32 %v8092, %v8100
          %v8103 = vpack.c.bf16 %v8101, %v8101
          %v8104 = vpack.c.bf16 %v8102, %v8102
          %v8105 = vpack.c.bf16 %v7954, %v7951
          %v8106 = vpack.c.bf16 %v7962, %v7959
          %v8107 = vpack.c.bf16 %v7970, %v7967
          %v8108 = vpack.c.bf16 %v7978, %v7975
          %v8110 = vsel %vm1364, %v8103, 0
          %8112 = vmatprep.subr.bf16.mxu0 0
          %8113 = vmatpush1.bf16.msra.mxu0 %v8105
          %8114 = vmatprep.subr.bf16.mxu0 0
          %8115 = vmatpush1.bf16.msra.mxu0 %v8106
          %8116 = vmatprep.subr.bf16.mxu0 0
          %8117 = vmatpush1.bf16.msra.mxu0 0
          %8118 = vmatprep.subr.bf16.mxu0 0
          %8119 = vmatpush1.bf16.msra.mxu0 0
          %8120 = vmatprep.subr.bf16.mxu0 0
          %8121 = vmatpush1.bf16.msra.mxu0 0
          %8122 = vmatprep.subr.bf16.mxu0 0
          %8123 = vmatpush1.bf16.msra.mxu0 0
          %8124 = vmatprep.subr.bf16.mxu0 0
          %8125 = vmatpush1.bf16.msra.mxu0 0
          %8126 = vmatprep.subr.bf16.mxu0 0
          %8127 = vmatpush1.bf16.msra.mxu0 0
          %8128 = vmatprep.subr.bf16.mxu0 0
          %8129 = vmatpush1.bf16.msra.mxu0 0
          %8130 = vmatprep.subr.bf16.mxu0 0
          %8131 = vmatpush1.bf16.msra.mxu0 0
          %8132 = vmatprep.subr.bf16.mxu0 0
          %8133 = vmatpush1.bf16.msra.mxu0 0
          %8134 = vmatprep.subr.bf16.mxu0 0
          %8135 = vmatpush1.bf16.msra.mxu0 0
          %8136 = vmatprep.subr.bf16.mxu0 0
          %8137 = vmatpush1.bf16.msra.mxu0 0
          %8138 = vmatprep.subr.bf16.mxu0 0
          %8139 = vmatpush1.bf16.msra.mxu0 0
          %8140 = vmatprep.subr.bf16.mxu0 0
          %8141 = vmatpush1.bf16.msra.mxu0 0
          %8142 = vmatprep.subr.bf16.mxu0 0
          %8143 = vmatpush1.bf16.msra.mxu0 0
          %8144 = vmatprep.mubr.bf16.mxu0 0
          %8145 = vmatmul.mubr.bf16.gmra.mrb[0].mxu0 %v8110
          %v8146 = vpop.f32.mrb[0].mxu0
          %v8147 = vadd.f32 0.0, %v8146
          %v8148 = vpop.f32.mrb[0].mxu0
          %v8149 = vpop.f32.mrb[0].mxu0
          %v8150 = vpop.f32.mrb[0].mxu0
          %8151 = vdwg.mxu0
          %v8153 = vsel %vm1364, %v8104, 0
          %8155 = vmatprep.subr.bf16.mxu0 0
          %8156 = vmatpush1.bf16.msra.mxu0 %v8107
          %8157 = vmatprep.subr.bf16.mxu0 0
          %8158 = vmatpush1.bf16.msra.mxu0 %v8108
          %8159 = vmatprep.subr.bf16.mxu0 0
          %8160 = vmatpush1.bf16.msra.mxu0 0
          %8161 = vmatprep.subr.bf16.mxu0 0
          %8162 = vmatpush1.bf16.msra.mxu0 0
          %8163 = vmatprep.subr.bf16.mxu0 0
          %8164 = vmatpush1.bf16.msra.mxu0 0
          %8165 = vmatprep.subr.bf16.mxu0 0
          %8166 = vmatpush1.bf16.msra.mxu0 0
          %8167 = vmatprep.subr.bf16.mxu0 0
          %8168 = vmatpush1.bf16.msra.mxu0 0
          %8169 = vmatprep.subr.bf16.mxu0 0
          %8170 = vmatpush1.bf16.msra.mxu0 0
          %8171 = vmatprep.subr.bf16.mxu0 0
          %8172 = vmatpush1.bf16.msra.mxu0 0
          %8173 = vmatprep.subr.bf16.mxu0 0
          %8174 = vmatpush1.bf16.msra.mxu0 0
          %8175 = vmatprep.subr.bf16.mxu0 0
          %8176 = vmatpush1.bf16.msra.mxu0 0
          %8177 = vmatprep.subr.bf16.mxu0 0
          %8178 = vmatpush1.bf16.msra.mxu0 0
          %8179 = vmatprep.subr.bf16.mxu0 0
          %8180 = vmatpush1.bf16.msra.mxu0 0
          %8181 = vmatprep.subr.bf16.mxu0 0
          %8182 = vmatpush1.bf16.msra.mxu0 0
          %8183 = vmatprep.subr.bf16.mxu0 0
          %8184 = vmatpush1.bf16.msra.mxu0 0
          %8185 = vmatprep.subr.bf16.mxu0 0
          %8186 = vmatpush1.bf16.msra.mxu0 0
          %8187 = vmatprep.mubr.bf16.mxu0 0
          %8188 = vmatmul.mubr.bf16.gmra.mrb[0].mxu0 %v8153
          %v8189 = vpop.f32.mrb[0].mxu0
          %v8190 = vadd.f32 0.0, %v8189
          %v8191 = vpop.f32.mrb[0].mxu0
          %v8192 = vpop.f32.mrb[0].mxu0
          %v8193 = vpop.f32.mrb[0].mxu0
          %8194 = vdwg.mxu0
          %v8195 = vpack.c.bf16 %v8190, %v8147
          %s8196 = scalar_lea.vmem %s15, 48
          %v8197 = vld [vmem:[%s8196] sm:$0xf]
          %v8198 = vld [vmem:[%s8196 + $0x4] sm:$0xf]
          %v8199 = vld [vmem:[%s8196 + $0x8] sm:$0xf]
          %v8200 = vld [vmem:[%s8196 + $0xc] sm:$0xf]
          %v8205 = vunpack.c.l.b16 %v8197
          %v8206 = vunpack.c.l.b16 %v8198
          %v8207 = vunpack.c.l.b16 %v8199
          %v8208 = vunpack.c.l.b16 %v8200
          %v8209 = vpack.c.b16 %v8206, %v8205
          %v8210 = vpack.c.b16 %v8208, %v8207
          %v8214 = vsel %vm1364, %v8195, 0
          %8216 = vmatprep.subr.bf16.mxu0 0
          %8217 = vmatpush1.bf16.msra.mxu0 %v8209
          %8218 = vmatprep.subr.bf16.mxu0 0
          %8219 = vmatpush1.bf16.msra.mxu0 %v8210
          %8220 = vmatprep.subr.bf16.mxu0 0
          %8221 = vmatpush1.bf16.msra.mxu0 0
          %8222 = vmatprep.subr.bf16.mxu0 0
          %8223 = vmatpush1.bf16.msra.mxu0 0
          %8224 = vmatprep.subr.bf16.mxu0 0
          %8225 = vmatpush1.bf16.msra.mxu0 0
          %8226 = vmatprep.subr.bf16.mxu0 0
          %8227 = vmatpush1.bf16.msra.mxu0 0
          %8228 = vmatprep.subr.bf16.mxu0 0
          %8229 = vmatpush1.bf16.msra.mxu0 0
          %8230 = vmatprep.subr.bf16.mxu0 0
          %8231 = vmatpush1.bf16.msra.mxu0 0
          %8232 = vmatprep.subr.bf16.mxu0 0
          %8233 = vmatpush1.bf16.msra.mxu0 0
          %8234 = vmatprep.subr.bf16.mxu0 0
          %8235 = vmatpush1.bf16.msra.mxu0 0
          %8236 = vmatprep.subr.bf16.mxu0 0
          %8237 = vmatpush1.bf16.msra.mxu0 0
          %8238 = vmatprep.subr.bf16.mxu0 0
          %8239 = vmatpush1.bf16.msra.mxu0 0
          %8240 = vmatprep.subr.bf16.mxu0 0
          %8241 = vmatpush1.bf16.msra.mxu0 0
          %8242 = vmatprep.subr.bf16.mxu0 0
          %8243 = vmatpush1.bf16.msra.mxu0 0
          %8244 = vmatprep.subr.bf16.mxu0 0
          %8245 = vmatpush1.bf16.msra.mxu0 0
          %8246 = vmatprep.subr.bf16.mxu0 0
          %8247 = vmatpush1.bf16.msra.mxu0 0
          %8248 = vmatprep.mubr.bf16.mxu0 0
          %8249 = vmatmul.mubr.bf16.gmra.mrb[0].mxu0 %v8214
          %v8250 = vpop.f32.mrb[0].mxu0
          %v8251 = vadd.f32 0.0, %v8250
          %v8252 = vpop.f32.mrb[0].mxu0
          %v8253 = vpop.f32.mrb[0].mxu0
          %v8254 = vadd.f32 0.0, %v8253
          %v8255 = vpop.f32.mrb[0].mxu0
          %8256 = vdwg.mxu0
          %v8257 = vadd.f32 %v7606, %v8251
          %v8258 = vadd.f32 %v7607, %v8254
          %v8259 = vadd.f32 %v8257, %v5521
          %v8260 = vadd.f32 %v8258, %v5521
          %v8261 = vlaneseq
          %v8262 = vshrl.u32 %v8261, 7
          %v8263 = vsub.s32 6, %v8262
          %v8264 = vrot.slane %v5520, %v8263
          %v8265 = vadd.f32 %v8259, %v8264
          %v8266 = vadd.f32 %v8260, %v8264
          %8267 = vadd.xlane.f32.xlu0 %v8265
          %v8268 = vpop.xlane.xlu0 %8267
          %8269 = vadd.xlane.f32.xlu0 %v8266
          %v8270 = vpop.xlane.xlu0 %8269
          %v8271 = vmul.f32 %v8268, %v858
          %v8272 = vmul.f32 %v8270, %v858
          %v8273 = vsub.f32 %v8265, %v8271
          %v8274 = vsub.f32 %v8266, %v8272
          %v8275 = vmul.f32 %v8273, %v8273
          %v8276 = vmul.f32 %v8274, %v8274
          %8277 = vadd.xlane.f32.xlu0 %v8275
          %v8278 = vpop.xlane.xlu0 %8277
          %8279 = vadd.xlane.f32.xlu0 %v8276
          %v8280 = vpop.xlane.xlu0 %8279
          %v8281 = vmul.f32 %v8278, %v858
          %v8282 = vmul.f32 %v8280, %v858
          %v8283 = vadd.f32 %v8281, 1e-06
          %v8284 = vadd.f32 %v8282, 1e-06
          %v8285 = vrsqrt.pop %v8283
          %v8286 = vrsqrt.pop %v8284
          %v8287 = vmul.f32 %v8273, %v8285
          %v8288 = vmul.f32 %v8274, %v8286
          %v8289 = vlaneseq
          %v8290 = vshrl.u32 %v8289, 7
          %v8291 = vsub.s32 4, %v8290
          %v8292 = vrot.slane %v5520, %v8291
          %v8293 = vmul.f32 %v8287, %v8292
          %v8294 = vmul.f32 %v8288, %v8292
          %v8295 = vlaneseq
          %v8296 = vshrl.u32 %v8295, 7
          %v8297 = vsub.s32 5, %v8296
          %v8298 = vrot.slane %v5520, %v8297
          %v8299 = vadd.f32 %v8293, %v8298
          %v8300 = vadd.f32 %v8294, %v8298
          %v8301 = vpack.c.bf16 %v8300, %v8299
          %v8302 = vld [vmem:[%s16] sm:$0xff]
          %v8303 = vld [vmem:[%s16 + $0x8] sm:$0xff]
          %v8304 = vld [vmem:[%s16 + $0x10] sm:$0xff]
          %v8305 = vld [vmem:[%s16 + $0x18] sm:$0xff]
          %v8306 = vld [vmem:[%s16 + $0x20] sm:$0xff]
          %v8307 = vld [vmem:[%s16 + $0x28] sm:$0xff]
          %v8308 = vld [vmem:[%s16 + $0x30] sm:$0xff]
          %v8309 = vld [vmem:[%s16 + $0x38] sm:$0xff]
          %v8310 = vld [vmem:[%s16 + $0x40] sm:$0xff]
          %v8311 = vld [vmem:[%s16 + $0x48] sm:$0xff]
          %v8312 = vld [vmem:[%s16 + $0x50] sm:$0xff]
          %v8313 = vld [vmem:[%s16 + $0x58] sm:$0xff]
          %v8314 = vld [vmem:[%s16 + $0x60] sm:$0xff]
          %v8315 = vld [vmem:[%s16 + $0x68] sm:$0xff]
          %v8316 = vld [vmem:[%s16 + $0x70] sm:$0xff]
          %v8317 = vld [vmem:[%s16 + $0x78] sm:$0xff]
          %v8318 = vld [vmem:[%s16 + $0x80] sm:$0xff]
          %v8319 = vld [vmem:[%s16 + $0x88] sm:$0xff]
          %v8320 = vld [vmem:[%s16 + $0x90] sm:$0xff]
          %v8321 = vld [vmem:[%s16 + $0x98] sm:$0xff]
          %v8322 = vld [vmem:[%s16 + $0xa0] sm:$0xff]
          %v8323 = vld [vmem:[%s16 + $0xa8] sm:$0xff]
          %v8324 = vld [vmem:[%s16 + $0xb0] sm:$0xff]
          %v8325 = vld [vmem:[%s16 + $0xb8] sm:$0xff]
          %v8326 = vld [vmem:[%s16 + $0xc0] sm:$0xff]
          %v8327 = vld [vmem:[%s16 + $0xc8] sm:$0xff]
          %v8328 = vld [vmem:[%s16 + $0xd0] sm:$0xff]
          %v8329 = vld [vmem:[%s16 + $0xd8] sm:$0xff]
          %v8330 = vld [vmem:[%s16 + $0xe0] sm:$0xff]
          %v8331 = vld [vmem:[%s16 + $0xe8] sm:$0xff]
          %v8332 = vld [vmem:[%s16 + $0xf0] sm:$0xff]
          %v8333 = vld [vmem:[%s16 + $0xf8] sm:$0xff]
          %v8334 = vld [vmem:[%s12] sm:$0xf]
          %v8336 = vlaneseq
          %v8337 = vshrl.u32 %v8336, 7
          %v8338 = vsub.s32 0, %v8337
          %v8339 = vrot.slane %v8334, %v8338
          %v8340 = vlaneseq
          %v8341 = vshrl.u32 %v8340, 7
          %v8342 = vsub.s32 1, %v8341
          %v8343 = vrot.slane %v8334, %v8342
          %v8344 = vlaneseq
          %v8345 = vshrl.u32 %v8344, 7
          %v8346 = vsub.s32 2, %v8345
          %v8347 = vrot.slane %v8334, %v8346
          %v8348 = vlaneseq
          %v8349 = vshrl.u32 %v8348, 7
          %v8350 = vsub.s32 3, %v8349
          %v8351 = vrot.slane %v8334, %v8350
          %v8388 = vunpack.c.l.b16 %v8302
          %v8389 = vunpack.c.h.b16 %v8302
          %v8390 = vunpack.c.l.b16 %v8303
          %v8391 = vunpack.c.h.b16 %v8303
          %v8392 = vunpack.c.l.b16 %v8304
          %v8393 = vunpack.c.h.b16 %v8304
          %v8394 = vunpack.c.l.b16 %v8305
          %v8395 = vunpack.c.h.b16 %v8305
          %v8396 = vunpack.c.l.b16 %v8306
          %v8397 = vunpack.c.h.b16 %v8306
          %v8398 = vunpack.c.l.b16 %v8307
          %v8399 = vunpack.c.h.b16 %v8307
          %v8400 = vunpack.c.l.b16 %v8308
          %v8401 = vunpack.c.h.b16 %v8308
          %v8402 = vunpack.c.l.b16 %v8309
          %v8403 = vunpack.c.h.b16 %v8309
          %v8404 = vunpack.c.l.b16 %v8310
          %v8405 = vunpack.c.h.b16 %v8310
          %v8406 = vunpack.c.l.b16 %v8311
          %v8407 = vunpack.c.h.b16 %v8311
          %v8408 = vunpack.c.l.b16 %v8312
          %v8409 = vunpack.c.h.b16 %v8312
          %v8410 = vunpack.c.l.b16 %v8313
          %v8411 = vunpack.c.h.b16 %v8313
          %v8412 = vunpack.c.l.b16 %v8314
          %v8413 = vunpack.c.h.b16 %v8314
          %v8414 = vunpack.c.l.b16 %v8315
          %v8415 = vunpack.c.h.b16 %v8315
          %v8416 = vunpack.c.l.b16 %v8316
          %v8417 = vunpack.c.h.b16 %v8316
          %v8418 = vunpack.c.l.b16 %v8317
          %v8419 = vunpack.c.h.b16 %v8317
          %v8420 = vunpack.c.l.b16 %v8318
          %v8421 = vunpack.c.h.b16 %v8318
          %v8422 = vunpack.c.l.b16 %v8319
          %v8423 = vunpack.c.h.b16 %v8319
          %v8424 = vunpack.c.l.b16 %v8320
          %v8425 = vunpack.c.h.b16 %v8320
          %v8426 = vunpack.c.l.b16 %v8321
          %v8427 = vunpack.c.h.b16 %v8321
          %v8428 = vunpack.c.l.b16 %v8322
          %v8429 = vunpack.c.h.b16 %v8322
          %v8430 = vunpack.c.l.b16 %v8323
          %v8431 = vunpack.c.h.b16 %v8323
          %v8432 = vunpack.c.l.b16 %v8324
          %v8433 = vunpack.c.h.b16 %v8324
          %v8434 = vunpack.c.l.b16 %v8325
          %v8435 = vunpack.c.h.b16 %v8325
          %v8436 = vunpack.c.l.b16 %v8326
          %v8437 = vunpack.c.h.b16 %v8326
          %v8438 = vunpack.c.l.b16 %v8327
          %v8439 = vunpack.c.h.b16 %v8327
          %v8440 = vunpack.c.l.b16 %v8328
          %v8441 = vunpack.c.h.b16 %v8328
          %v8442 = vunpack.c.l.b16 %v8329
          %v8443 = vunpack.c.h.b16 %v8329
          %v8444 = vunpack.c.l.b16 %v8330
          %v8445 = vunpack.c.h.b16 %v8330
          %v8446 = vunpack.c.l.b16 %v8331
          %v8447 = vunpack.c.h.b16 %v8331
          %v8448 = vunpack.c.l.b16 %v8332
          %v8449 = vunpack.c.h.b16 %v8332
          %v8450 = vunpack.c.l.b16 %v8333
          %v8451 = vunpack.c.h.b16 %v8333
          %v8452 = vpack.c.b16 %v8392, %v8388
          %v8453 = vpack.c.b16 %v8393, %v8389
          %v8454 = vpack.c.b16 %v8394, %v8390
          %v8455 = vpack.c.b16 %v8395, %v8391
          %v8456 = vpack.c.b16 %v8400, %v8396
          %v8457 = vpack.c.b16 %v8401, %v8397
          %v8458 = vpack.c.b16 %v8402, %v8398
          %v8459 = vpack.c.b16 %v8403, %v8399
          %v8460 = vpack.c.b16 %v8408, %v8404
          %v8461 = vpack.c.b16 %v8409, %v8405
          %v8462 = vpack.c.b16 %v8410, %v8406
          %v8463 = vpack.c.b16 %v8411, %v8407
          %v8464 = vpack.c.b16 %v8416, %v8412
          %v8465 = vpack.c.b16 %v8417, %v8413
          %v8466 = vpack.c.b16 %v8418, %v8414
          %v8467 = vpack.c.b16 %v8419, %v8415
          %v8468 = vpack.c.b16 %v8424, %v8420
          %v8469 = vpack.c.b16 %v8425, %v8421
          %v8470 = vpack.c.b16 %v8426, %v8422
          %v8471 = vpack.c.b16 %v8427, %v8423
          %v8472 = vpack.c.b16 %v8432, %v8428
          %v8473 = vpack.c.b16 %v8433, %v8429
          %v8474 = vpack.c.b16 %v8434, %v8430
          %v8475 = vpack.c.b16 %v8435, %v8431
          %v8476 = vpack.c.b16 %v8440, %v8436
          %v8477 = vpack.c.b16 %v8441, %v8437
          %v8478 = vpack.c.b16 %v8442, %v8438
          %v8479 = vpack.c.b16 %v8443, %v8439
          %v8480 = vpack.c.b16 %v8448, %v8444
          %v8481 = vpack.c.b16 %v8449, %v8445
          %v8482 = vpack.c.b16 %v8450, %v8446
          %v8483 = vpack.c.b16 %v8451, %v8447
          %8516 = vmatprep.subr.bf16.mxu0 %v8453
          %8517 = vmatpush1.bf16.msra.mxu0 %v8452
          %8518 = vmatprep.subr.bf16.mxu0 %v8457
          %8519 = vmatpush1.bf16.msra.mxu0 %v8456
          %8520 = vmatprep.subr.bf16.mxu0 %v8461
          %8521 = vmatpush1.bf16.msra.mxu0 %v8460
          %8522 = vmatprep.subr.bf16.mxu0 %v8465
          %8523 = vmatpush1.bf16.msra.mxu0 %v8464
          %8524 = vmatprep.subr.bf16.mxu0 %v8469
          %8525 = vmatpush1.bf16.msra.mxu0 %v8468
          %8526 = vmatprep.subr.bf16.mxu0 %v8473
          %8527 = vmatpush1.bf16.msra.mxu0 %v8472
          %8528 = vmatprep.subr.bf16.mxu0 %v8477
          %8529 = vmatpush1.bf16.msra.mxu0 %v8476
          %8530 = vmatprep.subr.bf16.mxu0 %v8481
          %8531 = vmatpush1.bf16.msra.mxu0 %v8480
          %8532 = vmatprep.subr.bf16.mxu0 0
          %8533 = vmatpush1.bf16.msra.mxu0 0
          %8534 = vmatprep.subr.bf16.mxu0 0
          %8535 = vmatpush1.bf16.msra.mxu0 0
          %8536 = vmatprep.subr.bf16.mxu0 0
          %8537 = vmatpush1.bf16.msra.mxu0 0
          %8538 = vmatprep.subr.bf16.mxu0 0
          %8539 = vmatpush1.bf16.msra.mxu0 0
          %8540 = vmatprep.subr.bf16.mxu0 0
          %8541 = vmatpush1.bf16.msra.mxu0 0
          %8542 = vmatprep.subr.bf16.mxu0 0
          %8543 = vmatpush1.bf16.msra.mxu0 0
          %8544 = vmatprep.subr.bf16.mxu0 0
          %8545 = vmatpush1.bf16.msra.mxu0 0
          %8546 = vmatprep.subr.bf16.mxu0 0
          %8547 = vmatpush1.bf16.msra.mxu0 0
          %8548 = vmatprep.mubr.bf16.mxu0 0
          %8549 = vmatmul.mubr.bf16.gmra.mrb[0].mxu0 %v8301
          %v8550 = vpop.f32.mrb[0].mxu0
          %v8551 = vadd.f32 %v8339, %v8550
          %v8552 = vpop.f32.mrb[0].mxu0
          %v8553 = vadd.f32 %v8343, %v8552
          %v8554 = vpop.f32.mrb[0].mxu0
          %v8555 = vadd.f32 %v8339, %v8554
          %v8556 = vpop.f32.mrb[0].mxu0
          %v8557 = vadd.f32 %v8343, %v8556
          %8558 = vdwg.mxu0
          %8559 = vmatprep.subr.bf16.mxu0 %v8455
          %8560 = vmatpush1.bf16.msra.mxu0 %v8454
          %8561 = vmatprep.subr.bf16.mxu0 %v8459
          %8562 = vmatpush1.bf16.msra.mxu0 %v8458
          %8563 = vmatprep.subr.bf16.mxu0 %v8463
          %8564 = vmatpush1.bf16.msra.mxu0 %v8462
          %8565 = vmatprep.subr.bf16.mxu0 %v8467
          %8566 = vmatpush1.bf16.msra.mxu0 %v8466
          %8567 = vmatprep.subr.bf16.mxu0 %v8471
          %8568 = vmatpush1.bf16.msra.mxu0 %v8470
          %8569 = vmatprep.subr.bf16.mxu0 %v8475
          %8570 = vmatpush1.bf16.msra.mxu0 %v8474
          %8571 = vmatprep.subr.bf16.mxu0 %v8479
          %8572 = vmatpush1.bf16.msra.mxu0 %v8478
          %8573 = vmatprep.subr.bf16.mxu0 %v8483
          %8574 = vmatpush1.bf16.msra.mxu0 %v8482
          %8575 = vmatprep.subr.bf16.mxu0 0
          %8576 = vmatpush1.bf16.msra.mxu0 0
          %8577 = vmatprep.subr.bf16.mxu0 0
          %8578 = vmatpush1.bf16.msra.mxu0 0
          %8579 = vmatprep.subr.bf16.mxu0 0
          %8580 = vmatpush1.bf16.msra.mxu0 0
          %8581 = vmatprep.subr.bf16.mxu0 0
          %8582 = vmatpush1.bf16.msra.mxu0 0
          %8583 = vmatprep.subr.bf16.mxu0 0
          %8584 = vmatpush1.bf16.msra.mxu0 0
          %8585 = vmatprep.subr.bf16.mxu0 0
          %8586 = vmatpush1.bf16.msra.mxu0 0
          %8587 = vmatprep.subr.bf16.mxu0 0
          %8588 = vmatpush1.bf16.msra.mxu0 0
          %8589 = vmatprep.subr.bf16.mxu0 0
          %8590 = vmatpush1.bf16.msra.mxu0 0
          %8591 = vmatprep.mubr.bf16.mxu0 0
          %8592 = vmatmul.mubr.bf16.gmra.mrb[0].mxu0 %v8301
          %v8593 = vpop.f32.mrb[0].mxu0
          %v8594 = vadd.f32 %v8347, %v8593
          %v8595 = vpop.f32.mrb[0].mxu0
          %v8596 = vadd.f32 %v8351, %v8595
          %v8597 = vpop.f32.mrb[0].mxu0
          %v8598 = vadd.f32 %v8347, %v8597
          %v8599 = vpop.f32.mrb[0].mxu0
          %v8600 = vadd.f32 %v8351, %v8599
          %8601 = vdwg.mxu0
          %v8602 = vmul.f32 %v8551, %v8551
          %v8603 = vmul.f32 %v8553, %v8553
          %v8604 = vmul.f32 %v8594, %v8594
          %v8605 = vmul.f32 %v8596, %v8596
          %v8606 = vmul.f32 %v8555, %v8555
          %v8607 = vmul.f32 %v8557, %v8557
          %v8608 = vmul.f32 %v8598, %v8598
          %v8609 = vmul.f32 %v8600, %v8600
          %v8610 = vmul.f32 %v8551, %v8602
          %v8611 = vmul.f32 %v8553, %v8603
          %v8612 = vmul.f32 %v8594, %v8604
          %v8613 = vmul.f32 %v8596, %v8605
          %v8614 = vmul.f32 %v8555, %v8606
          %v8615 = vmul.f32 %v8557, %v8607
          %v8616 = vmul.f32 %v8598, %v8608
          %v8617 = vmul.f32 %v8600, %v8609
          %v8618 = vmul.f32 %v8610, 0.044715
          %v8619 = vmul.f32 %v8611, 0.044715
          %v8620 = vmul.f32 %v8612, 0.044715
          %v8621 = vmul.f32 %v8613, 0.044715
          %v8622 = vmul.f32 %v8614, 0.044715
          %v8623 = vmul.f32 %v8615, 0.044715
          %v8624 = vmul.f32 %v8616, 0.044715
          %v8625 = vmul.f32 %v8617, 0.044715
          %v8626 = vadd.f32 %v8551, %v8618
          %v8627 = vadd.f32 %v8553, %v8619
          %v8628 = vadd.f32 %v8594, %v8620
          %v8629 = vadd.f32 %v8596, %v8621
          %v8630 = vadd.f32 %v8555, %v8622
          %v8631 = vadd.f32 %v8557, %v8623
          %v8632 = vadd.f32 %v8598, %v8624
          %v8633 = vadd.f32 %v8600, %v8625
          %v8634 = vmul.f32 %v8626, 0.7978846
          %v8635 = vmul.f32 %v8627, 0.7978846
          %v8636 = vmul.f32 %v8628, 0.7978846
          %v8637 = vmul.f32 %v8629, 0.7978846
          %v8638 = vmul.f32 %v8630, 0.7978846
          %v8639 = vmul.f32 %v8631, 0.7978846
          %v8640 = vmul.f32 %v8632, 0.7978846
          %v8641 = vmul.f32 %v8633, 0.7978846
          %v8642 = vtanh.pop %v8634
          %v8643 = vtanh.pop %v8635
          %v8644 = vtanh.pop %v8636
          %v8645 = vtanh.pop %v8637
          %v8646 = vtanh.pop %v8638
          %v8647 = vtanh.pop %v8639
          %v8648 = vtanh.pop %v8640
          %v8649 = vtanh.pop %v8641
          %v8650 = vadd.f32 %v8642, 1.0
          %v8651 = vadd.f32 %v8643, 1.0
          %v8652 = vadd.f32 %v8644, 1.0
          %v8653 = vadd.f32 %v8645, 1.0
          %v8654 = vadd.f32 %v8646, 1.0
          %v8655 = vadd.f32 %v8647, 1.0
          %v8656 = vadd.f32 %v8648, 1.0
          %v8657 = vadd.f32 %v8649, 1.0
          %v8658 = vmul.f32 %v8650, 0.5
          %v8659 = vmul.f32 %v8651, 0.5
          %v8660 = vmul.f32 %v8652, 0.5
          %v8661 = vmul.f32 %v8653, 0.5
          %v8662 = vmul.f32 %v8654, 0.5
          %v8663 = vmul.f32 %v8655, 0.5
          %v8664 = vmul.f32 %v8656, 0.5
          %v8665 = vmul.f32 %v8657, 0.5
          %v8666 = vmul.f32 %v8551, %v8658
          %v8667 = vmul.f32 %v8553, %v8659
          %v8668 = vmul.f32 %v8594, %v8660
          %v8669 = vmul.f32 %v8596, %v8661
          %v8670 = vmul.f32 %v8555, %v8662
          %v8671 = vmul.f32 %v8557, %v8663
          %v8672 = vmul.f32 %v8598, %v8664
          %v8673 = vmul.f32 %v8600, %v8665
          %v8674 = vpack.c.bf16 %v8670, %v8666
          %v8675 = vpack.c.bf16 %v8671, %v8667
          %v8676 = vpack.c.bf16 %v8672, %v8668
          %v8677 = vpack.c.bf16 %v8673, %v8669
          %v8678 = vld [vmem:[%s17] sm:$0xf]
          %v8679 = vld [vmem:[%s17 + $0x4] sm:$0xf]
          %v8680 = vld [vmem:[%s17 + $0x8] sm:$0xf]
          %v8681 = vld [vmem:[%s17 + $0xc] sm:$0xf]
          %v8682 = vld [vmem:[%s17 + $0x10] sm:$0xf]
          %v8683 = vld [vmem:[%s17 + $0x14] sm:$0xf]
          %v8684 = vld [vmem:[%s17 + $0x18] sm:$0xf]
          %v8685 = vld [vmem:[%s17 + $0x1c] sm:$0xf]
          %v8686 = vld [vmem:[%s17 + $0x20] sm:$0xf]
          %v8687 = vld [vmem:[%s17 + $0x24] sm:$0xf]
          %v8688 = vld [vmem:[%s17 + $0x28] sm:$0xf]
          %v8689 = vld [vmem:[%s17 + $0x2c] sm:$0xf]
          %v8690 = vld [vmem:[%s17 + $0x30] sm:$0xf]
          %v8691 = vld [vmem:[%s17 + $0x34] sm:$0xf]
          %v8692 = vld [vmem:[%s17 + $0x38] sm:$0xf]
          %v8693 = vld [vmem:[%s17 + $0x3c] sm:$0xf]
          %v8694 = vld [vmem:[%s17 + $0x40] sm:$0xf]
          %v8695 = vld [vmem:[%s17 + $0x44] sm:$0xf]
          %v8696 = vld [vmem:[%s17 + $0x48] sm:$0xf]
          %v8697 = vld [vmem:[%s17 + $0x4c] sm:$0xf]
          %v8698 = vld [vmem:[%s17 + $0x50] sm:$0xf]
          %v8699 = vld [vmem:[%s17 + $0x54] sm:$0xf]
          %v8700 = vld [vmem:[%s17 + $0x58] sm:$0xf]
          %v8701 = vld [vmem:[%s17 + $0x5c] sm:$0xf]
          %v8702 = vld [vmem:[%s17 + $0x60] sm:$0xf]
          %v8703 = vld [vmem:[%s17 + $0x64] sm:$0xf]
          %v8704 = vld [vmem:[%s17 + $0x68] sm:$0xf]
          %v8705 = vld [vmem:[%s17 + $0x6c] sm:$0xf]
          %v8706 = vld [vmem:[%s17 + $0x70] sm:$0xf]
          %v8707 = vld [vmem:[%s17 + $0x74] sm:$0xf]
          %v8708 = vld [vmem:[%s17 + $0x78] sm:$0xf]
          %v8709 = vld [vmem:[%s17 + $0x7c] sm:$0xf]
          %v8710 = vld [vmem:[%s17 + $0x80] sm:$0xf]
          %v8711 = vld [vmem:[%s17 + $0x84] sm:$0xf]
          %v8712 = vld [vmem:[%s17 + $0x88] sm:$0xf]
          %v8713 = vld [vmem:[%s17 + $0x8c] sm:$0xf]
          %v8714 = vld [vmem:[%s17 + $0x90] sm:$0xf]
          %v8715 = vld [vmem:[%s17 + $0x94] sm:$0xf]
          %v8716 = vld [vmem:[%s17 + $0x98] sm:$0xf]
          %v8717 = vld [vmem:[%s17 + $0x9c] sm:$0xf]
          %v8718 = vld [vmem:[%s17 + $0xa0] sm:$0xf]
          %v8719 = vld [vmem:[%s17 + $0xa4] sm:$0xf]
          %v8720 = vld [vmem:[%s17 + $0xa8] sm:$0xf]
          %v8721 = vld [vmem:[%s17 + $0xac] sm:$0xf]
          %v8722 = vld [vmem:[%s17 + $0xb0] sm:$0xf]
          %v8723 = vld [vmem:[%s17 + $0xb4] sm:$0xf]
          %v8724 = vld [vmem:[%s17 + $0xb8] sm:$0xf]
          %v8725 = vld [vmem:[%s17 + $0xbc] sm:$0xf]
          %v8726 = vld [vmem:[%s17 + $0xc0] sm:$0xf]
          %v8727 = vld [vmem:[%s17 + $0xc4] sm:$0xf]
          %v8728 = vld [vmem:[%s17 + $0xc8] sm:$0xf]
          %v8729 = vld [vmem:[%s17 + $0xcc] sm:$0xf]
          %v8730 = vld [vmem:[%s17 + $0xd0] sm:$0xf]
          %v8731 = vld [vmem:[%s17 + $0xd4] sm:$0xf]
          %v8732 = vld [vmem:[%s17 + $0xd8] sm:$0xf]
          %v8733 = vld [vmem:[%s17 + $0xdc] sm:$0xf]
          %v8734 = vld [vmem:[%s17 + $0xe0] sm:$0xf]
          %v8735 = vld [vmem:[%s17 + $0xe4] sm:$0xf]
          %v8736 = vld [vmem:[%s17 + $0xe8] sm:$0xf]
          %v8737 = vld [vmem:[%s17 + $0xec] sm:$0xf]
          %v8738 = vld [vmem:[%s17 + $0xf0] sm:$0xf]
          %v8739 = vld [vmem:[%s17 + $0xf4] sm:$0xf]
          %v8740 = vld [vmem:[%s17 + $0xf8] sm:$0xf]
          %v8741 = vld [vmem:[%s17 + $0xfc] sm:$0xf]
          %v8806 = vunpack.c.l.b16 %v8678
          %v8807 = vunpack.c.l.b16 %v8679
          %v8808 = vunpack.c.l.b16 %v8680
          %v8809 = vunpack.c.l.b16 %v8681
          %v8810 = vunpack.c.l.b16 %v8682
          %v8811 = vunpack.c.l.b16 %v8683
          %v8812 = vunpack.c.l.b16 %v8684
          %v8813 = vunpack.c.l.b16 %v8685
          %v8814 = vunpack.c.l.b16 %v8686
          %v8815 = vunpack.c.l.b16 %v8687
          %v8816 = vunpack.c.l.b16 %v8688
          %v8817 = vunpack.c.l.b16 %v8689
          %v8818 = vunpack.c.l.b16 %v8690
          %v8819 = vunpack.c.l.b16 %v8691
          %v8820 = vunpack.c.l.b16 %v8692
          %v8821 = vunpack.c.l.b16 %v8693
          %v8822 = vunpack.c.l.b16 %v8694
          %v8823 = vunpack.c.l.b16 %v8695
          %v8824 = vunpack.c.l.b16 %v8696
          %v8825 = vunpack.c.l.b16 %v8697
          %v8826 = vunpack.c.l.b16 %v8698
          %v8827 = vunpack.c.l.b16 %v8699
          %v8828 = vunpack.c.l.b16 %v8700
          %v8829 = vunpack.c.l.b16 %v8701
          %v8830 = vunpack.c.l.b16 %v8702
          %v8831 = vunpack.c.l.b16 %v8703
          %v8832 = vunpack.c.l.b16 %v8704
          %v8833 = vunpack.c.l.b16 %v8705
          %v8834 = vunpack.c.l.b16 %v8706
          %v8835 = vunpack.c.l.b16 %v8707
          %v8836 = vunpack.c.l.b16 %v8708
          %v8837 = vunpack.c.l.b16 %v8709
          %v8838 = vunpack.c.l.b16 %v8710
          %v8839 = vunpack.c.l.b16 %v8711
          %v8840 = vunpack.c.l.b16 %v8712
          %v8841 = vunpack.c.l.b16 %v8713
          %v8842 = vunpack.c.l.b16 %v8714
          %v8843 = vunpack.c.l.b16 %v8715
          %v8844 = vunpack.c.l.b16 %v8716
          %v8845 = vunpack.c.l.b16 %v8717
          %v8846 = vunpack.c.l.b16 %v8718
          %v8847 = vunpack.c.l.b16 %v8719
          %v8848 = vunpack.c.l.b16 %v8720
          %v8849 = vunpack.c.l.b16 %v8721
          %v8850 = vunpack.c.l.b16 %v8722
          %v8851 = vunpack.c.l.b16 %v8723
          %v8852 = vunpack.c.l.b16 %v8724
          %v8853 = vunpack.c.l.b16 %v8725
          %v8854 = vunpack.c.l.b16 %v8726
          %v8855 = vunpack.c.l.b16 %v8727
          %v8856 = vunpack.c.l.b16 %v8728
          %v8857 = vunpack.c.l.b16 %v8729
          %v8858 = vunpack.c.l.b16 %v8730
          %v8859 = vunpack.c.l.b16 %v8731
          %v8860 = vunpack.c.l.b16 %v8732
          %v8861 = vunpack.c.l.b16 %v8733
          %v8862 = vunpack.c.l.b16 %v8734
          %v8863 = vunpack.c.l.b16 %v8735
          %v8864 = vunpack.c.l.b16 %v8736
          %v8865 = vunpack.c.l.b16 %v8737
          %v8866 = vunpack.c.l.b16 %v8738
          %v8867 = vunpack.c.l.b16 %v8739
          %v8868 = vunpack.c.l.b16 %v8740
          %v8869 = vunpack.c.l.b16 %v8741
          %v8870 = vpack.c.b16 %v8807, %v8806
          %v8871 = vpack.c.b16 %v8809, %v8808
          %v8872 = vpack.c.b16 %v8811, %v8810
          %v8873 = vpack.c.b16 %v8813, %v8812
          %v8874 = vpack.c.b16 %v8815, %v8814
          %v8875 = vpack.c.b16 %v8817, %v8816
          %v8876 = vpack.c.b16 %v8819, %v8818
          %v8877 = vpack.c.b16 %v8821, %v8820
          %v8878 = vpack.c.b16 %v8823, %v8822
          %v8879 = vpack.c.b16 %v8825, %v8824
          %v8880 = vpack.c.b16 %v8827, %v8826
          %v8881 = vpack.c.b16 %v8829, %v8828
          %v8882 = vpack.c.b16 %v8831, %v8830
          %v8883 = vpack.c.b16 %v8833, %v8832
          %v8884 = vpack.c.b16 %v8835, %v8834
          %v8885 = vpack.c.b16 %v8837, %v8836
          %v8886 = vpack.c.b16 %v8839, %v8838
          %v8887 = vpack.c.b16 %v8841, %v8840
          %v8888 = vpack.c.b16 %v8843, %v8842
          %v8889 = vpack.c.b16 %v8845, %v8844
          %v8890 = vpack.c.b16 %v8847, %v8846
          %v8891 = vpack.c.b16 %v8849, %v8848
          %v8892 = vpack.c.b16 %v8851, %v8850
          %v8893 = vpack.c.b16 %v8853, %v8852
          %v8894 = vpack.c.b16 %v8855, %v8854
          %v8895 = vpack.c.b16 %v8857, %v8856
          %v8896 = vpack.c.b16 %v8859, %v8858
          %v8897 = vpack.c.b16 %v8861, %v8860
          %v8898 = vpack.c.b16 %v8863, %v8862
          %v8899 = vpack.c.b16 %v8865, %v8864
          %v8900 = vpack.c.b16 %v8867, %v8866
          %v8901 = vpack.c.b16 %v8869, %v8868
          %8934 = vmatprep.subr.bf16.mxu0 0
          %8935 = vmatpush1.bf16.msra.mxu0 %v8870
          %8936 = vmatprep.subr.bf16.mxu0 0
          %8937 = vmatpush1.bf16.msra.mxu0 %v8871
          %8938 = vmatprep.subr.bf16.mxu0 0
          %8939 = vmatpush1.bf16.msra.mxu0 %v8872
          %8940 = vmatprep.subr.bf16.mxu0 0
          %8941 = vmatpush1.bf16.msra.mxu0 %v8873
          %8942 = vmatprep.subr.bf16.mxu0 0
          %8943 = vmatpush1.bf16.msra.mxu0 %v8874
          %8944 = vmatprep.subr.bf16.mxu0 0
          %8945 = vmatpush1.bf16.msra.mxu0 %v8875
          %8946 = vmatprep.subr.bf16.mxu0 0
          %8947 = vmatpush1.bf16.msra.mxu0 %v8876
          %8948 = vmatprep.subr.bf16.mxu0 0
          %8949 = vmatpush1.bf16.msra.mxu0 %v8877
          %8950 = vmatprep.subr.bf16.mxu0 0
          %8951 = vmatpush1.bf16.msra.mxu0 %v8878
          %8952 = vmatprep.subr.bf16.mxu0 0
          %8953 = vmatpush1.bf16.msra.mxu0 %v8879
          %8954 = vmatprep.subr.bf16.mxu0 0
          %8955 = vmatpush1.bf16.msra.mxu0 %v8880
          %8956 = vmatprep.subr.bf16.mxu0 0
          %8957 = vmatpush1.bf16.msra.mxu0 %v8881
          %8958 = vmatprep.subr.bf16.mxu0 0
          %8959 = vmatpush1.bf16.msra.mxu0 %v8882
          %8960 = vmatprep.subr.bf16.mxu0 0
          %8961 = vmatpush1.bf16.msra.mxu0 %v8883
          %8962 = vmatprep.subr.bf16.mxu0 0
          %8963 = vmatpush1.bf16.msra.mxu0 %v8884
          %8964 = vmatprep.subr.bf16.mxu0 0
          %8965 = vmatpush1.bf16.msra.mxu0 %v8885
          %8966 = vmatprep.mubr.bf16.mxu0 %v8675
          %8967 = vmatmul.mubr.bf16.gmra.mrb[0].mxu0 %v8674
          %v8968 = vpop.f32.mrb[0].mxu0
          %v8969 = vadd.f32 0.0, %v8968
          %v8970 = vpop.f32.mrb[0].mxu0
          %v8971 = vpop.f32.mrb[0].mxu0
          %v8972 = vadd.f32 0.0, %v8971
          %v8973 = vpop.f32.mrb[0].mxu0
          %8974 = vdwg.mxu0
          %8975 = vmatprep.subr.bf16.mxu0 0
          %8976 = vmatpush1.bf16.msra.mxu0 %v8886
          %8977 = vmatprep.subr.bf16.mxu0 0
          %8978 = vmatpush1.bf16.msra.mxu0 %v8887
          %8979 = vmatprep.subr.bf16.mxu0 0
          %8980 = vmatpush1.bf16.msra.mxu0 %v8888
          %8981 = vmatprep.subr.bf16.mxu0 0
          %8982 = vmatpush1.bf16.msra.mxu0 %v8889
          %8983 = vmatprep.subr.bf16.mxu0 0
          %8984 = vmatpush1.bf16.msra.mxu0 %v8890
          %8985 = vmatprep.subr.bf16.mxu0 0
          %8986 = vmatpush1.bf16.msra.mxu0 %v8891
          %8987 = vmatprep.subr.bf16.mxu0 0
          %8988 = vmatpush1.bf16.msra.mxu0 %v8892
          %8989 = vmatprep.subr.bf16.mxu0 0
          %8990 = vmatpush1.bf16.msra.mxu0 %v8893
          %8991 = vmatprep.subr.bf16.mxu0 0
          %8992 = vmatpush1.bf16.msra.mxu0 %v8894
          %8993 = vmatprep.subr.bf16.mxu0 0
          %8994 = vmatpush1.bf16.msra.mxu0 %v8895
          %8995 = vmatprep.subr.bf16.mxu0 0
          %8996 = vmatpush1.bf16.msra.mxu0 %v8896
          %8997 = vmatprep.subr.bf16.mxu0 0
          %8998 = vmatpush1.bf16.msra.mxu0 %v8897
          %8999 = vmatprep.subr.bf16.mxu0 0
          %9000 = vmatpush1.bf16.msra.mxu0 %v8898
          %9001 = vmatprep.subr.bf16.mxu0 0
          %9002 = vmatpush1.bf16.msra.mxu0 %v8899
          %9003 = vmatprep.subr.bf16.mxu0 0
          %9004 = vmatpush1.bf16.msra.mxu0 %v8900
          %9005 = vmatprep.subr.bf16.mxu0 0
          %9006 = vmatpush1.bf16.msra.mxu0 %v8901
          %9007 = vmatprep.mubr.bf16.mxu0 %v8677
          %9008 = vmatmul.mubr.bf16.gmra.mrb[0].mxu0 %v8676
          %v9009 = vpop.f32.mrb[0].mxu0
          %v9010 = vadd.f32 %v8969, %v9009
          %v9011 = vpop.f32.mrb[0].mxu0
          %v9012 = vpop.f32.mrb[0].mxu0
          %v9013 = vadd.f32 %v8972, %v9012
          %v9014 = vpop.f32.mrb[0].mxu0
          %9015 = vdwg.mxu0
          %v9016 = vadd.f32 %v8265, %v9010
          %v9017 = vadd.f32 %v8266, %v9013
          %v9018 = vlaneseq
          %v9019 = vshrl.u32 %v9018, 7
          %v9020 = vsub.s32 7, %v9019
          %v9021 = vrot.slane %v5520, %v9020
          %v9022 = vadd.f32 %v9016, %v9021
          %v9023 = vadd.f32 %v9017, %v9021
          %9024 = vst [vmem:[#allocation3] sm:$0xff] %v9022
          %9025 = vst [vmem:[#allocation3 + $0x8] sm:$0xff] %v9023
        $region100: #{upt_context_perc_approximator.1} parent=91 // pred_fallthru
          _
        // Predicated region
        $region101: #{upt_context_perc_approximator.1} parent=91 // pred_check
          %p9026 = pneg %p456
        $region102: #{upt_context_perc_approximator.1} parent=91 // pred_check_branch
          %9028 = sbr.rel (%p9026) target = $region104
        $region103: #{upt_context_perc_approximator.1} parent=91 // pred_region
          %s9030 = ssub.s32 256, 256
          %9031 = vsyncadd [#allocation4], %s9030
          %s9032 = sshll.u32 [#allocation3], 4
          %s9033 = int_to_ptr.vmem [resolvable:$true] %s9032
          %9038 = dma.vmem_to_hbm [thread:$0]  %s9033, 256, %s18, [#allocation4], 128, 128, 8
        $region104: #{upt_context_perc_approximator.1} parent=91 // pred_fallthru
          _
        // Predicated region
        $region105: #{upt_context_perc_approximator.1} parent=91 // pred_check
          %p9039 = pneg %p456
        $region106: #{upt_context_perc_approximator.1} parent=91 // pred_check_branch
          %9041 = sbr.rel (%p9039) target = $region108
        $region107: #{upt_context_perc_approximator.1} parent=91 // pred_region
          %9042 = dma.done [#allocation4], 256
        $region108: #{upt_context_perc_approximator.1} parent=91 // pred_fallthru
          _
      $region92: #{upt_context_perc_approximator.1} parent=5 // pred_fallthru
        _
      %p9043 = scmp.le.s32.totalorder 2, %s25
      // Predicated region
      $region109: #{upt_context_perc_approximator.1} parent=5 // pred_check
        %p9044 = pneg %p9043
      $region110: #{upt_context_perc_approximator.1} parent=5 // pred_check_branch
        %9046 = sbr.rel (%p9044) target = $region112
      $region111: #{upt_context_perc_approximator.1} parent=5 // pred_region
        %s9047 = ssub.s32 %s25, 2
      $region112: #{upt_context_perc_approximator.1} parent=5 // pred_fallthru
        _
    $region6: #{upt_context_perc_approximator.1} parent=1 // loop_footer
      %s29 = sadd.s32 1, %s25
    $region7: #{upt_context_perc_approximator.1} parent=1 // loop_footer_branch
      %24 = sbr.rel target = $region3
    $region8: #{upt_context_perc_approximator.1} parent=1 // loop_exit
      _
    %9048 = vsyncpa [#allocation4], 1
    %s9049 = scalar_lea.sflag [#allocation4], 1
    %9050 = vsyncpa %s9049, 1

</llo_original>
